<compile_context>
chip_gen: v7x
topology: tpu7x:2x2x1
jax: 0.10.0
libtpu: 0.0.40
codegen_flags: <defaults>
</compile_context>

<pallas_src>
import jax
import jax.numpy as jnp
from jax.experimental import pallas as pl
from jax.experimental.pallas import tpu as pltpu

_LANES = 128


def _round_up(x, m):
    return (x + m - 1) // m * m


# ----------------------------- Pallas kernels ------------------------------ #

def _conv1_stats_kernel(x_ref, w_ref, b_ref, y_ref, s1_ref, s2_ref):
    """conv1 (3x3, pad=1 via pre-padded input) + bias for ONE image.

    Emits (a) the pre-BN conv output into an (H+2, W+2) slab whose trailing
    2 rows/cols are zero (so the next kernel's shifted 3x3 windows stay
    sublane-aligned), and (b) per-channel sum / sum-of-squares partials for
    the cross-image BatchNorm statistics.
    """
    hp, wp, cin = x_ref.shape[1], x_ref.shape[2], x_ref.shape[3]
    h, w = hp - 2, wp - 2
    cp = y_ref.shape[3]

    acc = jnp.zeros((h * w, cp), jnp.float32)
    for t in range(9):                      # unrolled 3x3 taps (in-kernel im2col)
        dy, dx = t // 3, t % 3
        win = x_ref[0, dy:dy + h, dx:dx + w, :]              # (h, w, cin) f32
        win = win.reshape(h * w, cin).astype(jnp.bfloat16)   # bf16 MXU operand
        acc = acc + jnp.dot(win, w_ref[t],
                            preferred_element_type=jnp.float32)
    acc = acc + b_ref[...]                                   # (h*w, cp)

    # BatchNorm partial statistics (finalized across images in the wrapper).
    s1_ref[0] = jnp.sum(acc, axis=0, keepdims=True)
    s2_ref[0] = jnp.sum(acc * acc, axis=0, keepdims=True)

    # Pre-BN conv1 output, real data at [0:h, 0:w], trailing border zeroed.
    y_ref[...] = jnp.zeros_like(y_ref)
    y_ref[:, 0:h, 0:w, :] = acc.reshape(1, h, w, cp)


def _bn_relu_conv2_relu_kernel(y_ref, scale_ref, shift_ref, w_ref, b_ref,
                               o_ref):
    """Fused BN-affine + ReLU + conv2 (3x3 valid) + bias + ReLU, ONE image."""
    hp, wp, cp = y_ref.shape[1], y_ref.shape[2], y_ref.shape[3]
    h, w = hp - 2, wp - 2
    ho, wo = h - 2, w - 2

    # BatchNorm affine + ReLU on the VPU at load time (never written to HBM).
    sc = scale_ref[...].reshape(1, 1, cp)
    sh = shift_ref[...].reshape(1, 1, cp)
    a = jnp.maximum(y_ref[0] * sc + sh, 0.0)                 # (hp, wp, cp) f32

    acc = jnp.zeros((h * w, cp), jnp.float32)
    for t in range(9):                      # unrolled 3x3 taps (in-kernel im2col)
        dy, dx = t // 3, t % 3
        win = a[dy:dy + h, dx:dx + w, :].reshape(h * w, cp)
        acc = acc + jnp.dot(win.astype(jnp.bfloat16), w_ref[t],
                            preferred_element_type=jnp.float32)
    acc = acc + b_ref[...]

    r = jnp.maximum(acc, 0.0).reshape(h, w, cp)
    # Keep only the 'valid' conv outputs (windows that never touched the
    # trailing zero border).
    o_ref[...] = r[0:ho, 0:wo, :].reshape(1, ho, wo, cp)


# --------------------------- pallas_call wrappers --------------------------- #

def _call_conv1(x_pad, w1p, b1p, cp):
    n, hp, wp, cin = x_pad.shape
    h, w = hp - 2, wp - 2
    flops = 2 * n * h * w * 9 * cin * cp
    bytes_accessed = (x_pad.size * 4 + w1p.size * 2
                      + n * hp * wp * cp * 4 + 2 * n * cp * 4)
    return pl.pallas_call(
        _conv1_stats_kernel,
        grid=(n,),
        in_specs=[
            pl.BlockSpec((1, hp, wp, cin), lambda i: (i, 0, 0, 0)),
            pl.BlockSpec((9, cin, cp), lambda i: (0, 0, 0)),   # resident weights
            pl.BlockSpec((1, cp), lambda i: (0, 0)),           # resident bias
        ],
        out_specs=(
            pl.BlockSpec((1, hp, wp, cp), lambda i: (i, 0, 0, 0)),
            pl.BlockSpec((1, 1, cp), lambda i: (i, 0, 0)),
            pl.BlockSpec((1, 1, cp), lambda i: (i, 0, 0)),
        ),
        out_shape=(
            jax.ShapeDtypeStruct((n, hp, wp, cp), jnp.float32),  # pre-BN conv1
            jax.ShapeDtypeStruct((n, 1, cp), jnp.float32),       # per-image sum
            jax.ShapeDtypeStruct((n, 1, cp), jnp.float32),       # per-image sumsq
        ),
        compiler_params=pltpu.CompilerParams(
            dimension_semantics=("parallel",),
            vmem_limit_bytes=32 * 1024 * 1024),
        cost_estimate=pl.CostEstimate(flops=flops, transcendentals=0,
                                      bytes_accessed=bytes_accessed),
    )(x_pad, w1p, b1p)


def _call_conv2(y1pad, scale, shift, w2p, b2p):
    n, hp, wp, cp = y1pad.shape
    h, w = hp - 2, wp - 2
    ho, wo = h - 2, w - 2
    flops = 2 * n * h * w * 9 * cp * cp
    bytes_accessed = (y1pad.size * 4 + w2p.size * 2
                      + n * ho * wo * cp * 4 + 4 * cp * 4)
    return pl.pallas_call(
        _bn_relu_conv2_relu_kernel,
        grid=(n,),
        in_specs=[
            pl.BlockSpec((1, hp, wp, cp), lambda i: (i, 0, 0, 0)),
            pl.BlockSpec((1, cp), lambda i: (0, 0)),           # BN scale
            pl.BlockSpec((1, cp), lambda i: (0, 0)),           # BN shift
            pl.BlockSpec((9, cp, cp), lambda i: (0, 0, 0)),    # resident weights
            pl.BlockSpec((1, cp), lambda i: (0, 0)),           # resident bias
        ],
        out_specs=pl.BlockSpec((1, ho, wo, cp), lambda i: (i, 0, 0, 0)),
        out_shape=jax.ShapeDtypeStruct((n, ho, wo, cp), jnp.float32),
        compiler_params=pltpu.CompilerParams(
            dimension_semantics=("parallel",),
            vmem_limit_bytes=32 * 1024 * 1024),
        cost_estimate=pl.CostEstimate(flops=flops, transcendentals=0,
                                      bytes_accessed=bytes_accessed),
    )(y1pad, scale, shift, w2p, b2p)


# ------------------------------- JAX wrapper -------------------------------- #

@jax.jit
def convblock_forward(x_nchw, params):
    """Forward pass of Convblock. x_nchw: (N, Cin, H, W) float32, NCHW."""
    w1, b1, gamma, beta, w2, b2 = params
    cin, cout = w1.shape[2], w1.shape[3]
    cp = _round_up(cout, _LANES)                     # lane-dense channel count

    n, _, h, w = x_nchw.shape

    # NCHW -> NHWC + spatial pad of 1 for conv1's padding=1.
    x = jnp.transpose(x_nchw, (0, 2, 3, 1)).astype(jnp.float32)
    x_pad = jnp.pad(x, ((0, 0), (1, 1), (1, 1), (0, 0)))

    # Channel-padded parameters; conv weights as bf16 MXU operands (HWIO,
    # flattened h-major then w, matching the in-kernel tap order).
    w1p = jnp.zeros((9, cin, cp), jnp.float32).at[:, :, :cout].set(
        w1.reshape(9, cin, cout)).astype(jnp.bfloat16)
    b1p = jnp.zeros((1, cp), jnp.float32).at[0, :cout].set(b1)
    w2p = jnp.zeros((9, cp, cp), jnp.float32).at[:, :cout, :cout].set(
        w2.reshape(9, cout, cout)).astype(jnp.bfloat16)
    b2p = jnp.zeros((1, cp), jnp.float32).at[0, :cout].set(b2)
    gp = jnp.zeros((1, cp), jnp.float32).at[0, :cout].set(gamma)
    bp = jnp.zeros((1, cp), jnp.float32).at[0, :cout].set(beta)

    # Pass 1: conv1 + bias, per-image BN partial sums (Pallas, grid over N).
    y1pad, s1, s2 = _call_conv1(x_pad, w1p, b1p, cp)

    # Finalize BatchNorm (training mode: batch mean, biased variance) into a
    # per-channel affine. Padded channels have gamma=0 -> scale=shift=0.
    cnt = float(n * h * w)
    mean = jnp.sum(s1, axis=0) / cnt                       # (1, cp)
    var = jnp.maximum(jnp.sum(s2, axis=0) / cnt - mean * mean, 0.0)
    inv = jax.lax.rsqrt(var + 1e-5)
    scale = gp * inv
    shift = bp - mean * scale

    # Pass 2: fused BN-affine + ReLU + conv2 (valid) + bias + ReLU.
    out_pad = _call_conv2(y1pad, scale, shift, w2p, b2p)

    # Drop channel padding, NHWC -> NCHW.
    return jnp.transpose(out_pad[..., :cout], (0, 3, 1, 2))


# Pure-JAX reference (sanity check).
def _reference(x_nchw, params):
    w1, b1, gamma, beta, w2, b2 = params
    dn = ('NCHW', 'HWIO', 'NCHW')
    y = jax.lax.conv_general_dilated(x_nchw, w1, (1, 1), ((1, 1), (1, 1)),
                                     dimension_numbers=dn)
    y = y + b1.reshape(1, -1, 1, 1)
    mean = y.mean(axis=(0, 2, 3), keepdims=True)
    var = ((y - mean) ** 2).mean(axis=(0, 2, 3), keepdims=True)
    y = (y - mean) / jnp.sqrt(var + 1e-5)
    y = y * gamma.reshape(1, -1, 1, 1) + beta.reshape(1, -1, 1, 1)
    y = jnp.maximum(y, 0.0)
    z = jax.lax.conv_general_dilated(y, w2, (1, 1), ((0, 0), (0, 0)),
                                     dimension_numbers=dn)
    z = z + b2.reshape(1, -1, 1, 1)
    return jnp.maximum(z, 0.0)


# ----------------------------------- main ----------------------------------- #

if __name__ == "__main__":
    N, CIN, COUT, H, W = 2, 4, 8, 16, 16

    key = jax.random.PRNGKey(0)
    kx, kw1, kb1, kg, kbt, kw2, kb2 = jax.random.split(key, 7)

    x = jax.random.normal(kx, (N, CIN, H, W), dtype=jnp.float32)

    # Deterministic synthetic parameters (HWIO conv weights).
    w1 = 0.1 * jax.random.normal(kw1, (3, 3, CIN, COUT), dtype=jnp.float32)
    b1 = 0.1 * jax.random.normal(kb1, (COUT,), dtype=jnp.float32)
    gamma = 1.0 + 0.1 * jax.random.normal(kg, (COUT,), dtype=jnp.float32)
    beta = 0.1 * jax.random.normal(kbt, (COUT,), dtype=jnp.float32)
    w2 = 0.1 * jax.random.normal(kw2, (3, 3, COUT, COUT), dtype=jnp.float32)
    b2 = 0.1 * jax.random.normal(kb2, (COUT,), dtype=jnp.float32)
    params = (w1, b1, gamma, beta, w2, b2)

    out = jax.block_until_ready(convblock_forward(x, params))
    assert out.shape == (N, COUT, H - 2, W - 2), out.shape

    ref = jax.block_until_ready(_reference(x, params))
    # Tolerance loosened vs a pure-f32 implementation because matmul operands
    # are cast to bf16 for the MXU (accumulation is f32).
    max_err = float(jnp.max(jnp.abs(out - ref)))
    assert jnp.allclose(out, ref, atol=5e-2, rtol=5e-2), max_err

    print("KERNEL_OK")
</pallas_src>

<mosaic_0001>
module attributes {stable_mosaic.version = 11 : i64} {
  func.func @_conv1_stats_kernel(%arg0: i32, %arg1: memref<1x18x18x4xf32, #tpu.memory_space<vmem>>, %arg2: memref<9x4x128xbf16, #tpu.memory_space<vmem>>, %arg3: memref<1x128xf32, #tpu.memory_space<vmem>>, %arg4: memref<1x18x18x128xf32, #tpu.memory_space<vmem>>, %arg5: memref<1x1x128xf32, #tpu.memory_space<vmem>>, %arg6: memref<1x1x128xf32, #tpu.memory_space<vmem>>) attributes {dimension_semantics = [#tpu.dimension_semantics<parallel>], iteration_bounds = array<i64: 2>, scalar_prefetch = 0 : i64, scratch_operands = 0 : i64, tpu.core_type = #tpu.core_type<tc>, window_params = [{transform_indices = @transform_0, window_bounds = array<i64: 1, 18, 18, 4>}, {pipeline_mode = #tpu.pipeline_mode<synchronous>, transform_indices = @transform_1, window_bounds = array<i64: 9, 4, 128>}, {pipeline_mode = #tpu.pipeline_mode<synchronous>, transform_indices = @transform_2, window_bounds = array<i64: 1, 128>}, {transform_indices = @transform_3, window_bounds = array<i64: 1, 18, 18, 128>}, {transform_indices = @transform_4, window_bounds = array<i64: 1, 1, 128>}, {transform_indices = @transform_5, window_bounds = array<i64: 1, 1, 128>}]} {
    %cst = arith.constant 0.000000e+00 : f32
    %0 = vector.broadcast %cst : f32 to vector<256x128xf32>
    %c0 = arith.constant 0 : index
    %c0_0 = arith.constant 0 : index
    %c0_1 = arith.constant 0 : index
    %c0_2 = arith.constant 0 : index
    %1 = vector.load %arg1[%c0, %c0_0, %c0_1, %c0_2] : memref<1x18x18x4xf32, #tpu.memory_space<vmem>>, vector<1x16x16x4xf32>
    %2 = vector.shape_cast %1 : vector<1x16x16x4xf32> to vector<16x16x4xf32>
    %3 = vector.shape_cast %2 : vector<16x16x4xf32> to vector<256x4xf32>
    %4 = arith.truncf %3 : vector<256x4xf32> to vector<256x4xbf16>
    %c0_3 = arith.constant 0 : index
    %c0_4 = arith.constant 0 : index
    %c0_5 = arith.constant 0 : index
    %5 = vector.load %arg2[%c0_3, %c0_4, %c0_5] : memref<9x4x128xbf16, #tpu.memory_space<vmem>>, vector<1x4x128xbf16>
    %6 = vector.shape_cast %5 : vector<1x4x128xbf16> to vector<4x128xbf16>
    %cst_6 = arith.constant dense<0.000000e+00> : vector<256x128xf32>
    %7 = tpu.matmul %4, %6, %cst_6 {dimension_numbers = #tpu.dot_dimension_numbers<[1], [0], [0], [1], [0, 0, 1, 1], [], []>} : vector<256x4xbf16>, vector<4x128xbf16>, vector<256x128xf32> -> vector<256x128xf32>
    %8 = arith.addf %0, %7 : vector<256x128xf32>
    %c0_7 = arith.constant 0 : index
    %c0_8 = arith.constant 0 : index
    %c1 = arith.constant 1 : index
    %c0_9 = arith.constant 0 : index
    %9 = vector.load %arg1[%c0_7, %c0_8, %c1, %c0_9] : memref<1x18x18x4xf32, #tpu.memory_space<vmem>>, vector<1x16x16x4xf32>
    %10 = vector.shape_cast %9 : vector<1x16x16x4xf32> to vector<16x16x4xf32>
    %11 = vector.shape_cast %10 : vector<16x16x4xf32> to vector<256x4xf32>
    %12 = arith.truncf %11 : vector<256x4xf32> to vector<256x4xbf16>
    %c1_10 = arith.constant 1 : index
    %c0_11 = arith.constant 0 : index
    %c0_12 = arith.constant 0 : index
    %13 = vector.load %arg2[%c1_10, %c0_11, %c0_12] : memref<9x4x128xbf16, #tpu.memory_space<vmem>>, vector<1x4x128xbf16>
    %14 = vector.shape_cast %13 : vector<1x4x128xbf16> to vector<4x128xbf16>
    %cst_13 = arith.constant dense<0.000000e+00> : vector<256x128xf32>
    %15 = tpu.matmul %12, %14, %cst_13 {dimension_numbers = #tpu.dot_dimension_numbers<[1], [0], [0], [1], [0, 0, 1, 1], [], []>} : vector<256x4xbf16>, vector<4x128xbf16>, vector<256x128xf32> -> vector<256x128xf32>
    %16 = arith.addf %8, %15 : vector<256x128xf32>
    %c0_14 = arith.constant 0 : index
    %c0_15 = arith.constant 0 : index
    %c2 = arith.constant 2 : index
    %c0_16 = arith.constant 0 : index
    %17 = vector.load %arg1[%c0_14, %c0_15, %c2, %c0_16] : memref<1x18x18x4xf32, #tpu.memory_space<vmem>>, vector<1x16x16x4xf32>
    %18 = vector.shape_cast %17 : vector<1x16x16x4xf32> to vector<16x16x4xf32>
    %19 = vector.shape_cast %18 : vector<16x16x4xf32> to vector<256x4xf32>
    %20 = arith.truncf %19 : vector<256x4xf32> to vector<256x4xbf16>
    %c2_17 = arith.constant 2 : index
    %c0_18 = arith.constant 0 : index
    %c0_19 = arith.constant 0 : index
    %21 = vector.load %arg2[%c2_17, %c0_18, %c0_19] : memref<9x4x128xbf16, #tpu.memory_space<vmem>>, vector<1x4x128xbf16>
    %22 = vector.shape_cast %21 : vector<1x4x128xbf16> to vector<4x128xbf16>
    %cst_20 = arith.constant dense<0.000000e+00> : vector<256x128xf32>
    %23 = tpu.matmul %20, %22, %cst_20 {dimension_numbers = #tpu.dot_dimension_numbers<[1], [0], [0], [1], [0, 0, 1, 1], [], []>} : vector<256x4xbf16>, vector<4x128xbf16>, vector<256x128xf32> -> vector<256x128xf32>
    %24 = arith.addf %16, %23 : vector<256x128xf32>
    %c0_21 = arith.constant 0 : index
    %c1_22 = arith.constant 1 : index
    %c0_23 = arith.constant 0 : index
    %c0_24 = arith.constant 0 : index
    %25 = vector.load %arg1[%c0_21, %c1_22, %c0_23, %c0_24] : memref<1x18x18x4xf32, #tpu.memory_space<vmem>>, vector<1x16x16x4xf32>
    %26 = vector.shape_cast %25 : vector<1x16x16x4xf32> to vector<16x16x4xf32>
    %27 = vector.shape_cast %26 : vector<16x16x4xf32> to vector<256x4xf32>
    %28 = arith.truncf %27 : vector<256x4xf32> to vector<256x4xbf16>
    %c3 = arith.constant 3 : index
    %c0_25 = arith.constant 0 : index
    %c0_26 = arith.constant 0 : index
    %29 = vector.load %arg2[%c3, %c0_25, %c0_26] : memref<9x4x128xbf16, #tpu.memory_space<vmem>>, vector<1x4x128xbf16>
    %30 = vector.shape_cast %29 : vector<1x4x128xbf16> to vector<4x128xbf16>
    %cst_27 = arith.constant dense<0.000000e+00> : vector<256x128xf32>
    %31 = tpu.matmul %28, %30, %cst_27 {dimension_numbers = #tpu.dot_dimension_numbers<[1], [0], [0], [1], [0, 0, 1, 1], [], []>} : vector<256x4xbf16>, vector<4x128xbf16>, vector<256x128xf32> -> vector<256x128xf32>
    %32 = arith.addf %24, %31 : vector<256x128xf32>
    %c0_28 = arith.constant 0 : index
    %c1_29 = arith.constant 1 : index
    %c1_30 = arith.constant 1 : index
    %c0_31 = arith.constant 0 : index
    %33 = vector.load %arg1[%c0_28, %c1_29, %c1_30, %c0_31] : memref<1x18x18x4xf32, #tpu.memory_space<vmem>>, vector<1x16x16x4xf32>
    %34 = vector.shape_cast %33 : vector<1x16x16x4xf32> to vector<16x16x4xf32>
    %35 = vector.shape_cast %34 : vector<16x16x4xf32> to vector<256x4xf32>
    %36 = arith.truncf %35 : vector<256x4xf32> to vector<256x4xbf16>
    %c4 = arith.constant 4 : index
    %c0_32 = arith.constant 0 : index
    %c0_33 = arith.constant 0 : index
    %37 = vector.load %arg2[%c4, %c0_32, %c0_33] : memref<9x4x128xbf16, #tpu.memory_space<vmem>>, vector<1x4x128xbf16>
    %38 = vector.shape_cast %37 : vector<1x4x128xbf16> to vector<4x128xbf16>
    %cst_34 = arith.constant dense<0.000000e+00> : vector<256x128xf32>
    %39 = tpu.matmul %36, %38, %cst_34 {dimension_numbers = #tpu.dot_dimension_numbers<[1], [0], [0], [1], [0, 0, 1, 1], [], []>} : vector<256x4xbf16>, vector<4x128xbf16>, vector<256x128xf32> -> vector<256x128xf32>
    %40 = arith.addf %32, %39 : vector<256x128xf32>
    %c0_35 = arith.constant 0 : index
    %c1_36 = arith.constant 1 : index
    %c2_37 = arith.constant 2 : index
    %c0_38 = arith.constant 0 : index
    %41 = vector.load %arg1[%c0_35, %c1_36, %c2_37, %c0_38] : memref<1x18x18x4xf32, #tpu.memory_space<vmem>>, vector<1x16x16x4xf32>
    %42 = vector.shape_cast %41 : vector<1x16x16x4xf32> to vector<16x16x4xf32>
    %43 = vector.shape_cast %42 : vector<16x16x4xf32> to vector<256x4xf32>
    %44 = arith.truncf %43 : vector<256x4xf32> to vector<256x4xbf16>
    %c5 = arith.constant 5 : index
    %c0_39 = arith.constant 0 : index
    %c0_40 = arith.constant 0 : index
    %45 = vector.load %arg2[%c5, %c0_39, %c0_40] : memref<9x4x128xbf16, #tpu.memory_space<vmem>>, vector<1x4x128xbf16>
    %46 = vector.shape_cast %45 : vector<1x4x128xbf16> to vector<4x128xbf16>
    %cst_41 = arith.constant dense<0.000000e+00> : vector<256x128xf32>
    %47 = tpu.matmul %44, %46, %cst_41 {dimension_numbers = #tpu.dot_dimension_numbers<[1], [0], [0], [1], [0, 0, 1, 1], [], []>} : vector<256x4xbf16>, vector<4x128xbf16>, vector<256x128xf32> -> vector<256x128xf32>
    %48 = arith.addf %40, %47 : vector<256x128xf32>
    %c0_42 = arith.constant 0 : index
    %c2_43 = arith.constant 2 : index
    %c0_44 = arith.constant 0 : index
    %c0_45 = arith.constant 0 : index
    %49 = vector.load %arg1[%c0_42, %c2_43, %c0_44, %c0_45] : memref<1x18x18x4xf32, #tpu.memory_space<vmem>>, vector<1x16x16x4xf32>
    %50 = vector.shape_cast %49 : vector<1x16x16x4xf32> to vector<16x16x4xf32>
    %51 = vector.shape_cast %50 : vector<16x16x4xf32> to vector<256x4xf32>
    %52 = arith.truncf %51 : vector<256x4xf32> to vector<256x4xbf16>
    %c6 = arith.constant 6 : index
    %c0_46 = arith.constant 0 : index
    %c0_47 = arith.constant 0 : index
    %53 = vector.load %arg2[%c6, %c0_46, %c0_47] : memref<9x4x128xbf16, #tpu.memory_space<vmem>>, vector<1x4x128xbf16>
    %54 = vector.shape_cast %53 : vector<1x4x128xbf16> to vector<4x128xbf16>
    %cst_48 = arith.constant dense<0.000000e+00> : vector<256x128xf32>
    %55 = tpu.matmul %52, %54, %cst_48 {dimension_numbers = #tpu.dot_dimension_numbers<[1], [0], [0], [1], [0, 0, 1, 1], [], []>} : vector<256x4xbf16>, vector<4x128xbf16>, vector<256x128xf32> -> vector<256x128xf32>
    %56 = arith.addf %48, %55 : vector<256x128xf32>
    %c0_49 = arith.constant 0 : index
    %c2_50 = arith.constant 2 : index
    %c1_51 = arith.constant 1 : index
    %c0_52 = arith.constant 0 : index
    %57 = vector.load %arg1[%c0_49, %c2_50, %c1_51, %c0_52] : memref<1x18x18x4xf32, #tpu.memory_space<vmem>>, vector<1x16x16x4xf32>
    %58 = vector.shape_cast %57 : vector<1x16x16x4xf32> to vector<16x16x4xf32>
    %59 = vector.shape_cast %58 : vector<16x16x4xf32> to vector<256x4xf32>
    %60 = arith.truncf %59 : vector<256x4xf32> to vector<256x4xbf16>
    %c7 = arith.constant 7 : index
    %c0_53 = arith.constant 0 : index
    %c0_54 = arith.constant 0 : index
    %61 = vector.load %arg2[%c7, %c0_53, %c0_54] : memref<9x4x128xbf16, #tpu.memory_space<vmem>>, vector<1x4x128xbf16>
    %62 = vector.shape_cast %61 : vector<1x4x128xbf16> to vector<4x128xbf16>
    %cst_55 = arith.constant dense<0.000000e+00> : vector<256x128xf32>
    %63 = tpu.matmul %60, %62, %cst_55 {dimension_numbers = #tpu.dot_dimension_numbers<[1], [0], [0], [1], [0, 0, 1, 1], [], []>} : vector<256x4xbf16>, vector<4x128xbf16>, vector<256x128xf32> -> vector<256x128xf32>
    %64 = arith.addf %56, %63 : vector<256x128xf32>
    %c0_56 = arith.constant 0 : index
    %c2_57 = arith.constant 2 : index
    %c2_58 = arith.constant 2 : index
    %c0_59 = arith.constant 0 : index
    %65 = vector.load %arg1[%c0_56, %c2_57, %c2_58, %c0_59] : memref<1x18x18x4xf32, #tpu.memory_space<vmem>>, vector<1x16x16x4xf32>
    %66 = vector.shape_cast %65 : vector<1x16x16x4xf32> to vector<16x16x4xf32>
    %67 = vector.shape_cast %66 : vector<16x16x4xf32> to vector<256x4xf32>
    %68 = arith.truncf %67 : vector<256x4xf32> to vector<256x4xbf16>
    %c8 = arith.constant 8 : index
    %c0_60 = arith.constant 0 : index
    %c0_61 = arith.constant 0 : index
    %69 = vector.load %arg2[%c8, %c0_60, %c0_61] : memref<9x4x128xbf16, #tpu.memory_space<vmem>>, vector<1x4x128xbf16>
    %70 = vector.shape_cast %69 : vector<1x4x128xbf16> to vector<4x128xbf16>
    %cst_62 = arith.constant dense<0.000000e+00> : vector<256x128xf32>
    %71 = tpu.matmul %68, %70, %cst_62 {dimension_numbers = #tpu.dot_dimension_numbers<[1], [0], [0], [1], [0, 0, 1, 1], [], []>} : vector<256x4xbf16>, vector<4x128xbf16>, vector<256x128xf32> -> vector<256x128xf32>
    %72 = arith.addf %64, %71 : vector<256x128xf32>
    %c0_63 = arith.constant 0 : index
    %c0_64 = arith.constant 0 : index
    %73 = vector.load %arg3[%c0_63, %c0_64] : memref<1x128xf32, #tpu.memory_space<vmem>>, vector<1x128xf32>
    %74 = vector.broadcast %73 : vector<1x128xf32> to vector<256x128xf32>
    %75 = arith.addf %72, %74 : vector<256x128xf32>
    %cst_65 = arith.constant dense<0.000000e+00> : vector<128xf32>
    %76 = vector.multi_reduction <add>, %75, %cst_65 [0] : vector<256x128xf32> to vector<128xf32>
    %77 = vector.shape_cast %76 : vector<128xf32> to vector<1x128xf32>
    %c0_66 = arith.constant 0 : index
    %c0_67 = arith.constant 0 : index
    %c0_68 = arith.constant 0 : index
    %78 = vector.load %arg5[%c0_66, %c0_67, %c0_68] : memref<1x1x128xf32, #tpu.memory_space<vmem>>, vector<1x1x128xf32>
    %79 = vector.shape_cast %78 : vector<1x1x128xf32> to vector<1x128xf32>
    %80 = vector.shape_cast %77 : vector<1x128xf32> to vector<1x1x128xf32>
    tpu.vector_store %arg5[%c0_66, %c0_67, %c0_68], %80 {strides = array<i32>} : memref<1x1x128xf32, #tpu.memory_space<vmem>>, vector<1x1x128xf32>,
    %81 = arith.mulf %75, %75 : vector<256x128xf32>
    %cst_69 = arith.constant dense<0.000000e+00> : vector<128xf32>
    %82 = vector.multi_reduction <add>, %81, %cst_69 [0] : vector<256x128xf32> to vector<128xf32>
    %83 = vector.shape_cast %82 : vector<128xf32> to vector<1x128xf32>
    %c0_70 = arith.constant 0 : index
    %c0_71 = arith.constant 0 : index
    %c0_72 = arith.constant 0 : index
    %84 = vector.load %arg6[%c0_70, %c0_71, %c0_72] : memref<1x1x128xf32, #tpu.memory_space<vmem>>, vector<1x1x128xf32>
    %85 = vector.shape_cast %84 : vector<1x1x128xf32> to vector<1x128xf32>
    %86 = vector.shape_cast %83 : vector<1x128xf32> to vector<1x1x128xf32>
    tpu.vector_store %arg6[%c0_70, %c0_71, %c0_72], %86 {strides = array<i32>} : memref<1x1x128xf32, #tpu.memory_space<vmem>>, vector<1x1x128xf32>,
    %cst_73 = arith.constant 0.000000e+00 : f32
    %87 = vector.broadcast %cst_73 : f32 to vector<1x18x18x128xf32>
    %c0_74 = arith.constant 0 : index
    %c0_75 = arith.constant 0 : index
    %c0_76 = arith.constant 0 : index
    %c0_77 = arith.constant 0 : index
    %88 = vector.load %arg4[%c0_74, %c0_75, %c0_76, %c0_77] : memref<1x18x18x128xf32, #tpu.memory_space<vmem>>, vector<1x18x18x128xf32>
    tpu.vector_store %arg4[%c0_74, %c0_75, %c0_76, %c0_77], %87 {strides = array<i32>} : memref<1x18x18x128xf32, #tpu.memory_space<vmem>>, vector<1x18x18x128xf32>,
    %89 = vector.shape_cast %75 : vector<256x128xf32> to vector<1x16x16x128xf32>
    %c0_78 = arith.constant 0 : index
    %c0_79 = arith.constant 0 : index
    %c0_80 = arith.constant 0 : index
    %c0_81 = arith.constant 0 : index
    %90 = vector.load %arg4[%c0_78, %c0_79, %c0_80, %c0_81] : memref<1x18x18x128xf32, #tpu.memory_space<vmem>>, vector<1x16x16x128xf32>
    tpu.vector_store %arg4[%c0_78, %c0_79, %c0_80, %c0_81], %89 {strides = array<i32>} : memref<1x18x18x128xf32, #tpu.memory_space<vmem>>, vector<1x16x16x128xf32>,
    return
  }
  func.func @transform_0(%arg0: i32) -> (i32, i32, i32, i32) {
    %c0_i32 = arith.constant 0 : i32
    %c0_i32_0 = arith.constant 0 : i32
    %c0_i32_1 = arith.constant 0 : i32
    %c0_i32_2 = arith.constant 0 : i32
    return %arg0, %c0_i32, %c0_i32_0, %c0_i32_1 : i32, i32, i32, i32
  }
  func.func @transform_1(%arg0: i32) -> (i32, i32, i32) {
    %c0_i32 = arith.constant 0 : i32
    %c0_i32_0 = arith.constant 0 : i32
    %c0_i32_1 = arith.constant 0 : i32
    %c0_i32_2 = arith.constant 0 : i32
    return %c0_i32, %c0_i32_0, %c0_i32_1 : i32, i32, i32
  }
  func.func @transform_2(%arg0: i32) -> (i32, i32) {
    %c0_i32 = arith.constant 0 : i32
    %c0_i32_0 = arith.constant 0 : i32
    %c0_i32_1 = arith.constant 0 : i32
    return %c0_i32, %c0_i32_0 : i32, i32
  }
  func.func @transform_3(%arg0: i32) -> (i32, i32, i32, i32) {
    %c0_i32 = arith.constant 0 : i32
    %c0_i32_0 = arith.constant 0 : i32
    %c0_i32_1 = arith.constant 0 : i32
    %c0_i32_2 = arith.constant 0 : i32
    return %arg0, %c0_i32, %c0_i32_0, %c0_i32_1 : i32, i32, i32, i32
  }
  func.func @transform_4(%arg0: i32) -> (i32, i32, i32) {
    %c0_i32 = arith.constant 0 : i32
    %c0_i32_0 = arith.constant 0 : i32
    %c0_i32_1 = arith.constant 0 : i32
    return %arg0, %c0_i32, %c0_i32_0 : i32, i32, i32
  }
  func.func @transform_5(%arg0: i32) -> (i32, i32, i32) {
    %c0_i32 = arith.constant 0 : i32
    %c0_i32_0 = arith.constant 0 : i32
    %c0_i32_1 = arith.constant 0 : i32
    return %arg0, %c0_i32, %c0_i32_0 : i32, i32, i32
  }
}

module attributes {stable_mosaic.version = 11 : i64} {
  func.func @_bn_relu_conv2_relu_kernel(%arg0: i32, %arg1: memref<1x18x18x128xf32, #tpu.memory_space<vmem>>, %arg2: memref<1x128xf32, #tpu.memory_space<vmem>>, %arg3: memref<1x128xf32, #tpu.memory_space<vmem>>, %arg4: memref<9x128x128xbf16, #tpu.memory_space<vmem>>, %arg5: memref<1x128xf32, #tpu.memory_space<vmem>>, %arg6: memref<1x14x14x128xf32, #tpu.memory_space<vmem>>) attributes {dimension_semantics = [#tpu.dimension_semantics<parallel>], iteration_bounds = array<i64: 2>, scalar_prefetch = 0 : i64, scratch_operands = 0 : i64, tpu.core_type = #tpu.core_type<tc>, window_params = [{transform_indices = @transform_0, window_bounds = array<i64: 1, 18, 18, 128>}, {pipeline_mode = #tpu.pipeline_mode<synchronous>, transform_indices = @transform_1, window_bounds = array<i64: 1, 128>}, {pipeline_mode = #tpu.pipeline_mode<synchronous>, transform_indices = @transform_2, window_bounds = array<i64: 1, 128>}, {pipeline_mode = #tpu.pipeline_mode<synchronous>, transform_indices = @transform_3, window_bounds = array<i64: 9, 128, 128>}, {pipeline_mode = #tpu.pipeline_mode<synchronous>, transform_indices = @transform_4, window_bounds = array<i64: 1, 128>}, {transform_indices = @transform_5, window_bounds = array<i64: 1, 14, 14, 128>}]} {
    %c0 = arith.constant 0 : index
    %c0_0 = arith.constant 0 : index
    %0 = vector.load %arg2[%c0, %c0_0] : memref<1x128xf32, #tpu.memory_space<vmem>>, vector<1x128xf32>
    %1 = vector.shape_cast %0 : vector<1x128xf32> to vector<1x1x128xf32>
    %c0_1 = arith.constant 0 : index
    %c0_2 = arith.constant 0 : index
    %2 = vector.load %arg3[%c0_1, %c0_2] : memref<1x128xf32, #tpu.memory_space<vmem>>, vector<1x128xf32>
    %3 = vector.shape_cast %2 : vector<1x128xf32> to vector<1x1x128xf32>
    %c0_3 = arith.constant 0 : index
    %c0_4 = arith.constant 0 : index
    %c0_5 = arith.constant 0 : index
    %c0_6 = arith.constant 0 : index
    %4 = vector.load %arg1[%c0_3, %c0_4, %c0_5, %c0_6] : memref<1x18x18x128xf32, #tpu.memory_space<vmem>>, vector<1x18x18x128xf32>
    %5 = vector.shape_cast %4 : vector<1x18x18x128xf32> to vector<18x18x128xf32>
    %6 = vector.broadcast %1 : vector<1x1x128xf32> to vector<18x18x128xf32>
    %7 = arith.mulf %5, %6 : vector<18x18x128xf32>
    %8 = vector.broadcast %3 : vector<1x1x128xf32> to vector<18x18x128xf32>
    %9 = arith.addf %7, %8 : vector<18x18x128xf32>
    %cst = arith.constant 0.000000e+00 : f32
    %10 = vector.broadcast %cst : f32 to vector<18x18x128xf32>
    %11 = arith.maximumf %9, %10 : vector<18x18x128xf32>
    %cst_7 = arith.constant 0.000000e+00 : f32
    %12 = vector.broadcast %cst_7 : f32 to vector<256x128xf32>
    %13 = vector.extract_strided_slice %11 {offsets = [0, 0, 0], sizes = [16, 16, 128], strides = [1, 1, 1]} : vector<18x18x128xf32> to vector<16x16x128xf32>
    %14 = vector.shape_cast %13 : vector<16x16x128xf32> to vector<256x128xf32>
    %15 = arith.truncf %14 : vector<256x128xf32> to vector<256x128xbf16>
    %c0_8 = arith.constant 0 : index
    %c0_9 = arith.constant 0 : index
    %c0_10 = arith.constant 0 : index
    %16 = vector.load %arg4[%c0_8, %c0_9, %c0_10] : memref<9x128x128xbf16, #tpu.memory_space<vmem>>, vector<1x128x128xbf16>
    %17 = vector.shape_cast %16 : vector<1x128x128xbf16> to vector<128x128xbf16>
    %cst_11 = arith.constant dense<0.000000e+00> : vector<256x128xf32>
    %18 = tpu.matmul %15, %17, %cst_11 {dimension_numbers = #tpu.dot_dimension_numbers<[1], [0], [0], [1], [0, 0, 1, 1], [], []>} : vector<256x128xbf16>, vector<128x128xbf16>, vector<256x128xf32> -> vector<256x128xf32>
    %19 = arith.addf %12, %18 : vector<256x128xf32>
    %20 = vector.extract_strided_slice %11 {offsets = [0, 1, 0], sizes = [16, 16, 128], strides = [1, 1, 1]} : vector<18x18x128xf32> to vector<16x16x128xf32>
    %21 = vector.shape_cast %20 : vector<16x16x128xf32> to vector<256x128xf32>
    %22 = arith.truncf %21 : vector<256x128xf32> to vector<256x128xbf16>
    %c1 = arith.constant 1 : index
    %c0_12 = arith.constant 0 : index
    %c0_13 = arith.constant 0 : index
    %23 = vector.load %arg4[%c1, %c0_12, %c0_13] : memref<9x128x128xbf16, #tpu.memory_space<vmem>>, vector<1x128x128xbf16>
    %24 = vector.shape_cast %23 : vector<1x128x128xbf16> to vector<128x128xbf16>
    %cst_14 = arith.constant dense<0.000000e+00> : vector<256x128xf32>
    %25 = tpu.matmul %22, %24, %cst_14 {dimension_numbers = #tpu.dot_dimension_numbers<[1], [0], [0], [1], [0, 0, 1, 1], [], []>} : vector<256x128xbf16>, vector<128x128xbf16>, vector<256x128xf32> -> vector<256x128xf32>
    %26 = arith.addf %19, %25 : vector<256x128xf32>
    %27 = vector.extract_strided_slice %11 {offsets = [0, 2, 0], sizes = [16, 16, 128], strides = [1, 1, 1]} : vector<18x18x128xf32> to vector<16x16x128xf32>
    %28 = vector.shape_cast %27 : vector<16x16x128xf32> to vector<256x128xf32>
    %29 = arith.truncf %28 : vector<256x128xf32> to vector<256x128xbf16>
    %c2 = arith.constant 2 : index
    %c0_15 = arith.constant 0 : index
    %c0_16 = arith.constant 0 : index
    %30 = vector.load %arg4[%c2, %c0_15, %c0_16] : memref<9x128x128xbf16, #tpu.memory_space<vmem>>, vector<1x128x128xbf16>
    %31 = vector.shape_cast %30 : vector<1x128x128xbf16> to vector<128x128xbf16>
    %cst_17 = arith.constant dense<0.000000e+00> : vector<256x128xf32>
    %32 = tpu.matmul %29, %31, %cst_17 {dimension_numbers = #tpu.dot_dimension_numbers<[1], [0], [0], [1], [0, 0, 1, 1], [], []>} : vector<256x128xbf16>, vector<128x128xbf16>, vector<256x128xf32> -> vector<256x128xf32>
    %33 = arith.addf %26, %32 : vector<256x128xf32>
    %34 = vector.extract_strided_slice %11 {offsets = [1, 0, 0], sizes = [16, 16, 128], strides = [1, 1, 1]} : vector<18x18x128xf32> to vector<16x16x128xf32>
    %35 = vector.shape_cast %34 : vector<16x16x128xf32> to vector<256x128xf32>
    %36 = arith.truncf %35 : vector<256x128xf32> to vector<256x128xbf16>
    %c3 = arith.constant 3 : index
    %c0_18 = arith.constant 0 : index
    %c0_19 = arith.constant 0 : index
    %37 = vector.load %arg4[%c3, %c0_18, %c0_19] : memref<9x128x128xbf16, #tpu.memory_space<vmem>>, vector<1x128x128xbf16>
    %38 = vector.shape_cast %37 : vector<1x128x128xbf16> to vector<128x128xbf16>
    %cst_20 = arith.constant dense<0.000000e+00> : vector<256x128xf32>
    %39 = tpu.matmul %36, %38, %cst_20 {dimension_numbers = #tpu.dot_dimension_numbers<[1], [0], [0], [1], [0, 0, 1, 1], [], []>} : vector<256x128xbf16>, vector<128x128xbf16>, vector<256x128xf32> -> vector<256x128xf32>
    %40 = arith.addf %33, %39 : vector<256x128xf32>
    %41 = vector.extract_strided_slice %11 {offsets = [1, 1, 0], sizes = [16, 16, 128], strides = [1, 1, 1]} : vector<18x18x128xf32> to vector<16x16x128xf32>
    %42 = vector.shape_cast %41 : vector<16x16x128xf32> to vector<256x128xf32>
    %43 = arith.truncf %42 : vector<256x128xf32> to vector<256x128xbf16>
    %c4 = arith.constant 4 : index
    %c0_21 = arith.constant 0 : index
    %c0_22 = arith.constant 0 : index
    %44 = vector.load %arg4[%c4, %c0_21, %c0_22] : memref<9x128x128xbf16, #tpu.memory_space<vmem>>, vector<1x128x128xbf16>
    %45 = vector.shape_cast %44 : vector<1x128x128xbf16> to vector<128x128xbf16>
    %cst_23 = arith.constant dense<0.000000e+00> : vector<256x128xf32>
    %46 = tpu.matmul %43, %45, %cst_23 {dimension_numbers = #tpu.dot_dimension_numbers<[1], [0], [0], [1], [0, 0, 1, 1], [], []>} : vector<256x128xbf16>, vector<128x128xbf16>, vector<256x128xf32> -> vector<256x128xf32>
    %47 = arith.addf %40, %46 : vector<256x128xf32>
    %48 = vector.extract_strided_slice %11 {offsets = [1, 2, 0], sizes = [16, 16, 128], strides = [1, 1, 1]} : vector<18x18x128xf32> to vector<16x16x128xf32>
    %49 = vector.shape_cast %48 : vector<16x16x128xf32> to vector<256x128xf32>
    %50 = arith.truncf %49 : vector<256x128xf32> to vector<256x128xbf16>
    %c5 = arith.constant 5 : index
    %c0_24 = arith.constant 0 : index
    %c0_25 = arith.constant 0 : index
    %51 = vector.load %arg4[%c5, %c0_24, %c0_25] : memref<9x128x128xbf16, #tpu.memory_space<vmem>>, vector<1x128x128xbf16>
    %52 = vector.shape_cast %51 : vector<1x128x128xbf16> to vector<128x128xbf16>
    %cst_26 = arith.constant dense<0.000000e+00> : vector<256x128xf32>
    %53 = tpu.matmul %50, %52, %cst_26 {dimension_numbers = #tpu.dot_dimension_numbers<[1], [0], [0], [1], [0, 0, 1, 1], [], []>} : vector<256x128xbf16>, vector<128x128xbf16>, vector<256x128xf32> -> vector<256x128xf32>
    %54 = arith.addf %47, %53 : vector<256x128xf32>
    %55 = vector.extract_strided_slice %11 {offsets = [2, 0, 0], sizes = [16, 16, 128], strides = [1, 1, 1]} : vector<18x18x128xf32> to vector<16x16x128xf32>
    %56 = vector.shape_cast %55 : vector<16x16x128xf32> to vector<256x128xf32>
    %57 = arith.truncf %56 : vector<256x128xf32> to vector<256x128xbf16>
    %c6 = arith.constant 6 : index
    %c0_27 = arith.constant 0 : index
    %c0_28 = arith.constant 0 : index
    %58 = vector.load %arg4[%c6, %c0_27, %c0_28] : memref<9x128x128xbf16, #tpu.memory_space<vmem>>, vector<1x128x128xbf16>
    %59 = vector.shape_cast %58 : vector<1x128x128xbf16> to vector<128x128xbf16>
    %cst_29 = arith.constant dense<0.000000e+00> : vector<256x128xf32>
    %60 = tpu.matmul %57, %59, %cst_29 {dimension_numbers = #tpu.dot_dimension_numbers<[1], [0], [0], [1], [0, 0, 1, 1], [], []>} : vector<256x128xbf16>, vector<128x128xbf16>, vector<256x128xf32> -> vector<256x128xf32>
    %61 = arith.addf %54, %60 : vector<256x128xf32>
    %62 = vector.extract_strided_slice %11 {offsets = [2, 1, 0], sizes = [16, 16, 128], strides = [1, 1, 1]} : vector<18x18x128xf32> to vector<16x16x128xf32>
    %63 = vector.shape_cast %62 : vector<16x16x128xf32> to vector<256x128xf32>
    %64 = arith.truncf %63 : vector<256x128xf32> to vector<256x128xbf16>
    %c7 = arith.constant 7 : index
    %c0_30 = arith.constant 0 : index
    %c0_31 = arith.constant 0 : index
    %65 = vector.load %arg4[%c7, %c0_30, %c0_31] : memref<9x128x128xbf16, #tpu.memory_space<vmem>>, vector<1x128x128xbf16>
    %66 = vector.shape_cast %65 : vector<1x128x128xbf16> to vector<128x128xbf16>
    %cst_32 = arith.constant dense<0.000000e+00> : vector<256x128xf32>
    %67 = tpu.matmul %64, %66, %cst_32 {dimension_numbers = #tpu.dot_dimension_numbers<[1], [0], [0], [1], [0, 0, 1, 1], [], []>} : vector<256x128xbf16>, vector<128x128xbf16>, vector<256x128xf32> -> vector<256x128xf32>
    %68 = arith.addf %61, %67 : vector<256x128xf32>
    %69 = vector.extract_strided_slice %11 {offsets = [2, 2, 0], sizes = [16, 16, 128], strides = [1, 1, 1]} : vector<18x18x128xf32> to vector<16x16x128xf32>
    %70 = vector.shape_cast %69 : vector<16x16x128xf32> to vector<256x128xf32>
    %71 = arith.truncf %70 : vector<256x128xf32> to vector<256x128xbf16>
    %c8 = arith.constant 8 : index
    %c0_33 = arith.constant 0 : index
    %c0_34 = arith.constant 0 : index
    %72 = vector.load %arg4[%c8, %c0_33, %c0_34] : memref<9x128x128xbf16, #tpu.memory_space<vmem>>, vector<1x128x128xbf16>
    %73 = vector.shape_cast %72 : vector<1x128x128xbf16> to vector<128x128xbf16>
    %cst_35 = arith.constant dense<0.000000e+00> : vector<256x128xf32>
    %74 = tpu.matmul %71, %73, %cst_35 {dimension_numbers = #tpu.dot_dimension_numbers<[1], [0], [0], [1], [0, 0, 1, 1], [], []>} : vector<256x128xbf16>, vector<128x128xbf16>, vector<256x128xf32> -> vector<256x128xf32>
    %75 = arith.addf %68, %74 : vector<256x128xf32>
    %c0_36 = arith.constant 0 : index
    %c0_37 = arith.constant 0 : index
    %76 = vector.load %arg5[%c0_36, %c0_37] : memref<1x128xf32, #tpu.memory_space<vmem>>, vector<1x128xf32>
    %77 = vector.broadcast %76 : vector<1x128xf32> to vector<256x128xf32>
    %78 = arith.addf %75, %77 : vector<256x128xf32>
    %cst_38 = arith.constant 0.000000e+00 : f32
    %79 = vector.broadcast %cst_38 : f32 to vector<256x128xf32>
    %80 = arith.maximumf %78, %79 : vector<256x128xf32>
    %81 = vector.shape_cast %80 : vector<256x128xf32> to vector<16x16x128xf32>
    %82 = vector.extract_strided_slice %81 {offsets = [0, 0, 0], sizes = [14, 14, 128], strides = [1, 1, 1]} : vector<16x16x128xf32> to vector<14x14x128xf32>
    %83 = vector.shape_cast %82 : vector<14x14x128xf32> to vector<1x14x14x128xf32>
    %c0_39 = arith.constant 0 : index
    %c0_40 = arith.constant 0 : index
    %c0_41 = arith.constant 0 : index
    %c0_42 = arith.constant 0 : index
    %84 = vector.load %arg6[%c0_39, %c0_40, %c0_41, %c0_42] : memref<1x14x14x128xf32, #tpu.memory_space<vmem>>, vector<1x14x14x128xf32>
    tpu.vector_store %arg6[%c0_39, %c0_40, %c0_41, %c0_42], %83 {strides = array<i32>} : memref<1x14x14x128xf32, #tpu.memory_space<vmem>>, vector<1x14x14x128xf32>,
    return
  }
  func.func @transform_0(%arg0: i32) -> (i32, i32, i32, i32) {
    %c0_i32 = arith.constant 0 : i32
    %c0_i32_0 = arith.constant 0 : i32
    %c0_i32_1 = arith.constant 0 : i32
    %c0_i32_2 = arith.constant 0 : i32
    return %arg0, %c0_i32, %c0_i32_0, %c0_i32_1 : i32, i32, i32, i32
  }
  func.func @transform_1(%arg0: i32) -> (i32, i32) {
    %c0_i32 = arith.constant 0 : i32
    %c0_i32_0 = arith.constant 0 : i32
    %c0_i32_1 = arith.constant 0 : i32
    return %c0_i32, %c0_i32_0 : i32, i32
  }
  func.func @transform_2(%arg0: i32) -> (i32, i32) {
    %c0_i32 = arith.constant 0 : i32
    %c0_i32_0 = arith.constant 0 : i32
    %c0_i32_1 = arith.constant 0 : i32
    return %c0_i32, %c0_i32_0 : i32, i32
  }
  func.func @transform_3(%arg0: i32) -> (i32, i32, i32) {
    %c0_i32 = arith.constant 0 : i32
    %c0_i32_0 = arith.constant 0 : i32
    %c0_i32_1 = arith.constant 0 : i32
    %c0_i32_2 = arith.constant 0 : i32
    return %c0_i32, %c0_i32_0, %c0_i32_1 : i32, i32, i32
  }
  func.func @transform_4(%arg0: i32) -> (i32, i32) {
    %c0_i32 = arith.constant 0 : i32
    %c0_i32_0 = arith.constant 0 : i32
    %c0_i32_1 = arith.constant 0 : i32
    return %c0_i32, %c0_i32_0 : i32, i32
  }
  func.func @transform_5(%arg0: i32) -> (i32, i32, i32, i32) {
    %c0_i32 = arith.constant 0 : i32
    %c0_i32_0 = arith.constant 0 : i32
    %c0_i32_1 = arith.constant 0 : i32
    %c0_i32_2 = arith.constant 0 : i32
    return %arg0, %c0_i32, %c0_i32_0, %c0_i32_1 : i32, i32, i32, i32
  }
}

</mosaic_0001>

<llo_original>
// kernel: convblock_forward.3
$region0: #{convblock_forward.3}
  #allocation0 [shape = 'u32[]', space=smem, size = 0x4, offset = 0x4, fixed_abs, tag = 'smem constant byte address 0x4 - core index']
  #allocation1 [shape = 'u32[144,128]{1,0:T(1,128)}', space=vmem, size = 0x12000, scoped, tag = 'internal scratch']
  %s0 = inlined_call_operand.vmem [shape: f32[2,18,18,128], index: 0, kind: input, shape index: {}]
  %s1 = inlined_call_operand.vmem [shape: f32[1,128], index: 1, kind: input, shape index: {}]
  %s2 = inlined_call_operand.vmem [shape: f32[1,128], index: 2, kind: input, shape index: {}]
  %s3 = inlined_call_operand.vmem [shape: bf16[9,128,128], index: 3, kind: input, shape index: {}]
  %s4 = inlined_call_operand.vmem [shape: f32[1,128], index: 4, kind: input, shape index: {}]
  %s5 = inlined_call_operand.vmem [shape: f32[2,14,14,128], index: 5, kind: output, shape index: {}]
  %s6 = sld [smem:[#allocation0]]
  $region53: #{convblock_forward.3} parent=0
    _
  %s8 = ssub.s32 1, %s6
  %s9 = scalar_select 0, %s8, %s6
  loop: start=0, step=1, limit=4
  $region2: #{convblock_forward.3} parent=0 // loop_pre_header
    _
  $region3: #{convblock_forward.3} parent=0 // loop_header
    %s11 = sphi 0, %s15
    %p12 = scmp.ge.s32.totalorder %s11, 4
    %s21 = sphi 0, %s23
    %s24 = sphi 0, %s21
    %s25 = sphi 0, %s24
    %s41 = sphi 0, %s25
    %s45 = sphi 0, %s45
    %s47 = sphi 0, %s45
    %s48 = sphi 0, %s47
    %s62 = sphi 0, %s48
    %s66 = sphi 0, %s66
    %s68 = sphi 0, %s66
    %s69 = sphi 0, %s68
    %s83 = sphi 0, %s69
    %s87 = sphi 0, %s87
    %s89 = sphi 0, %s87
    %s90 = sphi 0, %s89
    %s104 = sphi 0, %s90
    %s108 = sphi 0, %s108
    %s110 = sphi 0, %s108
    %s111 = sphi 0, %s110
    %s125 = sphi 0, %s111
    %s131 = sphi 0, %s133
    %s134 = sphi 0, %s131
    %s135 = sphi 0, %s134
    %s151 = sphi 0, %s135
  $region4: #{convblock_forward.3} parent=0 // loop_header_branch
    %14 = sbr.rel (%p12) target = $region8
  $region5: #{convblock_forward.3} parent=0 // loop_body
    %s16 = ssub.s32 %s11, 1
    %s17 = ssub.s32 %s11, 2
    %s18 = sadd.s32 %s11, 1
    %s19 = ssub.s32 %s11, %s18
    %p20 = scmp.eq.s32.totalorder %s19, 0
    %s22 = sadd.s32 %s21, 1
    %s23 = scalar_select %p20, %s21, %s22
    %p26 = pneg %p20
    %p27 = scmp.eq.s32.totalorder %s11, 1
    %p28 = por %p26, %p27
    %p29 = scmp.ne.s32.totalorder %s21, %s24
    %p30 = scmp.eq.s32.totalorder %s11, 0
    %p31 = por %p29, %p30
    %p32 = scmp.ne.s32.totalorder %s21, %s24
    %p33 = scmp.eq.s32.totalorder %s16, 1
    %p34 = por %p32, %p33
    %p35 = scmp.ne.s32.totalorder %s24, %s25
    %p36 = scmp.eq.s32.totalorder %s16, 0
    %p37 = por %p35, %p36
    %p38 = scmp.ne.s32.totalorder %s24, %s25
    %p39 = scmp.eq.s32.totalorder %s17, 1
    %p40 = por %p38, %p39
    %p42 = scmp.ne.s32.totalorder %s25, %s41
    %p43 = scmp.eq.s32.totalorder %s17, 0
    %p44 = por %p42, %p43
    %s46 = sadd.s32 %s45, 1
    %p49 = scmp.eq.s32.totalorder %s11, 1
    %p50 = scmp.ne.s32.totalorder %s45, %s47
    %p51 = scmp.eq.s32.totalorder %s11, 0
    %p52 = por %p50, %p51
    %p53 = scmp.ne.s32.totalorder %s45, %s47
    %p54 = scmp.eq.s32.totalorder %s16, 1
    %p55 = por %p53, %p54
    %p56 = scmp.ne.s32.totalorder %s47, %s48
    %p57 = scmp.eq.s32.totalorder %s16, 0
    %p58 = por %p56, %p57
    %p59 = scmp.ne.s32.totalorder %s47, %s48
    %p60 = scmp.eq.s32.totalorder %s17, 1
    %p61 = por %p59, %p60
    %p63 = scmp.ne.s32.totalorder %s48, %s62
    %p64 = scmp.eq.s32.totalorder %s17, 0
    %p65 = por %p63, %p64
    %s67 = sadd.s32 %s66, 1
    %p70 = scmp.eq.s32.totalorder %s11, 1
    %p71 = scmp.ne.s32.totalorder %s66, %s68
    %p72 = scmp.eq.s32.totalorder %s11, 0
    %p73 = por %p71, %p72
    %p74 = scmp.ne.s32.totalorder %s66, %s68
    %p75 = scmp.eq.s32.totalorder %s16, 1
    %p76 = por %p74, %p75
    %p77 = scmp.ne.s32.totalorder %s68, %s69
    %p78 = scmp.eq.s32.totalorder %s16, 0
    %p79 = por %p77, %p78
    %p80 = scmp.ne.s32.totalorder %s68, %s69
    %p81 = scmp.eq.s32.totalorder %s17, 1
    %p82 = por %p80, %p81
    %p84 = scmp.ne.s32.totalorder %s69, %s83
    %p85 = scmp.eq.s32.totalorder %s17, 0
    %p86 = por %p84, %p85
    %s88 = sadd.s32 %s87, 1
    %p91 = scmp.eq.s32.totalorder %s11, 1
    %p92 = scmp.ne.s32.totalorder %s87, %s89
    %p93 = scmp.eq.s32.totalorder %s11, 0
    %p94 = por %p92, %p93
    %p95 = scmp.ne.s32.totalorder %s87, %s89
    %p96 = scmp.eq.s32.totalorder %s16, 1
    %p97 = por %p95, %p96
    %p98 = scmp.ne.s32.totalorder %s89, %s90
    %p99 = scmp.eq.s32.totalorder %s16, 0
    %p100 = por %p98, %p99
    %p101 = scmp.ne.s32.totalorder %s89, %s90
    %p102 = scmp.eq.s32.totalorder %s17, 1
    %p103 = por %p101, %p102
    %p105 = scmp.ne.s32.totalorder %s90, %s104
    %p106 = scmp.eq.s32.totalorder %s17, 0
    %p107 = por %p105, %p106
    %s109 = sadd.s32 %s108, 1
    %p112 = scmp.eq.s32.totalorder %s11, 1
    %p113 = scmp.ne.s32.totalorder %s108, %s110
    %p114 = scmp.eq.s32.totalorder %s11, 0
    %p115 = por %p113, %p114
    %p116 = scmp.ne.s32.totalorder %s108, %s110
    %p117 = scmp.eq.s32.totalorder %s16, 1
    %p118 = por %p116, %p117
    %p119 = scmp.ne.s32.totalorder %s110, %s111
    %p120 = scmp.eq.s32.totalorder %s16, 0
    %p121 = por %p119, %p120
    %p122 = scmp.ne.s32.totalorder %s110, %s111
    %p123 = scmp.eq.s32.totalorder %s17, 1
    %p124 = por %p122, %p123
    %p126 = scmp.ne.s32.totalorder %s111, %s125
    %p127 = scmp.eq.s32.totalorder %s17, 0
    %p128 = por %p126, %p127
    %s129 = ssub.s32 %s11, %s18
    %p130 = scmp.eq.s32.totalorder %s129, 0
    %s132 = sadd.s32 %s131, 1
    %s133 = scalar_select %p130, %s131, %s132
    %p136 = pneg %p130
    %p137 = scmp.eq.s32.totalorder %s11, 1
    %p138 = por %p136, %p137
    %p139 = scmp.ne.s32.totalorder %s131, %s134
    %p140 = scmp.eq.s32.totalorder %s11, 0
    %p141 = por %p139, %p140
    %p142 = scmp.ne.s32.totalorder %s131, %s134
    %p143 = scmp.eq.s32.totalorder %s16, 1
    %p144 = por %p142, %p143
    %p145 = scmp.ne.s32.totalorder %s134, %s135
    %p146 = scmp.eq.s32.totalorder %s16, 0
    %p147 = por %p145, %p146
    %p148 = scmp.ne.s32.totalorder %s134, %s135
    %p149 = scmp.eq.s32.totalorder %s17, 1
    %p150 = por %p148, %p149
    %p152 = scmp.ne.s32.totalorder %s135, %s151
    %p153 = scmp.eq.s32.totalorder %s17, 0
    %p154 = por %p152, %p153
    %p155 = scmp.le.s32.totalorder 1, %s11
    %p156 = scmp.lt.s32.totalorder %s11, 3
    %p157 = pnand %p155, %p156
    %p158 = pneg %p157
    // Predicated region
    $region9: #{convblock_forward.3} parent=5 // pred_check
      _
    $region10: #{convblock_forward.3} parent=5 // pred_check_branch
      %160 = sbr.rel (%p157) target = $region12
    $region11: #{convblock_forward.3} parent=5 // pred_region
      %s161 = ssub.s32 %s11, 1
      // Predicated region
      $region13: #{convblock_forward.3} parent=11 // pred_check
        %p162 = pneg %p58
      $region14: #{convblock_forward.3} parent=11 // pred_check_branch
        %164 = sbr.rel (%p162) target = $region16
      $region15: #{convblock_forward.3} parent=11 // pred_region
        _
      $region16: #{convblock_forward.3} parent=11 // pred_fallthru
        _
      // Predicated region
      $region17: #{convblock_forward.3} parent=11 // pred_check
        %p165 = pneg %p79
      $region18: #{convblock_forward.3} parent=11 // pred_check_branch
        %167 = sbr.rel (%p165) target = $region20
      $region19: #{convblock_forward.3} parent=11 // pred_region
        _
      $region20: #{convblock_forward.3} parent=11 // pred_fallthru
        _
      // Predicated region
      $region21: #{convblock_forward.3} parent=11 // pred_check
        %p168 = pneg %p100
      $region22: #{convblock_forward.3} parent=11 // pred_check_branch
        %170 = sbr.rel (%p168) target = $region24
      $region23: #{convblock_forward.3} parent=11 // pred_region
        _
      $region24: #{convblock_forward.3} parent=11 // pred_fallthru
        _
      // Predicated region
      $region25: #{convblock_forward.3} parent=11 // pred_check
        %p171 = pneg %p121
      $region26: #{convblock_forward.3} parent=11 // pred_check_branch
        %173 = sbr.rel (%p171) target = $region28
      $region27: #{convblock_forward.3} parent=11 // pred_region
        _
      $region28: #{convblock_forward.3} parent=11 // pred_fallthru
        _
    $region12: #{convblock_forward.3} parent=5 // pred_fallthru
      _
    %p174 = scmp.lt.s32.totalorder %s11, 2
    // Predicated region
    $region29: #{convblock_forward.3} parent=5 // pred_check
      %p175 = pneg %p174
    $region30: #{convblock_forward.3} parent=5 // pred_check_branch
      %177 = sbr.rel (%p175) target = $region32
    $region31: #{convblock_forward.3} parent=5 // pred_region
      // Predicated region
      $region33: #{convblock_forward.3} parent=31 // pred_check
        %p178 = pneg %p31
      $region34: #{convblock_forward.3} parent=31 // pred_check_branch
        %180 = sbr.rel (%p178) target = $region36
      $region35: #{convblock_forward.3} parent=31 // pred_region
        %p181 = scmp.lt.s32.totalorder %s11, 1
        %s182 = scalar_select %p181, %s11, 1
        %s183 = smul.addr %s182, 54
        %s184 = smul.addr %s183, 8
        %s185 = scalar_lea.vmem %s0, %s184
      $region36: #{convblock_forward.3} parent=31 // pred_fallthru
        _
    $region32: #{convblock_forward.3} parent=5 // pred_fallthru
      _
    %p186 = scmp.le.s32.totalorder 1, %s11
    %p187 = scmp.lt.s32.totalorder %s11, 3
    %p188 = pnand %p186, %p187
    %p189 = pneg %p188
    // Predicated region
    $region37: #{convblock_forward.3} parent=5 // pred_check
      _
    $region38: #{convblock_forward.3} parent=5 // pred_check_branch
      %191 = sbr.rel (%p188) target = $region40
    $region39: #{convblock_forward.3} parent=5 // pred_region
      %s192 = ssub.s32 %s11, 1
      %p193 = scmp.lt.s32.totalorder %s16, 1
      %s194 = scalar_select %p193, %s16, 1
      %s195 = smul.addr %s194, 54
      %s196 = smul.addr %s195, 8
      %s197 = scalar_lea.vmem %s0, %s196
      %p198 = pneg %p37
      %p199 = pneg %p34
      %p200 = pneg %p58
      %p201 = pneg %p55
      %p202 = pneg %p79
      %p203 = pneg %p76
      %p204 = pneg %p100
      %p205 = pneg %p97
      %p206 = pneg %p121
      %p207 = pneg %p118
      %p208 = pneg %p147
      %p209 = pneg %p144
      %p210 = scmp.lt.s32.totalorder %s16, 1
      %s211 = scalar_select %p210, %s16, 1
      %s212 = smul.addr %s211, 28
      %s213 = smul.addr %s212, 8
      %s214 = scalar_lea.vmem %s5, %s213
      %p215 = scmp.lt.s32.totalorder %s16, 1
      %s216 = scalar_select %p215, %s16, 1
      %s217 = smul.addr %s216, 54
      %s218 = smul.addr %s217, 8
      %s219 = scalar_lea.vmem %s0, %s218
      %p220 = scmp.lt.s32.totalorder %s16, 1
      %s221 = scalar_select %p220, %s16, 1
      %s222 = smul.addr %s221, 28
      %s223 = smul.addr %s222, 8
      %s224 = scalar_lea.vmem %s5, %s223
      %v226 = vld [vmem:[%s1] sm:$0x1]
      %v227 = vld [vmem:[%s2] sm:$0x1]
      %v228 = vld [vmem:[%s219] sm:$0xff]
      %v229 = vld [vmem:[%s219 + $0x8] sm:$0xff]
      %v230 = vld [vmem:[%s219 + $0x10] sm:$0x3]
      %v231 = vld [vmem:[%s219 + $0x18] sm:$0xff]
      %v232 = vld [vmem:[%s219 + $0x20] sm:$0xff]
      %v233 = vld [vmem:[%s219 + $0x28] sm:$0x3]
      %v234 = vld [vmem:[%s219 + $0x30] sm:$0xff]
      %v235 = vld [vmem:[%s219 + $0x38] sm:$0xff]
      %v236 = vld [vmem:[%s219 + $0x40] sm:$0x3]
      %v237 = vld [vmem:[%s219 + $0x48] sm:$0xff]
      %v238 = vld [vmem:[%s219 + $0x50] sm:$0xff]
      %v239 = vld [vmem:[%s219 + $0x58] sm:$0x3]
      %v240 = vld [vmem:[%s219 + $0x60] sm:$0xff]
      %v241 = vld [vmem:[%s219 + $0x68] sm:$0xff]
      %v242 = vld [vmem:[%s219 + $0x70] sm:$0x3]
      %v243 = vld [vmem:[%s219 + $0x78] sm:$0xff]
      %v244 = vld [vmem:[%s219 + $0x80] sm:$0xff]
      %v245 = vld [vmem:[%s219 + $0x88] sm:$0x3]
      %v246 = vld [vmem:[%s219 + $0x90] sm:$0xff]
      %v247 = vld [vmem:[%s219 + $0x98] sm:$0xff]
      %v248 = vld [vmem:[%s219 + $0xa0] sm:$0x3]
      %v249 = vld [vmem:[%s219 + $0xa8] sm:$0xff]
      %v250 = vld [vmem:[%s219 + $0xb0] sm:$0xff]
      %v251 = vld [vmem:[%s219 + $0xb8] sm:$0x3]
      %v252 = vld [vmem:[%s219 + $0xc0] sm:$0xff]
      %v253 = vld [vmem:[%s219 + $0xc8] sm:$0xff]
      %v254 = vld [vmem:[%s219 + $0xd0] sm:$0x3]
      %v255 = vld [vmem:[%s219 + $0xd8] sm:$0xff]
      %v256 = vld [vmem:[%s219 + $0xe0] sm:$0xff]
      %v257 = vld [vmem:[%s219 + $0xe8] sm:$0x3]
      %v258 = vld [vmem:[%s219 + $0xf0] sm:$0xff]
      %v259 = vld [vmem:[%s219 + $0xf8] sm:$0xff]
      %v260 = vld [vmem:[%s219 + $0x100] sm:$0x3]
      %v261 = vld [vmem:[%s219 + $0x108] sm:$0xff]
      %v262 = vld [vmem:[%s219 + $0x110] sm:$0xff]
      %v263 = vld [vmem:[%s219 + $0x118] sm:$0x3]
      %v264 = vld [vmem:[%s219 + $0x120] sm:$0xff]
      %v265 = vld [vmem:[%s219 + $0x128] sm:$0xff]
      %v266 = vld [vmem:[%s219 + $0x130] sm:$0x3]
      %v267 = vld [vmem:[%s219 + $0x138] sm:$0xff]
      %v268 = vld [vmem:[%s219 + $0x140] sm:$0xff]
      %v269 = vld [vmem:[%s219 + $0x148] sm:$0x3]
      %v270 = vld [vmem:[%s219 + $0x150] sm:$0xff]
      %v271 = vld [vmem:[%s219 + $0x158] sm:$0xff]
      %v272 = vld [vmem:[%s219 + $0x160] sm:$0x3]
      %v273 = vld [vmem:[%s219 + $0x168] sm:$0xff]
      %v274 = vld [vmem:[%s219 + $0x170] sm:$0xff]
      %v275 = vld [vmem:[%s219 + $0x178] sm:$0x3]
      %v276 = vld [vmem:[%s219 + $0x180] sm:$0xff]
      %v277 = vld [vmem:[%s219 + $0x188] sm:$0xff]
      %v278 = vld [vmem:[%s219 + $0x190] sm:$0x3]
      %v279 = vld [vmem:[%s219 + $0x198] sm:$0xff]
      %v280 = vld [vmem:[%s219 + $0x1a0] sm:$0xff]
      %v281 = vld [vmem:[%s219 + $0x1a8] sm:$0x3]
      %v283 = vlaneseq
      %v284 = vshrl.u32 %v283, 7
      %v285 = vsub.s32 0, %v284
      %v286 = vrot.slane %v226, %v285
      %v288 = vmul.f32 %v228, %v286
      %v289 = vmul.f32 %v229, %v286
      %v290 = vmul.f32 %v230, %v286
      %v291 = vmul.f32 %v231, %v286
      %v292 = vmul.f32 %v232, %v286
      %v293 = vmul.f32 %v233, %v286
      %v294 = vmul.f32 %v234, %v286
      %v295 = vmul.f32 %v235, %v286
      %v296 = vmul.f32 %v236, %v286
      %v297 = vmul.f32 %v237, %v286
      %v298 = vmul.f32 %v238, %v286
      %v299 = vmul.f32 %v239, %v286
      %v300 = vmul.f32 %v240, %v286
      %v301 = vmul.f32 %v241, %v286
      %v302 = vmul.f32 %v242, %v286
      %v303 = vmul.f32 %v243, %v286
      %v304 = vmul.f32 %v244, %v286
      %v305 = vmul.f32 %v245, %v286
      %v306 = vmul.f32 %v246, %v286
      %v307 = vmul.f32 %v247, %v286
      %v308 = vmul.f32 %v248, %v286
      %v309 = vmul.f32 %v249, %v286
      %v310 = vmul.f32 %v250, %v286
      %v311 = vmul.f32 %v251, %v286
      %v312 = vmul.f32 %v252, %v286
      %v313 = vmul.f32 %v253, %v286
      %v314 = vmul.f32 %v254, %v286
      %v315 = vmul.f32 %v255, %v286
      %v316 = vmul.f32 %v256, %v286
      %v317 = vmul.f32 %v257, %v286
      %v318 = vmul.f32 %v258, %v286
      %v319 = vmul.f32 %v259, %v286
      %v320 = vmul.f32 %v260, %v286
      %v321 = vmul.f32 %v261, %v286
      %v322 = vmul.f32 %v262, %v286
      %v323 = vmul.f32 %v263, %v286
      %v324 = vmul.f32 %v264, %v286
      %v325 = vmul.f32 %v265, %v286
      %v326 = vmul.f32 %v266, %v286
      %v327 = vmul.f32 %v267, %v286
      %v328 = vmul.f32 %v268, %v286
      %v329 = vmul.f32 %v269, %v286
      %v330 = vmul.f32 %v270, %v286
      %v331 = vmul.f32 %v271, %v286
      %v332 = vmul.f32 %v272, %v286
      %v333 = vmul.f32 %v273, %v286
      %v334 = vmul.f32 %v274, %v286
      %v335 = vmul.f32 %v275, %v286
      %v336 = vmul.f32 %v276, %v286
      %v337 = vmul.f32 %v277, %v286
      %v338 = vmul.f32 %v278, %v286
      %v339 = vmul.f32 %v279, %v286
      %v340 = vmul.f32 %v280, %v286
      %v341 = vmul.f32 %v281, %v286
      %v343 = vlaneseq
      %v344 = vshrl.u32 %v343, 7
      %v345 = vsub.s32 0, %v344
      %v346 = vrot.slane %v227, %v345
      %v348 = vadd.f32 %v288, %v346
      %v349 = vadd.f32 %v289, %v346
      %v350 = vadd.f32 %v290, %v346
      %v351 = vadd.f32 %v291, %v346
      %v352 = vadd.f32 %v292, %v346
      %v353 = vadd.f32 %v293, %v346
      %v354 = vadd.f32 %v294, %v346
      %v355 = vadd.f32 %v295, %v346
      %v356 = vadd.f32 %v296, %v346
      %v357 = vadd.f32 %v297, %v346
      %v358 = vadd.f32 %v298, %v346
      %v359 = vadd.f32 %v299, %v346
      %v360 = vadd.f32 %v300, %v346
      %v361 = vadd.f32 %v301, %v346
      %v362 = vadd.f32 %v302, %v346
      %v363 = vadd.f32 %v303, %v346
      %v364 = vadd.f32 %v304, %v346
      %v365 = vadd.f32 %v305, %v346
      %v366 = vadd.f32 %v306, %v346
      %v367 = vadd.f32 %v307, %v346
      %v368 = vadd.f32 %v308, %v346
      %v369 = vadd.f32 %v309, %v346
      %v370 = vadd.f32 %v310, %v346
      %v371 = vadd.f32 %v311, %v346
      %v372 = vadd.f32 %v312, %v346
      %v373 = vadd.f32 %v313, %v346
      %v374 = vadd.f32 %v314, %v346
      %v375 = vadd.f32 %v315, %v346
      %v376 = vadd.f32 %v316, %v346
      %v377 = vadd.f32 %v317, %v346
      %v378 = vadd.f32 %v318, %v346
      %v379 = vadd.f32 %v319, %v346
      %v380 = vadd.f32 %v320, %v346
      %v381 = vadd.f32 %v321, %v346
      %v382 = vadd.f32 %v322, %v346
      %v383 = vadd.f32 %v323, %v346
      %v384 = vadd.f32 %v324, %v346
      %v385 = vadd.f32 %v325, %v346
      %v386 = vadd.f32 %v326, %v346
      %v387 = vadd.f32 %v327, %v346
      %v388 = vadd.f32 %v328, %v346
      %v389 = vadd.f32 %v329, %v346
      %v390 = vadd.f32 %v330, %v346
      %v391 = vadd.f32 %v331, %v346
      %v392 = vadd.f32 %v332, %v346
      %v393 = vadd.f32 %v333, %v346
      %v394 = vadd.f32 %v334, %v346
      %v395 = vadd.f32 %v335, %v346
      %v396 = vadd.f32 %v336, %v346
      %v397 = vadd.f32 %v337, %v346
      %v398 = vadd.f32 %v338, %v346
      %v399 = vadd.f32 %v339, %v346
      %v400 = vadd.f32 %v340, %v346
      %v401 = vadd.f32 %v341, %v346
      %v402 = vmax.f32 %v348, 0.0
      %v403 = vmax.f32 %v349, 0.0
      %v404 = vmax.f32 %v350, 0.0
      %v405 = vmax.f32 %v351, 0.0
      %v406 = vmax.f32 %v352, 0.0
      %v407 = vmax.f32 %v353, 0.0
      %v408 = vmax.f32 %v354, 0.0
      %v409 = vmax.f32 %v355, 0.0
      %v410 = vmax.f32 %v356, 0.0
      %v411 = vmax.f32 %v357, 0.0
      %v412 = vmax.f32 %v358, 0.0
      %v413 = vmax.f32 %v359, 0.0
      %v414 = vmax.f32 %v360, 0.0
      %v415 = vmax.f32 %v361, 0.0
      %v416 = vmax.f32 %v362, 0.0
      %v417 = vmax.f32 %v363, 0.0
      %v418 = vmax.f32 %v364, 0.0
      %v419 = vmax.f32 %v365, 0.0
      %v420 = vmax.f32 %v366, 0.0
      %v421 = vmax.f32 %v367, 0.0
      %v422 = vmax.f32 %v368, 0.0
      %v423 = vmax.f32 %v369, 0.0
      %v424 = vmax.f32 %v370, 0.0
      %v425 = vmax.f32 %v371, 0.0
      %v426 = vmax.f32 %v372, 0.0
      %v427 = vmax.f32 %v373, 0.0
      %v428 = vmax.f32 %v374, 0.0
      %v429 = vmax.f32 %v375, 0.0
      %v430 = vmax.f32 %v376, 0.0
      %v431 = vmax.f32 %v377, 0.0
      %v432 = vmax.f32 %v378, 0.0
      %v433 = vmax.f32 %v379, 0.0
      %v434 = vmax.f32 %v380, 0.0
      %v435 = vmax.f32 %v381, 0.0
      %v436 = vmax.f32 %v382, 0.0
      %v437 = vmax.f32 %v383, 0.0
      %v438 = vmax.f32 %v384, 0.0
      %v439 = vmax.f32 %v385, 0.0
      %v440 = vmax.f32 %v386, 0.0
      %v441 = vmax.f32 %v387, 0.0
      %v442 = vmax.f32 %v388, 0.0
      %v443 = vmax.f32 %v389, 0.0
      %v444 = vmax.f32 %v390, 0.0
      %v445 = vmax.f32 %v391, 0.0
      %v446 = vmax.f32 %v392, 0.0
      %v447 = vmax.f32 %v393, 0.0
      %v448 = vmax.f32 %v394, 0.0
      %v449 = vmax.f32 %v395, 0.0
      %v450 = vmax.f32 %v396, 0.0
      %v451 = vmax.f32 %v397, 0.0
      %v452 = vmax.f32 %v398, 0.0
      %v453 = vmax.f32 %v399, 0.0
      %v454 = vmax.f32 %v400, 0.0
      %v455 = vmax.f32 %v401, 0.0
      %v456 = vpack.c.bf16 %v403, %v402
      %v457 = vpack.c.bf16 %v406, %v405
      %v458 = vpack.c.bf16 %v409, %v408
      %v459 = vpack.c.bf16 %v412, %v411
      %v460 = vpack.c.bf16 %v415, %v414
      %v461 = vpack.c.bf16 %v418, %v417
      %v462 = vpack.c.bf16 %v421, %v420
      %v463 = vpack.c.bf16 %v424, %v423
      %v464 = vpack.c.bf16 %v427, %v426
      %v465 = vpack.c.bf16 %v430, %v429
      %v466 = vpack.c.bf16 %v433, %v432
      %v467 = vpack.c.bf16 %v436, %v435
      %v468 = vpack.c.bf16 %v439, %v438
      %v469 = vpack.c.bf16 %v442, %v441
      %v470 = vpack.c.bf16 %v445, %v444
      %v471 = vpack.c.bf16 %v448, %v447
      %v472 = vld [vmem:[%s3] sm:$0xf]
      %v473 = vld [vmem:[%s3 + $0x4] sm:$0xf]
      %v474 = vld [vmem:[%s3 + $0x8] sm:$0xf]
      %v475 = vld [vmem:[%s3 + $0xc] sm:$0xf]
      %v476 = vld [vmem:[%s3 + $0x10] sm:$0xf]
      %v477 = vld [vmem:[%s3 + $0x14] sm:$0xf]
      %v478 = vld [vmem:[%s3 + $0x18] sm:$0xf]
      %v479 = vld [vmem:[%s3 + $0x1c] sm:$0xf]
      %v480 = vld [vmem:[%s3 + $0x20] sm:$0xf]
      %v481 = vld [vmem:[%s3 + $0x24] sm:$0xf]
      %v482 = vld [vmem:[%s3 + $0x28] sm:$0xf]
      %v483 = vld [vmem:[%s3 + $0x2c] sm:$0xf]
      %v484 = vld [vmem:[%s3 + $0x30] sm:$0xf]
      %v485 = vld [vmem:[%s3 + $0x34] sm:$0xf]
      %v486 = vld [vmem:[%s3 + $0x38] sm:$0xf]
      %v487 = vld [vmem:[%s3 + $0x3c] sm:$0xf]
      %vm536 = vcmask 1046528
      %v537 = vrot.slane %v402, 1
      %v538 = vrot.slane %v403, 1
      %v539 = vsel %vm536, %v537, %v538
      %v540 = vrot.slane %v404, 1
      %v541 = vsel %vm536, %v538, %v540
      %v542 = vrot.slane %v405, 1
      %v543 = vrot.slane %v406, 1
      %v544 = vsel %vm536, %v542, %v543
      %v545 = vrot.slane %v407, 1
      %v546 = vsel %vm536, %v543, %v545
      %v547 = vrot.slane %v408, 1
      %v548 = vrot.slane %v409, 1
      %v549 = vsel %vm536, %v547, %v548
      %v550 = vrot.slane %v410, 1
      %v551 = vsel %vm536, %v548, %v550
      %v552 = vrot.slane %v411, 1
      %v553 = vrot.slane %v412, 1
      %v554 = vsel %vm536, %v552, %v553
      %v555 = vrot.slane %v413, 1
      %v556 = vsel %vm536, %v553, %v555
      %v557 = vrot.slane %v414, 1
      %v558 = vrot.slane %v415, 1
      %v559 = vsel %vm536, %v557, %v558
      %v560 = vrot.slane %v416, 1
      %v561 = vsel %vm536, %v558, %v560
      %v562 = vrot.slane %v417, 1
      %v563 = vrot.slane %v418, 1
      %v564 = vsel %vm536, %v562, %v563
      %v565 = vrot.slane %v419, 1
      %v566 = vsel %vm536, %v563, %v565
      %v567 = vrot.slane %v420, 1
      %v568 = vrot.slane %v421, 1
      %v569 = vsel %vm536, %v567, %v568
      %v570 = vrot.slane %v422, 1
      %v571 = vsel %vm536, %v568, %v570
      %v572 = vrot.slane %v423, 1
      %v573 = vrot.slane %v424, 1
      %v574 = vsel %vm536, %v572, %v573
      %v575 = vrot.slane %v425, 1
      %v576 = vsel %vm536, %v573, %v575
      %v577 = vrot.slane %v426, 1
      %v578 = vrot.slane %v427, 1
      %v579 = vsel %vm536, %v577, %v578
      %v580 = vrot.slane %v428, 1
      %v581 = vsel %vm536, %v578, %v580
      %v582 = vrot.slane %v429, 1
      %v583 = vrot.slane %v430, 1
      %v584 = vsel %vm536, %v582, %v583
      %v585 = vrot.slane %v431, 1
      %v586 = vsel %vm536, %v583, %v585
      %v587 = vrot.slane %v432, 1
      %v588 = vrot.slane %v433, 1
      %v589 = vsel %vm536, %v587, %v588
      %v590 = vrot.slane %v434, 1
      %v591 = vsel %vm536, %v588, %v590
      %v592 = vrot.slane %v435, 1
      %v593 = vrot.slane %v436, 1
      %v594 = vsel %vm536, %v592, %v593
      %v595 = vrot.slane %v437, 1
      %v596 = vsel %vm536, %v593, %v595
      %v597 = vrot.slane %v438, 1
      %v598 = vrot.slane %v439, 1
      %v599 = vsel %vm536, %v597, %v598
      %v600 = vrot.slane %v440, 1
      %v601 = vsel %vm536, %v598, %v600
      %v602 = vrot.slane %v441, 1
      %v603 = vrot.slane %v442, 1
      %v604 = vsel %vm536, %v602, %v603
      %v605 = vrot.slane %v443, 1
      %v606 = vsel %vm536, %v603, %v605
      %v607 = vrot.slane %v444, 1
      %v608 = vrot.slane %v445, 1
      %v609 = vsel %vm536, %v607, %v608
      %v610 = vrot.slane %v446, 1
      %v611 = vsel %vm536, %v608, %v610
      %v612 = vrot.slane %v447, 1
      %v613 = vrot.slane %v448, 1
      %v614 = vsel %vm536, %v612, %v613
      %v615 = vrot.slane %v449, 1
      %v616 = vsel %vm536, %v613, %v615
      %v649 = vpack.c.bf16 %v541, %v539
      %v650 = vpack.c.bf16 %v546, %v544
      %v651 = vpack.c.bf16 %v551, %v549
      %v652 = vpack.c.bf16 %v556, %v554
      %v653 = vpack.c.bf16 %v561, %v559
      %v654 = vpack.c.bf16 %v566, %v564
      %v655 = vpack.c.bf16 %v571, %v569
      %v656 = vpack.c.bf16 %v576, %v574
      %v657 = vpack.c.bf16 %v581, %v579
      %v658 = vpack.c.bf16 %v586, %v584
      %v659 = vpack.c.bf16 %v591, %v589
      %v660 = vpack.c.bf16 %v596, %v594
      %v661 = vpack.c.bf16 %v601, %v599
      %v662 = vpack.c.bf16 %v606, %v604
      %v663 = vpack.c.bf16 %v611, %v609
      %v664 = vpack.c.bf16 %v616, %v614
      %s665 = scalar_lea.vmem %s3, 64
      %v666 = vld [vmem:[%s665] sm:$0xf]
      %v667 = vld [vmem:[%s665 + $0x4] sm:$0xf]
      %v668 = vld [vmem:[%s665 + $0x8] sm:$0xf]
      %v669 = vld [vmem:[%s665 + $0xc] sm:$0xf]
      %v670 = vld [vmem:[%s665 + $0x10] sm:$0xf]
      %v671 = vld [vmem:[%s665 + $0x14] sm:$0xf]
      %v672 = vld [vmem:[%s665 + $0x18] sm:$0xf]
      %v673 = vld [vmem:[%s665 + $0x1c] sm:$0xf]
      %v674 = vld [vmem:[%s665 + $0x20] sm:$0xf]
      %v675 = vld [vmem:[%s665 + $0x24] sm:$0xf]
      %v676 = vld [vmem:[%s665 + $0x28] sm:$0xf]
      %v677 = vld [vmem:[%s665 + $0x2c] sm:$0xf]
      %v678 = vld [vmem:[%s665 + $0x30] sm:$0xf]
      %v679 = vld [vmem:[%s665 + $0x34] sm:$0xf]
      %v680 = vld [vmem:[%s665 + $0x38] sm:$0xf]
      %v681 = vld [vmem:[%s665 + $0x3c] sm:$0xf]
      %v698 = vunpack.c.l.b16 %v666
      %v699 = vunpack.c.l.b16 %v667
      %v700 = vunpack.c.l.b16 %v668
      %v701 = vunpack.c.l.b16 %v669
      %v702 = vunpack.c.l.b16 %v670
      %v703 = vunpack.c.l.b16 %v671
      %v704 = vunpack.c.l.b16 %v672
      %v705 = vunpack.c.l.b16 %v673
      %v706 = vunpack.c.l.b16 %v674
      %v707 = vunpack.c.l.b16 %v675
      %v708 = vunpack.c.l.b16 %v676
      %v709 = vunpack.c.l.b16 %v677
      %v710 = vunpack.c.l.b16 %v678
      %v711 = vunpack.c.l.b16 %v679
      %v712 = vunpack.c.l.b16 %v680
      %v713 = vunpack.c.l.b16 %v681
      %v714 = vpack.c.b16 %v699, %v698
      %v715 = vpack.c.b16 %v701, %v700
      %v716 = vpack.c.b16 %v703, %v702
      %v717 = vpack.c.b16 %v705, %v704
      %v718 = vpack.c.b16 %v707, %v706
      %v719 = vpack.c.b16 %v709, %v708
      %v720 = vpack.c.b16 %v711, %v710
      %v721 = vpack.c.b16 %v713, %v712
      %730 = vmatprep.subr.bf16.mxu0 0
      %731 = vmatpush1.bf16.msra.mxu0 %v714
      %732 = vmatprep.subr.bf16.mxu0 0
      %733 = vmatpush1.bf16.msra.mxu0 %v715
      %734 = vmatprep.subr.bf16.mxu0 0
      %735 = vmatpush1.bf16.msra.mxu0 %v716
      %736 = vmatprep.subr.bf16.mxu0 0
      %737 = vmatpush1.bf16.msra.mxu0 %v717
      %738 = vmatprep.subr.bf16.mxu0 0
      %739 = vmatpush1.bf16.msra.mxu0 %v718
      %740 = vmatprep.subr.bf16.mxu0 0
      %741 = vmatpush1.bf16.msra.mxu0 %v719
      %742 = vmatprep.subr.bf16.mxu0 0
      %743 = vmatpush1.bf16.msra.mxu0 %v720
      %744 = vmatprep.subr.bf16.mxu0 0
      %745 = vmatpush1.bf16.msra.mxu0 %v721
      %746 = vmatprep.subr.bf16.mxu0 0
      %747 = vmatpush1.bf16.msra.mxu0 0
      %748 = vmatprep.subr.bf16.mxu0 0
      %749 = vmatpush1.bf16.msra.mxu0 0
      %750 = vmatprep.subr.bf16.mxu0 0
      %751 = vmatpush1.bf16.msra.mxu0 0
      %752 = vmatprep.subr.bf16.mxu0 0
      %753 = vmatpush1.bf16.msra.mxu0 0
      %754 = vmatprep.subr.bf16.mxu0 0
      %755 = vmatpush1.bf16.msra.mxu0 0
      %756 = vmatprep.subr.bf16.mxu0 0
      %757 = vmatpush1.bf16.msra.mxu0 0
      %758 = vmatprep.subr.bf16.mxu0 0
      %759 = vmatpush1.bf16.msra.mxu0 0
      %760 = vmatprep.subr.bf16.mxu0 0
      %761 = vmatpush1.bf16.msra.mxu0 0
      %762 = vmatprep.mubr.bf16.mxu0 0
      %763 = vmatmul.mubr.bf16.gmra.mrb[0].mxu0 %v649
      %v764 = vpop.f32.mrb[0].mxu0
      %v765 = vadd.f32 0.0, %v764
      %v766 = vpop.f32.mrb[0].mxu0
      %v767 = vpop.f32.mrb[0].mxu0
      %v768 = vadd.f32 0.0, %v767
      %v769 = vpop.f32.mrb[0].mxu0
      %770 = vmatprep.mubr.bf16.mxu0 0
      %771 = vmatmul.mubr.bf16.gmra.mrb[0].mxu0 %v650
      %v772 = vpop.f32.mrb[0].mxu0
      %v773 = vadd.f32 0.0, %v772
      %v774 = vpop.f32.mrb[0].mxu0
      %v775 = vpop.f32.mrb[0].mxu0
      %v776 = vadd.f32 0.0, %v775
      %v777 = vpop.f32.mrb[0].mxu0
      %778 = vmatprep.mubr.bf16.mxu0 0
      %779 = vmatmul.mubr.bf16.gmra.mrb[0].mxu0 %v651
      %v780 = vpop.f32.mrb[0].mxu0
      %v781 = vadd.f32 0.0, %v780
      %v782 = vpop.f32.mrb[0].mxu0
      %v783 = vpop.f32.mrb[0].mxu0
      %v784 = vadd.f32 0.0, %v783
      %v785 = vpop.f32.mrb[0].mxu0
      %786 = vmatprep.mubr.bf16.mxu0 0
      %787 = vmatmul.mubr.bf16.gmra.mrb[0].mxu0 %v652
      %v788 = vpop.f32.mrb[0].mxu0
      %v789 = vadd.f32 0.0, %v788
      %v790 = vpop.f32.mrb[0].mxu0
      %v791 = vpop.f32.mrb[0].mxu0
      %v792 = vadd.f32 0.0, %v791
      %v793 = vpop.f32.mrb[0].mxu0
      %794 = vmatprep.mubr.bf16.mxu0 0
      %795 = vmatmul.mubr.bf16.gmra.mrb[0].mxu0 %v653
      %v796 = vpop.f32.mrb[0].mxu0
      %v797 = vadd.f32 0.0, %v796
      %v798 = vpop.f32.mrb[0].mxu0
      %v799 = vpop.f32.mrb[0].mxu0
      %v800 = vadd.f32 0.0, %v799
      %v801 = vpop.f32.mrb[0].mxu0
      %802 = vmatprep.mubr.bf16.mxu0 0
      %803 = vmatmul.mubr.bf16.gmra.mrb[0].mxu0 %v654
      %v804 = vpop.f32.mrb[0].mxu0
      %v805 = vadd.f32 0.0, %v804
      %v806 = vpop.f32.mrb[0].mxu0
      %v807 = vpop.f32.mrb[0].mxu0
      %v808 = vadd.f32 0.0, %v807
      %v809 = vpop.f32.mrb[0].mxu0
      %810 = vmatprep.mubr.bf16.mxu0 0
      %811 = vmatmul.mubr.bf16.gmra.mrb[0].mxu0 %v655
      %v812 = vpop.f32.mrb[0].mxu0
      %v813 = vadd.f32 0.0, %v812
      %v814 = vpop.f32.mrb[0].mxu0
      %v815 = vpop.f32.mrb[0].mxu0
      %v816 = vadd.f32 0.0, %v815
      %v817 = vpop.f32.mrb[0].mxu0
      %818 = vmatprep.mubr.bf16.mxu0 0
      %819 = vmatmul.mubr.bf16.gmra.mrb[0].mxu0 %v656
      %v820 = vpop.f32.mrb[0].mxu0
      %v821 = vadd.f32 0.0, %v820
      %v822 = vpop.f32.mrb[0].mxu0
      %v823 = vpop.f32.mrb[0].mxu0
      %v824 = vadd.f32 0.0, %v823
      %v825 = vpop.f32.mrb[0].mxu0
      %826 = vmatprep.mubr.bf16.mxu0 0
      %827 = vmatmul.mubr.bf16.gmra.mrb[0].mxu0 %v657
      %v828 = vpop.f32.mrb[0].mxu0
      %v829 = vadd.f32 0.0, %v828
      %v830 = vpop.f32.mrb[0].mxu0
      %v831 = vpop.f32.mrb[0].mxu0
      %v832 = vadd.f32 0.0, %v831
      %v833 = vpop.f32.mrb[0].mxu0
      %834 = vmatprep.mubr.bf16.mxu0 0
      %835 = vmatmul.mubr.bf16.gmra.mrb[0].mxu0 %v658
      %v836 = vpop.f32.mrb[0].mxu0
      %v837 = vadd.f32 0.0, %v836
      %v838 = vpop.f32.mrb[0].mxu0
      %v839 = vpop.f32.mrb[0].mxu0
      %v840 = vadd.f32 0.0, %v839
      %v841 = vpop.f32.mrb[0].mxu0
      %842 = vmatprep.mubr.bf16.mxu0 0
      %843 = vmatmul.mubr.bf16.gmra.mrb[0].mxu0 %v659
      %v844 = vpop.f32.mrb[0].mxu0
      %v845 = vadd.f32 0.0, %v844
      %v846 = vpop.f32.mrb[0].mxu0
      %v847 = vpop.f32.mrb[0].mxu0
      %v848 = vadd.f32 0.0, %v847
      %v849 = vpop.f32.mrb[0].mxu0
      %850 = vmatprep.mubr.bf16.mxu0 0
      %851 = vmatmul.mubr.bf16.gmra.mrb[0].mxu0 %v660
      %v852 = vpop.f32.mrb[0].mxu0
      %v853 = vadd.f32 0.0, %v852
      %v854 = vpop.f32.mrb[0].mxu0
      %v855 = vpop.f32.mrb[0].mxu0
      %v856 = vadd.f32 0.0, %v855
      %v857 = vpop.f32.mrb[0].mxu0
      %858 = vmatprep.mubr.bf16.mxu0 0
      %859 = vmatmul.mubr.bf16.gmra.mrb[0].mxu0 %v661
      %v860 = vpop.f32.mrb[0].mxu0
      %v861 = vadd.f32 0.0, %v860
      %v862 = vpop.f32.mrb[0].mxu0
      %v863 = vpop.f32.mrb[0].mxu0
      %v864 = vadd.f32 0.0, %v863
      %v865 = vpop.f32.mrb[0].mxu0
      %866 = vmatprep.mubr.bf16.mxu0 0
      %867 = vmatmul.mubr.bf16.gmra.mrb[0].mxu0 %v662
      %v868 = vpop.f32.mrb[0].mxu0
      %v869 = vadd.f32 0.0, %v868
      %v870 = vpop.f32.mrb[0].mxu0
      %v871 = vpop.f32.mrb[0].mxu0
      %v872 = vadd.f32 0.0, %v871
      %v873 = vpop.f32.mrb[0].mxu0
      %874 = vmatprep.mubr.bf16.mxu0 0
      %875 = vmatmul.mubr.bf16.gmra.mrb[0].mxu0 %v663
      %v876 = vpop.f32.mrb[0].mxu0
      %v877 = vpop.f32.mrb[0].mxu0
      %v878 = vpop.f32.mrb[0].mxu0
      %v879 = vpop.f32.mrb[0].mxu0
      %880 = vmatprep.mubr.bf16.mxu0 0
      %881 = vmatmul.mubr.bf16.gmra.mrb[0].mxu0 %v664
      %v882 = vpop.f32.mrb[0].mxu0
      %v883 = vpop.f32.mrb[0].mxu0
      %v884 = vpop.f32.mrb[0].mxu0
      %v885 = vpop.f32.mrb[0].mxu0
      %886 = vdwg.mxu0
      %v903 = vunpack.c.l.b16 %v472
      %v904 = vunpack.c.l.b16 %v473
      %v905 = vunpack.c.l.b16 %v474
      %v906 = vunpack.c.l.b16 %v475
      %v907 = vunpack.c.l.b16 %v476
      %v908 = vunpack.c.l.b16 %v477
      %v909 = vunpack.c.l.b16 %v478
      %v910 = vunpack.c.l.b16 %v479
      %v911 = vunpack.c.l.b16 %v480
      %v912 = vunpack.c.l.b16 %v481
      %v913 = vunpack.c.l.b16 %v482
      %v914 = vunpack.c.l.b16 %v483
      %v915 = vunpack.c.l.b16 %v484
      %v916 = vunpack.c.l.b16 %v485
      %v917 = vunpack.c.l.b16 %v486
      %v918 = vunpack.c.l.b16 %v487
      %v919 = vpack.c.b16 %v904, %v903
      %v920 = vpack.c.b16 %v906, %v905
      %v921 = vpack.c.b16 %v908, %v907
      %v922 = vpack.c.b16 %v910, %v909
      %v923 = vpack.c.b16 %v912, %v911
      %v924 = vpack.c.b16 %v914, %v913
      %v925 = vpack.c.b16 %v916, %v915
      %v926 = vpack.c.b16 %v918, %v917
      %935 = vmatprep.subr.bf16.mxu0 0
      %936 = vmatpush1.bf16.msra.mxu0 %v919
      %937 = vmatprep.subr.bf16.mxu0 0
      %938 = vmatpush1.bf16.msra.mxu0 %v920
      %939 = vmatprep.subr.bf16.mxu0 0
      %940 = vmatpush1.bf16.msra.mxu0 %v921
      %941 = vmatprep.subr.bf16.mxu0 0
      %942 = vmatpush1.bf16.msra.mxu0 %v922
      %943 = vmatprep.subr.bf16.mxu0 0
      %944 = vmatpush1.bf16.msra.mxu0 %v923
      %945 = vmatprep.subr.bf16.mxu0 0
      %946 = vmatpush1.bf16.msra.mxu0 %v924
      %947 = vmatprep.subr.bf16.mxu0 0
      %948 = vmatpush1.bf16.msra.mxu0 %v925
      %949 = vmatprep.subr.bf16.mxu0 0
      %950 = vmatpush1.bf16.msra.mxu0 %v926
      %951 = vmatprep.subr.bf16.mxu0 0
      %952 = vmatpush1.bf16.msra.mxu0 0
      %953 = vmatprep.subr.bf16.mxu0 0
      %954 = vmatpush1.bf16.msra.mxu0 0
      %955 = vmatprep.subr.bf16.mxu0 0
      %956 = vmatpush1.bf16.msra.mxu0 0
      %957 = vmatprep.subr.bf16.mxu0 0
      %958 = vmatpush1.bf16.msra.mxu0 0
      %959 = vmatprep.subr.bf16.mxu0 0
      %960 = vmatpush1.bf16.msra.mxu0 0
      %961 = vmatprep.subr.bf16.mxu0 0
      %962 = vmatpush1.bf16.msra.mxu0 0
      %963 = vmatprep.subr.bf16.mxu0 0
      %964 = vmatpush1.bf16.msra.mxu0 0
      %965 = vmatprep.subr.bf16.mxu0 0
      %966 = vmatpush1.bf16.msra.mxu0 0
      %967 = vmatprep.mubr.bf16.mxu0 0
      %968 = vmatmul.mubr.bf16.gmra.mrb[0].mxu0 %v456
      %v969 = vpop.f32.mrb[0].mxu0
      %v970 = vadd.f32 %v765, %v969
      %v971 = vpop.f32.mrb[0].mxu0
      %v972 = vpop.f32.mrb[0].mxu0
      %v973 = vadd.f32 %v768, %v972
      %v974 = vpop.f32.mrb[0].mxu0
      %975 = vmatprep.mubr.bf16.mxu0 0
      %976 = vmatmul.mubr.bf16.gmra.mrb[0].mxu0 %v457
      %v977 = vpop.f32.mrb[0].mxu0
      %v978 = vadd.f32 %v773, %v977
      %v979 = vpop.f32.mrb[0].mxu0
      %v980 = vpop.f32.mrb[0].mxu0
      %v981 = vadd.f32 %v776, %v980
      %v982 = vpop.f32.mrb[0].mxu0
      %983 = vmatprep.mubr.bf16.mxu0 0
      %984 = vmatmul.mubr.bf16.gmra.mrb[0].mxu0 %v458
      %v985 = vpop.f32.mrb[0].mxu0
      %v986 = vadd.f32 %v781, %v985
      %v987 = vpop.f32.mrb[0].mxu0
      %v988 = vpop.f32.mrb[0].mxu0
      %v989 = vadd.f32 %v784, %v988
      %v990 = vpop.f32.mrb[0].mxu0
      %991 = vmatprep.mubr.bf16.mxu0 0
      %992 = vmatmul.mubr.bf16.gmra.mrb[0].mxu0 %v459
      %v993 = vpop.f32.mrb[0].mxu0
      %v994 = vadd.f32 %v789, %v993
      %v995 = vpop.f32.mrb[0].mxu0
      %v996 = vpop.f32.mrb[0].mxu0
      %v997 = vadd.f32 %v792, %v996
      %v998 = vpop.f32.mrb[0].mxu0
      %999 = vmatprep.mubr.bf16.mxu0 0
      %1000 = vmatmul.mubr.bf16.gmra.mrb[0].mxu0 %v460
      %v1001 = vpop.f32.mrb[0].mxu0
      %v1002 = vadd.f32 %v797, %v1001
      %v1003 = vpop.f32.mrb[0].mxu0
      %v1004 = vpop.f32.mrb[0].mxu0
      %v1005 = vadd.f32 %v800, %v1004
      %v1006 = vpop.f32.mrb[0].mxu0
      %1007 = vmatprep.mubr.bf16.mxu0 0
      %1008 = vmatmul.mubr.bf16.gmra.mrb[0].mxu0 %v461
      %v1009 = vpop.f32.mrb[0].mxu0
      %v1010 = vadd.f32 %v805, %v1009
      %v1011 = vpop.f32.mrb[0].mxu0
      %v1012 = vpop.f32.mrb[0].mxu0
      %v1013 = vadd.f32 %v808, %v1012
      %v1014 = vpop.f32.mrb[0].mxu0
      %1015 = vmatprep.mubr.bf16.mxu0 0
      %1016 = vmatmul.mubr.bf16.gmra.mrb[0].mxu0 %v462
      %v1017 = vpop.f32.mrb[0].mxu0
      %v1018 = vadd.f32 %v813, %v1017
      %v1019 = vpop.f32.mrb[0].mxu0
      %v1020 = vpop.f32.mrb[0].mxu0
      %v1021 = vadd.f32 %v816, %v1020
      %v1022 = vpop.f32.mrb[0].mxu0
      %1023 = vmatprep.mubr.bf16.mxu0 0
      %1024 = vmatmul.mubr.bf16.gmra.mrb[0].mxu0 %v463
      %v1025 = vpop.f32.mrb[0].mxu0
      %v1026 = vadd.f32 %v821, %v1025
      %v1027 = vpop.f32.mrb[0].mxu0
      %v1028 = vpop.f32.mrb[0].mxu0
      %v1029 = vadd.f32 %v824, %v1028
      %v1030 = vpop.f32.mrb[0].mxu0
      %1031 = vmatprep.mubr.bf16.mxu0 0
      %1032 = vmatmul.mubr.bf16.gmra.mrb[0].mxu0 %v464
      %v1033 = vpop.f32.mrb[0].mxu0
      %v1034 = vadd.f32 %v829, %v1033
      %v1035 = vpop.f32.mrb[0].mxu0
      %v1036 = vpop.f32.mrb[0].mxu0
      %v1037 = vadd.f32 %v832, %v1036
      %v1038 = vpop.f32.mrb[0].mxu0
      %1039 = vmatprep.mubr.bf16.mxu0 0
      %1040 = vmatmul.mubr.bf16.gmra.mrb[0].mxu0 %v465
      %v1041 = vpop.f32.mrb[0].mxu0
      %v1042 = vadd.f32 %v837, %v1041
      %v1043 = vpop.f32.mrb[0].mxu0
      %v1044 = vpop.f32.mrb[0].mxu0
      %v1045 = vadd.f32 %v840, %v1044
      %v1046 = vpop.f32.mrb[0].mxu0
      %1047 = vmatprep.mubr.bf16.mxu0 0
      %1048 = vmatmul.mubr.bf16.gmra.mrb[0].mxu0 %v466
      %v1049 = vpop.f32.mrb[0].mxu0
      %v1050 = vadd.f32 %v845, %v1049
      %v1051 = vpop.f32.mrb[0].mxu0
      %v1052 = vpop.f32.mrb[0].mxu0
      %v1053 = vadd.f32 %v848, %v1052
      %v1054 = vpop.f32.mrb[0].mxu0
      %1055 = vmatprep.mubr.bf16.mxu0 0
      %1056 = vmatmul.mubr.bf16.gmra.mrb[0].mxu0 %v467
      %v1057 = vpop.f32.mrb[0].mxu0
      %v1058 = vadd.f32 %v853, %v1057
      %v1059 = vpop.f32.mrb[0].mxu0
      %v1060 = vpop.f32.mrb[0].mxu0
      %v1061 = vadd.f32 %v856, %v1060
      %v1062 = vpop.f32.mrb[0].mxu0
      %1063 = vmatprep.mubr.bf16.mxu0 0
      %1064 = vmatmul.mubr.bf16.gmra.mrb[0].mxu0 %v468
      %v1065 = vpop.f32.mrb[0].mxu0
      %v1066 = vadd.f32 %v861, %v1065
      %v1067 = vpop.f32.mrb[0].mxu0
      %v1068 = vpop.f32.mrb[0].mxu0
      %v1069 = vadd.f32 %v864, %v1068
      %v1070 = vpop.f32.mrb[0].mxu0
      %1071 = vmatprep.mubr.bf16.mxu0 0
      %1072 = vmatmul.mubr.bf16.gmra.mrb[0].mxu0 %v469
      %v1073 = vpop.f32.mrb[0].mxu0
      %v1074 = vadd.f32 %v869, %v1073
      %v1075 = vpop.f32.mrb[0].mxu0
      %v1076 = vpop.f32.mrb[0].mxu0
      %v1077 = vadd.f32 %v872, %v1076
      %v1078 = vpop.f32.mrb[0].mxu0
      %1079 = vmatprep.mubr.bf16.mxu0 0
      %1080 = vmatmul.mubr.bf16.gmra.mrb[0].mxu0 %v470
      %v1081 = vpop.f32.mrb[0].mxu0
      %v1082 = vpop.f32.mrb[0].mxu0
      %v1083 = vpop.f32.mrb[0].mxu0
      %v1084 = vpop.f32.mrb[0].mxu0
      %1085 = vmatprep.mubr.bf16.mxu0 0
      %1086 = vmatmul.mubr.bf16.gmra.mrb[0].mxu0 %v471
      %v1087 = vpop.f32.mrb[0].mxu0
      %v1088 = vpop.f32.mrb[0].mxu0
      %v1089 = vpop.f32.mrb[0].mxu0
      %v1090 = vpop.f32.mrb[0].mxu0
      %1091 = vdwg.mxu0
      %vm1092 = vcmask 1045504
      %v1093 = vrot.slane %v402, 2
      %v1094 = vrot.slane %v403, 2
      %v1095 = vsel %vm1092, %v1093, %v1094
      %v1096 = vrot.slane %v404, 2
      %v1097 = vsel %vm1092, %v1094, %v1096
      %v1098 = vrot.slane %v405, 2
      %v1099 = vrot.slane %v406, 2
      %v1100 = vsel %vm1092, %v1098, %v1099
      %v1101 = vrot.slane %v407, 2
      %v1102 = vsel %vm1092, %v1099, %v1101
      %v1103 = vrot.slane %v408, 2
      %v1104 = vrot.slane %v409, 2
      %v1105 = vsel %vm1092, %v1103, %v1104
      %v1106 = vrot.slane %v410, 2
      %v1107 = vsel %vm1092, %v1104, %v1106
      %v1108 = vrot.slane %v411, 2
      %v1109 = vrot.slane %v412, 2
      %v1110 = vsel %vm1092, %v1108, %v1109
      %v1111 = vrot.slane %v413, 2
      %v1112 = vsel %vm1092, %v1109, %v1111
      %v1113 = vrot.slane %v414, 2
      %v1114 = vrot.slane %v415, 2
      %v1115 = vsel %vm1092, %v1113, %v1114
      %v1116 = vrot.slane %v416, 2
      %v1117 = vsel %vm1092, %v1114, %v1116
      %v1118 = vrot.slane %v417, 2
      %v1119 = vrot.slane %v418, 2
      %v1120 = vsel %vm1092, %v1118, %v1119
      %v1121 = vrot.slane %v419, 2
      %v1122 = vsel %vm1092, %v1119, %v1121
      %v1123 = vrot.slane %v420, 2
      %v1124 = vrot.slane %v421, 2
      %v1125 = vsel %vm1092, %v1123, %v1124
      %v1126 = vrot.slane %v422, 2
      %v1127 = vsel %vm1092, %v1124, %v1126
      %v1128 = vrot.slane %v423, 2
      %v1129 = vrot.slane %v424, 2
      %v1130 = vsel %vm1092, %v1128, %v1129
      %v1131 = vrot.slane %v425, 2
      %v1132 = vsel %vm1092, %v1129, %v1131
      %v1133 = vrot.slane %v426, 2
      %v1134 = vrot.slane %v427, 2
      %v1135 = vsel %vm1092, %v1133, %v1134
      %v1136 = vrot.slane %v428, 2
      %v1137 = vsel %vm1092, %v1134, %v1136
      %v1138 = vrot.slane %v429, 2
      %v1139 = vrot.slane %v430, 2
      %v1140 = vsel %vm1092, %v1138, %v1139
      %v1141 = vrot.slane %v431, 2
      %v1142 = vsel %vm1092, %v1139, %v1141
      %v1143 = vrot.slane %v432, 2
      %v1144 = vrot.slane %v433, 2
      %v1145 = vsel %vm1092, %v1143, %v1144
      %v1146 = vrot.slane %v434, 2
      %v1147 = vsel %vm1092, %v1144, %v1146
      %v1148 = vrot.slane %v435, 2
      %v1149 = vrot.slane %v436, 2
      %v1150 = vsel %vm1092, %v1148, %v1149
      %v1151 = vrot.slane %v437, 2
      %v1152 = vsel %vm1092, %v1149, %v1151
      %v1153 = vrot.slane %v438, 2
      %v1154 = vrot.slane %v439, 2
      %v1155 = vsel %vm1092, %v1153, %v1154
      %v1156 = vrot.slane %v440, 2
      %v1157 = vsel %vm1092, %v1154, %v1156
      %v1158 = vrot.slane %v441, 2
      %v1159 = vrot.slane %v442, 2
      %v1160 = vsel %vm1092, %v1158, %v1159
      %v1161 = vrot.slane %v443, 2
      %v1162 = vsel %vm1092, %v1159, %v1161
      %v1163 = vrot.slane %v444, 2
      %v1164 = vrot.slane %v445, 2
      %v1165 = vsel %vm1092, %v1163, %v1164
      %v1166 = vrot.slane %v446, 2
      %v1167 = vsel %vm1092, %v1164, %v1166
      %v1168 = vrot.slane %v447, 2
      %v1169 = vrot.slane %v448, 2
      %v1170 = vsel %vm1092, %v1168, %v1169
      %v1171 = vrot.slane %v449, 2
      %v1172 = vsel %vm1092, %v1169, %v1171
      %v1205 = vpack.c.bf16 %v1097, %v1095
      %v1206 = vpack.c.bf16 %v1102, %v1100
      %v1207 = vpack.c.bf16 %v1107, %v1105
      %v1208 = vpack.c.bf16 %v1112, %v1110
      %v1209 = vpack.c.bf16 %v1117, %v1115
      %v1210 = vpack.c.bf16 %v1122, %v1120
      %v1211 = vpack.c.bf16 %v1127, %v1125
      %v1212 = vpack.c.bf16 %v1132, %v1130
      %v1213 = vpack.c.bf16 %v1137, %v1135
      %v1214 = vpack.c.bf16 %v1142, %v1140
      %v1215 = vpack.c.bf16 %v1147, %v1145
      %v1216 = vpack.c.bf16 %v1152, %v1150
      %v1217 = vpack.c.bf16 %v1157, %v1155
      %v1218 = vpack.c.bf16 %v1162, %v1160
      %v1219 = vpack.c.bf16 %v1167, %v1165
      %v1220 = vpack.c.bf16 %v1172, %v1170
      %s1221 = scalar_lea.vmem %s3, 128
      %v1222 = vld [vmem:[%s1221] sm:$0xf]
      %v1223 = vld [vmem:[%s1221 + $0x4] sm:$0xf]
      %v1224 = vld [vmem:[%s1221 + $0x8] sm:$0xf]
      %v1225 = vld [vmem:[%s1221 + $0xc] sm:$0xf]
      %v1226 = vld [vmem:[%s1221 + $0x10] sm:$0xf]
      %v1227 = vld [vmem:[%s1221 + $0x14] sm:$0xf]
      %v1228 = vld [vmem:[%s1221 + $0x18] sm:$0xf]
      %v1229 = vld [vmem:[%s1221 + $0x1c] sm:$0xf]
      %v1230 = vld [vmem:[%s1221 + $0x20] sm:$0xf]
      %v1231 = vld [vmem:[%s1221 + $0x24] sm:$0xf]
      %v1232 = vld [vmem:[%s1221 + $0x28] sm:$0xf]
      %v1233 = vld [vmem:[%s1221 + $0x2c] sm:$0xf]
      %v1234 = vld [vmem:[%s1221 + $0x30] sm:$0xf]
      %v1235 = vld [vmem:[%s1221 + $0x34] sm:$0xf]
      %v1236 = vld [vmem:[%s1221 + $0x38] sm:$0xf]
      %v1237 = vld [vmem:[%s1221 + $0x3c] sm:$0xf]
      %v1254 = vunpack.c.l.b16 %v1222
      %v1255 = vunpack.c.l.b16 %v1223
      %v1256 = vunpack.c.l.b16 %v1224
      %v1257 = vunpack.c.l.b16 %v1225
      %v1258 = vunpack.c.l.b16 %v1226
      %v1259 = vunpack.c.l.b16 %v1227
      %v1260 = vunpack.c.l.b16 %v1228
      %v1261 = vunpack.c.l.b16 %v1229
      %v1262 = vunpack.c.l.b16 %v1230
      %v1263 = vunpack.c.l.b16 %v1231
      %v1264 = vunpack.c.l.b16 %v1232
      %v1265 = vunpack.c.l.b16 %v1233
      %v1266 = vunpack.c.l.b16 %v1234
      %v1267 = vunpack.c.l.b16 %v1235
      %v1268 = vunpack.c.l.b16 %v1236
      %v1269 = vunpack.c.l.b16 %v1237
      %v1270 = vpack.c.b16 %v1255, %v1254
      %v1271 = vpack.c.b16 %v1257, %v1256
      %v1272 = vpack.c.b16 %v1259, %v1258
      %v1273 = vpack.c.b16 %v1261, %v1260
      %v1274 = vpack.c.b16 %v1263, %v1262
      %v1275 = vpack.c.b16 %v1265, %v1264
      %v1276 = vpack.c.b16 %v1267, %v1266
      %v1277 = vpack.c.b16 %v1269, %v1268
      %1286 = vmatprep.subr.bf16.mxu0 0
      %1287 = vmatpush1.bf16.msra.mxu0 %v1270
      %1288 = vmatprep.subr.bf16.mxu0 0
      %1289 = vmatpush1.bf16.msra.mxu0 %v1271
      %1290 = vmatprep.subr.bf16.mxu0 0
      %1291 = vmatpush1.bf16.msra.mxu0 %v1272
      %1292 = vmatprep.subr.bf16.mxu0 0
      %1293 = vmatpush1.bf16.msra.mxu0 %v1273
      %1294 = vmatprep.subr.bf16.mxu0 0
      %1295 = vmatpush1.bf16.msra.mxu0 %v1274
      %1296 = vmatprep.subr.bf16.mxu0 0
      %1297 = vmatpush1.bf16.msra.mxu0 %v1275
      %1298 = vmatprep.subr.bf16.mxu0 0
      %1299 = vmatpush1.bf16.msra.mxu0 %v1276
      %1300 = vmatprep.subr.bf16.mxu0 0
      %1301 = vmatpush1.bf16.msra.mxu0 %v1277
      %1302 = vmatprep.subr.bf16.mxu0 0
      %1303 = vmatpush1.bf16.msra.mxu0 0
      %1304 = vmatprep.subr.bf16.mxu0 0
      %1305 = vmatpush1.bf16.msra.mxu0 0
      %1306 = vmatprep.subr.bf16.mxu0 0
      %1307 = vmatpush1.bf16.msra.mxu0 0
      %1308 = vmatprep.subr.bf16.mxu0 0
      %1309 = vmatpush1.bf16.msra.mxu0 0
      %1310 = vmatprep.subr.bf16.mxu0 0
      %1311 = vmatpush1.bf16.msra.mxu0 0
      %1312 = vmatprep.subr.bf16.mxu0 0
      %1313 = vmatpush1.bf16.msra.mxu0 0
      %1314 = vmatprep.subr.bf16.mxu0 0
      %1315 = vmatpush1.bf16.msra.mxu0 0
      %1316 = vmatprep.subr.bf16.mxu0 0
      %1317 = vmatpush1.bf16.msra.mxu0 0
      %1318 = vmatprep.mubr.bf16.mxu0 0
      %1319 = vmatmul.mubr.bf16.gmra.mrb[0].mxu0 %v1205
      %v1320 = vpop.f32.mrb[0].mxu0
      %v1321 = vadd.f32 0.0, %v1320
      %v1322 = vpop.f32.mrb[0].mxu0
      %v1323 = vpop.f32.mrb[0].mxu0
      %v1324 = vadd.f32 0.0, %v1323
      %v1325 = vpop.f32.mrb[0].mxu0
      %1326 = vmatprep.mubr.bf16.mxu0 0
      %1327 = vmatmul.mubr.bf16.gmra.mrb[0].mxu0 %v1206
      %v1328 = vpop.f32.mrb[0].mxu0
      %v1329 = vadd.f32 0.0, %v1328
      %v1330 = vpop.f32.mrb[0].mxu0
      %v1331 = vpop.f32.mrb[0].mxu0
      %v1332 = vadd.f32 0.0, %v1331
      %v1333 = vpop.f32.mrb[0].mxu0
      %1334 = vmatprep.mubr.bf16.mxu0 0
      %1335 = vmatmul.mubr.bf16.gmra.mrb[0].mxu0 %v1207
      %v1336 = vpop.f32.mrb[0].mxu0
      %v1337 = vadd.f32 0.0, %v1336
      %v1338 = vpop.f32.mrb[0].mxu0
      %v1339 = vpop.f32.mrb[0].mxu0
      %v1340 = vadd.f32 0.0, %v1339
      %v1341 = vpop.f32.mrb[0].mxu0
      %1342 = vmatprep.mubr.bf16.mxu0 0
      %1343 = vmatmul.mubr.bf16.gmra.mrb[0].mxu0 %v1208
      %v1344 = vpop.f32.mrb[0].mxu0
      %v1345 = vadd.f32 0.0, %v1344
      %v1346 = vpop.f32.mrb[0].mxu0
      %v1347 = vpop.f32.mrb[0].mxu0
      %v1348 = vadd.f32 0.0, %v1347
      %v1349 = vpop.f32.mrb[0].mxu0
      %1350 = vmatprep.mubr.bf16.mxu0 0
      %1351 = vmatmul.mubr.bf16.gmra.mrb[0].mxu0 %v1209
      %v1352 = vpop.f32.mrb[0].mxu0
      %v1353 = vadd.f32 0.0, %v1352
      %v1354 = vpop.f32.mrb[0].mxu0
      %v1355 = vpop.f32.mrb[0].mxu0
      %v1356 = vadd.f32 0.0, %v1355
      %v1357 = vpop.f32.mrb[0].mxu0
      %1358 = vmatprep.mubr.bf16.mxu0 0
      %1359 = vmatmul.mubr.bf16.gmra.mrb[0].mxu0 %v1210
      %v1360 = vpop.f32.mrb[0].mxu0
      %v1361 = vadd.f32 0.0, %v1360
      %v1362 = vpop.f32.mrb[0].mxu0
      %v1363 = vpop.f32.mrb[0].mxu0
      %v1364 = vadd.f32 0.0, %v1363
      %v1365 = vpop.f32.mrb[0].mxu0
      %1366 = vmatprep.mubr.bf16.mxu0 0
      %1367 = vmatmul.mubr.bf16.gmra.mrb[0].mxu0 %v1211
      %v1368 = vpop.f32.mrb[0].mxu0
      %v1369 = vadd.f32 0.0, %v1368
      %v1370 = vpop.f32.mrb[0].mxu0
      %v1371 = vpop.f32.mrb[0].mxu0
      %v1372 = vadd.f32 0.0, %v1371
      %v1373 = vpop.f32.mrb[0].mxu0
      %1374 = vmatprep.mubr.bf16.mxu0 0
      %1375 = vmatmul.mubr.bf16.gmra.mrb[0].mxu0 %v1212
      %v1376 = vpop.f32.mrb[0].mxu0
      %v1377 = vadd.f32 0.0, %v1376
      %v1378 = vpop.f32.mrb[0].mxu0
      %v1379 = vpop.f32.mrb[0].mxu0
      %v1380 = vadd.f32 0.0, %v1379
      %v1381 = vpop.f32.mrb[0].mxu0
      %1382 = vmatprep.mubr.bf16.mxu0 0
      %1383 = vmatmul.mubr.bf16.gmra.mrb[0].mxu0 %v1213
      %v1384 = vpop.f32.mrb[0].mxu0
      %v1385 = vadd.f32 0.0, %v1384
      %v1386 = vpop.f32.mrb[0].mxu0
      %v1387 = vpop.f32.mrb[0].mxu0
      %v1388 = vadd.f32 0.0, %v1387
      %v1389 = vpop.f32.mrb[0].mxu0
      %1390 = vmatprep.mubr.bf16.mxu0 0
      %1391 = vmatmul.mubr.bf16.gmra.mrb[0].mxu0 %v1214
      %v1392 = vpop.f32.mrb[0].mxu0
      %v1393 = vadd.f32 0.0, %v1392
      %v1394 = vpop.f32.mrb[0].mxu0
      %v1395 = vpop.f32.mrb[0].mxu0
      %v1396 = vadd.f32 0.0, %v1395
      %v1397 = vpop.f32.mrb[0].mxu0
      %1398 = vmatprep.mubr.bf16.mxu0 0
      %1399 = vmatmul.mubr.bf16.gmra.mrb[0].mxu0 %v1215
      %v1400 = vpop.f32.mrb[0].mxu0
      %v1401 = vadd.f32 0.0, %v1400
      %v1402 = vpop.f32.mrb[0].mxu0
      %v1403 = vpop.f32.mrb[0].mxu0
      %v1404 = vadd.f32 0.0, %v1403
      %v1405 = vpop.f32.mrb[0].mxu0
      %1406 = vmatprep.mubr.bf16.mxu0 0
      %1407 = vmatmul.mubr.bf16.gmra.mrb[0].mxu0 %v1216
      %v1408 = vpop.f32.mrb[0].mxu0
      %v1409 = vadd.f32 0.0, %v1408
      %v1410 = vpop.f32.mrb[0].mxu0
      %v1411 = vpop.f32.mrb[0].mxu0
      %v1412 = vadd.f32 0.0, %v1411
      %v1413 = vpop.f32.mrb[0].mxu0
      %1414 = vmatprep.mubr.bf16.mxu0 0
      %1415 = vmatmul.mubr.bf16.gmra.mrb[0].mxu0 %v1217
      %v1416 = vpop.f32.mrb[0].mxu0
      %v1417 = vadd.f32 0.0, %v1416
      %v1418 = vpop.f32.mrb[0].mxu0
      %v1419 = vpop.f32.mrb[0].mxu0
      %v1420 = vadd.f32 0.0, %v1419
      %v1421 = vpop.f32.mrb[0].mxu0
      %1422 = vmatprep.mubr.bf16.mxu0 0
      %1423 = vmatmul.mubr.bf16.gmra.mrb[0].mxu0 %v1218
      %v1424 = vpop.f32.mrb[0].mxu0
      %v1425 = vadd.f32 0.0, %v1424
      %v1426 = vpop.f32.mrb[0].mxu0
      %v1427 = vpop.f32.mrb[0].mxu0
      %v1428 = vadd.f32 0.0, %v1427
      %v1429 = vpop.f32.mrb[0].mxu0
      %1430 = vmatprep.mubr.bf16.mxu0 0
      %1431 = vmatmul.mubr.bf16.gmra.mrb[0].mxu0 %v1219
      %v1432 = vpop.f32.mrb[0].mxu0
      %v1433 = vpop.f32.mrb[0].mxu0
      %v1434 = vpop.f32.mrb[0].mxu0
      %v1435 = vpop.f32.mrb[0].mxu0
      %1436 = vmatprep.mubr.bf16.mxu0 0
      %1437 = vmatmul.mubr.bf16.gmra.mrb[0].mxu0 %v1220
      %v1438 = vpop.f32.mrb[0].mxu0
      %v1439 = vpop.f32.mrb[0].mxu0
      %v1440 = vpop.f32.mrb[0].mxu0
      %v1441 = vpop.f32.mrb[0].mxu0
      %1442 = vdwg.mxu0
      %v1443 = vadd.f32 %v970, %v1321
      %v1444 = vadd.f32 %v973, %v1324
      %v1445 = vadd.f32 %v978, %v1329
      %v1446 = vadd.f32 %v981, %v1332
      %v1447 = vadd.f32 %v986, %v1337
      %v1448 = vadd.f32 %v989, %v1340
      %v1449 = vadd.f32 %v994, %v1345
      %v1450 = vadd.f32 %v997, %v1348
      %v1451 = vadd.f32 %v1002, %v1353
      %v1452 = vadd.f32 %v1005, %v1356
      %v1453 = vadd.f32 %v1010, %v1361
      %v1454 = vadd.f32 %v1013, %v1364
      %v1455 = vadd.f32 %v1018, %v1369
      %v1456 = vadd.f32 %v1021, %v1372
      %v1457 = vadd.f32 %v1026, %v1377
      %v1458 = vadd.f32 %v1029, %v1380
      %v1459 = vadd.f32 %v1034, %v1385
      %v1460 = vadd.f32 %v1037, %v1388
      %v1461 = vadd.f32 %v1042, %v1393
      %v1462 = vadd.f32 %v1045, %v1396
      %v1463 = vadd.f32 %v1050, %v1401
      %v1464 = vadd.f32 %v1053, %v1404
      %v1465 = vadd.f32 %v1058, %v1409
      %v1466 = vadd.f32 %v1061, %v1412
      %v1467 = vadd.f32 %v1066, %v1417
      %v1468 = vadd.f32 %v1069, %v1420
      %v1469 = vadd.f32 %v1074, %v1425
      %v1470 = vadd.f32 %v1077, %v1428
      %v1471 = vpack.c.bf16 %v451, %v450
      %s1472 = scalar_lea.vmem %s3, 192
      %v1473 = vld [vmem:[%s1472] sm:$0xf]
      %v1474 = vld [vmem:[%s1472 + $0x4] sm:$0xf]
      %v1475 = vld [vmem:[%s1472 + $0x8] sm:$0xf]
      %v1476 = vld [vmem:[%s1472 + $0xc] sm:$0xf]
      %v1477 = vld [vmem:[%s1472 + $0x10] sm:$0xf]
      %v1478 = vld [vmem:[%s1472 + $0x14] sm:$0xf]
      %v1479 = vld [vmem:[%s1472 + $0x18] sm:$0xf]
      %v1480 = vld [vmem:[%s1472 + $0x1c] sm:$0xf]
      %v1481 = vld [vmem:[%s1472 + $0x20] sm:$0xf]
      %v1482 = vld [vmem:[%s1472 + $0x24] sm:$0xf]
      %v1483 = vld [vmem:[%s1472 + $0x28] sm:$0xf]
      %v1484 = vld [vmem:[%s1472 + $0x2c] sm:$0xf]
      %v1485 = vld [vmem:[%s1472 + $0x30] sm:$0xf]
      %v1486 = vld [vmem:[%s1472 + $0x34] sm:$0xf]
      %v1487 = vld [vmem:[%s1472 + $0x38] sm:$0xf]
      %v1488 = vld [vmem:[%s1472 + $0x3c] sm:$0xf]
      %v1505 = vunpack.c.l.b16 %v1473
      %v1506 = vunpack.c.l.b16 %v1474
      %v1507 = vunpack.c.l.b16 %v1475
      %v1508 = vunpack.c.l.b16 %v1476
      %v1509 = vunpack.c.l.b16 %v1477
      %v1510 = vunpack.c.l.b16 %v1478
      %v1511 = vunpack.c.l.b16 %v1479
      %v1512 = vunpack.c.l.b16 %v1480
      %v1513 = vunpack.c.l.b16 %v1481
      %v1514 = vunpack.c.l.b16 %v1482
      %v1515 = vunpack.c.l.b16 %v1483
      %v1516 = vunpack.c.l.b16 %v1484
      %v1517 = vunpack.c.l.b16 %v1485
      %v1518 = vunpack.c.l.b16 %v1486
      %v1519 = vunpack.c.l.b16 %v1487
      %v1520 = vunpack.c.l.b16 %v1488
      %v1521 = vpack.c.b16 %v1506, %v1505
      %v1522 = vpack.c.b16 %v1508, %v1507
      %v1523 = vpack.c.b16 %v1510, %v1509
      %v1524 = vpack.c.b16 %v1512, %v1511
      %v1525 = vpack.c.b16 %v1514, %v1513
      %v1526 = vpack.c.b16 %v1516, %v1515
      %v1527 = vpack.c.b16 %v1518, %v1517
      %v1528 = vpack.c.b16 %v1520, %v1519
      %1537 = vmatprep.subr.bf16.mxu0 0
      %1538 = vmatpush1.bf16.msra.mxu0 %v1521
      %1539 = vmatprep.subr.bf16.mxu0 0
      %1540 = vmatpush1.bf16.msra.mxu0 %v1522
      %1541 = vmatprep.subr.bf16.mxu0 0
      %1542 = vmatpush1.bf16.msra.mxu0 %v1523
      %1543 = vmatprep.subr.bf16.mxu0 0
      %1544 = vmatpush1.bf16.msra.mxu0 %v1524
      %1545 = vmatprep.subr.bf16.mxu0 0
      %1546 = vmatpush1.bf16.msra.mxu0 %v1525
      %1547 = vmatprep.subr.bf16.mxu0 0
      %1548 = vmatpush1.bf16.msra.mxu0 %v1526
      %1549 = vmatprep.subr.bf16.mxu0 0
      %1550 = vmatpush1.bf16.msra.mxu0 %v1527
      %1551 = vmatprep.subr.bf16.mxu0 0
      %1552 = vmatpush1.bf16.msra.mxu0 %v1528
      %1553 = vmatprep.subr.bf16.mxu0 0
      %1554 = vmatpush1.bf16.msra.mxu0 0
      %1555 = vmatprep.subr.bf16.mxu0 0
      %1556 = vmatpush1.bf16.msra.mxu0 0
      %1557 = vmatprep.subr.bf16.mxu0 0
      %1558 = vmatpush1.bf16.msra.mxu0 0
      %1559 = vmatprep.subr.bf16.mxu0 0
      %1560 = vmatpush1.bf16.msra.mxu0 0
      %1561 = vmatprep.subr.bf16.mxu0 0
      %1562 = vmatpush1.bf16.msra.mxu0 0
      %1563 = vmatprep.subr.bf16.mxu0 0
      %1564 = vmatpush1.bf16.msra.mxu0 0
      %1565 = vmatprep.subr.bf16.mxu0 0
      %1566 = vmatpush1.bf16.msra.mxu0 0
      %1567 = vmatprep.subr.bf16.mxu0 0
      %1568 = vmatpush1.bf16.msra.mxu0 0
      %1569 = vmatprep.mubr.bf16.mxu0 0
      %1570 = vmatmul.mubr.bf16.gmra.mrb[0].mxu0 %v457
      %v1571 = vpop.f32.mrb[0].mxu0
      %v1572 = vadd.f32 0.0, %v1571
      %v1573 = vpop.f32.mrb[0].mxu0
      %v1574 = vpop.f32.mrb[0].mxu0
      %v1575 = vadd.f32 0.0, %v1574
      %v1576 = vpop.f32.mrb[0].mxu0
      %1577 = vmatprep.mubr.bf16.mxu0 0
      %1578 = vmatmul.mubr.bf16.gmra.mrb[0].mxu0 %v458
      %v1579 = vpop.f32.mrb[0].mxu0
      %v1580 = vadd.f32 0.0, %v1579
      %v1581 = vpop.f32.mrb[0].mxu0
      %v1582 = vpop.f32.mrb[0].mxu0
      %v1583 = vadd.f32 0.0, %v1582
      %v1584 = vpop.f32.mrb[0].mxu0
      %1585 = vmatprep.mubr.bf16.mxu0 0
      %1586 = vmatmul.mubr.bf16.gmra.mrb[0].mxu0 %v459
      %v1587 = vpop.f32.mrb[0].mxu0
      %v1588 = vadd.f32 0.0, %v1587
      %v1589 = vpop.f32.mrb[0].mxu0
      %v1590 = vpop.f32.mrb[0].mxu0
      %v1591 = vadd.f32 0.0, %v1590
      %v1592 = vpop.f32.mrb[0].mxu0
      %1593 = vmatprep.mubr.bf16.mxu0 0
      %1594 = vmatmul.mubr.bf16.gmra.mrb[0].mxu0 %v460
      %v1595 = vpop.f32.mrb[0].mxu0
      %v1596 = vadd.f32 0.0, %v1595
      %v1597 = vpop.f32.mrb[0].mxu0
      %v1598 = vpop.f32.mrb[0].mxu0
      %v1599 = vadd.f32 0.0, %v1598
      %v1600 = vpop.f32.mrb[0].mxu0
      %1601 = vmatprep.mubr.bf16.mxu0 0
      %1602 = vmatmul.mubr.bf16.gmra.mrb[0].mxu0 %v461
      %v1603 = vpop.f32.mrb[0].mxu0
      %v1604 = vadd.f32 0.0, %v1603
      %v1605 = vpop.f32.mrb[0].mxu0
      %v1606 = vpop.f32.mrb[0].mxu0
      %v1607 = vadd.f32 0.0, %v1606
      %v1608 = vpop.f32.mrb[0].mxu0
      %1609 = vmatprep.mubr.bf16.mxu0 0
      %1610 = vmatmul.mubr.bf16.gmra.mrb[0].mxu0 %v462
      %v1611 = vpop.f32.mrb[0].mxu0
      %v1612 = vadd.f32 0.0, %v1611
      %v1613 = vpop.f32.mrb[0].mxu0
      %v1614 = vpop.f32.mrb[0].mxu0
      %v1615 = vadd.f32 0.0, %v1614
      %v1616 = vpop.f32.mrb[0].mxu0
      %1617 = vmatprep.mubr.bf16.mxu0 0
      %1618 = vmatmul.mubr.bf16.gmra.mrb[0].mxu0 %v463
      %v1619 = vpop.f32.mrb[0].mxu0
      %v1620 = vadd.f32 0.0, %v1619
      %v1621 = vpop.f32.mrb[0].mxu0
      %v1622 = vpop.f32.mrb[0].mxu0
      %v1623 = vadd.f32 0.0, %v1622
      %v1624 = vpop.f32.mrb[0].mxu0
      %1625 = vmatprep.mubr.bf16.mxu0 0
      %1626 = vmatmul.mubr.bf16.gmra.mrb[0].mxu0 %v464
      %v1627 = vpop.f32.mrb[0].mxu0
      %v1628 = vadd.f32 0.0, %v1627
      %v1629 = vpop.f32.mrb[0].mxu0
      %v1630 = vpop.f32.mrb[0].mxu0
      %v1631 = vadd.f32 0.0, %v1630
      %v1632 = vpop.f32.mrb[0].mxu0
      %1633 = vmatprep.mubr.bf16.mxu0 0
      %1634 = vmatmul.mubr.bf16.gmra.mrb[0].mxu0 %v465
      %v1635 = vpop.f32.mrb[0].mxu0
      %v1636 = vadd.f32 0.0, %v1635
      %v1637 = vpop.f32.mrb[0].mxu0
      %v1638 = vpop.f32.mrb[0].mxu0
      %v1639 = vadd.f32 0.0, %v1638
      %v1640 = vpop.f32.mrb[0].mxu0
      %1641 = vmatprep.mubr.bf16.mxu0 0
      %1642 = vmatmul.mubr.bf16.gmra.mrb[0].mxu0 %v466
      %v1643 = vpop.f32.mrb[0].mxu0
      %v1644 = vadd.f32 0.0, %v1643
      %v1645 = vpop.f32.mrb[0].mxu0
      %v1646 = vpop.f32.mrb[0].mxu0
      %v1647 = vadd.f32 0.0, %v1646
      %v1648 = vpop.f32.mrb[0].mxu0
      %1649 = vmatprep.mubr.bf16.mxu0 0
      %1650 = vmatmul.mubr.bf16.gmra.mrb[0].mxu0 %v467
      %v1651 = vpop.f32.mrb[0].mxu0
      %v1652 = vadd.f32 0.0, %v1651
      %v1653 = vpop.f32.mrb[0].mxu0
      %v1654 = vpop.f32.mrb[0].mxu0
      %v1655 = vadd.f32 0.0, %v1654
      %v1656 = vpop.f32.mrb[0].mxu0
      %1657 = vmatprep.mubr.bf16.mxu0 0
      %1658 = vmatmul.mubr.bf16.gmra.mrb[0].mxu0 %v468
      %v1659 = vpop.f32.mrb[0].mxu0
      %v1660 = vadd.f32 0.0, %v1659
      %v1661 = vpop.f32.mrb[0].mxu0
      %v1662 = vpop.f32.mrb[0].mxu0
      %v1663 = vadd.f32 0.0, %v1662
      %v1664 = vpop.f32.mrb[0].mxu0
      %1665 = vmatprep.mubr.bf16.mxu0 0
      %1666 = vmatmul.mubr.bf16.gmra.mrb[0].mxu0 %v469
      %v1667 = vpop.f32.mrb[0].mxu0
      %v1668 = vadd.f32 0.0, %v1667
      %v1669 = vpop.f32.mrb[0].mxu0
      %v1670 = vpop.f32.mrb[0].mxu0
      %v1671 = vadd.f32 0.0, %v1670
      %v1672 = vpop.f32.mrb[0].mxu0
      %1673 = vmatprep.mubr.bf16.mxu0 0
      %1674 = vmatmul.mubr.bf16.gmra.mrb[0].mxu0 %v470
      %v1675 = vpop.f32.mrb[0].mxu0
      %v1676 = vadd.f32 0.0, %v1675
      %v1677 = vpop.f32.mrb[0].mxu0
      %v1678 = vpop.f32.mrb[0].mxu0
      %v1679 = vadd.f32 0.0, %v1678
      %v1680 = vpop.f32.mrb[0].mxu0
      %1681 = vmatprep.mubr.bf16.mxu0 0
      %1682 = vmatmul.mubr.bf16.gmra.mrb[0].mxu0 %v471
      %v1683 = vpop.f32.mrb[0].mxu0
      %v1684 = vpop.f32.mrb[0].mxu0
      %v1685 = vpop.f32.mrb[0].mxu0
      %v1686 = vpop.f32.mrb[0].mxu0
      %1687 = vmatprep.mubr.bf16.mxu0 0
      %1688 = vmatmul.mubr.bf16.gmra.mrb[0].mxu0 %v1471
      %v1689 = vpop.f32.mrb[0].mxu0
      %v1690 = vpop.f32.mrb[0].mxu0
      %v1691 = vpop.f32.mrb[0].mxu0
      %v1692 = vpop.f32.mrb[0].mxu0
      %1693 = vdwg.mxu0
      %v1694 = vadd.f32 %v1443, %v1572
      %v1695 = vadd.f32 %v1444, %v1575
      %v1696 = vadd.f32 %v1445, %v1580
      %v1697 = vadd.f32 %v1446, %v1583
      %v1698 = vadd.f32 %v1447, %v1588
      %v1699 = vadd.f32 %v1448, %v1591
      %v1700 = vadd.f32 %v1449, %v1596
      %v1701 = vadd.f32 %v1450, %v1599
      %v1702 = vadd.f32 %v1451, %v1604
      %v1703 = vadd.f32 %v1452, %v1607
      %v1704 = vadd.f32 %v1453, %v1612
      %v1705 = vadd.f32 %v1454, %v1615
      %v1706 = vadd.f32 %v1455, %v1620
      %v1707 = vadd.f32 %v1456, %v1623
      %v1708 = vadd.f32 %v1457, %v1628
      %v1709 = vadd.f32 %v1458, %v1631
      %v1710 = vadd.f32 %v1459, %v1636
      %v1711 = vadd.f32 %v1460, %v1639
      %v1712 = vadd.f32 %v1461, %v1644
      %v1713 = vadd.f32 %v1462, %v1647
      %v1714 = vadd.f32 %v1463, %v1652
      %v1715 = vadd.f32 %v1464, %v1655
      %v1716 = vadd.f32 %v1465, %v1660
      %v1717 = vadd.f32 %v1466, %v1663
      %v1718 = vadd.f32 %v1467, %v1668
      %v1719 = vadd.f32 %v1468, %v1671
      %v1720 = vadd.f32 %v1469, %v1676
      %v1721 = vadd.f32 %v1470, %v1679
      %v1725 = vrot.slane %v450, 1
      %v1726 = vrot.slane %v451, 1
      %v1727 = vsel %vm536, %v1725, %v1726
      %v1728 = vrot.slane %v452, 1
      %v1729 = vsel %vm536, %v1726, %v1728
      %v1732 = vpack.c.bf16 %v1729, %v1727
      %s1733 = scalar_lea.vmem %s3, 256
      %v1734 = vld [vmem:[%s1733] sm:$0xf]
      %v1735 = vld [vmem:[%s1733 + $0x4] sm:$0xf]
      %v1736 = vld [vmem:[%s1733 + $0x8] sm:$0xf]
      %v1737 = vld [vmem:[%s1733 + $0xc] sm:$0xf]
      %v1738 = vld [vmem:[%s1733 + $0x10] sm:$0xf]
      %v1739 = vld [vmem:[%s1733 + $0x14] sm:$0xf]
      %v1740 = vld [vmem:[%s1733 + $0x18] sm:$0xf]
      %v1741 = vld [vmem:[%s1733 + $0x1c] sm:$0xf]
      %v1742 = vld [vmem:[%s1733 + $0x20] sm:$0xf]
      %v1743 = vld [vmem:[%s1733 + $0x24] sm:$0xf]
      %v1744 = vld [vmem:[%s1733 + $0x28] sm:$0xf]
      %v1745 = vld [vmem:[%s1733 + $0x2c] sm:$0xf]
      %v1746 = vld [vmem:[%s1733 + $0x30] sm:$0xf]
      %v1747 = vld [vmem:[%s1733 + $0x34] sm:$0xf]
      %v1748 = vld [vmem:[%s1733 + $0x38] sm:$0xf]
      %v1749 = vld [vmem:[%s1733 + $0x3c] sm:$0xf]
      %v1766 = vunpack.c.l.b16 %v1734
      %v1767 = vunpack.c.l.b16 %v1735
      %v1768 = vunpack.c.l.b16 %v1736
      %v1769 = vunpack.c.l.b16 %v1737
      %v1770 = vunpack.c.l.b16 %v1738
      %v1771 = vunpack.c.l.b16 %v1739
      %v1772 = vunpack.c.l.b16 %v1740
      %v1773 = vunpack.c.l.b16 %v1741
      %v1774 = vunpack.c.l.b16 %v1742
      %v1775 = vunpack.c.l.b16 %v1743
      %v1776 = vunpack.c.l.b16 %v1744
      %v1777 = vunpack.c.l.b16 %v1745
      %v1778 = vunpack.c.l.b16 %v1746
      %v1779 = vunpack.c.l.b16 %v1747
      %v1780 = vunpack.c.l.b16 %v1748
      %v1781 = vunpack.c.l.b16 %v1749
      %v1782 = vpack.c.b16 %v1767, %v1766
      %v1783 = vpack.c.b16 %v1769, %v1768
      %v1784 = vpack.c.b16 %v1771, %v1770
      %v1785 = vpack.c.b16 %v1773, %v1772
      %v1786 = vpack.c.b16 %v1775, %v1774
      %v1787 = vpack.c.b16 %v1777, %v1776
      %v1788 = vpack.c.b16 %v1779, %v1778
      %v1789 = vpack.c.b16 %v1781, %v1780
      %1798 = vmatprep.subr.bf16.mxu0 0
      %1799 = vmatpush1.bf16.msra.mxu0 %v1782
      %1800 = vmatprep.subr.bf16.mxu0 0
      %1801 = vmatpush1.bf16.msra.mxu0 %v1783
      %1802 = vmatprep.subr.bf16.mxu0 0
      %1803 = vmatpush1.bf16.msra.mxu0 %v1784
      %1804 = vmatprep.subr.bf16.mxu0 0
      %1805 = vmatpush1.bf16.msra.mxu0 %v1785
      %1806 = vmatprep.subr.bf16.mxu0 0
      %1807 = vmatpush1.bf16.msra.mxu0 %v1786
      %1808 = vmatprep.subr.bf16.mxu0 0
      %1809 = vmatpush1.bf16.msra.mxu0 %v1787
      %1810 = vmatprep.subr.bf16.mxu0 0
      %1811 = vmatpush1.bf16.msra.mxu0 %v1788
      %1812 = vmatprep.subr.bf16.mxu0 0
      %1813 = vmatpush1.bf16.msra.mxu0 %v1789
      %1814 = vmatprep.subr.bf16.mxu0 0
      %1815 = vmatpush1.bf16.msra.mxu0 0
      %1816 = vmatprep.subr.bf16.mxu0 0
      %1817 = vmatpush1.bf16.msra.mxu0 0
      %1818 = vmatprep.subr.bf16.mxu0 0
      %1819 = vmatpush1.bf16.msra.mxu0 0
      %1820 = vmatprep.subr.bf16.mxu0 0
      %1821 = vmatpush1.bf16.msra.mxu0 0
      %1822 = vmatprep.subr.bf16.mxu0 0
      %1823 = vmatpush1.bf16.msra.mxu0 0
      %1824 = vmatprep.subr.bf16.mxu0 0
      %1825 = vmatpush1.bf16.msra.mxu0 0
      %1826 = vmatprep.subr.bf16.mxu0 0
      %1827 = vmatpush1.bf16.msra.mxu0 0
      %1828 = vmatprep.subr.bf16.mxu0 0
      %1829 = vmatpush1.bf16.msra.mxu0 0
      %1830 = vmatprep.mubr.bf16.mxu0 0
      %1831 = vmatmul.mubr.bf16.gmra.mrb[0].mxu0 %v650
      %v1832 = vpop.f32.mrb[0].mxu0
      %v1833 = vadd.f32 0.0, %v1832
      %v1834 = vpop.f32.mrb[0].mxu0
      %v1835 = vpop.f32.mrb[0].mxu0
      %v1836 = vadd.f32 0.0, %v1835
      %v1837 = vpop.f32.mrb[0].mxu0
      %1838 = vmatprep.mubr.bf16.mxu0 0
      %1839 = vmatmul.mubr.bf16.gmra.mrb[0].mxu0 %v651
      %v1840 = vpop.f32.mrb[0].mxu0
      %v1841 = vadd.f32 0.0, %v1840
      %v1842 = vpop.f32.mrb[0].mxu0
      %v1843 = vpop.f32.mrb[0].mxu0
      %v1844 = vadd.f32 0.0, %v1843
      %v1845 = vpop.f32.mrb[0].mxu0
      %1846 = vmatprep.mubr.bf16.mxu0 0
      %1847 = vmatmul.mubr.bf16.gmra.mrb[0].mxu0 %v652
      %v1848 = vpop.f32.mrb[0].mxu0
      %v1849 = vadd.f32 0.0, %v1848
      %v1850 = vpop.f32.mrb[0].mxu0
      %v1851 = vpop.f32.mrb[0].mxu0
      %v1852 = vadd.f32 0.0, %v1851
      %v1853 = vpop.f32.mrb[0].mxu0
      %1854 = vmatprep.mubr.bf16.mxu0 0
      %1855 = vmatmul.mubr.bf16.gmra.mrb[0].mxu0 %v653
      %v1856 = vpop.f32.mrb[0].mxu0
      %v1857 = vadd.f32 0.0, %v1856
      %v1858 = vpop.f32.mrb[0].mxu0
      %v1859 = vpop.f32.mrb[0].mxu0
      %v1860 = vadd.f32 0.0, %v1859
      %v1861 = vpop.f32.mrb[0].mxu0
      %1862 = vmatprep.mubr.bf16.mxu0 0
      %1863 = vmatmul.mubr.bf16.gmra.mrb[0].mxu0 %v654
      %v1864 = vpop.f32.mrb[0].mxu0
      %v1865 = vadd.f32 0.0, %v1864
      %v1866 = vpop.f32.mrb[0].mxu0
      %v1867 = vpop.f32.mrb[0].mxu0
      %v1868 = vadd.f32 0.0, %v1867
      %v1869 = vpop.f32.mrb[0].mxu0
      %1870 = vmatprep.mubr.bf16.mxu0 0
      %1871 = vmatmul.mubr.bf16.gmra.mrb[0].mxu0 %v655
      %v1872 = vpop.f32.mrb[0].mxu0
      %v1873 = vadd.f32 0.0, %v1872
      %v1874 = vpop.f32.mrb[0].mxu0
      %v1875 = vpop.f32.mrb[0].mxu0
      %v1876 = vadd.f32 0.0, %v1875
      %v1877 = vpop.f32.mrb[0].mxu0
      %1878 = vmatprep.mubr.bf16.mxu0 0
      %1879 = vmatmul.mubr.bf16.gmra.mrb[0].mxu0 %v656
      %v1880 = vpop.f32.mrb[0].mxu0
      %v1881 = vadd.f32 0.0, %v1880
      %v1882 = vpop.f32.mrb[0].mxu0
      %v1883 = vpop.f32.mrb[0].mxu0
      %v1884 = vadd.f32 0.0, %v1883
      %v1885 = vpop.f32.mrb[0].mxu0
      %1886 = vmatprep.mubr.bf16.mxu0 0
      %1887 = vmatmul.mubr.bf16.gmra.mrb[0].mxu0 %v657
      %v1888 = vpop.f32.mrb[0].mxu0
      %v1889 = vadd.f32 0.0, %v1888
      %v1890 = vpop.f32.mrb[0].mxu0
      %v1891 = vpop.f32.mrb[0].mxu0
      %v1892 = vadd.f32 0.0, %v1891
      %v1893 = vpop.f32.mrb[0].mxu0
      %1894 = vmatprep.mubr.bf16.mxu0 0
      %1895 = vmatmul.mubr.bf16.gmra.mrb[0].mxu0 %v658
      %v1896 = vpop.f32.mrb[0].mxu0
      %v1897 = vadd.f32 0.0, %v1896
      %v1898 = vpop.f32.mrb[0].mxu0
      %v1899 = vpop.f32.mrb[0].mxu0
      %v1900 = vadd.f32 0.0, %v1899
      %v1901 = vpop.f32.mrb[0].mxu0
      %1902 = vmatprep.mubr.bf16.mxu0 0
      %1903 = vmatmul.mubr.bf16.gmra.mrb[0].mxu0 %v659
      %v1904 = vpop.f32.mrb[0].mxu0
      %v1905 = vadd.f32 0.0, %v1904
      %v1906 = vpop.f32.mrb[0].mxu0
      %v1907 = vpop.f32.mrb[0].mxu0
      %v1908 = vadd.f32 0.0, %v1907
      %v1909 = vpop.f32.mrb[0].mxu0
      %1910 = vmatprep.mubr.bf16.mxu0 0
      %1911 = vmatmul.mubr.bf16.gmra.mrb[0].mxu0 %v660
      %v1912 = vpop.f32.mrb[0].mxu0
      %v1913 = vadd.f32 0.0, %v1912
      %v1914 = vpop.f32.mrb[0].mxu0
      %v1915 = vpop.f32.mrb[0].mxu0
      %v1916 = vadd.f32 0.0, %v1915
      %v1917 = vpop.f32.mrb[0].mxu0
      %1918 = vmatprep.mubr.bf16.mxu0 0
      %1919 = vmatmul.mubr.bf16.gmra.mrb[0].mxu0 %v661
      %v1920 = vpop.f32.mrb[0].mxu0
      %v1921 = vadd.f32 0.0, %v1920
      %v1922 = vpop.f32.mrb[0].mxu0
      %v1923 = vpop.f32.mrb[0].mxu0
      %v1924 = vadd.f32 0.0, %v1923
      %v1925 = vpop.f32.mrb[0].mxu0
      %1926 = vmatprep.mubr.bf16.mxu0 0
      %1927 = vmatmul.mubr.bf16.gmra.mrb[0].mxu0 %v662
      %v1928 = vpop.f32.mrb[0].mxu0
      %v1929 = vadd.f32 0.0, %v1928
      %v1930 = vpop.f32.mrb[0].mxu0
      %v1931 = vpop.f32.mrb[0].mxu0
      %v1932 = vadd.f32 0.0, %v1931
      %v1933 = vpop.f32.mrb[0].mxu0
      %1934 = vmatprep.mubr.bf16.mxu0 0
      %1935 = vmatmul.mubr.bf16.gmra.mrb[0].mxu0 %v663
      %v1936 = vpop.f32.mrb[0].mxu0
      %v1937 = vadd.f32 0.0, %v1936
      %v1938 = vpop.f32.mrb[0].mxu0
      %v1939 = vpop.f32.mrb[0].mxu0
      %v1940 = vadd.f32 0.0, %v1939
      %v1941 = vpop.f32.mrb[0].mxu0
      %1942 = vmatprep.mubr.bf16.mxu0 0
      %1943 = vmatmul.mubr.bf16.gmra.mrb[0].mxu0 %v664
      %v1944 = vpop.f32.mrb[0].mxu0
      %v1945 = vpop.f32.mrb[0].mxu0
      %v1946 = vpop.f32.mrb[0].mxu0
      %v1947 = vpop.f32.mrb[0].mxu0
      %1948 = vmatprep.mubr.bf16.mxu0 0
      %1949 = vmatmul.mubr.bf16.gmra.mrb[0].mxu0 %v1732
      %v1950 = vpop.f32.mrb[0].mxu0
      %v1951 = vpop.f32.mrb[0].mxu0
      %v1952 = vpop.f32.mrb[0].mxu0
      %v1953 = vpop.f32.mrb[0].mxu0
      %1954 = vdwg.mxu0
      %v1955 = vadd.f32 %v1694, %v1833
      %v1956 = vadd.f32 %v1695, %v1836
      %v1957 = vadd.f32 %v1696, %v1841
      %v1958 = vadd.f32 %v1697, %v1844
      %v1959 = vadd.f32 %v1698, %v1849
      %v1960 = vadd.f32 %v1699, %v1852
      %v1961 = vadd.f32 %v1700, %v1857
      %v1962 = vadd.f32 %v1701, %v1860
      %v1963 = vadd.f32 %v1702, %v1865
      %v1964 = vadd.f32 %v1703, %v1868
      %v1965 = vadd.f32 %v1704, %v1873
      %v1966 = vadd.f32 %v1705, %v1876
      %v1967 = vadd.f32 %v1706, %v1881
      %v1968 = vadd.f32 %v1707, %v1884
      %v1969 = vadd.f32 %v1708, %v1889
      %v1970 = vadd.f32 %v1709, %v1892
      %v1971 = vadd.f32 %v1710, %v1897
      %v1972 = vadd.f32 %v1711, %v1900
      %v1973 = vadd.f32 %v1712, %v1905
      %v1974 = vadd.f32 %v1713, %v1908
      %v1975 = vadd.f32 %v1714, %v1913
      %v1976 = vadd.f32 %v1715, %v1916
      %v1977 = vadd.f32 %v1716, %v1921
      %v1978 = vadd.f32 %v1717, %v1924
      %v1979 = vadd.f32 %v1718, %v1929
      %v1980 = vadd.f32 %v1719, %v1932
      %v1981 = vadd.f32 %v1720, %v1937
      %v1982 = vadd.f32 %v1721, %v1940
      %v1983 = vrot.slane %v450, 2
      %v1984 = vrot.slane %v451, 2
      %v1985 = vsel %vm1092, %v1983, %v1984
      %v1986 = vrot.slane %v452, 2
      %v1987 = vsel %vm1092, %v1984, %v1986
      %v1990 = vpack.c.bf16 %v1987, %v1985
      %s1991 = scalar_lea.vmem %s3, 320
      %v1992 = vld [vmem:[%s1991] sm:$0xf]
      %v1993 = vld [vmem:[%s1991 + $0x4] sm:$0xf]
      %v1994 = vld [vmem:[%s1991 + $0x8] sm:$0xf]
      %v1995 = vld [vmem:[%s1991 + $0xc] sm:$0xf]
      %v1996 = vld [vmem:[%s1991 + $0x10] sm:$0xf]
      %v1997 = vld [vmem:[%s1991 + $0x14] sm:$0xf]
      %v1998 = vld [vmem:[%s1991 + $0x18] sm:$0xf]
      %v1999 = vld [vmem:[%s1991 + $0x1c] sm:$0xf]
      %v2000 = vld [vmem:[%s1991 + $0x20] sm:$0xf]
      %v2001 = vld [vmem:[%s1991 + $0x24] sm:$0xf]
      %v2002 = vld [vmem:[%s1991 + $0x28] sm:$0xf]
      %v2003 = vld [vmem:[%s1991 + $0x2c] sm:$0xf]
      %v2004 = vld [vmem:[%s1991 + $0x30] sm:$0xf]
      %v2005 = vld [vmem:[%s1991 + $0x34] sm:$0xf]
      %v2006 = vld [vmem:[%s1991 + $0x38] sm:$0xf]
      %v2007 = vld [vmem:[%s1991 + $0x3c] sm:$0xf]
      %v2024 = vunpack.c.l.b16 %v1992
      %v2025 = vunpack.c.l.b16 %v1993
      %v2026 = vunpack.c.l.b16 %v1994
      %v2027 = vunpack.c.l.b16 %v1995
      %v2028 = vunpack.c.l.b16 %v1996
      %v2029 = vunpack.c.l.b16 %v1997
      %v2030 = vunpack.c.l.b16 %v1998
      %v2031 = vunpack.c.l.b16 %v1999
      %v2032 = vunpack.c.l.b16 %v2000
      %v2033 = vunpack.c.l.b16 %v2001
      %v2034 = vunpack.c.l.b16 %v2002
      %v2035 = vunpack.c.l.b16 %v2003
      %v2036 = vunpack.c.l.b16 %v2004
      %v2037 = vunpack.c.l.b16 %v2005
      %v2038 = vunpack.c.l.b16 %v2006
      %v2039 = vunpack.c.l.b16 %v2007
      %v2040 = vpack.c.b16 %v2025, %v2024
      %v2041 = vpack.c.b16 %v2027, %v2026
      %v2042 = vpack.c.b16 %v2029, %v2028
      %v2043 = vpack.c.b16 %v2031, %v2030
      %v2044 = vpack.c.b16 %v2033, %v2032
      %v2045 = vpack.c.b16 %v2035, %v2034
      %v2046 = vpack.c.b16 %v2037, %v2036
      %v2047 = vpack.c.b16 %v2039, %v2038
      %2056 = vmatprep.subr.bf16.mxu0 0
      %2057 = vmatpush1.bf16.msra.mxu0 %v2040
      %2058 = vmatprep.subr.bf16.mxu0 0
      %2059 = vmatpush1.bf16.msra.mxu0 %v2041
      %2060 = vmatprep.subr.bf16.mxu0 0
      %2061 = vmatpush1.bf16.msra.mxu0 %v2042
      %2062 = vmatprep.subr.bf16.mxu0 0
      %2063 = vmatpush1.bf16.msra.mxu0 %v2043
      %2064 = vmatprep.subr.bf16.mxu0 0
      %2065 = vmatpush1.bf16.msra.mxu0 %v2044
      %2066 = vmatprep.subr.bf16.mxu0 0
      %2067 = vmatpush1.bf16.msra.mxu0 %v2045
      %2068 = vmatprep.subr.bf16.mxu0 0
      %2069 = vmatpush1.bf16.msra.mxu0 %v2046
      %2070 = vmatprep.subr.bf16.mxu0 0
      %2071 = vmatpush1.bf16.msra.mxu0 %v2047
      %2072 = vmatprep.subr.bf16.mxu0 0
      %2073 = vmatpush1.bf16.msra.mxu0 0
      %2074 = vmatprep.subr.bf16.mxu0 0
      %2075 = vmatpush1.bf16.msra.mxu0 0
      %2076 = vmatprep.subr.bf16.mxu0 0
      %2077 = vmatpush1.bf16.msra.mxu0 0
      %2078 = vmatprep.subr.bf16.mxu0 0
      %2079 = vmatpush1.bf16.msra.mxu0 0
      %2080 = vmatprep.subr.bf16.mxu0 0
      %2081 = vmatpush1.bf16.msra.mxu0 0
      %2082 = vmatprep.subr.bf16.mxu0 0
      %2083 = vmatpush1.bf16.msra.mxu0 0
      %2084 = vmatprep.subr.bf16.mxu0 0
      %2085 = vmatpush1.bf16.msra.mxu0 0
      %2086 = vmatprep.subr.bf16.mxu0 0
      %2087 = vmatpush1.bf16.msra.mxu0 0
      %2088 = vmatprep.mubr.bf16.mxu0 0
      %2089 = vmatmul.mubr.bf16.gmra.mrb[0].mxu0 %v1206
      %v2090 = vpop.f32.mrb[0].mxu0
      %v2091 = vadd.f32 0.0, %v2090
      %v2092 = vpop.f32.mrb[0].mxu0
      %v2093 = vpop.f32.mrb[0].mxu0
      %v2094 = vadd.f32 0.0, %v2093
      %v2095 = vpop.f32.mrb[0].mxu0
      %2096 = vmatprep.mubr.bf16.mxu0 0
      %2097 = vmatmul.mubr.bf16.gmra.mrb[0].mxu0 %v1207
      %v2098 = vpop.f32.mrb[0].mxu0
      %v2099 = vadd.f32 0.0, %v2098
      %v2100 = vpop.f32.mrb[0].mxu0
      %v2101 = vpop.f32.mrb[0].mxu0
      %v2102 = vadd.f32 0.0, %v2101
      %v2103 = vpop.f32.mrb[0].mxu0
      %2104 = vmatprep.mubr.bf16.mxu0 0
      %2105 = vmatmul.mubr.bf16.gmra.mrb[0].mxu0 %v1208
      %v2106 = vpop.f32.mrb[0].mxu0
      %v2107 = vadd.f32 0.0, %v2106
      %v2108 = vpop.f32.mrb[0].mxu0
      %v2109 = vpop.f32.mrb[0].mxu0
      %v2110 = vadd.f32 0.0, %v2109
      %v2111 = vpop.f32.mrb[0].mxu0
      %2112 = vmatprep.mubr.bf16.mxu0 0
      %2113 = vmatmul.mubr.bf16.gmra.mrb[0].mxu0 %v1209
      %v2114 = vpop.f32.mrb[0].mxu0
      %v2115 = vadd.f32 0.0, %v2114
      %v2116 = vpop.f32.mrb[0].mxu0
      %v2117 = vpop.f32.mrb[0].mxu0
      %v2118 = vadd.f32 0.0, %v2117
      %v2119 = vpop.f32.mrb[0].mxu0
      %2120 = vmatprep.mubr.bf16.mxu0 0
      %2121 = vmatmul.mubr.bf16.gmra.mrb[0].mxu0 %v1210
      %v2122 = vpop.f32.mrb[0].mxu0
      %v2123 = vadd.f32 0.0, %v2122
      %v2124 = vpop.f32.mrb[0].mxu0
      %v2125 = vpop.f32.mrb[0].mxu0
      %v2126 = vadd.f32 0.0, %v2125
      %v2127 = vpop.f32.mrb[0].mxu0
      %2128 = vmatprep.mubr.bf16.mxu0 0
      %2129 = vmatmul.mubr.bf16.gmra.mrb[0].mxu0 %v1211
      %v2130 = vpop.f32.mrb[0].mxu0
      %v2131 = vadd.f32 0.0, %v2130
      %v2132 = vpop.f32.mrb[0].mxu0
      %v2133 = vpop.f32.mrb[0].mxu0
      %v2134 = vadd.f32 0.0, %v2133
      %v2135 = vpop.f32.mrb[0].mxu0
      %2136 = vmatprep.mubr.bf16.mxu0 0
      %2137 = vmatmul.mubr.bf16.gmra.mrb[0].mxu0 %v1212
      %v2138 = vpop.f32.mrb[0].mxu0
      %v2139 = vadd.f32 0.0, %v2138
      %v2140 = vpop.f32.mrb[0].mxu0
      %v2141 = vpop.f32.mrb[0].mxu0
      %v2142 = vadd.f32 0.0, %v2141
      %v2143 = vpop.f32.mrb[0].mxu0
      %2144 = vmatprep.mubr.bf16.mxu0 0
      %2145 = vmatmul.mubr.bf16.gmra.mrb[0].mxu0 %v1213
      %v2146 = vpop.f32.mrb[0].mxu0
      %v2147 = vadd.f32 0.0, %v2146
      %v2148 = vpop.f32.mrb[0].mxu0
      %v2149 = vpop.f32.mrb[0].mxu0
      %v2150 = vadd.f32 0.0, %v2149
      %v2151 = vpop.f32.mrb[0].mxu0
      %2152 = vmatprep.mubr.bf16.mxu0 0
      %2153 = vmatmul.mubr.bf16.gmra.mrb[0].mxu0 %v1214
      %v2154 = vpop.f32.mrb[0].mxu0
      %v2155 = vadd.f32 0.0, %v2154
      %v2156 = vpop.f32.mrb[0].mxu0
      %v2157 = vpop.f32.mrb[0].mxu0
      %v2158 = vadd.f32 0.0, %v2157
      %v2159 = vpop.f32.mrb[0].mxu0
      %2160 = vmatprep.mubr.bf16.mxu0 0
      %2161 = vmatmul.mubr.bf16.gmra.mrb[0].mxu0 %v1215
      %v2162 = vpop.f32.mrb[0].mxu0
      %v2163 = vadd.f32 0.0, %v2162
      %v2164 = vpop.f32.mrb[0].mxu0
      %v2165 = vpop.f32.mrb[0].mxu0
      %v2166 = vadd.f32 0.0, %v2165
      %v2167 = vpop.f32.mrb[0].mxu0
      %2168 = vmatprep.mubr.bf16.mxu0 0
      %2169 = vmatmul.mubr.bf16.gmra.mrb[0].mxu0 %v1216
      %v2170 = vpop.f32.mrb[0].mxu0
      %v2171 = vadd.f32 0.0, %v2170
      %v2172 = vpop.f32.mrb[0].mxu0
      %v2173 = vpop.f32.mrb[0].mxu0
      %v2174 = vadd.f32 0.0, %v2173
      %v2175 = vpop.f32.mrb[0].mxu0
      %2176 = vmatprep.mubr.bf16.mxu0 0
      %2177 = vmatmul.mubr.bf16.gmra.mrb[0].mxu0 %v1217
      %v2178 = vpop.f32.mrb[0].mxu0
      %v2179 = vadd.f32 0.0, %v2178
      %v2180 = vpop.f32.mrb[0].mxu0
      %v2181 = vpop.f32.mrb[0].mxu0
      %v2182 = vadd.f32 0.0, %v2181
      %v2183 = vpop.f32.mrb[0].mxu0
      %2184 = vmatprep.mubr.bf16.mxu0 0
      %2185 = vmatmul.mubr.bf16.gmra.mrb[0].mxu0 %v1218
      %v2186 = vpop.f32.mrb[0].mxu0
      %v2187 = vadd.f32 0.0, %v2186
      %v2188 = vpop.f32.mrb[0].mxu0
      %v2189 = vpop.f32.mrb[0].mxu0
      %v2190 = vadd.f32 0.0, %v2189
      %v2191 = vpop.f32.mrb[0].mxu0
      %2192 = vmatprep.mubr.bf16.mxu0 0
      %2193 = vmatmul.mubr.bf16.gmra.mrb[0].mxu0 %v1219
      %v2194 = vpop.f32.mrb[0].mxu0
      %v2195 = vadd.f32 0.0, %v2194
      %v2196 = vpop.f32.mrb[0].mxu0
      %v2197 = vpop.f32.mrb[0].mxu0
      %v2198 = vadd.f32 0.0, %v2197
      %v2199 = vpop.f32.mrb[0].mxu0
      %2200 = vmatprep.mubr.bf16.mxu0 0
      %2201 = vmatmul.mubr.bf16.gmra.mrb[0].mxu0 %v1220
      %v2202 = vpop.f32.mrb[0].mxu0
      %v2203 = vpop.f32.mrb[0].mxu0
      %v2204 = vpop.f32.mrb[0].mxu0
      %v2205 = vpop.f32.mrb[0].mxu0
      %2206 = vmatprep.mubr.bf16.mxu0 0
      %2207 = vmatmul.mubr.bf16.gmra.mrb[0].mxu0 %v1990
      %v2208 = vpop.f32.mrb[0].mxu0
      %v2209 = vpop.f32.mrb[0].mxu0
      %v2210 = vpop.f32.mrb[0].mxu0
      %v2211 = vpop.f32.mrb[0].mxu0
      %2212 = vdwg.mxu0
      %v2213 = vadd.f32 %v1955, %v2091
      %v2214 = vadd.f32 %v1956, %v2094
      %v2215 = vadd.f32 %v1957, %v2099
      %v2216 = vadd.f32 %v1958, %v2102
      %v2217 = vadd.f32 %v1959, %v2107
      %v2218 = vadd.f32 %v1960, %v2110
      %v2219 = vadd.f32 %v1961, %v2115
      %v2220 = vadd.f32 %v1962, %v2118
      %v2221 = vadd.f32 %v1963, %v2123
      %v2222 = vadd.f32 %v1964, %v2126
      %v2223 = vadd.f32 %v1965, %v2131
      %v2224 = vadd.f32 %v1966, %v2134
      %v2225 = vadd.f32 %v1967, %v2139
      %v2226 = vadd.f32 %v1968, %v2142
      %v2227 = vadd.f32 %v1969, %v2147
      %v2228 = vadd.f32 %v1970, %v2150
      %v2229 = vadd.f32 %v1971, %v2155
      %v2230 = vadd.f32 %v1972, %v2158
      %v2231 = vadd.f32 %v1973, %v2163
      %v2232 = vadd.f32 %v1974, %v2166
      %v2233 = vadd.f32 %v1975, %v2171
      %v2234 = vadd.f32 %v1976, %v2174
      %v2235 = vadd.f32 %v1977, %v2179
      %v2236 = vadd.f32 %v1978, %v2182
      %v2237 = vadd.f32 %v1979, %v2187
      %v2238 = vadd.f32 %v1980, %v2190
      %v2239 = vadd.f32 %v1981, %v2195
      %v2240 = vadd.f32 %v1982, %v2198
      %v2241 = vpack.c.bf16 %v454, %v453
      %s2242 = scalar_lea.vmem %s3, 384
      %v2243 = vld [vmem:[%s2242] sm:$0xf]
      %v2244 = vld [vmem:[%s2242 + $0x4] sm:$0xf]
      %v2245 = vld [vmem:[%s2242 + $0x8] sm:$0xf]
      %v2246 = vld [vmem:[%s2242 + $0xc] sm:$0xf]
      %v2247 = vld [vmem:[%s2242 + $0x10] sm:$0xf]
      %v2248 = vld [vmem:[%s2242 + $0x14] sm:$0xf]
      %v2249 = vld [vmem:[%s2242 + $0x18] sm:$0xf]
      %v2250 = vld [vmem:[%s2242 + $0x1c] sm:$0xf]
      %v2251 = vld [vmem:[%s2242 + $0x20] sm:$0xf]
      %v2252 = vld [vmem:[%s2242 + $0x24] sm:$0xf]
      %v2253 = vld [vmem:[%s2242 + $0x28] sm:$0xf]
      %v2254 = vld [vmem:[%s2242 + $0x2c] sm:$0xf]
      %v2255 = vld [vmem:[%s2242 + $0x30] sm:$0xf]
      %v2256 = vld [vmem:[%s2242 + $0x34] sm:$0xf]
      %v2257 = vld [vmem:[%s2242 + $0x38] sm:$0xf]
      %v2258 = vld [vmem:[%s2242 + $0x3c] sm:$0xf]
      %v2275 = vunpack.c.l.b16 %v2243
      %v2276 = vunpack.c.l.b16 %v2244
      %v2277 = vunpack.c.l.b16 %v2245
      %v2278 = vunpack.c.l.b16 %v2246
      %v2279 = vunpack.c.l.b16 %v2247
      %v2280 = vunpack.c.l.b16 %v2248
      %v2281 = vunpack.c.l.b16 %v2249
      %v2282 = vunpack.c.l.b16 %v2250
      %v2283 = vunpack.c.l.b16 %v2251
      %v2284 = vunpack.c.l.b16 %v2252
      %v2285 = vunpack.c.l.b16 %v2253
      %v2286 = vunpack.c.l.b16 %v2254
      %v2287 = vunpack.c.l.b16 %v2255
      %v2288 = vunpack.c.l.b16 %v2256
      %v2289 = vunpack.c.l.b16 %v2257
      %v2290 = vunpack.c.l.b16 %v2258
      %v2291 = vpack.c.b16 %v2276, %v2275
      %v2292 = vpack.c.b16 %v2278, %v2277
      %v2293 = vpack.c.b16 %v2280, %v2279
      %v2294 = vpack.c.b16 %v2282, %v2281
      %v2295 = vpack.c.b16 %v2284, %v2283
      %v2296 = vpack.c.b16 %v2286, %v2285
      %v2297 = vpack.c.b16 %v2288, %v2287
      %v2298 = vpack.c.b16 %v2290, %v2289
      %2307 = vmatprep.subr.bf16.mxu0 0
      %2308 = vmatpush1.bf16.msra.mxu0 %v2291
      %2309 = vmatprep.subr.bf16.mxu0 0
      %2310 = vmatpush1.bf16.msra.mxu0 %v2292
      %2311 = vmatprep.subr.bf16.mxu0 0
      %2312 = vmatpush1.bf16.msra.mxu0 %v2293
      %2313 = vmatprep.subr.bf16.mxu0 0
      %2314 = vmatpush1.bf16.msra.mxu0 %v2294
      %2315 = vmatprep.subr.bf16.mxu0 0
      %2316 = vmatpush1.bf16.msra.mxu0 %v2295
      %2317 = vmatprep.subr.bf16.mxu0 0
      %2318 = vmatpush1.bf16.msra.mxu0 %v2296
      %2319 = vmatprep.subr.bf16.mxu0 0
      %2320 = vmatpush1.bf16.msra.mxu0 %v2297
      %2321 = vmatprep.subr.bf16.mxu0 0
      %2322 = vmatpush1.bf16.msra.mxu0 %v2298
      %2323 = vmatprep.subr.bf16.mxu0 0
      %2324 = vmatpush1.bf16.msra.mxu0 0
      %2325 = vmatprep.subr.bf16.mxu0 0
      %2326 = vmatpush1.bf16.msra.mxu0 0
      %2327 = vmatprep.subr.bf16.mxu0 0
      %2328 = vmatpush1.bf16.msra.mxu0 0
      %2329 = vmatprep.subr.bf16.mxu0 0
      %2330 = vmatpush1.bf16.msra.mxu0 0
      %2331 = vmatprep.subr.bf16.mxu0 0
      %2332 = vmatpush1.bf16.msra.mxu0 0
      %2333 = vmatprep.subr.bf16.mxu0 0
      %2334 = vmatpush1.bf16.msra.mxu0 0
      %2335 = vmatprep.subr.bf16.mxu0 0
      %2336 = vmatpush1.bf16.msra.mxu0 0
      %2337 = vmatprep.subr.bf16.mxu0 0
      %2338 = vmatpush1.bf16.msra.mxu0 0
      %2339 = vmatprep.mubr.bf16.mxu0 0
      %2340 = vmatmul.mubr.bf16.gmra.mrb[0].mxu0 %v458
      %v2341 = vpop.f32.mrb[0].mxu0
      %v2342 = vadd.f32 0.0, %v2341
      %v2343 = vpop.f32.mrb[0].mxu0
      %v2344 = vpop.f32.mrb[0].mxu0
      %v2345 = vadd.f32 0.0, %v2344
      %v2346 = vpop.f32.mrb[0].mxu0
      %2347 = vmatprep.mubr.bf16.mxu0 0
      %2348 = vmatmul.mubr.bf16.gmra.mrb[0].mxu0 %v459
      %v2349 = vpop.f32.mrb[0].mxu0
      %v2350 = vadd.f32 0.0, %v2349
      %v2351 = vpop.f32.mrb[0].mxu0
      %v2352 = vpop.f32.mrb[0].mxu0
      %v2353 = vadd.f32 0.0, %v2352
      %v2354 = vpop.f32.mrb[0].mxu0
      %2355 = vmatprep.mubr.bf16.mxu0 0
      %2356 = vmatmul.mubr.bf16.gmra.mrb[0].mxu0 %v460
      %v2357 = vpop.f32.mrb[0].mxu0
      %v2358 = vadd.f32 0.0, %v2357
      %v2359 = vpop.f32.mrb[0].mxu0
      %v2360 = vpop.f32.mrb[0].mxu0
      %v2361 = vadd.f32 0.0, %v2360
      %v2362 = vpop.f32.mrb[0].mxu0
      %2363 = vmatprep.mubr.bf16.mxu0 0
      %2364 = vmatmul.mubr.bf16.gmra.mrb[0].mxu0 %v461
      %v2365 = vpop.f32.mrb[0].mxu0
      %v2366 = vadd.f32 0.0, %v2365
      %v2367 = vpop.f32.mrb[0].mxu0
      %v2368 = vpop.f32.mrb[0].mxu0
      %v2369 = vadd.f32 0.0, %v2368
      %v2370 = vpop.f32.mrb[0].mxu0
      %2371 = vmatprep.mubr.bf16.mxu0 0
      %2372 = vmatmul.mubr.bf16.gmra.mrb[0].mxu0 %v462
      %v2373 = vpop.f32.mrb[0].mxu0
      %v2374 = vadd.f32 0.0, %v2373
      %v2375 = vpop.f32.mrb[0].mxu0
      %v2376 = vpop.f32.mrb[0].mxu0
      %v2377 = vadd.f32 0.0, %v2376
      %v2378 = vpop.f32.mrb[0].mxu0
      %2379 = vmatprep.mubr.bf16.mxu0 0
      %2380 = vmatmul.mubr.bf16.gmra.mrb[0].mxu0 %v463
      %v2381 = vpop.f32.mrb[0].mxu0
      %v2382 = vadd.f32 0.0, %v2381
      %v2383 = vpop.f32.mrb[0].mxu0
      %v2384 = vpop.f32.mrb[0].mxu0
      %v2385 = vadd.f32 0.0, %v2384
      %v2386 = vpop.f32.mrb[0].mxu0
      %2387 = vmatprep.mubr.bf16.mxu0 0
      %2388 = vmatmul.mubr.bf16.gmra.mrb[0].mxu0 %v464
      %v2389 = vpop.f32.mrb[0].mxu0
      %v2390 = vadd.f32 0.0, %v2389
      %v2391 = vpop.f32.mrb[0].mxu0
      %v2392 = vpop.f32.mrb[0].mxu0
      %v2393 = vadd.f32 0.0, %v2392
      %v2394 = vpop.f32.mrb[0].mxu0
      %2395 = vmatprep.mubr.bf16.mxu0 0
      %2396 = vmatmul.mubr.bf16.gmra.mrb[0].mxu0 %v465
      %v2397 = vpop.f32.mrb[0].mxu0
      %v2398 = vadd.f32 0.0, %v2397
      %v2399 = vpop.f32.mrb[0].mxu0
      %v2400 = vpop.f32.mrb[0].mxu0
      %v2401 = vadd.f32 0.0, %v2400
      %v2402 = vpop.f32.mrb[0].mxu0
      %2403 = vmatprep.mubr.bf16.mxu0 0
      %2404 = vmatmul.mubr.bf16.gmra.mrb[0].mxu0 %v466
      %v2405 = vpop.f32.mrb[0].mxu0
      %v2406 = vadd.f32 0.0, %v2405
      %v2407 = vpop.f32.mrb[0].mxu0
      %v2408 = vpop.f32.mrb[0].mxu0
      %v2409 = vadd.f32 0.0, %v2408
      %v2410 = vpop.f32.mrb[0].mxu0
      %2411 = vmatprep.mubr.bf16.mxu0 0
      %2412 = vmatmul.mubr.bf16.gmra.mrb[0].mxu0 %v467
      %v2413 = vpop.f32.mrb[0].mxu0
      %v2414 = vadd.f32 0.0, %v2413
      %v2415 = vpop.f32.mrb[0].mxu0
      %v2416 = vpop.f32.mrb[0].mxu0
      %v2417 = vadd.f32 0.0, %v2416
      %v2418 = vpop.f32.mrb[0].mxu0
      %2419 = vmatprep.mubr.bf16.mxu0 0
      %2420 = vmatmul.mubr.bf16.gmra.mrb[0].mxu0 %v468
      %v2421 = vpop.f32.mrb[0].mxu0
      %v2422 = vadd.f32 0.0, %v2421
      %v2423 = vpop.f32.mrb[0].mxu0
      %v2424 = vpop.f32.mrb[0].mxu0
      %v2425 = vadd.f32 0.0, %v2424
      %v2426 = vpop.f32.mrb[0].mxu0
      %2427 = vmatprep.mubr.bf16.mxu0 0
      %2428 = vmatmul.mubr.bf16.gmra.mrb[0].mxu0 %v469
      %v2429 = vpop.f32.mrb[0].mxu0
      %v2430 = vadd.f32 0.0, %v2429
      %v2431 = vpop.f32.mrb[0].mxu0
      %v2432 = vpop.f32.mrb[0].mxu0
      %v2433 = vadd.f32 0.0, %v2432
      %v2434 = vpop.f32.mrb[0].mxu0
      %2435 = vmatprep.mubr.bf16.mxu0 0
      %2436 = vmatmul.mubr.bf16.gmra.mrb[0].mxu0 %v470
      %v2437 = vpop.f32.mrb[0].mxu0
      %v2438 = vadd.f32 0.0, %v2437
      %v2439 = vpop.f32.mrb[0].mxu0
      %v2440 = vpop.f32.mrb[0].mxu0
      %v2441 = vadd.f32 0.0, %v2440
      %v2442 = vpop.f32.mrb[0].mxu0
      %2443 = vmatprep.mubr.bf16.mxu0 0
      %2444 = vmatmul.mubr.bf16.gmra.mrb[0].mxu0 %v471
      %v2445 = vpop.f32.mrb[0].mxu0
      %v2446 = vadd.f32 0.0, %v2445
      %v2447 = vpop.f32.mrb[0].mxu0
      %v2448 = vpop.f32.mrb[0].mxu0
      %v2449 = vadd.f32 0.0, %v2448
      %v2450 = vpop.f32.mrb[0].mxu0
      %2451 = vmatprep.mubr.bf16.mxu0 0
      %2452 = vmatmul.mubr.bf16.gmra.mrb[0].mxu0 %v1471
      %v2453 = vpop.f32.mrb[0].mxu0
      %v2454 = vpop.f32.mrb[0].mxu0
      %v2455 = vpop.f32.mrb[0].mxu0
      %v2456 = vpop.f32.mrb[0].mxu0
      %2457 = vmatprep.mubr.bf16.mxu0 0
      %2458 = vmatmul.mubr.bf16.gmra.mrb[0].mxu0 %v2241
      %v2459 = vpop.f32.mrb[0].mxu0
      %v2460 = vpop.f32.mrb[0].mxu0
      %v2461 = vpop.f32.mrb[0].mxu0
      %v2462 = vpop.f32.mrb[0].mxu0
      %2463 = vdwg.mxu0
      %v2464 = vadd.f32 %v2213, %v2342
      %v2465 = vadd.f32 %v2214, %v2345
      %v2466 = vadd.f32 %v2215, %v2350
      %v2467 = vadd.f32 %v2216, %v2353
      %v2468 = vadd.f32 %v2217, %v2358
      %v2469 = vadd.f32 %v2218, %v2361
      %v2470 = vadd.f32 %v2219, %v2366
      %v2471 = vadd.f32 %v2220, %v2369
      %v2472 = vadd.f32 %v2221, %v2374
      %v2473 = vadd.f32 %v2222, %v2377
      %v2474 = vadd.f32 %v2223, %v2382
      %v2475 = vadd.f32 %v2224, %v2385
      %v2476 = vadd.f32 %v2225, %v2390
      %v2477 = vadd.f32 %v2226, %v2393
      %v2478 = vadd.f32 %v2227, %v2398
      %v2479 = vadd.f32 %v2228, %v2401
      %v2480 = vadd.f32 %v2229, %v2406
      %v2481 = vadd.f32 %v2230, %v2409
      %v2482 = vadd.f32 %v2231, %v2414
      %v2483 = vadd.f32 %v2232, %v2417
      %v2484 = vadd.f32 %v2233, %v2422
      %v2485 = vadd.f32 %v2234, %v2425
      %v2486 = vadd.f32 %v2235, %v2430
      %v2487 = vadd.f32 %v2236, %v2433
      %v2488 = vadd.f32 %v2237, %v2438
      %v2489 = vadd.f32 %v2238, %v2441
      %v2490 = vadd.f32 %v2239, %v2446
      %v2491 = vadd.f32 %v2240, %v2449
      %v2495 = vrot.slane %v453, 1
      %v2496 = vrot.slane %v454, 1
      %v2497 = vsel %vm536, %v2495, %v2496
      %v2498 = vrot.slane %v455, 1
      %v2499 = vsel %vm536, %v2496, %v2498
      %v2502 = vpack.c.bf16 %v2499, %v2497
      %s2503 = scalar_lea.vmem %s3, 448
      %v2504 = vld [vmem:[%s2503] sm:$0xf]
      %v2505 = vld [vmem:[%s2503 + $0x4] sm:$0xf]
      %v2506 = vld [vmem:[%s2503 + $0x8] sm:$0xf]
      %v2507 = vld [vmem:[%s2503 + $0xc] sm:$0xf]
      %v2508 = vld [vmem:[%s2503 + $0x10] sm:$0xf]
      %v2509 = vld [vmem:[%s2503 + $0x14] sm:$0xf]
      %v2510 = vld [vmem:[%s2503 + $0x18] sm:$0xf]
      %v2511 = vld [vmem:[%s2503 + $0x1c] sm:$0xf]
      %v2512 = vld [vmem:[%s2503 + $0x20] sm:$0xf]
      %v2513 = vld [vmem:[%s2503 + $0x24] sm:$0xf]
      %v2514 = vld [vmem:[%s2503 + $0x28] sm:$0xf]
      %v2515 = vld [vmem:[%s2503 + $0x2c] sm:$0xf]
      %v2516 = vld [vmem:[%s2503 + $0x30] sm:$0xf]
      %v2517 = vld [vmem:[%s2503 + $0x34] sm:$0xf]
      %v2518 = vld [vmem:[%s2503 + $0x38] sm:$0xf]
      %v2519 = vld [vmem:[%s2503 + $0x3c] sm:$0xf]
      %v2536 = vunpack.c.l.b16 %v2504
      %v2537 = vunpack.c.l.b16 %v2505
      %v2538 = vunpack.c.l.b16 %v2506
      %v2539 = vunpack.c.l.b16 %v2507
      %v2540 = vunpack.c.l.b16 %v2508
      %v2541 = vunpack.c.l.b16 %v2509
      %v2542 = vunpack.c.l.b16 %v2510
      %v2543 = vunpack.c.l.b16 %v2511
      %v2544 = vunpack.c.l.b16 %v2512
      %v2545 = vunpack.c.l.b16 %v2513
      %v2546 = vunpack.c.l.b16 %v2514
      %v2547 = vunpack.c.l.b16 %v2515
      %v2548 = vunpack.c.l.b16 %v2516
      %v2549 = vunpack.c.l.b16 %v2517
      %v2550 = vunpack.c.l.b16 %v2518
      %v2551 = vunpack.c.l.b16 %v2519
      %v2552 = vpack.c.b16 %v2537, %v2536
      %v2553 = vpack.c.b16 %v2539, %v2538
      %v2554 = vpack.c.b16 %v2541, %v2540
      %v2555 = vpack.c.b16 %v2543, %v2542
      %v2556 = vpack.c.b16 %v2545, %v2544
      %v2557 = vpack.c.b16 %v2547, %v2546
      %v2558 = vpack.c.b16 %v2549, %v2548
      %v2559 = vpack.c.b16 %v2551, %v2550
      %2568 = vmatprep.subr.bf16.mxu0 0
      %2569 = vmatpush1.bf16.msra.mxu0 %v2552
      %2570 = vmatprep.subr.bf16.mxu0 0
      %2571 = vmatpush1.bf16.msra.mxu0 %v2553
      %2572 = vmatprep.subr.bf16.mxu0 0
      %2573 = vmatpush1.bf16.msra.mxu0 %v2554
      %2574 = vmatprep.subr.bf16.mxu0 0
      %2575 = vmatpush1.bf16.msra.mxu0 %v2555
      %2576 = vmatprep.subr.bf16.mxu0 0
      %2577 = vmatpush1.bf16.msra.mxu0 %v2556
      %2578 = vmatprep.subr.bf16.mxu0 0
      %2579 = vmatpush1.bf16.msra.mxu0 %v2557
      %2580 = vmatprep.subr.bf16.mxu0 0
      %2581 = vmatpush1.bf16.msra.mxu0 %v2558
      %2582 = vmatprep.subr.bf16.mxu0 0
      %2583 = vmatpush1.bf16.msra.mxu0 %v2559
      %2584 = vmatprep.subr.bf16.mxu0 0
      %2585 = vmatpush1.bf16.msra.mxu0 0
      %2586 = vmatprep.subr.bf16.mxu0 0
      %2587 = vmatpush1.bf16.msra.mxu0 0
      %2588 = vmatprep.subr.bf16.mxu0 0
      %2589 = vmatpush1.bf16.msra.mxu0 0
      %2590 = vmatprep.subr.bf16.mxu0 0
      %2591 = vmatpush1.bf16.msra.mxu0 0
      %2592 = vmatprep.subr.bf16.mxu0 0
      %2593 = vmatpush1.bf16.msra.mxu0 0
      %2594 = vmatprep.subr.bf16.mxu0 0
      %2595 = vmatpush1.bf16.msra.mxu0 0
      %2596 = vmatprep.subr.bf16.mxu0 0
      %2597 = vmatpush1.bf16.msra.mxu0 0
      %2598 = vmatprep.subr.bf16.mxu0 0
      %2599 = vmatpush1.bf16.msra.mxu0 0
      %2600 = vmatprep.mubr.bf16.mxu0 0
      %2601 = vmatmul.mubr.bf16.gmra.mrb[0].mxu0 %v651
      %v2602 = vpop.f32.mrb[0].mxu0
      %v2603 = vadd.f32 0.0, %v2602
      %v2604 = vpop.f32.mrb[0].mxu0
      %v2605 = vpop.f32.mrb[0].mxu0
      %v2606 = vadd.f32 0.0, %v2605
      %v2607 = vpop.f32.mrb[0].mxu0
      %2608 = vmatprep.mubr.bf16.mxu0 0
      %2609 = vmatmul.mubr.bf16.gmra.mrb[0].mxu0 %v652
      %v2610 = vpop.f32.mrb[0].mxu0
      %v2611 = vadd.f32 0.0, %v2610
      %v2612 = vpop.f32.mrb[0].mxu0
      %v2613 = vpop.f32.mrb[0].mxu0
      %v2614 = vadd.f32 0.0, %v2613
      %v2615 = vpop.f32.mrb[0].mxu0
      %2616 = vmatprep.mubr.bf16.mxu0 0
      %2617 = vmatmul.mubr.bf16.gmra.mrb[0].mxu0 %v653
      %v2618 = vpop.f32.mrb[0].mxu0
      %v2619 = vadd.f32 0.0, %v2618
      %v2620 = vpop.f32.mrb[0].mxu0
      %v2621 = vpop.f32.mrb[0].mxu0
      %v2622 = vadd.f32 0.0, %v2621
      %v2623 = vpop.f32.mrb[0].mxu0
      %2624 = vmatprep.mubr.bf16.mxu0 0
      %2625 = vmatmul.mubr.bf16.gmra.mrb[0].mxu0 %v654
      %v2626 = vpop.f32.mrb[0].mxu0
      %v2627 = vadd.f32 0.0, %v2626
      %v2628 = vpop.f32.mrb[0].mxu0
      %v2629 = vpop.f32.mrb[0].mxu0
      %v2630 = vadd.f32 0.0, %v2629
      %v2631 = vpop.f32.mrb[0].mxu0
      %2632 = vmatprep.mubr.bf16.mxu0 0
      %2633 = vmatmul.mubr.bf16.gmra.mrb[0].mxu0 %v655
      %v2634 = vpop.f32.mrb[0].mxu0
      %v2635 = vadd.f32 0.0, %v2634
      %v2636 = vpop.f32.mrb[0].mxu0
      %v2637 = vpop.f32.mrb[0].mxu0
      %v2638 = vadd.f32 0.0, %v2637
      %v2639 = vpop.f32.mrb[0].mxu0
      %2640 = vmatprep.mubr.bf16.mxu0 0
      %2641 = vmatmul.mubr.bf16.gmra.mrb[0].mxu0 %v656
      %v2642 = vpop.f32.mrb[0].mxu0
      %v2643 = vadd.f32 0.0, %v2642
      %v2644 = vpop.f32.mrb[0].mxu0
      %v2645 = vpop.f32.mrb[0].mxu0
      %v2646 = vadd.f32 0.0, %v2645
      %v2647 = vpop.f32.mrb[0].mxu0
      %2648 = vmatprep.mubr.bf16.mxu0 0
      %2649 = vmatmul.mubr.bf16.gmra.mrb[0].mxu0 %v657
      %v2650 = vpop.f32.mrb[0].mxu0
      %v2651 = vadd.f32 0.0, %v2650
      %v2652 = vpop.f32.mrb[0].mxu0
      %v2653 = vpop.f32.mrb[0].mxu0
      %v2654 = vadd.f32 0.0, %v2653
      %v2655 = vpop.f32.mrb[0].mxu0
      %2656 = vmatprep.mubr.bf16.mxu0 0
      %2657 = vmatmul.mubr.bf16.gmra.mrb[0].mxu0 %v658
      %v2658 = vpop.f32.mrb[0].mxu0
      %v2659 = vadd.f32 0.0, %v2658
      %v2660 = vpop.f32.mrb[0].mxu0
      %v2661 = vpop.f32.mrb[0].mxu0
      %v2662 = vadd.f32 0.0, %v2661
      %v2663 = vpop.f32.mrb[0].mxu0
      %2664 = vmatprep.mubr.bf16.mxu0 0
      %2665 = vmatmul.mubr.bf16.gmra.mrb[0].mxu0 %v659
      %v2666 = vpop.f32.mrb[0].mxu0
      %v2667 = vadd.f32 0.0, %v2666
      %v2668 = vpop.f32.mrb[0].mxu0
      %v2669 = vpop.f32.mrb[0].mxu0
      %v2670 = vadd.f32 0.0, %v2669
      %v2671 = vpop.f32.mrb[0].mxu0
      %2672 = vmatprep.mubr.bf16.mxu0 0
      %2673 = vmatmul.mubr.bf16.gmra.mrb[0].mxu0 %v660
      %v2674 = vpop.f32.mrb[0].mxu0
      %v2675 = vadd.f32 0.0, %v2674
      %v2676 = vpop.f32.mrb[0].mxu0
      %v2677 = vpop.f32.mrb[0].mxu0
      %v2678 = vadd.f32 0.0, %v2677
      %v2679 = vpop.f32.mrb[0].mxu0
      %2680 = vmatprep.mubr.bf16.mxu0 0
      %2681 = vmatmul.mubr.bf16.gmra.mrb[0].mxu0 %v661
      %v2682 = vpop.f32.mrb[0].mxu0
      %v2683 = vadd.f32 0.0, %v2682
      %v2684 = vpop.f32.mrb[0].mxu0
      %v2685 = vpop.f32.mrb[0].mxu0
      %v2686 = vadd.f32 0.0, %v2685
      %v2687 = vpop.f32.mrb[0].mxu0
      %2688 = vmatprep.mubr.bf16.mxu0 0
      %2689 = vmatmul.mubr.bf16.gmra.mrb[0].mxu0 %v662
      %v2690 = vpop.f32.mrb[0].mxu0
      %v2691 = vadd.f32 0.0, %v2690
      %v2692 = vpop.f32.mrb[0].mxu0
      %v2693 = vpop.f32.mrb[0].mxu0
      %v2694 = vadd.f32 0.0, %v2693
      %v2695 = vpop.f32.mrb[0].mxu0
      %2696 = vmatprep.mubr.bf16.mxu0 0
      %2697 = vmatmul.mubr.bf16.gmra.mrb[0].mxu0 %v663
      %v2698 = vpop.f32.mrb[0].mxu0
      %v2699 = vadd.f32 0.0, %v2698
      %v2700 = vpop.f32.mrb[0].mxu0
      %v2701 = vpop.f32.mrb[0].mxu0
      %v2702 = vadd.f32 0.0, %v2701
      %v2703 = vpop.f32.mrb[0].mxu0
      %2704 = vmatprep.mubr.bf16.mxu0 0
      %2705 = vmatmul.mubr.bf16.gmra.mrb[0].mxu0 %v664
      %v2706 = vpop.f32.mrb[0].mxu0
      %v2707 = vadd.f32 0.0, %v2706
      %v2708 = vpop.f32.mrb[0].mxu0
      %v2709 = vpop.f32.mrb[0].mxu0
      %v2710 = vadd.f32 0.0, %v2709
      %v2711 = vpop.f32.mrb[0].mxu0
      %2712 = vmatprep.mubr.bf16.mxu0 0
      %2713 = vmatmul.mubr.bf16.gmra.mrb[0].mxu0 %v1732
      %v2714 = vpop.f32.mrb[0].mxu0
      %v2715 = vpop.f32.mrb[0].mxu0
      %v2716 = vpop.f32.mrb[0].mxu0
      %v2717 = vpop.f32.mrb[0].mxu0
      %2718 = vmatprep.mubr.bf16.mxu0 0
      %2719 = vmatmul.mubr.bf16.gmra.mrb[0].mxu0 %v2502
      %v2720 = vpop.f32.mrb[0].mxu0
      %v2721 = vpop.f32.mrb[0].mxu0
      %v2722 = vpop.f32.mrb[0].mxu0
      %v2723 = vpop.f32.mrb[0].mxu0
      %2724 = vdwg.mxu0
      %v2725 = vadd.f32 %v2464, %v2603
      %v2726 = vadd.f32 %v2465, %v2606
      %v2727 = vadd.f32 %v2466, %v2611
      %v2728 = vadd.f32 %v2467, %v2614
      %v2729 = vadd.f32 %v2468, %v2619
      %v2730 = vadd.f32 %v2469, %v2622
      %v2731 = vadd.f32 %v2470, %v2627
      %v2732 = vadd.f32 %v2471, %v2630
      %v2733 = vadd.f32 %v2472, %v2635
      %v2734 = vadd.f32 %v2473, %v2638
      %v2735 = vadd.f32 %v2474, %v2643
      %v2736 = vadd.f32 %v2475, %v2646
      %v2737 = vadd.f32 %v2476, %v2651
      %v2738 = vadd.f32 %v2477, %v2654
      %v2739 = vadd.f32 %v2478, %v2659
      %v2740 = vadd.f32 %v2479, %v2662
      %v2741 = vadd.f32 %v2480, %v2667
      %v2742 = vadd.f32 %v2481, %v2670
      %v2743 = vadd.f32 %v2482, %v2675
      %v2744 = vadd.f32 %v2483, %v2678
      %v2745 = vadd.f32 %v2484, %v2683
      %v2746 = vadd.f32 %v2485, %v2686
      %v2747 = vadd.f32 %v2486, %v2691
      %v2748 = vadd.f32 %v2487, %v2694
      %v2749 = vadd.f32 %v2488, %v2699
      %v2750 = vadd.f32 %v2489, %v2702
      %v2751 = vadd.f32 %v2490, %v2707
      %v2752 = vadd.f32 %v2491, %v2710
      %v2753 = vrot.slane %v453, 2
      %v2754 = vrot.slane %v454, 2
      %v2755 = vsel %vm1092, %v2753, %v2754
      %v2756 = vrot.slane %v455, 2
      %v2757 = vsel %vm1092, %v2754, %v2756
      %v2760 = vpack.c.bf16 %v2757, %v2755
      %s2761 = scalar_lea.vmem %s3, 512
      %v2762 = vld [vmem:[%s2761] sm:$0xf]
      %v2763 = vld [vmem:[%s2761 + $0x4] sm:$0xf]
      %v2764 = vld [vmem:[%s2761 + $0x8] sm:$0xf]
      %v2765 = vld [vmem:[%s2761 + $0xc] sm:$0xf]
      %v2766 = vld [vmem:[%s2761 + $0x10] sm:$0xf]
      %v2767 = vld [vmem:[%s2761 + $0x14] sm:$0xf]
      %v2768 = vld [vmem:[%s2761 + $0x18] sm:$0xf]
      %v2769 = vld [vmem:[%s2761 + $0x1c] sm:$0xf]
      %v2770 = vld [vmem:[%s2761 + $0x20] sm:$0xf]
      %v2771 = vld [vmem:[%s2761 + $0x24] sm:$0xf]
      %v2772 = vld [vmem:[%s2761 + $0x28] sm:$0xf]
      %v2773 = vld [vmem:[%s2761 + $0x2c] sm:$0xf]
      %v2774 = vld [vmem:[%s2761 + $0x30] sm:$0xf]
      %v2775 = vld [vmem:[%s2761 + $0x34] sm:$0xf]
      %v2776 = vld [vmem:[%s2761 + $0x38] sm:$0xf]
      %v2777 = vld [vmem:[%s2761 + $0x3c] sm:$0xf]
      %v2794 = vunpack.c.l.b16 %v2762
      %v2795 = vunpack.c.l.b16 %v2763
      %v2796 = vunpack.c.l.b16 %v2764
      %v2797 = vunpack.c.l.b16 %v2765
      %v2798 = vunpack.c.l.b16 %v2766
      %v2799 = vunpack.c.l.b16 %v2767
      %v2800 = vunpack.c.l.b16 %v2768
      %v2801 = vunpack.c.l.b16 %v2769
      %v2802 = vunpack.c.l.b16 %v2770
      %v2803 = vunpack.c.l.b16 %v2771
      %v2804 = vunpack.c.l.b16 %v2772
      %v2805 = vunpack.c.l.b16 %v2773
      %v2806 = vunpack.c.l.b16 %v2774
      %v2807 = vunpack.c.l.b16 %v2775
      %v2808 = vunpack.c.l.b16 %v2776
      %v2809 = vunpack.c.l.b16 %v2777
      %v2810 = vpack.c.b16 %v2795, %v2794
      %v2811 = vpack.c.b16 %v2797, %v2796
      %v2812 = vpack.c.b16 %v2799, %v2798
      %v2813 = vpack.c.b16 %v2801, %v2800
      %v2814 = vpack.c.b16 %v2803, %v2802
      %v2815 = vpack.c.b16 %v2805, %v2804
      %v2816 = vpack.c.b16 %v2807, %v2806
      %v2817 = vpack.c.b16 %v2809, %v2808
      %2826 = vmatprep.subr.bf16.mxu0 0
      %2827 = vmatpush1.bf16.msra.mxu0 %v2810
      %2828 = vmatprep.subr.bf16.mxu0 0
      %2829 = vmatpush1.bf16.msra.mxu0 %v2811
      %2830 = vmatprep.subr.bf16.mxu0 0
      %2831 = vmatpush1.bf16.msra.mxu0 %v2812
      %2832 = vmatprep.subr.bf16.mxu0 0
      %2833 = vmatpush1.bf16.msra.mxu0 %v2813
      %2834 = vmatprep.subr.bf16.mxu0 0
      %2835 = vmatpush1.bf16.msra.mxu0 %v2814
      %2836 = vmatprep.subr.bf16.mxu0 0
      %2837 = vmatpush1.bf16.msra.mxu0 %v2815
      %2838 = vmatprep.subr.bf16.mxu0 0
      %2839 = vmatpush1.bf16.msra.mxu0 %v2816
      %2840 = vmatprep.subr.bf16.mxu0 0
      %2841 = vmatpush1.bf16.msra.mxu0 %v2817
      %2842 = vmatprep.subr.bf16.mxu0 0
      %2843 = vmatpush1.bf16.msra.mxu0 0
      %2844 = vmatprep.subr.bf16.mxu0 0
      %2845 = vmatpush1.bf16.msra.mxu0 0
      %2846 = vmatprep.subr.bf16.mxu0 0
      %2847 = vmatpush1.bf16.msra.mxu0 0
      %2848 = vmatprep.subr.bf16.mxu0 0
      %2849 = vmatpush1.bf16.msra.mxu0 0
      %2850 = vmatprep.subr.bf16.mxu0 0
      %2851 = vmatpush1.bf16.msra.mxu0 0
      %2852 = vmatprep.subr.bf16.mxu0 0
      %2853 = vmatpush1.bf16.msra.mxu0 0
      %2854 = vmatprep.subr.bf16.mxu0 0
      %2855 = vmatpush1.bf16.msra.mxu0 0
      %2856 = vmatprep.subr.bf16.mxu0 0
      %2857 = vmatpush1.bf16.msra.mxu0 0
      %2858 = vmatprep.mubr.bf16.mxu0 0
      %2859 = vmatmul.mubr.bf16.gmra.mrb[0].mxu0 %v1207
      %v2860 = vpop.f32.mrb[0].mxu0
      %v2861 = vadd.f32 0.0, %v2860
      %v2862 = vpop.f32.mrb[0].mxu0
      %v2863 = vpop.f32.mrb[0].mxu0
      %v2864 = vadd.f32 0.0, %v2863
      %v2865 = vpop.f32.mrb[0].mxu0
      %2866 = vmatprep.mubr.bf16.mxu0 0
      %2867 = vmatmul.mubr.bf16.gmra.mrb[0].mxu0 %v1208
      %v2868 = vpop.f32.mrb[0].mxu0
      %v2869 = vadd.f32 0.0, %v2868
      %v2870 = vpop.f32.mrb[0].mxu0
      %v2871 = vpop.f32.mrb[0].mxu0
      %v2872 = vadd.f32 0.0, %v2871
      %v2873 = vpop.f32.mrb[0].mxu0
      %2874 = vmatprep.mubr.bf16.mxu0 0
      %2875 = vmatmul.mubr.bf16.gmra.mrb[0].mxu0 %v1209
      %v2876 = vpop.f32.mrb[0].mxu0
      %v2877 = vadd.f32 0.0, %v2876
      %v2878 = vpop.f32.mrb[0].mxu0
      %v2879 = vpop.f32.mrb[0].mxu0
      %v2880 = vadd.f32 0.0, %v2879
      %v2881 = vpop.f32.mrb[0].mxu0
      %2882 = vmatprep.mubr.bf16.mxu0 0
      %2883 = vmatmul.mubr.bf16.gmra.mrb[0].mxu0 %v1210
      %v2884 = vpop.f32.mrb[0].mxu0
      %v2885 = vadd.f32 0.0, %v2884
      %v2886 = vpop.f32.mrb[0].mxu0
      %v2887 = vpop.f32.mrb[0].mxu0
      %v2888 = vadd.f32 0.0, %v2887
      %v2889 = vpop.f32.mrb[0].mxu0
      %2890 = vmatprep.mubr.bf16.mxu0 0
      %2891 = vmatmul.mubr.bf16.gmra.mrb[0].mxu0 %v1211
      %v2892 = vpop.f32.mrb[0].mxu0
      %v2893 = vadd.f32 0.0, %v2892
      %v2894 = vpop.f32.mrb[0].mxu0
      %v2895 = vpop.f32.mrb[0].mxu0
      %v2896 = vadd.f32 0.0, %v2895
      %v2897 = vpop.f32.mrb[0].mxu0
      %2898 = vmatprep.mubr.bf16.mxu0 0
      %2899 = vmatmul.mubr.bf16.gmra.mrb[0].mxu0 %v1212
      %v2900 = vpop.f32.mrb[0].mxu0
      %v2901 = vadd.f32 0.0, %v2900
      %v2902 = vpop.f32.mrb[0].mxu0
      %v2903 = vpop.f32.mrb[0].mxu0
      %v2904 = vadd.f32 0.0, %v2903
      %v2905 = vpop.f32.mrb[0].mxu0
      %2906 = vmatprep.mubr.bf16.mxu0 0
      %2907 = vmatmul.mubr.bf16.gmra.mrb[0].mxu0 %v1213
      %v2908 = vpop.f32.mrb[0].mxu0
      %v2909 = vadd.f32 0.0, %v2908
      %v2910 = vpop.f32.mrb[0].mxu0
      %v2911 = vpop.f32.mrb[0].mxu0
      %v2912 = vadd.f32 0.0, %v2911
      %v2913 = vpop.f32.mrb[0].mxu0
      %2914 = vmatprep.mubr.bf16.mxu0 0
      %2915 = vmatmul.mubr.bf16.gmra.mrb[0].mxu0 %v1214
      %v2916 = vpop.f32.mrb[0].mxu0
      %v2917 = vadd.f32 0.0, %v2916
      %v2918 = vpop.f32.mrb[0].mxu0
      %v2919 = vpop.f32.mrb[0].mxu0
      %v2920 = vadd.f32 0.0, %v2919
      %v2921 = vpop.f32.mrb[0].mxu0
      %2922 = vmatprep.mubr.bf16.mxu0 0
      %2923 = vmatmul.mubr.bf16.gmra.mrb[0].mxu0 %v1215
      %v2924 = vpop.f32.mrb[0].mxu0
      %v2925 = vadd.f32 0.0, %v2924
      %v2926 = vpop.f32.mrb[0].mxu0
      %v2927 = vpop.f32.mrb[0].mxu0
      %v2928 = vadd.f32 0.0, %v2927
      %v2929 = vpop.f32.mrb[0].mxu0
      %2930 = vmatprep.mubr.bf16.mxu0 0
      %2931 = vmatmul.mubr.bf16.gmra.mrb[0].mxu0 %v1216
      %v2932 = vpop.f32.mrb[0].mxu0
      %v2933 = vadd.f32 0.0, %v2932
      %v2934 = vpop.f32.mrb[0].mxu0
      %v2935 = vpop.f32.mrb[0].mxu0
      %v2936 = vadd.f32 0.0, %v2935
      %v2937 = vpop.f32.mrb[0].mxu0
      %2938 = vmatprep.mubr.bf16.mxu0 0
      %2939 = vmatmul.mubr.bf16.gmra.mrb[0].mxu0 %v1217
      %v2940 = vpop.f32.mrb[0].mxu0
      %v2941 = vadd.f32 0.0, %v2940
      %v2942 = vpop.f32.mrb[0].mxu0
      %v2943 = vpop.f32.mrb[0].mxu0
      %v2944 = vadd.f32 0.0, %v2943
      %v2945 = vpop.f32.mrb[0].mxu0
      %2946 = vmatprep.mubr.bf16.mxu0 0
      %2947 = vmatmul.mubr.bf16.gmra.mrb[0].mxu0 %v1218
      %v2948 = vpop.f32.mrb[0].mxu0
      %v2949 = vadd.f32 0.0, %v2948
      %v2950 = vpop.f32.mrb[0].mxu0
      %v2951 = vpop.f32.mrb[0].mxu0
      %v2952 = vadd.f32 0.0, %v2951
      %v2953 = vpop.f32.mrb[0].mxu0
      %2954 = vmatprep.mubr.bf16.mxu0 0
      %2955 = vmatmul.mubr.bf16.gmra.mrb[0].mxu0 %v1219
      %v2956 = vpop.f32.mrb[0].mxu0
      %v2957 = vadd.f32 0.0, %v2956
      %v2958 = vpop.f32.mrb[0].mxu0
      %v2959 = vpop.f32.mrb[0].mxu0
      %v2960 = vadd.f32 0.0, %v2959
      %v2961 = vpop.f32.mrb[0].mxu0
      %2962 = vmatprep.mubr.bf16.mxu0 0
      %2963 = vmatmul.mubr.bf16.gmra.mrb[0].mxu0 %v1220
      %v2964 = vpop.f32.mrb[0].mxu0
      %v2965 = vadd.f32 0.0, %v2964
      %v2966 = vpop.f32.mrb[0].mxu0
      %v2967 = vpop.f32.mrb[0].mxu0
      %v2968 = vadd.f32 0.0, %v2967
      %v2969 = vpop.f32.mrb[0].mxu0
      %2970 = vmatprep.mubr.bf16.mxu0 0
      %2971 = vmatmul.mubr.bf16.gmra.mrb[0].mxu0 %v1990
      %v2972 = vpop.f32.mrb[0].mxu0
      %v2973 = vpop.f32.mrb[0].mxu0
      %v2974 = vpop.f32.mrb[0].mxu0
      %v2975 = vpop.f32.mrb[0].mxu0
      %2976 = vmatprep.mubr.bf16.mxu0 0
      %2977 = vmatmul.mubr.bf16.gmra.mrb[0].mxu0 %v2760
      %v2978 = vpop.f32.mrb[0].mxu0
      %v2979 = vpop.f32.mrb[0].mxu0
      %v2980 = vpop.f32.mrb[0].mxu0
      %v2981 = vpop.f32.mrb[0].mxu0
      %2982 = vdwg.mxu0
      %v2983 = vadd.f32 %v2725, %v2861
      %v2984 = vadd.f32 %v2726, %v2864
      %v2985 = vadd.f32 %v2727, %v2869
      %v2986 = vadd.f32 %v2728, %v2872
      %v2987 = vadd.f32 %v2729, %v2877
      %v2988 = vadd.f32 %v2730, %v2880
      %v2989 = vadd.f32 %v2731, %v2885
      %v2990 = vadd.f32 %v2732, %v2888
      %v2991 = vadd.f32 %v2733, %v2893
      %v2992 = vadd.f32 %v2734, %v2896
      %v2993 = vadd.f32 %v2735, %v2901
      %v2994 = vadd.f32 %v2736, %v2904
      %v2995 = vadd.f32 %v2737, %v2909
      %v2996 = vadd.f32 %v2738, %v2912
      %v2997 = vadd.f32 %v2739, %v2917
      %v2998 = vadd.f32 %v2740, %v2920
      %v2999 = vadd.f32 %v2741, %v2925
      %v3000 = vadd.f32 %v2742, %v2928
      %v3001 = vadd.f32 %v2743, %v2933
      %v3002 = vadd.f32 %v2744, %v2936
      %v3003 = vadd.f32 %v2745, %v2941
      %v3004 = vadd.f32 %v2746, %v2944
      %v3005 = vadd.f32 %v2747, %v2949
      %v3006 = vadd.f32 %v2748, %v2952
      %v3007 = vadd.f32 %v2749, %v2957
      %v3008 = vadd.f32 %v2750, %v2960
      %v3009 = vadd.f32 %v2751, %v2965
      %v3010 = vadd.f32 %v2752, %v2968
      %v3011 = vld [vmem:[%s4] sm:$0x1]
      %v3013 = vlaneseq
      %v3014 = vshrl.u32 %v3013, 7
      %v3015 = vsub.s32 0, %v3014
      %v3016 = vrot.slane %v3011, %v3015
      %v3018 = vadd.f32 %v2983, %v3016
      %v3019 = vadd.f32 %v2984, %v3016
      %v3020 = vadd.f32 %v2985, %v3016
      %v3021 = vadd.f32 %v2986, %v3016
      %v3022 = vadd.f32 %v2987, %v3016
      %v3023 = vadd.f32 %v2988, %v3016
      %v3024 = vadd.f32 %v2989, %v3016
      %v3025 = vadd.f32 %v2990, %v3016
      %v3026 = vadd.f32 %v2991, %v3016
      %v3027 = vadd.f32 %v2992, %v3016
      %v3028 = vadd.f32 %v2993, %v3016
      %v3029 = vadd.f32 %v2994, %v3016
      %v3030 = vadd.f32 %v2995, %v3016
      %v3031 = vadd.f32 %v2996, %v3016
      %v3032 = vadd.f32 %v2997, %v3016
      %v3033 = vadd.f32 %v2998, %v3016
      %v3034 = vadd.f32 %v2999, %v3016
      %v3035 = vadd.f32 %v3000, %v3016
      %v3036 = vadd.f32 %v3001, %v3016
      %v3037 = vadd.f32 %v3002, %v3016
      %v3038 = vadd.f32 %v3003, %v3016
      %v3039 = vadd.f32 %v3004, %v3016
      %v3040 = vadd.f32 %v3005, %v3016
      %v3041 = vadd.f32 %v3006, %v3016
      %v3042 = vadd.f32 %v3007, %v3016
      %v3043 = vadd.f32 %v3008, %v3016
      %v3044 = vadd.f32 %v3009, %v3016
      %v3045 = vadd.f32 %v3010, %v3016
      %v3046 = vmax.f32 %v3018, 0.0
      %v3047 = vmax.f32 %v3019, 0.0
      %v3048 = vmax.f32 %v3020, 0.0
      %v3049 = vmax.f32 %v3021, 0.0
      %v3050 = vmax.f32 %v3022, 0.0
      %v3051 = vmax.f32 %v3023, 0.0
      %v3052 = vmax.f32 %v3024, 0.0
      %v3053 = vmax.f32 %v3025, 0.0
      %v3054 = vmax.f32 %v3026, 0.0
      %v3055 = vmax.f32 %v3027, 0.0
      %v3056 = vmax.f32 %v3028, 0.0
      %v3057 = vmax.f32 %v3029, 0.0
      %v3058 = vmax.f32 %v3030, 0.0
      %v3059 = vmax.f32 %v3031, 0.0
      %v3060 = vmax.f32 %v3032, 0.0
      %v3061 = vmax.f32 %v3033, 0.0
      %v3062 = vmax.f32 %v3034, 0.0
      %v3063 = vmax.f32 %v3035, 0.0
      %v3064 = vmax.f32 %v3036, 0.0
      %v3065 = vmax.f32 %v3037, 0.0
      %v3066 = vmax.f32 %v3038, 0.0
      %v3067 = vmax.f32 %v3039, 0.0
      %v3068 = vmax.f32 %v3040, 0.0
      %v3069 = vmax.f32 %v3041, 0.0
      %v3070 = vmax.f32 %v3042, 0.0
      %v3071 = vmax.f32 %v3043, 0.0
      %v3072 = vmax.f32 %v3044, 0.0
      %v3073 = vmax.f32 %v3045, 0.0
      %3074 = vst [vmem:[%s224] sm:$0xff] %v3046
      %3075 = vst [vmem:[%s224 + $0x8] sm:$0x3f] %v3047
      %3076 = vst [vmem:[%s224 + $0x10] sm:$0xff] %v3048
      %3077 = vst [vmem:[%s224 + $0x18] sm:$0x3f] %v3049
      %3078 = vst [vmem:[%s224 + $0x20] sm:$0xff] %v3050
      %3079 = vst [vmem:[%s224 + $0x28] sm:$0x3f] %v3051
      %3080 = vst [vmem:[%s224 + $0x30] sm:$0xff] %v3052
      %3081 = vst [vmem:[%s224 + $0x38] sm:$0x3f] %v3053
      %3082 = vst [vmem:[%s224 + $0x40] sm:$0xff] %v3054
      %3083 = vst [vmem:[%s224 + $0x48] sm:$0x3f] %v3055
      %3084 = vst [vmem:[%s224 + $0x50] sm:$0xff] %v3056
      %3085 = vst [vmem:[%s224 + $0x58] sm:$0x3f] %v3057
      %3086 = vst [vmem:[%s224 + $0x60] sm:$0xff] %v3058
      %3087 = vst [vmem:[%s224 + $0x68] sm:$0x3f] %v3059
      %3088 = vst [vmem:[%s224 + $0x70] sm:$0xff] %v3060
      %3089 = vst [vmem:[%s224 + $0x78] sm:$0x3f] %v3061
      %3090 = vst [vmem:[%s224 + $0x80] sm:$0xff] %v3062
      %3091 = vst [vmem:[%s224 + $0x88] sm:$0x3f] %v3063
      %3092 = vst [vmem:[%s224 + $0x90] sm:$0xff] %v3064
      %3093 = vst [vmem:[%s224 + $0x98] sm:$0x3f] %v3065
      %3094 = vst [vmem:[%s224 + $0xa0] sm:$0xff] %v3066
      %3095 = vst [vmem:[%s224 + $0xa8] sm:$0x3f] %v3067
      %3096 = vst [vmem:[%s224 + $0xb0] sm:$0xff] %v3068
      %3097 = vst [vmem:[%s224 + $0xb8] sm:$0x3f] %v3069
      %3098 = vst [vmem:[%s224 + $0xc0] sm:$0xff] %v3070
      %3099 = vst [vmem:[%s224 + $0xc8] sm:$0x3f] %v3071
      %3100 = vst [vmem:[%s224 + $0xd0] sm:$0xff] %v3072
      %3101 = vst [vmem:[%s224 + $0xd8] sm:$0x3f] %v3073
      %p3102 = scmp.lt.s32.totalorder %s16, 1
      %s3103 = scalar_select %p3102, %s16, 1
      %s3104 = smul.addr %s3103, 28
      %s3105 = smul.addr %s3104, 8
      %s3106 = scalar_lea.vmem %s5, %s3105
      // Predicated region
      $region41: #{convblock_forward.3} parent=39 // pred_check
        %p3107 = pneg %p144
      $region42: #{convblock_forward.3} parent=39 // pred_check_branch
        %3109 = sbr.rel (%p3107) target = $region44
      $region43: #{convblock_forward.3} parent=39 // pred_region
        _
      $region44: #{convblock_forward.3} parent=39 // pred_fallthru
        _
    $region40: #{convblock_forward.3} parent=5 // pred_fallthru
      _
    %p3110 = scmp.le.s32.totalorder 2, %s11
    // Predicated region
    $region45: #{convblock_forward.3} parent=5 // pred_check
      %p3111 = pneg %p3110
    $region46: #{convblock_forward.3} parent=5 // pred_check_branch
      %3113 = sbr.rel (%p3111) target = $region48
    $region47: #{convblock_forward.3} parent=5 // pred_region
      %s3114 = ssub.s32 %s11, 2
      // Predicated region
      $region49: #{convblock_forward.3} parent=47 // pred_check
        %p3115 = pneg %p150
      $region50: #{convblock_forward.3} parent=47 // pred_check_branch
        %3117 = sbr.rel (%p3115) target = $region52
      $region51: #{convblock_forward.3} parent=47 // pred_region
        %p3118 = scmp.lt.s32.totalorder %s17, 1
        %s3119 = scalar_select %p3118, %s17, 1
        %s3120 = smul.addr %s3119, 28
        %s3121 = smul.addr %s3120, 8
        %s3122 = scalar_lea.vmem %s5, %s3121
      $region52: #{convblock_forward.3} parent=47 // pred_fallthru
        _
    $region48: #{convblock_forward.3} parent=5 // pred_fallthru
      _
  $region6: #{convblock_forward.3} parent=0 // loop_footer
    %s15 = sadd.s32 1, %s11
  $region7: #{convblock_forward.3} parent=0 // loop_footer_branch
    %10 = sbr.rel target = $region3
  $region8: #{convblock_forward.3} parent=0 // loop_exit
    _

// kernel: convblock_forward.2
$region0: #{convblock_forward.2}
  #allocation0 [shape = 'u32[]', space=smem, size = 0x4, offset = 0x4, fixed_abs, tag = 'smem constant byte address 0x4 - core index']
  #allocation1 [shape = 'u32[144,128]{1,0:T(1,128)}', space=vmem, size = 0x12000, scoped, tag = 'internal scratch']
  %s0 = inlined_call_operand.vmem [shape: f32[2,18,18,4], index: 0, kind: input, shape index: {}]
  %s1 = inlined_call_operand.vmem [shape: bf16[9,4,128], index: 1, kind: input, shape index: {}]
  %s2 = inlined_call_operand.vmem [shape: f32[1,128], index: 2, kind: input, shape index: {}]
  %s3 = inlined_call_operand.vmem [shape: f32[2,18,18,128], index: 3, kind: output, shape index: {0}]
  %s4 = inlined_call_operand.vmem [shape: f32[2,1,128], index: 4, kind: output, shape index: {1}]
  %s5 = inlined_call_operand.vmem [shape: f32[2,1,128], index: 5, kind: output, shape index: {2}]
  %6 = xla_tuple %s3, %s4, %s5
  %s7 = sld [smem:[#allocation0]]
  $region61: #{convblock_forward.2} parent=0
    _
  %s9 = ssub.s32 1, %s7
  %s10 = scalar_select 0, %s9, %s7
  loop: start=0, step=1, limit=4
  $region2: #{convblock_forward.2} parent=0 // loop_pre_header
    _
  $region3: #{convblock_forward.2} parent=0 // loop_header
    %s12 = sphi 0, %s16
    %p13 = scmp.ge.s32.totalorder %s12, 4
    %s22 = sphi 0, %s24
    %s25 = sphi 0, %s22
    %s26 = sphi 0, %s25
    %s42 = sphi 0, %s26
    %s46 = sphi 0, %s46
    %s48 = sphi 0, %s46
    %s49 = sphi 0, %s48
    %s63 = sphi 0, %s49
    %s67 = sphi 0, %s67
    %s69 = sphi 0, %s67
    %s70 = sphi 0, %s69
    %s84 = sphi 0, %s70
    %s90 = sphi 0, %s92
    %s93 = sphi 0, %s90
    %s94 = sphi 0, %s93
    %s110 = sphi 0, %s94
    %s116 = sphi 0, %s118
    %s119 = sphi 0, %s116
    %s120 = sphi 0, %s119
    %s136 = sphi 0, %s120
    %s142 = sphi 0, %s144
    %s145 = sphi 0, %s142
    %s146 = sphi 0, %s145
    %s162 = sphi 0, %s146
  $region4: #{convblock_forward.2} parent=0 // loop_header_branch
    %15 = sbr.rel (%p13) target = $region8
  $region5: #{convblock_forward.2} parent=0 // loop_body
    %s17 = ssub.s32 %s12, 1
    %s18 = ssub.s32 %s12, 2
    %s19 = sadd.s32 %s12, 1
    %s20 = ssub.s32 %s12, %s19
    %p21 = scmp.eq.s32.totalorder %s20, 0
    %s23 = sadd.s32 %s22, 1
    %s24 = scalar_select %p21, %s22, %s23
    %p27 = pneg %p21
    %p28 = scmp.eq.s32.totalorder %s12, 1
    %p29 = por %p27, %p28
    %p30 = scmp.ne.s32.totalorder %s22, %s25
    %p31 = scmp.eq.s32.totalorder %s12, 0
    %p32 = por %p30, %p31
    %p33 = scmp.ne.s32.totalorder %s22, %s25
    %p34 = scmp.eq.s32.totalorder %s17, 1
    %p35 = por %p33, %p34
    %p36 = scmp.ne.s32.totalorder %s25, %s26
    %p37 = scmp.eq.s32.totalorder %s17, 0
    %p38 = por %p36, %p37
    %p39 = scmp.ne.s32.totalorder %s25, %s26
    %p40 = scmp.eq.s32.totalorder %s18, 1
    %p41 = por %p39, %p40
    %p43 = scmp.ne.s32.totalorder %s26, %s42
    %p44 = scmp.eq.s32.totalorder %s18, 0
    %p45 = por %p43, %p44
    %s47 = sadd.s32 %s46, 1
    %p50 = scmp.eq.s32.totalorder %s12, 1
    %p51 = scmp.ne.s32.totalorder %s46, %s48
    %p52 = scmp.eq.s32.totalorder %s12, 0
    %p53 = por %p51, %p52
    %p54 = scmp.ne.s32.totalorder %s46, %s48
    %p55 = scmp.eq.s32.totalorder %s17, 1
    %p56 = por %p54, %p55
    %p57 = scmp.ne.s32.totalorder %s48, %s49
    %p58 = scmp.eq.s32.totalorder %s17, 0
    %p59 = por %p57, %p58
    %p60 = scmp.ne.s32.totalorder %s48, %s49
    %p61 = scmp.eq.s32.totalorder %s18, 1
    %p62 = por %p60, %p61
    %p64 = scmp.ne.s32.totalorder %s49, %s63
    %p65 = scmp.eq.s32.totalorder %s18, 0
    %p66 = por %p64, %p65
    %s68 = sadd.s32 %s67, 1
    %p71 = scmp.eq.s32.totalorder %s12, 1
    %p72 = scmp.ne.s32.totalorder %s67, %s69
    %p73 = scmp.eq.s32.totalorder %s12, 0
    %p74 = por %p72, %p73
    %p75 = scmp.ne.s32.totalorder %s67, %s69
    %p76 = scmp.eq.s32.totalorder %s17, 1
    %p77 = por %p75, %p76
    %p78 = scmp.ne.s32.totalorder %s69, %s70
    %p79 = scmp.eq.s32.totalorder %s17, 0
    %p80 = por %p78, %p79
    %p81 = scmp.ne.s32.totalorder %s69, %s70
    %p82 = scmp.eq.s32.totalorder %s18, 1
    %p83 = por %p81, %p82
    %p85 = scmp.ne.s32.totalorder %s70, %s84
    %p86 = scmp.eq.s32.totalorder %s18, 0
    %p87 = por %p85, %p86
    %s88 = ssub.s32 %s12, %s19
    %p89 = scmp.eq.s32.totalorder %s88, 0
    %s91 = sadd.s32 %s90, 1
    %s92 = scalar_select %p89, %s90, %s91
    %p95 = pneg %p89
    %p96 = scmp.eq.s32.totalorder %s12, 1
    %p97 = por %p95, %p96
    %p98 = scmp.ne.s32.totalorder %s90, %s93
    %p99 = scmp.eq.s32.totalorder %s12, 0
    %p100 = por %p98, %p99
    %p101 = scmp.ne.s32.totalorder %s90, %s93
    %p102 = scmp.eq.s32.totalorder %s17, 1
    %p103 = por %p101, %p102
    %p104 = scmp.ne.s32.totalorder %s93, %s94
    %p105 = scmp.eq.s32.totalorder %s17, 0
    %p106 = por %p104, %p105
    %p107 = scmp.ne.s32.totalorder %s93, %s94
    %p108 = scmp.eq.s32.totalorder %s18, 1
    %p109 = por %p107, %p108
    %p111 = scmp.ne.s32.totalorder %s94, %s110
    %p112 = scmp.eq.s32.totalorder %s18, 0
    %p113 = por %p111, %p112
    %s114 = ssub.s32 %s12, %s19
    %p115 = scmp.eq.s32.totalorder %s114, 0
    %s117 = sadd.s32 %s116, 1
    %s118 = scalar_select %p115, %s116, %s117
    %p121 = pneg %p115
    %p122 = scmp.eq.s32.totalorder %s12, 1
    %p123 = por %p121, %p122
    %p124 = scmp.ne.s32.totalorder %s116, %s119
    %p125 = scmp.eq.s32.totalorder %s12, 0
    %p126 = por %p124, %p125
    %p127 = scmp.ne.s32.totalorder %s116, %s119
    %p128 = scmp.eq.s32.totalorder %s17, 1
    %p129 = por %p127, %p128
    %p130 = scmp.ne.s32.totalorder %s119, %s120
    %p131 = scmp.eq.s32.totalorder %s17, 0
    %p132 = por %p130, %p131
    %p133 = scmp.ne.s32.totalorder %s119, %s120
    %p134 = scmp.eq.s32.totalorder %s18, 1
    %p135 = por %p133, %p134
    %p137 = scmp.ne.s32.totalorder %s120, %s136
    %p138 = scmp.eq.s32.totalorder %s18, 0
    %p139 = por %p137, %p138
    %s140 = ssub.s32 %s12, %s19
    %p141 = scmp.eq.s32.totalorder %s140, 0
    %s143 = sadd.s32 %s142, 1
    %s144 = scalar_select %p141, %s142, %s143
    %p147 = pneg %p141
    %p148 = scmp.eq.s32.totalorder %s12, 1
    %p149 = por %p147, %p148
    %p150 = scmp.ne.s32.totalorder %s142, %s145
    %p151 = scmp.eq.s32.totalorder %s12, 0
    %p152 = por %p150, %p151
    %p153 = scmp.ne.s32.totalorder %s142, %s145
    %p154 = scmp.eq.s32.totalorder %s17, 1
    %p155 = por %p153, %p154
    %p156 = scmp.ne.s32.totalorder %s145, %s146
    %p157 = scmp.eq.s32.totalorder %s17, 0
    %p158 = por %p156, %p157
    %p159 = scmp.ne.s32.totalorder %s145, %s146
    %p160 = scmp.eq.s32.totalorder %s18, 1
    %p161 = por %p159, %p160
    %p163 = scmp.ne.s32.totalorder %s146, %s162
    %p164 = scmp.eq.s32.totalorder %s18, 0
    %p165 = por %p163, %p164
    %p166 = scmp.le.s32.totalorder 1, %s12
    %p167 = scmp.lt.s32.totalorder %s12, 3
    %p168 = pnand %p166, %p167
    %p169 = pneg %p168
    // Predicated region
    $region9: #{convblock_forward.2} parent=5 // pred_check
      _
    $region10: #{convblock_forward.2} parent=5 // pred_check_branch
      %171 = sbr.rel (%p168) target = $region12
    $region11: #{convblock_forward.2} parent=5 // pred_region
      %s172 = ssub.s32 %s12, 1
      // Predicated region
      $region13: #{convblock_forward.2} parent=11 // pred_check
        %p173 = pneg %p59
      $region14: #{convblock_forward.2} parent=11 // pred_check_branch
        %175 = sbr.rel (%p173) target = $region16
      $region15: #{convblock_forward.2} parent=11 // pred_region
        _
      $region16: #{convblock_forward.2} parent=11 // pred_fallthru
        _
      // Predicated region
      $region17: #{convblock_forward.2} parent=11 // pred_check
        %p176 = pneg %p80
      $region18: #{convblock_forward.2} parent=11 // pred_check_branch
        %178 = sbr.rel (%p176) target = $region20
      $region19: #{convblock_forward.2} parent=11 // pred_region
        _
      $region20: #{convblock_forward.2} parent=11 // pred_fallthru
        _
    $region12: #{convblock_forward.2} parent=5 // pred_fallthru
      _
    %p179 = scmp.lt.s32.totalorder %s12, 2
    // Predicated region
    $region21: #{convblock_forward.2} parent=5 // pred_check
      %p180 = pneg %p179
    $region22: #{convblock_forward.2} parent=5 // pred_check_branch
      %182 = sbr.rel (%p180) target = $region24
    $region23: #{convblock_forward.2} parent=5 // pred_region
      // Predicated region
      $region25: #{convblock_forward.2} parent=23 // pred_check
        %p183 = pneg %p32
      $region26: #{convblock_forward.2} parent=23 // pred_check_branch
        %185 = sbr.rel (%p183) target = $region28
      $region27: #{convblock_forward.2} parent=23 // pred_region
        %p186 = scmp.lt.s32.totalorder %s12, 1
        %s187 = scalar_select %p186, %s12, 1
        %s188 = smul.addr %s187, 54
        %s189 = smul.addr %s188, 8
        %s190 = scalar_lea.vmem %s0, %s189
      $region28: #{convblock_forward.2} parent=23 // pred_fallthru
        _
    $region24: #{convblock_forward.2} parent=5 // pred_fallthru
      _
    %p191 = scmp.le.s32.totalorder 1, %s12
    %p192 = scmp.lt.s32.totalorder %s12, 3
    %p193 = pnand %p191, %p192
    %p194 = pneg %p193
    // Predicated region
    $region29: #{convblock_forward.2} parent=5 // pred_check
      _
    $region30: #{convblock_forward.2} parent=5 // pred_check_branch
      %196 = sbr.rel (%p193) target = $region32
    $region31: #{convblock_forward.2} parent=5 // pred_region
      %s197 = ssub.s32 %s12, 1
      %p198 = scmp.lt.s32.totalorder %s17, 1
      %s199 = scalar_select %p198, %s17, 1
      %s200 = smul.addr %s199, 54
      %s201 = smul.addr %s200, 8
      %s202 = scalar_lea.vmem %s0, %s201
      %p203 = pneg %p38
      %p204 = pneg %p35
      %p205 = pneg %p59
      %p206 = pneg %p56
      %p207 = pneg %p80
      %p208 = pneg %p77
      %p209 = pneg %p106
      %p210 = pneg %p103
      %p211 = scmp.lt.s32.totalorder %s17, 1
      %s212 = scalar_select %p211, %s17, 1
      %s213 = smul.addr %s212, 54
      %s214 = smul.addr %s213, 8
      %s215 = scalar_lea.vmem %s3, %s214
      %p216 = pneg %p132
      %p217 = pneg %p129
      %p218 = scmp.lt.s32.totalorder %s17, 1
      %s219 = scalar_select %p218, %s17, 1
      %s220 = scalar_lea.vmem %s4, %s219
      %p221 = pneg %p158
      %p222 = pneg %p155
      %p223 = scmp.lt.s32.totalorder %s17, 1
      %s224 = scalar_select %p223, %s17, 1
      %s225 = scalar_lea.vmem %s5, %s224
      %p226 = scmp.lt.s32.totalorder %s17, 1
      %s227 = scalar_select %p226, %s17, 1
      %s228 = smul.addr %s227, 54
      %s229 = smul.addr %s228, 8
      %s230 = scalar_lea.vmem %s0, %s229
      %p231 = scmp.lt.s32.totalorder %s17, 1
      %s232 = scalar_select %p231, %s17, 1
      %s233 = smul.addr %s232, 54
      %s234 = smul.addr %s233, 8
      %s235 = scalar_lea.vmem %s3, %s234
      %p236 = scmp.lt.s32.totalorder %s17, 1
      %s237 = scalar_select %p236, %s17, 1
      %s238 = scalar_lea.vmem %s4, %s237
      %p239 = scmp.lt.s32.totalorder %s17, 1
      %s240 = scalar_select %p239, %s17, 1
      %s241 = scalar_lea.vmem %s5, %s240
      %v243 = vld [vmem:[%s230] sm:$0xff]
      %v244 = vld [vmem:[%s230 + $0x8] sm:$0xff]
      %v245 = vld [vmem:[%s230 + $0x18] sm:$0xff]
      %v246 = vld [vmem:[%s230 + $0x20] sm:$0xff]
      %v247 = vld [vmem:[%s230 + $0x30] sm:$0xff]
      %v248 = vld [vmem:[%s230 + $0x38] sm:$0xff]
      %v249 = vld [vmem:[%s230 + $0x48] sm:$0xff]
      %v250 = vld [vmem:[%s230 + $0x50] sm:$0xff]
      %v251 = vld [vmem:[%s230 + $0x60] sm:$0xff]
      %v252 = vld [vmem:[%s230 + $0x68] sm:$0xff]
      %v253 = vld [vmem:[%s230 + $0x78] sm:$0xff]
      %v254 = vld [vmem:[%s230 + $0x80] sm:$0xff]
      %v255 = vld [vmem:[%s230 + $0x90] sm:$0xff]
      %v256 = vld [vmem:[%s230 + $0x98] sm:$0xff]
      %v257 = vld [vmem:[%s230 + $0xa8] sm:$0xff]
      %v258 = vld [vmem:[%s230 + $0xb0] sm:$0xff]
      %v259 = vld [vmem:[%s230 + $0xc0] sm:$0xff]
      %v260 = vld [vmem:[%s230 + $0xc8] sm:$0xff]
      %v261 = vld [vmem:[%s230 + $0xd8] sm:$0xff]
      %v262 = vld [vmem:[%s230 + $0xe0] sm:$0xff]
      %v263 = vld [vmem:[%s230 + $0xf0] sm:$0xff]
      %v264 = vld [vmem:[%s230 + $0xf8] sm:$0xff]
      %v265 = vld [vmem:[%s230 + $0x108] sm:$0xff]
      %v266 = vld [vmem:[%s230 + $0x110] sm:$0xff]
      %v267 = vld [vmem:[%s230 + $0x120] sm:$0xff]
      %v268 = vld [vmem:[%s230 + $0x128] sm:$0xff]
      %v269 = vld [vmem:[%s230 + $0x138] sm:$0xff]
      %v270 = vld [vmem:[%s230 + $0x140] sm:$0xff]
      %v271 = vld [vmem:[%s230 + $0x150] sm:$0xff]
      %v272 = vld [vmem:[%s230 + $0x158] sm:$0xff]
      %v273 = vld [vmem:[%s230 + $0x168] sm:$0xff]
      %v274 = vld [vmem:[%s230 + $0x170] sm:$0xff]
      %v275 = vpack.c.bf16 %v244, %v243
      %v276 = vpack.c.bf16 %v246, %v245
      %v277 = vpack.c.bf16 %v248, %v247
      %v278 = vpack.c.bf16 %v250, %v249
      %v279 = vpack.c.bf16 %v252, %v251
      %v280 = vpack.c.bf16 %v254, %v253
      %v281 = vpack.c.bf16 %v256, %v255
      %v282 = vpack.c.bf16 %v258, %v257
      %v283 = vpack.c.bf16 %v260, %v259
      %v284 = vpack.c.bf16 %v262, %v261
      %v285 = vpack.c.bf16 %v264, %v263
      %v286 = vpack.c.bf16 %v266, %v265
      %v287 = vpack.c.bf16 %v268, %v267
      %v288 = vpack.c.bf16 %v270, %v269
      %v289 = vpack.c.bf16 %v272, %v271
      %v290 = vpack.c.bf16 %v274, %v273
      %v291 = vld [vmem:[%s1] sm:$0x3]
      %v292 = vld [vmem:[%s230 + $0x1] sm:$0xff]
      %v293 = vld [vmem:[%s230 + $0x9] sm:$0xff]
      %v294 = vld [vmem:[%s230 + $0x19] sm:$0xff]
      %v295 = vld [vmem:[%s230 + $0x21] sm:$0xff]
      %v296 = vld [vmem:[%s230 + $0x31] sm:$0xff]
      %v297 = vld [vmem:[%s230 + $0x39] sm:$0xff]
      %v298 = vld [vmem:[%s230 + $0x49] sm:$0xff]
      %v299 = vld [vmem:[%s230 + $0x51] sm:$0xff]
      %v300 = vld [vmem:[%s230 + $0x61] sm:$0xff]
      %v301 = vld [vmem:[%s230 + $0x69] sm:$0xff]
      %v302 = vld [vmem:[%s230 + $0x79] sm:$0xff]
      %v303 = vld [vmem:[%s230 + $0x81] sm:$0xff]
      %v304 = vld [vmem:[%s230 + $0x91] sm:$0xff]
      %v305 = vld [vmem:[%s230 + $0x99] sm:$0xff]
      %v306 = vld [vmem:[%s230 + $0xa9] sm:$0xff]
      %v307 = vld [vmem:[%s230 + $0xb1] sm:$0xff]
      %v308 = vld [vmem:[%s230 + $0xc1] sm:$0xff]
      %v309 = vld [vmem:[%s230 + $0xc9] sm:$0xff]
      %v310 = vld [vmem:[%s230 + $0xd9] sm:$0xff]
      %v311 = vld [vmem:[%s230 + $0xe1] sm:$0xff]
      %v312 = vld [vmem:[%s230 + $0xf1] sm:$0xff]
      %v313 = vld [vmem:[%s230 + $0xf9] sm:$0xff]
      %v314 = vld [vmem:[%s230 + $0x109] sm:$0xff]
      %v315 = vld [vmem:[%s230 + $0x111] sm:$0xff]
      %v316 = vld [vmem:[%s230 + $0x121] sm:$0xff]
      %v317 = vld [vmem:[%s230 + $0x129] sm:$0xff]
      %v318 = vld [vmem:[%s230 + $0x139] sm:$0xff]
      %v319 = vld [vmem:[%s230 + $0x141] sm:$0xff]
      %v320 = vld [vmem:[%s230 + $0x151] sm:$0xff]
      %v321 = vld [vmem:[%s230 + $0x159] sm:$0xff]
      %v322 = vld [vmem:[%s230 + $0x169] sm:$0xff]
      %v323 = vld [vmem:[%s230 + $0x171] sm:$0xff]
      %v324 = vpack.c.bf16 %v293, %v292
      %v325 = vpack.c.bf16 %v295, %v294
      %v326 = vpack.c.bf16 %v297, %v296
      %v327 = vpack.c.bf16 %v299, %v298
      %v328 = vpack.c.bf16 %v301, %v300
      %v329 = vpack.c.bf16 %v303, %v302
      %v330 = vpack.c.bf16 %v305, %v304
      %v331 = vpack.c.bf16 %v307, %v306
      %v332 = vpack.c.bf16 %v309, %v308
      %v333 = vpack.c.bf16 %v311, %v310
      %v334 = vpack.c.bf16 %v313, %v312
      %v335 = vpack.c.bf16 %v315, %v314
      %v336 = vpack.c.bf16 %v317, %v316
      %v337 = vpack.c.bf16 %v319, %v318
      %v338 = vpack.c.bf16 %v321, %v320
      %v339 = vpack.c.bf16 %v323, %v322
      %s340 = scalar_lea.vmem %s1, 2
      %v341 = vld [vmem:[%s340] sm:$0x3]
      %vm342 = vcmask 31744
      %v344 = vsel %vm342, %v324, 0
      %v347 = vsel %vm342, %v325, 0
      %v350 = vsel %vm342, %v326, 0
      %v353 = vsel %vm342, %v327, 0
      %v356 = vsel %vm342, %v328, 0
      %v359 = vsel %vm342, %v329, 0
      %v362 = vsel %vm342, %v330, 0
      %v365 = vsel %vm342, %v331, 0
      %v368 = vsel %vm342, %v332, 0
      %v371 = vsel %vm342, %v333, 0
      %v374 = vsel %vm342, %v334, 0
      %v377 = vsel %vm342, %v335, 0
      %v380 = vsel %vm342, %v336, 0
      %v383 = vsel %vm342, %v337, 0
      %v386 = vsel %vm342, %v338, 0
      %v389 = vsel %vm342, %v339, 0
      %vm391 = vcmask 1041408
      %v393 = vsel %vm391, %v341, 0
      %395 = vmatprep.subr.bf16.mxu0 0
      %396 = vmatpush1.bf16.msra.mxu0 %v393
      %397 = vmatprep.subr.bf16.mxu0 0
      %398 = vmatpush1.bf16.msra.mxu0 0
      %399 = vmatprep.subr.bf16.mxu0 0
      %400 = vmatpush1.bf16.msra.mxu0 0
      %401 = vmatprep.subr.bf16.mxu0 0
      %402 = vmatpush1.bf16.msra.mxu0 0
      %403 = vmatprep.subr.bf16.mxu0 0
      %404 = vmatpush1.bf16.msra.mxu0 0
      %405 = vmatprep.subr.bf16.mxu0 0
      %406 = vmatpush1.bf16.msra.mxu0 0
      %407 = vmatprep.subr.bf16.mxu0 0
      %408 = vmatpush1.bf16.msra.mxu0 0
      %409 = vmatprep.subr.bf16.mxu0 0
      %410 = vmatpush1.bf16.msra.mxu0 0
      %411 = vmatprep.subr.bf16.mxu0 0
      %412 = vmatpush1.bf16.msra.mxu0 0
      %413 = vmatprep.subr.bf16.mxu0 0
      %414 = vmatpush1.bf16.msra.mxu0 0
      %415 = vmatprep.subr.bf16.mxu0 0
      %416 = vmatpush1.bf16.msra.mxu0 0
      %417 = vmatprep.subr.bf16.mxu0 0
      %418 = vmatpush1.bf16.msra.mxu0 0
      %419 = vmatprep.subr.bf16.mxu0 0
      %420 = vmatpush1.bf16.msra.mxu0 0
      %421 = vmatprep.subr.bf16.mxu0 0
      %422 = vmatpush1.bf16.msra.mxu0 0
      %423 = vmatprep.subr.bf16.mxu0 0
      %424 = vmatpush1.bf16.msra.mxu0 0
      %425 = vmatprep.subr.bf16.mxu0 0
      %426 = vmatpush1.bf16.msra.mxu0 0
      %427 = vmatprep.mubr.bf16.mxu0 0
      %428 = vmatmul.mubr.bf16.gmra.mrb[0].mxu0 %v344
      %v429 = vpop.f32.mrb[0].mxu0
      %v430 = vadd.f32 0.0, %v429
      %v431 = vpop.f32.mrb[0].mxu0
      %v432 = vpop.f32.mrb[0].mxu0
      %v433 = vadd.f32 0.0, %v432
      %v434 = vpop.f32.mrb[0].mxu0
      %435 = vmatprep.mubr.bf16.mxu0 0
      %436 = vmatmul.mubr.bf16.gmra.mrb[0].mxu0 %v347
      %v437 = vpop.f32.mrb[0].mxu0
      %v438 = vadd.f32 0.0, %v437
      %v439 = vpop.f32.mrb[0].mxu0
      %v440 = vpop.f32.mrb[0].mxu0
      %v441 = vadd.f32 0.0, %v440
      %v442 = vpop.f32.mrb[0].mxu0
      %443 = vmatprep.mubr.bf16.mxu0 0
      %444 = vmatmul.mubr.bf16.gmra.mrb[0].mxu0 %v350
      %v445 = vpop.f32.mrb[0].mxu0
      %v446 = vadd.f32 0.0, %v445
      %v447 = vpop.f32.mrb[0].mxu0
      %v448 = vpop.f32.mrb[0].mxu0
      %v449 = vadd.f32 0.0, %v448
      %v450 = vpop.f32.mrb[0].mxu0
      %451 = vmatprep.mubr.bf16.mxu0 0
      %452 = vmatmul.mubr.bf16.gmra.mrb[0].mxu0 %v353
      %v453 = vpop.f32.mrb[0].mxu0
      %v454 = vadd.f32 0.0, %v453
      %v455 = vpop.f32.mrb[0].mxu0
      %v456 = vpop.f32.mrb[0].mxu0
      %v457 = vadd.f32 0.0, %v456
      %v458 = vpop.f32.mrb[0].mxu0
      %459 = vmatprep.mubr.bf16.mxu0 0
      %460 = vmatmul.mubr.bf16.gmra.mrb[0].mxu0 %v356
      %v461 = vpop.f32.mrb[0].mxu0
      %v462 = vadd.f32 0.0, %v461
      %v463 = vpop.f32.mrb[0].mxu0
      %v464 = vpop.f32.mrb[0].mxu0
      %v465 = vadd.f32 0.0, %v464
      %v466 = vpop.f32.mrb[0].mxu0
      %467 = vmatprep.mubr.bf16.mxu0 0
      %468 = vmatmul.mubr.bf16.gmra.mrb[0].mxu0 %v359
      %v469 = vpop.f32.mrb[0].mxu0
      %v470 = vadd.f32 0.0, %v469
      %v471 = vpop.f32.mrb[0].mxu0
      %v472 = vpop.f32.mrb[0].mxu0
      %v473 = vadd.f32 0.0, %v472
      %v474 = vpop.f32.mrb[0].mxu0
      %475 = vmatprep.mubr.bf16.mxu0 0
      %476 = vmatmul.mubr.bf16.gmra.mrb[0].mxu0 %v362
      %v477 = vpop.f32.mrb[0].mxu0
      %v478 = vadd.f32 0.0, %v477
      %v479 = vpop.f32.mrb[0].mxu0
      %v480 = vpop.f32.mrb[0].mxu0
      %v481 = vadd.f32 0.0, %v480
      %v482 = vpop.f32.mrb[0].mxu0
      %483 = vmatprep.mubr.bf16.mxu0 0
      %484 = vmatmul.mubr.bf16.gmra.mrb[0].mxu0 %v365
      %v485 = vpop.f32.mrb[0].mxu0
      %v486 = vadd.f32 0.0, %v485
      %v487 = vpop.f32.mrb[0].mxu0
      %v488 = vpop.f32.mrb[0].mxu0
      %v489 = vadd.f32 0.0, %v488
      %v490 = vpop.f32.mrb[0].mxu0
      %491 = vmatprep.mubr.bf16.mxu0 0
      %492 = vmatmul.mubr.bf16.gmra.mrb[0].mxu0 %v368
      %v493 = vpop.f32.mrb[0].mxu0
      %v494 = vadd.f32 0.0, %v493
      %v495 = vpop.f32.mrb[0].mxu0
      %v496 = vpop.f32.mrb[0].mxu0
      %v497 = vadd.f32 0.0, %v496
      %v498 = vpop.f32.mrb[0].mxu0
      %499 = vmatprep.mubr.bf16.mxu0 0
      %500 = vmatmul.mubr.bf16.gmra.mrb[0].mxu0 %v371
      %v501 = vpop.f32.mrb[0].mxu0
      %v502 = vadd.f32 0.0, %v501
      %v503 = vpop.f32.mrb[0].mxu0
      %v504 = vpop.f32.mrb[0].mxu0
      %v505 = vadd.f32 0.0, %v504
      %v506 = vpop.f32.mrb[0].mxu0
      %507 = vmatprep.mubr.bf16.mxu0 0
      %508 = vmatmul.mubr.bf16.gmra.mrb[0].mxu0 %v374
      %v509 = vpop.f32.mrb[0].mxu0
      %v510 = vadd.f32 0.0, %v509
      %v511 = vpop.f32.mrb[0].mxu0
      %v512 = vpop.f32.mrb[0].mxu0
      %v513 = vadd.f32 0.0, %v512
      %v514 = vpop.f32.mrb[0].mxu0
      %515 = vmatprep.mubr.bf16.mxu0 0
      %516 = vmatmul.mubr.bf16.gmra.mrb[0].mxu0 %v377
      %v517 = vpop.f32.mrb[0].mxu0
      %v518 = vadd.f32 0.0, %v517
      %v519 = vpop.f32.mrb[0].mxu0
      %v520 = vpop.f32.mrb[0].mxu0
      %v521 = vadd.f32 0.0, %v520
      %v522 = vpop.f32.mrb[0].mxu0
      %523 = vmatprep.mubr.bf16.mxu0 0
      %524 = vmatmul.mubr.bf16.gmra.mrb[0].mxu0 %v380
      %v525 = vpop.f32.mrb[0].mxu0
      %v526 = vadd.f32 0.0, %v525
      %v527 = vpop.f32.mrb[0].mxu0
      %v528 = vpop.f32.mrb[0].mxu0
      %v529 = vadd.f32 0.0, %v528
      %v530 = vpop.f32.mrb[0].mxu0
      %531 = vmatprep.mubr.bf16.mxu0 0
      %532 = vmatmul.mubr.bf16.gmra.mrb[0].mxu0 %v383
      %v533 = vpop.f32.mrb[0].mxu0
      %v534 = vadd.f32 0.0, %v533
      %v535 = vpop.f32.mrb[0].mxu0
      %v536 = vpop.f32.mrb[0].mxu0
      %v537 = vadd.f32 0.0, %v536
      %v538 = vpop.f32.mrb[0].mxu0
      %539 = vmatprep.mubr.bf16.mxu0 0
      %540 = vmatmul.mubr.bf16.gmra.mrb[0].mxu0 %v386
      %v541 = vpop.f32.mrb[0].mxu0
      %v542 = vadd.f32 0.0, %v541
      %v543 = vpop.f32.mrb[0].mxu0
      %v544 = vpop.f32.mrb[0].mxu0
      %v545 = vadd.f32 0.0, %v544
      %v546 = vpop.f32.mrb[0].mxu0
      %547 = vmatprep.mubr.bf16.mxu0 0
      %548 = vmatmul.mubr.bf16.gmra.mrb[0].mxu0 %v389
      %v549 = vpop.f32.mrb[0].mxu0
      %v550 = vadd.f32 0.0, %v549
      %v551 = vpop.f32.mrb[0].mxu0
      %v552 = vpop.f32.mrb[0].mxu0
      %v553 = vadd.f32 0.0, %v552
      %v554 = vpop.f32.mrb[0].mxu0
      %555 = vdwg.mxu0
      %v557 = vsel %vm342, %v275, 0
      %v560 = vsel %vm342, %v276, 0
      %v563 = vsel %vm342, %v277, 0
      %v566 = vsel %vm342, %v278, 0
      %v569 = vsel %vm342, %v279, 0
      %v572 = vsel %vm342, %v280, 0
      %v575 = vsel %vm342, %v281, 0
      %v578 = vsel %vm342, %v282, 0
      %v581 = vsel %vm342, %v283, 0
      %v584 = vsel %vm342, %v284, 0
      %v587 = vsel %vm342, %v285, 0
      %v590 = vsel %vm342, %v286, 0
      %v593 = vsel %vm342, %v287, 0
      %v596 = vsel %vm342, %v288, 0
      %v599 = vsel %vm342, %v289, 0
      %v602 = vsel %vm342, %v290, 0
      %v605 = vsel %vm391, %v291, 0
      %607 = vmatprep.subr.bf16.mxu0 0
      %608 = vmatpush1.bf16.msra.mxu0 %v605
      %609 = vmatprep.subr.bf16.mxu0 0
      %610 = vmatpush1.bf16.msra.mxu0 0
      %611 = vmatprep.subr.bf16.mxu0 0
      %612 = vmatpush1.bf16.msra.mxu0 0
      %613 = vmatprep.subr.bf16.mxu0 0
      %614 = vmatpush1.bf16.msra.mxu0 0
      %615 = vmatprep.subr.bf16.mxu0 0
      %616 = vmatpush1.bf16.msra.mxu0 0
      %617 = vmatprep.subr.bf16.mxu0 0
      %618 = vmatpush1.bf16.msra.mxu0 0
      %619 = vmatprep.subr.bf16.mxu0 0
      %620 = vmatpush1.bf16.msra.mxu0 0
      %621 = vmatprep.subr.bf16.mxu0 0
      %622 = vmatpush1.bf16.msra.mxu0 0
      %623 = vmatprep.subr.bf16.mxu0 0
      %624 = vmatpush1.bf16.msra.mxu0 0
      %625 = vmatprep.subr.bf16.mxu0 0
      %626 = vmatpush1.bf16.msra.mxu0 0
      %627 = vmatprep.subr.bf16.mxu0 0
      %628 = vmatpush1.bf16.msra.mxu0 0
      %629 = vmatprep.subr.bf16.mxu0 0
      %630 = vmatpush1.bf16.msra.mxu0 0
      %631 = vmatprep.subr.bf16.mxu0 0
      %632 = vmatpush1.bf16.msra.mxu0 0
      %633 = vmatprep.subr.bf16.mxu0 0
      %634 = vmatpush1.bf16.msra.mxu0 0
      %635 = vmatprep.subr.bf16.mxu0 0
      %636 = vmatpush1.bf16.msra.mxu0 0
      %637 = vmatprep.subr.bf16.mxu0 0
      %638 = vmatpush1.bf16.msra.mxu0 0
      %639 = vmatprep.mubr.bf16.mxu0 0
      %640 = vmatmul.mubr.bf16.gmra.mrb[0].mxu0 %v557
      %v641 = vpop.f32.mrb[0].mxu0
      %v642 = vadd.f32 %v430, %v641
      %v643 = vpop.f32.mrb[0].mxu0
      %v644 = vpop.f32.mrb[0].mxu0
      %v645 = vadd.f32 %v433, %v644
      %v646 = vpop.f32.mrb[0].mxu0
      %647 = vmatprep.mubr.bf16.mxu0 0
      %648 = vmatmul.mubr.bf16.gmra.mrb[0].mxu0 %v560
      %v649 = vpop.f32.mrb[0].mxu0
      %v650 = vadd.f32 %v438, %v649
      %v651 = vpop.f32.mrb[0].mxu0
      %v652 = vpop.f32.mrb[0].mxu0
      %v653 = vadd.f32 %v441, %v652
      %v654 = vpop.f32.mrb[0].mxu0
      %655 = vmatprep.mubr.bf16.mxu0 0
      %656 = vmatmul.mubr.bf16.gmra.mrb[0].mxu0 %v563
      %v657 = vpop.f32.mrb[0].mxu0
      %v658 = vadd.f32 %v446, %v657
      %v659 = vpop.f32.mrb[0].mxu0
      %v660 = vpop.f32.mrb[0].mxu0
      %v661 = vadd.f32 %v449, %v660
      %v662 = vpop.f32.mrb[0].mxu0
      %663 = vmatprep.mubr.bf16.mxu0 0
      %664 = vmatmul.mubr.bf16.gmra.mrb[0].mxu0 %v566
      %v665 = vpop.f32.mrb[0].mxu0
      %v666 = vadd.f32 %v454, %v665
      %v667 = vpop.f32.mrb[0].mxu0
      %v668 = vpop.f32.mrb[0].mxu0
      %v669 = vadd.f32 %v457, %v668
      %v670 = vpop.f32.mrb[0].mxu0
      %671 = vmatprep.mubr.bf16.mxu0 0
      %672 = vmatmul.mubr.bf16.gmra.mrb[0].mxu0 %v569
      %v673 = vpop.f32.mrb[0].mxu0
      %v674 = vadd.f32 %v462, %v673
      %v675 = vpop.f32.mrb[0].mxu0
      %v676 = vpop.f32.mrb[0].mxu0
      %v677 = vadd.f32 %v465, %v676
      %v678 = vpop.f32.mrb[0].mxu0
      %679 = vmatprep.mubr.bf16.mxu0 0
      %680 = vmatmul.mubr.bf16.gmra.mrb[0].mxu0 %v572
      %v681 = vpop.f32.mrb[0].mxu0
      %v682 = vadd.f32 %v470, %v681
      %v683 = vpop.f32.mrb[0].mxu0
      %v684 = vpop.f32.mrb[0].mxu0
      %v685 = vadd.f32 %v473, %v684
      %v686 = vpop.f32.mrb[0].mxu0
      %687 = vmatprep.mubr.bf16.mxu0 0
      %688 = vmatmul.mubr.bf16.gmra.mrb[0].mxu0 %v575
      %v689 = vpop.f32.mrb[0].mxu0
      %v690 = vadd.f32 %v478, %v689
      %v691 = vpop.f32.mrb[0].mxu0
      %v692 = vpop.f32.mrb[0].mxu0
      %v693 = vadd.f32 %v481, %v692
      %v694 = vpop.f32.mrb[0].mxu0
      %695 = vmatprep.mubr.bf16.mxu0 0
      %696 = vmatmul.mubr.bf16.gmra.mrb[0].mxu0 %v578
      %v697 = vpop.f32.mrb[0].mxu0
      %v698 = vadd.f32 %v486, %v697
      %v699 = vpop.f32.mrb[0].mxu0
      %v700 = vpop.f32.mrb[0].mxu0
      %v701 = vadd.f32 %v489, %v700
      %v702 = vpop.f32.mrb[0].mxu0
      %703 = vmatprep.mubr.bf16.mxu0 0
      %704 = vmatmul.mubr.bf16.gmra.mrb[0].mxu0 %v581
      %v705 = vpop.f32.mrb[0].mxu0
      %v706 = vadd.f32 %v494, %v705
      %v707 = vpop.f32.mrb[0].mxu0
      %v708 = vpop.f32.mrb[0].mxu0
      %v709 = vadd.f32 %v497, %v708
      %v710 = vpop.f32.mrb[0].mxu0
      %711 = vmatprep.mubr.bf16.mxu0 0
      %712 = vmatmul.mubr.bf16.gmra.mrb[0].mxu0 %v584
      %v713 = vpop.f32.mrb[0].mxu0
      %v714 = vadd.f32 %v502, %v713
      %v715 = vpop.f32.mrb[0].mxu0
      %v716 = vpop.f32.mrb[0].mxu0
      %v717 = vadd.f32 %v505, %v716
      %v718 = vpop.f32.mrb[0].mxu0
      %719 = vmatprep.mubr.bf16.mxu0 0
      %720 = vmatmul.mubr.bf16.gmra.mrb[0].mxu0 %v587
      %v721 = vpop.f32.mrb[0].mxu0
      %v722 = vadd.f32 %v510, %v721
      %v723 = vpop.f32.mrb[0].mxu0
      %v724 = vpop.f32.mrb[0].mxu0
      %v725 = vadd.f32 %v513, %v724
      %v726 = vpop.f32.mrb[0].mxu0
      %727 = vmatprep.mubr.bf16.mxu0 0
      %728 = vmatmul.mubr.bf16.gmra.mrb[0].mxu0 %v590
      %v729 = vpop.f32.mrb[0].mxu0
      %v730 = vadd.f32 %v518, %v729
      %v731 = vpop.f32.mrb[0].mxu0
      %v732 = vpop.f32.mrb[0].mxu0
      %v733 = vadd.f32 %v521, %v732
      %v734 = vpop.f32.mrb[0].mxu0
      %735 = vmatprep.mubr.bf16.mxu0 0
      %736 = vmatmul.mubr.bf16.gmra.mrb[0].mxu0 %v593
      %v737 = vpop.f32.mrb[0].mxu0
      %v738 = vadd.f32 %v526, %v737
      %v739 = vpop.f32.mrb[0].mxu0
      %v740 = vpop.f32.mrb[0].mxu0
      %v741 = vadd.f32 %v529, %v740
      %v742 = vpop.f32.mrb[0].mxu0
      %743 = vmatprep.mubr.bf16.mxu0 0
      %744 = vmatmul.mubr.bf16.gmra.mrb[0].mxu0 %v596
      %v745 = vpop.f32.mrb[0].mxu0
      %v746 = vadd.f32 %v534, %v745
      %v747 = vpop.f32.mrb[0].mxu0
      %v748 = vpop.f32.mrb[0].mxu0
      %v749 = vadd.f32 %v537, %v748
      %v750 = vpop.f32.mrb[0].mxu0
      %751 = vmatprep.mubr.bf16.mxu0 0
      %752 = vmatmul.mubr.bf16.gmra.mrb[0].mxu0 %v599
      %v753 = vpop.f32.mrb[0].mxu0
      %v754 = vadd.f32 %v542, %v753
      %v755 = vpop.f32.mrb[0].mxu0
      %v756 = vpop.f32.mrb[0].mxu0
      %v757 = vadd.f32 %v545, %v756
      %v758 = vpop.f32.mrb[0].mxu0
      %759 = vmatprep.mubr.bf16.mxu0 0
      %760 = vmatmul.mubr.bf16.gmra.mrb[0].mxu0 %v602
      %v761 = vpop.f32.mrb[0].mxu0
      %v762 = vadd.f32 %v550, %v761
      %v763 = vpop.f32.mrb[0].mxu0
      %v764 = vpop.f32.mrb[0].mxu0
      %v765 = vadd.f32 %v553, %v764
      %v766 = vpop.f32.mrb[0].mxu0
      %767 = vdwg.mxu0
      %v768 = vld [vmem:[%s230 + $0x2] sm:$0xff]
      %v769 = vld [vmem:[%s230 + $0xa] sm:$0xff]
      %v770 = vld [vmem:[%s230 + $0x1a] sm:$0xff]
      %v771 = vld [vmem:[%s230 + $0x22] sm:$0xff]
      %v772 = vld [vmem:[%s230 + $0x32] sm:$0xff]
      %v773 = vld [vmem:[%s230 + $0x3a] sm:$0xff]
      %v774 = vld [vmem:[%s230 + $0x4a] sm:$0xff]
      %v775 = vld [vmem:[%s230 + $0x52] sm:$0xff]
      %v776 = vld [vmem:[%s230 + $0x62] sm:$0xff]
      %v777 = vld [vmem:[%s230 + $0x6a] sm:$0xff]
      %v778 = vld [vmem:[%s230 + $0x7a] sm:$0xff]
      %v779 = vld [vmem:[%s230 + $0x82] sm:$0xff]
      %v780 = vld [vmem:[%s230 + $0x92] sm:$0xff]
      %v781 = vld [vmem:[%s230 + $0x9a] sm:$0xff]
      %v782 = vld [vmem:[%s230 + $0xaa] sm:$0xff]
      %v783 = vld [vmem:[%s230 + $0xb2] sm:$0xff]
      %v784 = vld [vmem:[%s230 + $0xc2] sm:$0xff]
      %v785 = vld [vmem:[%s230 + $0xca] sm:$0xff]
      %v786 = vld [vmem:[%s230 + $0xda] sm:$0xff]
      %v787 = vld [vmem:[%s230 + $0xe2] sm:$0xff]
      %v788 = vld [vmem:[%s230 + $0xf2] sm:$0xff]
      %v789 = vld [vmem:[%s230 + $0xfa] sm:$0xff]
      %v790 = vld [vmem:[%s230 + $0x10a] sm:$0xff]
      %v791 = vld [vmem:[%s230 + $0x112] sm:$0xff]
      %v792 = vld [vmem:[%s230 + $0x122] sm:$0xff]
      %v793 = vld [vmem:[%s230 + $0x12a] sm:$0xff]
      %v794 = vld [vmem:[%s230 + $0x13a] sm:$0xff]
      %v795 = vld [vmem:[%s230 + $0x142] sm:$0xff]
      %v796 = vld [vmem:[%s230 + $0x152] sm:$0xff]
      %v797 = vld [vmem:[%s230 + $0x15a] sm:$0xff]
      %v798 = vld [vmem:[%s230 + $0x16a] sm:$0xff]
      %v799 = vld [vmem:[%s230 + $0x172] sm:$0xff]
      %v800 = vpack.c.bf16 %v769, %v768
      %v801 = vpack.c.bf16 %v771, %v770
      %v802 = vpack.c.bf16 %v773, %v772
      %v803 = vpack.c.bf16 %v775, %v774
      %v804 = vpack.c.bf16 %v777, %v776
      %v805 = vpack.c.bf16 %v779, %v778
      %v806 = vpack.c.bf16 %v781, %v780
      %v807 = vpack.c.bf16 %v783, %v782
      %v808 = vpack.c.bf16 %v785, %v784
      %v809 = vpack.c.bf16 %v787, %v786
      %v810 = vpack.c.bf16 %v789, %v788
      %v811 = vpack.c.bf16 %v791, %v790
      %v812 = vpack.c.bf16 %v793, %v792
      %v813 = vpack.c.bf16 %v795, %v794
      %v814 = vpack.c.bf16 %v797, %v796
      %v815 = vpack.c.bf16 %v799, %v798
      %s816 = scalar_lea.vmem %s1, 4
      %v817 = vld [vmem:[%s816] sm:$0x3]
      %v819 = vsel %vm342, %v800, 0
      %v822 = vsel %vm342, %v801, 0
      %v825 = vsel %vm342, %v802, 0
      %v828 = vsel %vm342, %v803, 0
      %v831 = vsel %vm342, %v804, 0
      %v834 = vsel %vm342, %v805, 0
      %v837 = vsel %vm342, %v806, 0
      %v840 = vsel %vm342, %v807, 0
      %v843 = vsel %vm342, %v808, 0
      %v846 = vsel %vm342, %v809, 0
      %v849 = vsel %vm342, %v810, 0
      %v852 = vsel %vm342, %v811, 0
      %v855 = vsel %vm342, %v812, 0
      %v858 = vsel %vm342, %v813, 0
      %v861 = vsel %vm342, %v814, 0
      %v864 = vsel %vm342, %v815, 0
      %v867 = vsel %vm391, %v817, 0
      %869 = vmatprep.subr.bf16.mxu0 0
      %870 = vmatpush1.bf16.msra.mxu0 %v867
      %871 = vmatprep.subr.bf16.mxu0 0
      %872 = vmatpush1.bf16.msra.mxu0 0
      %873 = vmatprep.subr.bf16.mxu0 0
      %874 = vmatpush1.bf16.msra.mxu0 0
      %875 = vmatprep.subr.bf16.mxu0 0
      %876 = vmatpush1.bf16.msra.mxu0 0
      %877 = vmatprep.subr.bf16.mxu0 0
      %878 = vmatpush1.bf16.msra.mxu0 0
      %879 = vmatprep.subr.bf16.mxu0 0
      %880 = vmatpush1.bf16.msra.mxu0 0
      %881 = vmatprep.subr.bf16.mxu0 0
      %882 = vmatpush1.bf16.msra.mxu0 0
      %883 = vmatprep.subr.bf16.mxu0 0
      %884 = vmatpush1.bf16.msra.mxu0 0
      %885 = vmatprep.subr.bf16.mxu0 0
      %886 = vmatpush1.bf16.msra.mxu0 0
      %887 = vmatprep.subr.bf16.mxu0 0
      %888 = vmatpush1.bf16.msra.mxu0 0
      %889 = vmatprep.subr.bf16.mxu0 0
      %890 = vmatpush1.bf16.msra.mxu0 0
      %891 = vmatprep.subr.bf16.mxu0 0
      %892 = vmatpush1.bf16.msra.mxu0 0
      %893 = vmatprep.subr.bf16.mxu0 0
      %894 = vmatpush1.bf16.msra.mxu0 0
      %895 = vmatprep.subr.bf16.mxu0 0
      %896 = vmatpush1.bf16.msra.mxu0 0
      %897 = vmatprep.subr.bf16.mxu0 0
      %898 = vmatpush1.bf16.msra.mxu0 0
      %899 = vmatprep.subr.bf16.mxu0 0
      %900 = vmatpush1.bf16.msra.mxu0 0
      %901 = vmatprep.mubr.bf16.mxu0 0
      %902 = vmatmul.mubr.bf16.gmra.mrb[0].mxu0 %v819
      %v903 = vpop.f32.mrb[0].mxu0
      %v904 = vadd.f32 0.0, %v903
      %v905 = vpop.f32.mrb[0].mxu0
      %v906 = vpop.f32.mrb[0].mxu0
      %v907 = vadd.f32 0.0, %v906
      %v908 = vpop.f32.mrb[0].mxu0
      %909 = vmatprep.mubr.bf16.mxu0 0
      %910 = vmatmul.mubr.bf16.gmra.mrb[0].mxu0 %v822
      %v911 = vpop.f32.mrb[0].mxu0
      %v912 = vadd.f32 0.0, %v911
      %v913 = vpop.f32.mrb[0].mxu0
      %v914 = vpop.f32.mrb[0].mxu0
      %v915 = vadd.f32 0.0, %v914
      %v916 = vpop.f32.mrb[0].mxu0
      %917 = vmatprep.mubr.bf16.mxu0 0
      %918 = vmatmul.mubr.bf16.gmra.mrb[0].mxu0 %v825
      %v919 = vpop.f32.mrb[0].mxu0
      %v920 = vadd.f32 0.0, %v919
      %v921 = vpop.f32.mrb[0].mxu0
      %v922 = vpop.f32.mrb[0].mxu0
      %v923 = vadd.f32 0.0, %v922
      %v924 = vpop.f32.mrb[0].mxu0
      %925 = vmatprep.mubr.bf16.mxu0 0
      %926 = vmatmul.mubr.bf16.gmra.mrb[0].mxu0 %v828
      %v927 = vpop.f32.mrb[0].mxu0
      %v928 = vadd.f32 0.0, %v927
      %v929 = vpop.f32.mrb[0].mxu0
      %v930 = vpop.f32.mrb[0].mxu0
      %v931 = vadd.f32 0.0, %v930
      %v932 = vpop.f32.mrb[0].mxu0
      %933 = vmatprep.mubr.bf16.mxu0 0
      %934 = vmatmul.mubr.bf16.gmra.mrb[0].mxu0 %v831
      %v935 = vpop.f32.mrb[0].mxu0
      %v936 = vadd.f32 0.0, %v935
      %v937 = vpop.f32.mrb[0].mxu0
      %v938 = vpop.f32.mrb[0].mxu0
      %v939 = vadd.f32 0.0, %v938
      %v940 = vpop.f32.mrb[0].mxu0
      %941 = vmatprep.mubr.bf16.mxu0 0
      %942 = vmatmul.mubr.bf16.gmra.mrb[0].mxu0 %v834
      %v943 = vpop.f32.mrb[0].mxu0
      %v944 = vadd.f32 0.0, %v943
      %v945 = vpop.f32.mrb[0].mxu0
      %v946 = vpop.f32.mrb[0].mxu0
      %v947 = vadd.f32 0.0, %v946
      %v948 = vpop.f32.mrb[0].mxu0
      %949 = vmatprep.mubr.bf16.mxu0 0
      %950 = vmatmul.mubr.bf16.gmra.mrb[0].mxu0 %v837
      %v951 = vpop.f32.mrb[0].mxu0
      %v952 = vadd.f32 0.0, %v951
      %v953 = vpop.f32.mrb[0].mxu0
      %v954 = vpop.f32.mrb[0].mxu0
      %v955 = vadd.f32 0.0, %v954
      %v956 = vpop.f32.mrb[0].mxu0
      %957 = vmatprep.mubr.bf16.mxu0 0
      %958 = vmatmul.mubr.bf16.gmra.mrb[0].mxu0 %v840
      %v959 = vpop.f32.mrb[0].mxu0
      %v960 = vadd.f32 0.0, %v959
      %v961 = vpop.f32.mrb[0].mxu0
      %v962 = vpop.f32.mrb[0].mxu0
      %v963 = vadd.f32 0.0, %v962
      %v964 = vpop.f32.mrb[0].mxu0
      %965 = vmatprep.mubr.bf16.mxu0 0
      %966 = vmatmul.mubr.bf16.gmra.mrb[0].mxu0 %v843
      %v967 = vpop.f32.mrb[0].mxu0
      %v968 = vadd.f32 0.0, %v967
      %v969 = vpop.f32.mrb[0].mxu0
      %v970 = vpop.f32.mrb[0].mxu0
      %v971 = vadd.f32 0.0, %v970
      %v972 = vpop.f32.mrb[0].mxu0
      %973 = vmatprep.mubr.bf16.mxu0 0
      %974 = vmatmul.mubr.bf16.gmra.mrb[0].mxu0 %v846
      %v975 = vpop.f32.mrb[0].mxu0
      %v976 = vadd.f32 0.0, %v975
      %v977 = vpop.f32.mrb[0].mxu0
      %v978 = vpop.f32.mrb[0].mxu0
      %v979 = vadd.f32 0.0, %v978
      %v980 = vpop.f32.mrb[0].mxu0
      %981 = vmatprep.mubr.bf16.mxu0 0
      %982 = vmatmul.mubr.bf16.gmra.mrb[0].mxu0 %v849
      %v983 = vpop.f32.mrb[0].mxu0
      %v984 = vadd.f32 0.0, %v983
      %v985 = vpop.f32.mrb[0].mxu0
      %v986 = vpop.f32.mrb[0].mxu0
      %v987 = vadd.f32 0.0, %v986
      %v988 = vpop.f32.mrb[0].mxu0
      %989 = vmatprep.mubr.bf16.mxu0 0
      %990 = vmatmul.mubr.bf16.gmra.mrb[0].mxu0 %v852
      %v991 = vpop.f32.mrb[0].mxu0
      %v992 = vadd.f32 0.0, %v991
      %v993 = vpop.f32.mrb[0].mxu0
      %v994 = vpop.f32.mrb[0].mxu0
      %v995 = vadd.f32 0.0, %v994
      %v996 = vpop.f32.mrb[0].mxu0
      %997 = vmatprep.mubr.bf16.mxu0 0
      %998 = vmatmul.mubr.bf16.gmra.mrb[0].mxu0 %v855
      %v999 = vpop.f32.mrb[0].mxu0
      %v1000 = vadd.f32 0.0, %v999
      %v1001 = vpop.f32.mrb[0].mxu0
      %v1002 = vpop.f32.mrb[0].mxu0
      %v1003 = vadd.f32 0.0, %v1002
      %v1004 = vpop.f32.mrb[0].mxu0
      %1005 = vmatprep.mubr.bf16.mxu0 0
      %1006 = vmatmul.mubr.bf16.gmra.mrb[0].mxu0 %v858
      %v1007 = vpop.f32.mrb[0].mxu0
      %v1008 = vadd.f32 0.0, %v1007
      %v1009 = vpop.f32.mrb[0].mxu0
      %v1010 = vpop.f32.mrb[0].mxu0
      %v1011 = vadd.f32 0.0, %v1010
      %v1012 = vpop.f32.mrb[0].mxu0
      %1013 = vmatprep.mubr.bf16.mxu0 0
      %1014 = vmatmul.mubr.bf16.gmra.mrb[0].mxu0 %v861
      %v1015 = vpop.f32.mrb[0].mxu0
      %v1016 = vadd.f32 0.0, %v1015
      %v1017 = vpop.f32.mrb[0].mxu0
      %v1018 = vpop.f32.mrb[0].mxu0
      %v1019 = vadd.f32 0.0, %v1018
      %v1020 = vpop.f32.mrb[0].mxu0
      %1021 = vmatprep.mubr.bf16.mxu0 0
      %1022 = vmatmul.mubr.bf16.gmra.mrb[0].mxu0 %v864
      %v1023 = vpop.f32.mrb[0].mxu0
      %v1024 = vadd.f32 0.0, %v1023
      %v1025 = vpop.f32.mrb[0].mxu0
      %v1026 = vpop.f32.mrb[0].mxu0
      %v1027 = vadd.f32 0.0, %v1026
      %v1028 = vpop.f32.mrb[0].mxu0
      %1029 = vdwg.mxu0
      %v1030 = vadd.f32 %v642, %v904
      %v1031 = vadd.f32 %v645, %v907
      %v1032 = vadd.f32 %v650, %v912
      %v1033 = vadd.f32 %v653, %v915
      %v1034 = vadd.f32 %v658, %v920
      %v1035 = vadd.f32 %v661, %v923
      %v1036 = vadd.f32 %v666, %v928
      %v1037 = vadd.f32 %v669, %v931
      %v1038 = vadd.f32 %v674, %v936
      %v1039 = vadd.f32 %v677, %v939
      %v1040 = vadd.f32 %v682, %v944
      %v1041 = vadd.f32 %v685, %v947
      %v1042 = vadd.f32 %v690, %v952
      %v1043 = vadd.f32 %v693, %v955
      %v1044 = vadd.f32 %v698, %v960
      %v1045 = vadd.f32 %v701, %v963
      %v1046 = vadd.f32 %v706, %v968
      %v1047 = vadd.f32 %v709, %v971
      %v1048 = vadd.f32 %v714, %v976
      %v1049 = vadd.f32 %v717, %v979
      %v1050 = vadd.f32 %v722, %v984
      %v1051 = vadd.f32 %v725, %v987
      %v1052 = vadd.f32 %v730, %v992
      %v1053 = vadd.f32 %v733, %v995
      %v1054 = vadd.f32 %v738, %v1000
      %v1055 = vadd.f32 %v741, %v1003
      %v1056 = vadd.f32 %v746, %v1008
      %v1057 = vadd.f32 %v749, %v1011
      %v1058 = vadd.f32 %v754, %v1016
      %v1059 = vadd.f32 %v757, %v1019
      %v1060 = vadd.f32 %v762, %v1024
      %v1061 = vadd.f32 %v765, %v1027
      %s1062 = scalar_lea.vmem %s230, 24
      %v1063 = vld [vmem:[%s1062] sm:$0xff]
      %v1064 = vld [vmem:[%s1062 + $0x8] sm:$0xff]
      %v1065 = vld [vmem:[%s1062 + $0x18] sm:$0xff]
      %v1066 = vld [vmem:[%s1062 + $0x20] sm:$0xff]
      %v1067 = vld [vmem:[%s1062 + $0x30] sm:$0xff]
      %v1068 = vld [vmem:[%s1062 + $0x38] sm:$0xff]
      %v1069 = vld [vmem:[%s1062 + $0x48] sm:$0xff]
      %v1070 = vld [vmem:[%s1062 + $0x50] sm:$0xff]
      %v1071 = vld [vmem:[%s1062 + $0x60] sm:$0xff]
      %v1072 = vld [vmem:[%s1062 + $0x68] sm:$0xff]
      %v1073 = vld [vmem:[%s1062 + $0x78] sm:$0xff]
      %v1074 = vld [vmem:[%s1062 + $0x80] sm:$0xff]
      %v1075 = vld [vmem:[%s1062 + $0x90] sm:$0xff]
      %v1076 = vld [vmem:[%s1062 + $0x98] sm:$0xff]
      %v1077 = vld [vmem:[%s1062 + $0xa8] sm:$0xff]
      %v1078 = vld [vmem:[%s1062 + $0xb0] sm:$0xff]
      %v1079 = vld [vmem:[%s1062 + $0xc0] sm:$0xff]
      %v1080 = vld [vmem:[%s1062 + $0xc8] sm:$0xff]
      %v1081 = vld [vmem:[%s1062 + $0xd8] sm:$0xff]
      %v1082 = vld [vmem:[%s1062 + $0xe0] sm:$0xff]
      %v1083 = vld [vmem:[%s1062 + $0xf0] sm:$0xff]
      %v1084 = vld [vmem:[%s1062 + $0xf8] sm:$0xff]
      %v1085 = vld [vmem:[%s1062 + $0x108] sm:$0xff]
      %v1086 = vld [vmem:[%s1062 + $0x110] sm:$0xff]
      %v1087 = vld [vmem:[%s1062 + $0x120] sm:$0xff]
      %v1088 = vld [vmem:[%s1062 + $0x128] sm:$0xff]
      %v1089 = vld [vmem:[%s1062 + $0x138] sm:$0xff]
      %v1090 = vld [vmem:[%s1062 + $0x140] sm:$0xff]
      %v1091 = vld [vmem:[%s1062 + $0x150] sm:$0xff]
      %v1092 = vld [vmem:[%s1062 + $0x158] sm:$0xff]
      %v1093 = vld [vmem:[%s1062 + $0x168] sm:$0xff]
      %v1094 = vld [vmem:[%s1062 + $0x170] sm:$0xff]
      %v1095 = vpack.c.bf16 %v1064, %v1063
      %v1096 = vpack.c.bf16 %v1066, %v1065
      %v1097 = vpack.c.bf16 %v1068, %v1067
      %v1098 = vpack.c.bf16 %v1070, %v1069
      %v1099 = vpack.c.bf16 %v1072, %v1071
      %v1100 = vpack.c.bf16 %v1074, %v1073
      %v1101 = vpack.c.bf16 %v1076, %v1075
      %v1102 = vpack.c.bf16 %v1078, %v1077
      %v1103 = vpack.c.bf16 %v1080, %v1079
      %v1104 = vpack.c.bf16 %v1082, %v1081
      %v1105 = vpack.c.bf16 %v1084, %v1083
      %v1106 = vpack.c.bf16 %v1086, %v1085
      %v1107 = vpack.c.bf16 %v1088, %v1087
      %v1108 = vpack.c.bf16 %v1090, %v1089
      %v1109 = vpack.c.bf16 %v1092, %v1091
      %v1110 = vpack.c.bf16 %v1094, %v1093
      %s1111 = scalar_lea.vmem %s1, 6
      %v1112 = vld [vmem:[%s1111] sm:$0x3]
      %v1114 = vsel %vm342, %v1095, 0
      %v1117 = vsel %vm342, %v1096, 0
      %v1120 = vsel %vm342, %v1097, 0
      %v1123 = vsel %vm342, %v1098, 0
      %v1126 = vsel %vm342, %v1099, 0
      %v1129 = vsel %vm342, %v1100, 0
      %v1132 = vsel %vm342, %v1101, 0
      %v1135 = vsel %vm342, %v1102, 0
      %v1138 = vsel %vm342, %v1103, 0
      %v1141 = vsel %vm342, %v1104, 0
      %v1144 = vsel %vm342, %v1105, 0
      %v1147 = vsel %vm342, %v1106, 0
      %v1150 = vsel %vm342, %v1107, 0
      %v1153 = vsel %vm342, %v1108, 0
      %v1156 = vsel %vm342, %v1109, 0
      %v1159 = vsel %vm342, %v1110, 0
      %v1162 = vsel %vm391, %v1112, 0
      %1164 = vmatprep.subr.bf16.mxu0 0
      %1165 = vmatpush1.bf16.msra.mxu0 %v1162
      %1166 = vmatprep.subr.bf16.mxu0 0
      %1167 = vmatpush1.bf16.msra.mxu0 0
      %1168 = vmatprep.subr.bf16.mxu0 0
      %1169 = vmatpush1.bf16.msra.mxu0 0
      %1170 = vmatprep.subr.bf16.mxu0 0
      %1171 = vmatpush1.bf16.msra.mxu0 0
      %1172 = vmatprep.subr.bf16.mxu0 0
      %1173 = vmatpush1.bf16.msra.mxu0 0
      %1174 = vmatprep.subr.bf16.mxu0 0
      %1175 = vmatpush1.bf16.msra.mxu0 0
      %1176 = vmatprep.subr.bf16.mxu0 0
      %1177 = vmatpush1.bf16.msra.mxu0 0
      %1178 = vmatprep.subr.bf16.mxu0 0
      %1179 = vmatpush1.bf16.msra.mxu0 0
      %1180 = vmatprep.subr.bf16.mxu0 0
      %1181 = vmatpush1.bf16.msra.mxu0 0
      %1182 = vmatprep.subr.bf16.mxu0 0
      %1183 = vmatpush1.bf16.msra.mxu0 0
      %1184 = vmatprep.subr.bf16.mxu0 0
      %1185 = vmatpush1.bf16.msra.mxu0 0
      %1186 = vmatprep.subr.bf16.mxu0 0
      %1187 = vmatpush1.bf16.msra.mxu0 0
      %1188 = vmatprep.subr.bf16.mxu0 0
      %1189 = vmatpush1.bf16.msra.mxu0 0
      %1190 = vmatprep.subr.bf16.mxu0 0
      %1191 = vmatpush1.bf16.msra.mxu0 0
      %1192 = vmatprep.subr.bf16.mxu0 0
      %1193 = vmatpush1.bf16.msra.mxu0 0
      %1194 = vmatprep.subr.bf16.mxu0 0
      %1195 = vmatpush1.bf16.msra.mxu0 0
      %1196 = vmatprep.mubr.bf16.mxu0 0
      %1197 = vmatmul.mubr.bf16.gmra.mrb[0].mxu0 %v1114
      %v1198 = vpop.f32.mrb[0].mxu0
      %v1199 = vadd.f32 0.0, %v1198
      %v1200 = vpop.f32.mrb[0].mxu0
      %v1201 = vpop.f32.mrb[0].mxu0
      %v1202 = vadd.f32 0.0, %v1201
      %v1203 = vpop.f32.mrb[0].mxu0
      %1204 = vmatprep.mubr.bf16.mxu0 0
      %1205 = vmatmul.mubr.bf16.gmra.mrb[0].mxu0 %v1117
      %v1206 = vpop.f32.mrb[0].mxu0
      %v1207 = vadd.f32 0.0, %v1206
      %v1208 = vpop.f32.mrb[0].mxu0
      %v1209 = vpop.f32.mrb[0].mxu0
      %v1210 = vadd.f32 0.0, %v1209
      %v1211 = vpop.f32.mrb[0].mxu0
      %1212 = vmatprep.mubr.bf16.mxu0 0
      %1213 = vmatmul.mubr.bf16.gmra.mrb[0].mxu0 %v1120
      %v1214 = vpop.f32.mrb[0].mxu0
      %v1215 = vadd.f32 0.0, %v1214
      %v1216 = vpop.f32.mrb[0].mxu0
      %v1217 = vpop.f32.mrb[0].mxu0
      %v1218 = vadd.f32 0.0, %v1217
      %v1219 = vpop.f32.mrb[0].mxu0
      %1220 = vmatprep.mubr.bf16.mxu0 0
      %1221 = vmatmul.mubr.bf16.gmra.mrb[0].mxu0 %v1123
      %v1222 = vpop.f32.mrb[0].mxu0
      %v1223 = vadd.f32 0.0, %v1222
      %v1224 = vpop.f32.mrb[0].mxu0
      %v1225 = vpop.f32.mrb[0].mxu0
      %v1226 = vadd.f32 0.0, %v1225
      %v1227 = vpop.f32.mrb[0].mxu0
      %1228 = vmatprep.mubr.bf16.mxu0 0
      %1229 = vmatmul.mubr.bf16.gmra.mrb[0].mxu0 %v1126
      %v1230 = vpop.f32.mrb[0].mxu0
      %v1231 = vadd.f32 0.0, %v1230
      %v1232 = vpop.f32.mrb[0].mxu0
      %v1233 = vpop.f32.mrb[0].mxu0
      %v1234 = vadd.f32 0.0, %v1233
      %v1235 = vpop.f32.mrb[0].mxu0
      %1236 = vmatprep.mubr.bf16.mxu0 0
      %1237 = vmatmul.mubr.bf16.gmra.mrb[0].mxu0 %v1129
      %v1238 = vpop.f32.mrb[0].mxu0
      %v1239 = vadd.f32 0.0, %v1238
      %v1240 = vpop.f32.mrb[0].mxu0
      %v1241 = vpop.f32.mrb[0].mxu0
      %v1242 = vadd.f32 0.0, %v1241
      %v1243 = vpop.f32.mrb[0].mxu0
      %1244 = vmatprep.mubr.bf16.mxu0 0
      %1245 = vmatmul.mubr.bf16.gmra.mrb[0].mxu0 %v1132
      %v1246 = vpop.f32.mrb[0].mxu0
      %v1247 = vadd.f32 0.0, %v1246
      %v1248 = vpop.f32.mrb[0].mxu0
      %v1249 = vpop.f32.mrb[0].mxu0
      %v1250 = vadd.f32 0.0, %v1249
      %v1251 = vpop.f32.mrb[0].mxu0
      %1252 = vmatprep.mubr.bf16.mxu0 0
      %1253 = vmatmul.mubr.bf16.gmra.mrb[0].mxu0 %v1135
      %v1254 = vpop.f32.mrb[0].mxu0
      %v1255 = vadd.f32 0.0, %v1254
      %v1256 = vpop.f32.mrb[0].mxu0
      %v1257 = vpop.f32.mrb[0].mxu0
      %v1258 = vadd.f32 0.0, %v1257
      %v1259 = vpop.f32.mrb[0].mxu0
      %1260 = vmatprep.mubr.bf16.mxu0 0
      %1261 = vmatmul.mubr.bf16.gmra.mrb[0].mxu0 %v1138
      %v1262 = vpop.f32.mrb[0].mxu0
      %v1263 = vadd.f32 0.0, %v1262
      %v1264 = vpop.f32.mrb[0].mxu0
      %v1265 = vpop.f32.mrb[0].mxu0
      %v1266 = vadd.f32 0.0, %v1265
      %v1267 = vpop.f32.mrb[0].mxu0
      %1268 = vmatprep.mubr.bf16.mxu0 0
      %1269 = vmatmul.mubr.bf16.gmra.mrb[0].mxu0 %v1141
      %v1270 = vpop.f32.mrb[0].mxu0
      %v1271 = vadd.f32 0.0, %v1270
      %v1272 = vpop.f32.mrb[0].mxu0
      %v1273 = vpop.f32.mrb[0].mxu0
      %v1274 = vadd.f32 0.0, %v1273
      %v1275 = vpop.f32.mrb[0].mxu0
      %1276 = vmatprep.mubr.bf16.mxu0 0
      %1277 = vmatmul.mubr.bf16.gmra.mrb[0].mxu0 %v1144
      %v1278 = vpop.f32.mrb[0].mxu0
      %v1279 = vadd.f32 0.0, %v1278
      %v1280 = vpop.f32.mrb[0].mxu0
      %v1281 = vpop.f32.mrb[0].mxu0
      %v1282 = vadd.f32 0.0, %v1281
      %v1283 = vpop.f32.mrb[0].mxu0
      %1284 = vmatprep.mubr.bf16.mxu0 0
      %1285 = vmatmul.mubr.bf16.gmra.mrb[0].mxu0 %v1147
      %v1286 = vpop.f32.mrb[0].mxu0
      %v1287 = vadd.f32 0.0, %v1286
      %v1288 = vpop.f32.mrb[0].mxu0
      %v1289 = vpop.f32.mrb[0].mxu0
      %v1290 = vadd.f32 0.0, %v1289
      %v1291 = vpop.f32.mrb[0].mxu0
      %1292 = vmatprep.mubr.bf16.mxu0 0
      %1293 = vmatmul.mubr.bf16.gmra.mrb[0].mxu0 %v1150
      %v1294 = vpop.f32.mrb[0].mxu0
      %v1295 = vadd.f32 0.0, %v1294
      %v1296 = vpop.f32.mrb[0].mxu0
      %v1297 = vpop.f32.mrb[0].mxu0
      %v1298 = vadd.f32 0.0, %v1297
      %v1299 = vpop.f32.mrb[0].mxu0
      %1300 = vmatprep.mubr.bf16.mxu0 0
      %1301 = vmatmul.mubr.bf16.gmra.mrb[0].mxu0 %v1153
      %v1302 = vpop.f32.mrb[0].mxu0
      %v1303 = vadd.f32 0.0, %v1302
      %v1304 = vpop.f32.mrb[0].mxu0
      %v1305 = vpop.f32.mrb[0].mxu0
      %v1306 = vadd.f32 0.0, %v1305
      %v1307 = vpop.f32.mrb[0].mxu0
      %1308 = vmatprep.mubr.bf16.mxu0 0
      %1309 = vmatmul.mubr.bf16.gmra.mrb[0].mxu0 %v1156
      %v1310 = vpop.f32.mrb[0].mxu0
      %v1311 = vadd.f32 0.0, %v1310
      %v1312 = vpop.f32.mrb[0].mxu0
      %v1313 = vpop.f32.mrb[0].mxu0
      %v1314 = vadd.f32 0.0, %v1313
      %v1315 = vpop.f32.mrb[0].mxu0
      %1316 = vmatprep.mubr.bf16.mxu0 0
      %1317 = vmatmul.mubr.bf16.gmra.mrb[0].mxu0 %v1159
      %v1318 = vpop.f32.mrb[0].mxu0
      %v1319 = vadd.f32 0.0, %v1318
      %v1320 = vpop.f32.mrb[0].mxu0
      %v1321 = vpop.f32.mrb[0].mxu0
      %v1322 = vadd.f32 0.0, %v1321
      %v1323 = vpop.f32.mrb[0].mxu0
      %1324 = vdwg.mxu0
      %v1325 = vadd.f32 %v1030, %v1199
      %v1326 = vadd.f32 %v1031, %v1202
      %v1327 = vadd.f32 %v1032, %v1207
      %v1328 = vadd.f32 %v1033, %v1210
      %v1329 = vadd.f32 %v1034, %v1215
      %v1330 = vadd.f32 %v1035, %v1218
      %v1331 = vadd.f32 %v1036, %v1223
      %v1332 = vadd.f32 %v1037, %v1226
      %v1333 = vadd.f32 %v1038, %v1231
      %v1334 = vadd.f32 %v1039, %v1234
      %v1335 = vadd.f32 %v1040, %v1239
      %v1336 = vadd.f32 %v1041, %v1242
      %v1337 = vadd.f32 %v1042, %v1247
      %v1338 = vadd.f32 %v1043, %v1250
      %v1339 = vadd.f32 %v1044, %v1255
      %v1340 = vadd.f32 %v1045, %v1258
      %v1341 = vadd.f32 %v1046, %v1263
      %v1342 = vadd.f32 %v1047, %v1266
      %v1343 = vadd.f32 %v1048, %v1271
      %v1344 = vadd.f32 %v1049, %v1274
      %v1345 = vadd.f32 %v1050, %v1279
      %v1346 = vadd.f32 %v1051, %v1282
      %v1347 = vadd.f32 %v1052, %v1287
      %v1348 = vadd.f32 %v1053, %v1290
      %v1349 = vadd.f32 %v1054, %v1295
      %v1350 = vadd.f32 %v1055, %v1298
      %v1351 = vadd.f32 %v1056, %v1303
      %v1352 = vadd.f32 %v1057, %v1306
      %v1353 = vadd.f32 %v1058, %v1311
      %v1354 = vadd.f32 %v1059, %v1314
      %v1355 = vadd.f32 %v1060, %v1319
      %v1356 = vadd.f32 %v1061, %v1322
      %v1357 = vld [vmem:[%s1062 + $0x1] sm:$0xff]
      %v1358 = vld [vmem:[%s1062 + $0x9] sm:$0xff]
      %v1359 = vld [vmem:[%s1062 + $0x19] sm:$0xff]
      %v1360 = vld [vmem:[%s1062 + $0x21] sm:$0xff]
      %v1361 = vld [vmem:[%s1062 + $0x31] sm:$0xff]
      %v1362 = vld [vmem:[%s1062 + $0x39] sm:$0xff]
      %v1363 = vld [vmem:[%s1062 + $0x49] sm:$0xff]
      %v1364 = vld [vmem:[%s1062 + $0x51] sm:$0xff]
      %v1365 = vld [vmem:[%s1062 + $0x61] sm:$0xff]
      %v1366 = vld [vmem:[%s1062 + $0x69] sm:$0xff]
      %v1367 = vld [vmem:[%s1062 + $0x79] sm:$0xff]
      %v1368 = vld [vmem:[%s1062 + $0x81] sm:$0xff]
      %v1369 = vld [vmem:[%s1062 + $0x91] sm:$0xff]
      %v1370 = vld [vmem:[%s1062 + $0x99] sm:$0xff]
      %v1371 = vld [vmem:[%s1062 + $0xa9] sm:$0xff]
      %v1372 = vld [vmem:[%s1062 + $0xb1] sm:$0xff]
      %v1373 = vld [vmem:[%s1062 + $0xc1] sm:$0xff]
      %v1374 = vld [vmem:[%s1062 + $0xc9] sm:$0xff]
      %v1375 = vld [vmem:[%s1062 + $0xd9] sm:$0xff]
      %v1376 = vld [vmem:[%s1062 + $0xe1] sm:$0xff]
      %v1377 = vld [vmem:[%s1062 + $0xf1] sm:$0xff]
      %v1378 = vld [vmem:[%s1062 + $0xf9] sm:$0xff]
      %v1379 = vld [vmem:[%s1062 + $0x109] sm:$0xff]
      %v1380 = vld [vmem:[%s1062 + $0x111] sm:$0xff]
      %v1381 = vld [vmem:[%s1062 + $0x121] sm:$0xff]
      %v1382 = vld [vmem:[%s1062 + $0x129] sm:$0xff]
      %v1383 = vld [vmem:[%s1062 + $0x139] sm:$0xff]
      %v1384 = vld [vmem:[%s1062 + $0x141] sm:$0xff]
      %v1385 = vld [vmem:[%s1062 + $0x151] sm:$0xff]
      %v1386 = vld [vmem:[%s1062 + $0x159] sm:$0xff]
      %v1387 = vld [vmem:[%s1062 + $0x169] sm:$0xff]
      %v1388 = vld [vmem:[%s1062 + $0x171] sm:$0xff]
      %v1389 = vpack.c.bf16 %v1358, %v1357
      %v1390 = vpack.c.bf16 %v1360, %v1359
      %v1391 = vpack.c.bf16 %v1362, %v1361
      %v1392 = vpack.c.bf16 %v1364, %v1363
      %v1393 = vpack.c.bf16 %v1366, %v1365
      %v1394 = vpack.c.bf16 %v1368, %v1367
      %v1395 = vpack.c.bf16 %v1370, %v1369
      %v1396 = vpack.c.bf16 %v1372, %v1371
      %v1397 = vpack.c.bf16 %v1374, %v1373
      %v1398 = vpack.c.bf16 %v1376, %v1375
      %v1399 = vpack.c.bf16 %v1378, %v1377
      %v1400 = vpack.c.bf16 %v1380, %v1379
      %v1401 = vpack.c.bf16 %v1382, %v1381
      %v1402 = vpack.c.bf16 %v1384, %v1383
      %v1403 = vpack.c.bf16 %v1386, %v1385
      %v1404 = vpack.c.bf16 %v1388, %v1387
      %s1405 = scalar_lea.vmem %s1, 8
      %v1406 = vld [vmem:[%s1405] sm:$0x3]
      %v1408 = vsel %vm342, %v1389, 0
      %v1411 = vsel %vm342, %v1390, 0
      %v1414 = vsel %vm342, %v1391, 0
      %v1417 = vsel %vm342, %v1392, 0
      %v1420 = vsel %vm342, %v1393, 0
      %v1423 = vsel %vm342, %v1394, 0
      %v1426 = vsel %vm342, %v1395, 0
      %v1429 = vsel %vm342, %v1396, 0
      %v1432 = vsel %vm342, %v1397, 0
      %v1435 = vsel %vm342, %v1398, 0
      %v1438 = vsel %vm342, %v1399, 0
      %v1441 = vsel %vm342, %v1400, 0
      %v1444 = vsel %vm342, %v1401, 0
      %v1447 = vsel %vm342, %v1402, 0
      %v1450 = vsel %vm342, %v1403, 0
      %v1453 = vsel %vm342, %v1404, 0
      %v1456 = vsel %vm391, %v1406, 0
      %1458 = vmatprep.subr.bf16.mxu0 0
      %1459 = vmatpush1.bf16.msra.mxu0 %v1456
      %1460 = vmatprep.subr.bf16.mxu0 0
      %1461 = vmatpush1.bf16.msra.mxu0 0
      %1462 = vmatprep.subr.bf16.mxu0 0
      %1463 = vmatpush1.bf16.msra.mxu0 0
      %1464 = vmatprep.subr.bf16.mxu0 0
      %1465 = vmatpush1.bf16.msra.mxu0 0
      %1466 = vmatprep.subr.bf16.mxu0 0
      %1467 = vmatpush1.bf16.msra.mxu0 0
      %1468 = vmatprep.subr.bf16.mxu0 0
      %1469 = vmatpush1.bf16.msra.mxu0 0
      %1470 = vmatprep.subr.bf16.mxu0 0
      %1471 = vmatpush1.bf16.msra.mxu0 0
      %1472 = vmatprep.subr.bf16.mxu0 0
      %1473 = vmatpush1.bf16.msra.mxu0 0
      %1474 = vmatprep.subr.bf16.mxu0 0
      %1475 = vmatpush1.bf16.msra.mxu0 0
      %1476 = vmatprep.subr.bf16.mxu0 0
      %1477 = vmatpush1.bf16.msra.mxu0 0
      %1478 = vmatprep.subr.bf16.mxu0 0
      %1479 = vmatpush1.bf16.msra.mxu0 0
      %1480 = vmatprep.subr.bf16.mxu0 0
      %1481 = vmatpush1.bf16.msra.mxu0 0
      %1482 = vmatprep.subr.bf16.mxu0 0
      %1483 = vmatpush1.bf16.msra.mxu0 0
      %1484 = vmatprep.subr.bf16.mxu0 0
      %1485 = vmatpush1.bf16.msra.mxu0 0
      %1486 = vmatprep.subr.bf16.mxu0 0
      %1487 = vmatpush1.bf16.msra.mxu0 0
      %1488 = vmatprep.subr.bf16.mxu0 0
      %1489 = vmatpush1.bf16.msra.mxu0 0
      %1490 = vmatprep.mubr.bf16.mxu0 0
      %1491 = vmatmul.mubr.bf16.gmra.mrb[0].mxu0 %v1408
      %v1492 = vpop.f32.mrb[0].mxu0
      %v1493 = vadd.f32 0.0, %v1492
      %v1494 = vpop.f32.mrb[0].mxu0
      %v1495 = vpop.f32.mrb[0].mxu0
      %v1496 = vadd.f32 0.0, %v1495
      %v1497 = vpop.f32.mrb[0].mxu0
      %1498 = vmatprep.mubr.bf16.mxu0 0
      %1499 = vmatmul.mubr.bf16.gmra.mrb[0].mxu0 %v1411
      %v1500 = vpop.f32.mrb[0].mxu0
      %v1501 = vadd.f32 0.0, %v1500
      %v1502 = vpop.f32.mrb[0].mxu0
      %v1503 = vpop.f32.mrb[0].mxu0
      %v1504 = vadd.f32 0.0, %v1503
      %v1505 = vpop.f32.mrb[0].mxu0
      %1506 = vmatprep.mubr.bf16.mxu0 0
      %1507 = vmatmul.mubr.bf16.gmra.mrb[0].mxu0 %v1414
      %v1508 = vpop.f32.mrb[0].mxu0
      %v1509 = vadd.f32 0.0, %v1508
      %v1510 = vpop.f32.mrb[0].mxu0
      %v1511 = vpop.f32.mrb[0].mxu0
      %v1512 = vadd.f32 0.0, %v1511
      %v1513 = vpop.f32.mrb[0].mxu0
      %1514 = vmatprep.mubr.bf16.mxu0 0
      %1515 = vmatmul.mubr.bf16.gmra.mrb[0].mxu0 %v1417
      %v1516 = vpop.f32.mrb[0].mxu0
      %v1517 = vadd.f32 0.0, %v1516
      %v1518 = vpop.f32.mrb[0].mxu0
      %v1519 = vpop.f32.mrb[0].mxu0
      %v1520 = vadd.f32 0.0, %v1519
      %v1521 = vpop.f32.mrb[0].mxu0
      %1522 = vmatprep.mubr.bf16.mxu0 0
      %1523 = vmatmul.mubr.bf16.gmra.mrb[0].mxu0 %v1420
      %v1524 = vpop.f32.mrb[0].mxu0
      %v1525 = vadd.f32 0.0, %v1524
      %v1526 = vpop.f32.mrb[0].mxu0
      %v1527 = vpop.f32.mrb[0].mxu0
      %v1528 = vadd.f32 0.0, %v1527
      %v1529 = vpop.f32.mrb[0].mxu0
      %1530 = vmatprep.mubr.bf16.mxu0 0
      %1531 = vmatmul.mubr.bf16.gmra.mrb[0].mxu0 %v1423
      %v1532 = vpop.f32.mrb[0].mxu0
      %v1533 = vadd.f32 0.0, %v1532
      %v1534 = vpop.f32.mrb[0].mxu0
      %v1535 = vpop.f32.mrb[0].mxu0
      %v1536 = vadd.f32 0.0, %v1535
      %v1537 = vpop.f32.mrb[0].mxu0
      %1538 = vmatprep.mubr.bf16.mxu0 0
      %1539 = vmatmul.mubr.bf16.gmra.mrb[0].mxu0 %v1426
      %v1540 = vpop.f32.mrb[0].mxu0
      %v1541 = vadd.f32 0.0, %v1540
      %v1542 = vpop.f32.mrb[0].mxu0
      %v1543 = vpop.f32.mrb[0].mxu0
      %v1544 = vadd.f32 0.0, %v1543
      %v1545 = vpop.f32.mrb[0].mxu0
      %1546 = vmatprep.mubr.bf16.mxu0 0
      %1547 = vmatmul.mubr.bf16.gmra.mrb[0].mxu0 %v1429
      %v1548 = vpop.f32.mrb[0].mxu0
      %v1549 = vadd.f32 0.0, %v1548
      %v1550 = vpop.f32.mrb[0].mxu0
      %v1551 = vpop.f32.mrb[0].mxu0
      %v1552 = vadd.f32 0.0, %v1551
      %v1553 = vpop.f32.mrb[0].mxu0
      %1554 = vmatprep.mubr.bf16.mxu0 0
      %1555 = vmatmul.mubr.bf16.gmra.mrb[0].mxu0 %v1432
      %v1556 = vpop.f32.mrb[0].mxu0
      %v1557 = vadd.f32 0.0, %v1556
      %v1558 = vpop.f32.mrb[0].mxu0
      %v1559 = vpop.f32.mrb[0].mxu0
      %v1560 = vadd.f32 0.0, %v1559
      %v1561 = vpop.f32.mrb[0].mxu0
      %1562 = vmatprep.mubr.bf16.mxu0 0
      %1563 = vmatmul.mubr.bf16.gmra.mrb[0].mxu0 %v1435
      %v1564 = vpop.f32.mrb[0].mxu0
      %v1565 = vadd.f32 0.0, %v1564
      %v1566 = vpop.f32.mrb[0].mxu0
      %v1567 = vpop.f32.mrb[0].mxu0
      %v1568 = vadd.f32 0.0, %v1567
      %v1569 = vpop.f32.mrb[0].mxu0
      %1570 = vmatprep.mubr.bf16.mxu0 0
      %1571 = vmatmul.mubr.bf16.gmra.mrb[0].mxu0 %v1438
      %v1572 = vpop.f32.mrb[0].mxu0
      %v1573 = vadd.f32 0.0, %v1572
      %v1574 = vpop.f32.mrb[0].mxu0
      %v1575 = vpop.f32.mrb[0].mxu0
      %v1576 = vadd.f32 0.0, %v1575
      %v1577 = vpop.f32.mrb[0].mxu0
      %1578 = vmatprep.mubr.bf16.mxu0 0
      %1579 = vmatmul.mubr.bf16.gmra.mrb[0].mxu0 %v1441
      %v1580 = vpop.f32.mrb[0].mxu0
      %v1581 = vadd.f32 0.0, %v1580
      %v1582 = vpop.f32.mrb[0].mxu0
      %v1583 = vpop.f32.mrb[0].mxu0
      %v1584 = vadd.f32 0.0, %v1583
      %v1585 = vpop.f32.mrb[0].mxu0
      %1586 = vmatprep.mubr.bf16.mxu0 0
      %1587 = vmatmul.mubr.bf16.gmra.mrb[0].mxu0 %v1444
      %v1588 = vpop.f32.mrb[0].mxu0
      %v1589 = vadd.f32 0.0, %v1588
      %v1590 = vpop.f32.mrb[0].mxu0
      %v1591 = vpop.f32.mrb[0].mxu0
      %v1592 = vadd.f32 0.0, %v1591
      %v1593 = vpop.f32.mrb[0].mxu0
      %1594 = vmatprep.mubr.bf16.mxu0 0
      %1595 = vmatmul.mubr.bf16.gmra.mrb[0].mxu0 %v1447
      %v1596 = vpop.f32.mrb[0].mxu0
      %v1597 = vadd.f32 0.0, %v1596
      %v1598 = vpop.f32.mrb[0].mxu0
      %v1599 = vpop.f32.mrb[0].mxu0
      %v1600 = vadd.f32 0.0, %v1599
      %v1601 = vpop.f32.mrb[0].mxu0
      %1602 = vmatprep.mubr.bf16.mxu0 0
      %1603 = vmatmul.mubr.bf16.gmra.mrb[0].mxu0 %v1450
      %v1604 = vpop.f32.mrb[0].mxu0
      %v1605 = vadd.f32 0.0, %v1604
      %v1606 = vpop.f32.mrb[0].mxu0
      %v1607 = vpop.f32.mrb[0].mxu0
      %v1608 = vadd.f32 0.0, %v1607
      %v1609 = vpop.f32.mrb[0].mxu0
      %1610 = vmatprep.mubr.bf16.mxu0 0
      %1611 = vmatmul.mubr.bf16.gmra.mrb[0].mxu0 %v1453
      %v1612 = vpop.f32.mrb[0].mxu0
      %v1613 = vadd.f32 0.0, %v1612
      %v1614 = vpop.f32.mrb[0].mxu0
      %v1615 = vpop.f32.mrb[0].mxu0
      %v1616 = vadd.f32 0.0, %v1615
      %v1617 = vpop.f32.mrb[0].mxu0
      %1618 = vdwg.mxu0
      %v1619 = vadd.f32 %v1325, %v1493
      %v1620 = vadd.f32 %v1326, %v1496
      %v1621 = vadd.f32 %v1327, %v1501
      %v1622 = vadd.f32 %v1328, %v1504
      %v1623 = vadd.f32 %v1329, %v1509
      %v1624 = vadd.f32 %v1330, %v1512
      %v1625 = vadd.f32 %v1331, %v1517
      %v1626 = vadd.f32 %v1332, %v1520
      %v1627 = vadd.f32 %v1333, %v1525
      %v1628 = vadd.f32 %v1334, %v1528
      %v1629 = vadd.f32 %v1335, %v1533
      %v1630 = vadd.f32 %v1336, %v1536
      %v1631 = vadd.f32 %v1337, %v1541
      %v1632 = vadd.f32 %v1338, %v1544
      %v1633 = vadd.f32 %v1339, %v1549
      %v1634 = vadd.f32 %v1340, %v1552
      %v1635 = vadd.f32 %v1341, %v1557
      %v1636 = vadd.f32 %v1342, %v1560
      %v1637 = vadd.f32 %v1343, %v1565
      %v1638 = vadd.f32 %v1344, %v1568
      %v1639 = vadd.f32 %v1345, %v1573
      %v1640 = vadd.f32 %v1346, %v1576
      %v1641 = vadd.f32 %v1347, %v1581
      %v1642 = vadd.f32 %v1348, %v1584
      %v1643 = vadd.f32 %v1349, %v1589
      %v1644 = vadd.f32 %v1350, %v1592
      %v1645 = vadd.f32 %v1351, %v1597
      %v1646 = vadd.f32 %v1352, %v1600
      %v1647 = vadd.f32 %v1353, %v1605
      %v1648 = vadd.f32 %v1354, %v1608
      %v1649 = vadd.f32 %v1355, %v1613
      %v1650 = vadd.f32 %v1356, %v1616
      %v1651 = vld [vmem:[%s1062 + $0x2] sm:$0xff]
      %v1652 = vld [vmem:[%s1062 + $0xa] sm:$0xff]
      %v1653 = vld [vmem:[%s1062 + $0x1a] sm:$0xff]
      %v1654 = vld [vmem:[%s1062 + $0x22] sm:$0xff]
      %v1655 = vld [vmem:[%s1062 + $0x32] sm:$0xff]
      %v1656 = vld [vmem:[%s1062 + $0x3a] sm:$0xff]
      %v1657 = vld [vmem:[%s1062 + $0x4a] sm:$0xff]
      %v1658 = vld [vmem:[%s1062 + $0x52] sm:$0xff]
      %v1659 = vld [vmem:[%s1062 + $0x62] sm:$0xff]
      %v1660 = vld [vmem:[%s1062 + $0x6a] sm:$0xff]
      %v1661 = vld [vmem:[%s1062 + $0x7a] sm:$0xff]
      %v1662 = vld [vmem:[%s1062 + $0x82] sm:$0xff]
      %v1663 = vld [vmem:[%s1062 + $0x92] sm:$0xff]
      %v1664 = vld [vmem:[%s1062 + $0x9a] sm:$0xff]
      %v1665 = vld [vmem:[%s1062 + $0xaa] sm:$0xff]
      %v1666 = vld [vmem:[%s1062 + $0xb2] sm:$0xff]
      %v1667 = vld [vmem:[%s1062 + $0xc2] sm:$0xff]
      %v1668 = vld [vmem:[%s1062 + $0xca] sm:$0xff]
      %v1669 = vld [vmem:[%s1062 + $0xda] sm:$0xff]
      %v1670 = vld [vmem:[%s1062 + $0xe2] sm:$0xff]
      %v1671 = vld [vmem:[%s1062 + $0xf2] sm:$0xff]
      %v1672 = vld [vmem:[%s1062 + $0xfa] sm:$0xff]
      %v1673 = vld [vmem:[%s1062 + $0x10a] sm:$0xff]
      %v1674 = vld [vmem:[%s1062 + $0x112] sm:$0xff]
      %v1675 = vld [vmem:[%s1062 + $0x122] sm:$0xff]
      %v1676 = vld [vmem:[%s1062 + $0x12a] sm:$0xff]
      %v1677 = vld [vmem:[%s1062 + $0x13a] sm:$0xff]
      %v1678 = vld [vmem:[%s1062 + $0x142] sm:$0xff]
      %v1679 = vld [vmem:[%s1062 + $0x152] sm:$0xff]
      %v1680 = vld [vmem:[%s1062 + $0x15a] sm:$0xff]
      %v1681 = vld [vmem:[%s1062 + $0x16a] sm:$0xff]
      %v1682 = vld [vmem:[%s1062 + $0x172] sm:$0xff]
      %v1683 = vpack.c.bf16 %v1652, %v1651
      %v1684 = vpack.c.bf16 %v1654, %v1653
      %v1685 = vpack.c.bf16 %v1656, %v1655
      %v1686 = vpack.c.bf16 %v1658, %v1657
      %v1687 = vpack.c.bf16 %v1660, %v1659
      %v1688 = vpack.c.bf16 %v1662, %v1661
      %v1689 = vpack.c.bf16 %v1664, %v1663
      %v1690 = vpack.c.bf16 %v1666, %v1665
      %v1691 = vpack.c.bf16 %v1668, %v1667
      %v1692 = vpack.c.bf16 %v1670, %v1669
      %v1693 = vpack.c.bf16 %v1672, %v1671
      %v1694 = vpack.c.bf16 %v1674, %v1673
      %v1695 = vpack.c.bf16 %v1676, %v1675
      %v1696 = vpack.c.bf16 %v1678, %v1677
      %v1697 = vpack.c.bf16 %v1680, %v1679
      %v1698 = vpack.c.bf16 %v1682, %v1681
      %s1699 = scalar_lea.vmem %s1, 10
      %v1700 = vld [vmem:[%s1699] sm:$0x3]
      %v1702 = vsel %vm342, %v1683, 0
      %v1705 = vsel %vm342, %v1684, 0
      %v1708 = vsel %vm342, %v1685, 0
      %v1711 = vsel %vm342, %v1686, 0
      %v1714 = vsel %vm342, %v1687, 0
      %v1717 = vsel %vm342, %v1688, 0
      %v1720 = vsel %vm342, %v1689, 0
      %v1723 = vsel %vm342, %v1690, 0
      %v1726 = vsel %vm342, %v1691, 0
      %v1729 = vsel %vm342, %v1692, 0
      %v1732 = vsel %vm342, %v1693, 0
      %v1735 = vsel %vm342, %v1694, 0
      %v1738 = vsel %vm342, %v1695, 0
      %v1741 = vsel %vm342, %v1696, 0
      %v1744 = vsel %vm342, %v1697, 0
      %v1747 = vsel %vm342, %v1698, 0
      %v1750 = vsel %vm391, %v1700, 0
      %1752 = vmatprep.subr.bf16.mxu0 0
      %1753 = vmatpush1.bf16.msra.mxu0 %v1750
      %1754 = vmatprep.subr.bf16.mxu0 0
      %1755 = vmatpush1.bf16.msra.mxu0 0
      %1756 = vmatprep.subr.bf16.mxu0 0
      %1757 = vmatpush1.bf16.msra.mxu0 0
      %1758 = vmatprep.subr.bf16.mxu0 0
      %1759 = vmatpush1.bf16.msra.mxu0 0
      %1760 = vmatprep.subr.bf16.mxu0 0
      %1761 = vmatpush1.bf16.msra.mxu0 0
      %1762 = vmatprep.subr.bf16.mxu0 0
      %1763 = vmatpush1.bf16.msra.mxu0 0
      %1764 = vmatprep.subr.bf16.mxu0 0
      %1765 = vmatpush1.bf16.msra.mxu0 0
      %1766 = vmatprep.subr.bf16.mxu0 0
      %1767 = vmatpush1.bf16.msra.mxu0 0
      %1768 = vmatprep.subr.bf16.mxu0 0
      %1769 = vmatpush1.bf16.msra.mxu0 0
      %1770 = vmatprep.subr.bf16.mxu0 0
      %1771 = vmatpush1.bf16.msra.mxu0 0
      %1772 = vmatprep.subr.bf16.mxu0 0
      %1773 = vmatpush1.bf16.msra.mxu0 0
      %1774 = vmatprep.subr.bf16.mxu0 0
      %1775 = vmatpush1.bf16.msra.mxu0 0
      %1776 = vmatprep.subr.bf16.mxu0 0
      %1777 = vmatpush1.bf16.msra.mxu0 0
      %1778 = vmatprep.subr.bf16.mxu0 0
      %1779 = vmatpush1.bf16.msra.mxu0 0
      %1780 = vmatprep.subr.bf16.mxu0 0
      %1781 = vmatpush1.bf16.msra.mxu0 0
      %1782 = vmatprep.subr.bf16.mxu0 0
      %1783 = vmatpush1.bf16.msra.mxu0 0
      %1784 = vmatprep.mubr.bf16.mxu0 0
      %1785 = vmatmul.mubr.bf16.gmra.mrb[0].mxu0 %v1702
      %v1786 = vpop.f32.mrb[0].mxu0
      %v1787 = vadd.f32 0.0, %v1786
      %v1788 = vpop.f32.mrb[0].mxu0
      %v1789 = vpop.f32.mrb[0].mxu0
      %v1790 = vadd.f32 0.0, %v1789
      %v1791 = vpop.f32.mrb[0].mxu0
      %1792 = vmatprep.mubr.bf16.mxu0 0
      %1793 = vmatmul.mubr.bf16.gmra.mrb[0].mxu0 %v1705
      %v1794 = vpop.f32.mrb[0].mxu0
      %v1795 = vadd.f32 0.0, %v1794
      %v1796 = vpop.f32.mrb[0].mxu0
      %v1797 = vpop.f32.mrb[0].mxu0
      %v1798 = vadd.f32 0.0, %v1797
      %v1799 = vpop.f32.mrb[0].mxu0
      %1800 = vmatprep.mubr.bf16.mxu0 0
      %1801 = vmatmul.mubr.bf16.gmra.mrb[0].mxu0 %v1708
      %v1802 = vpop.f32.mrb[0].mxu0
      %v1803 = vadd.f32 0.0, %v1802
      %v1804 = vpop.f32.mrb[0].mxu0
      %v1805 = vpop.f32.mrb[0].mxu0
      %v1806 = vadd.f32 0.0, %v1805
      %v1807 = vpop.f32.mrb[0].mxu0
      %1808 = vmatprep.mubr.bf16.mxu0 0
      %1809 = vmatmul.mubr.bf16.gmra.mrb[0].mxu0 %v1711
      %v1810 = vpop.f32.mrb[0].mxu0
      %v1811 = vadd.f32 0.0, %v1810
      %v1812 = vpop.f32.mrb[0].mxu0
      %v1813 = vpop.f32.mrb[0].mxu0
      %v1814 = vadd.f32 0.0, %v1813
      %v1815 = vpop.f32.mrb[0].mxu0
      %1816 = vmatprep.mubr.bf16.mxu0 0
      %1817 = vmatmul.mubr.bf16.gmra.mrb[0].mxu0 %v1714
      %v1818 = vpop.f32.mrb[0].mxu0
      %v1819 = vadd.f32 0.0, %v1818
      %v1820 = vpop.f32.mrb[0].mxu0
      %v1821 = vpop.f32.mrb[0].mxu0
      %v1822 = vadd.f32 0.0, %v1821
      %v1823 = vpop.f32.mrb[0].mxu0
      %1824 = vmatprep.mubr.bf16.mxu0 0
      %1825 = vmatmul.mubr.bf16.gmra.mrb[0].mxu0 %v1717
      %v1826 = vpop.f32.mrb[0].mxu0
      %v1827 = vadd.f32 0.0, %v1826
      %v1828 = vpop.f32.mrb[0].mxu0
      %v1829 = vpop.f32.mrb[0].mxu0
      %v1830 = vadd.f32 0.0, %v1829
      %v1831 = vpop.f32.mrb[0].mxu0
      %1832 = vmatprep.mubr.bf16.mxu0 0
      %1833 = vmatmul.mubr.bf16.gmra.mrb[0].mxu0 %v1720
      %v1834 = vpop.f32.mrb[0].mxu0
      %v1835 = vadd.f32 0.0, %v1834
      %v1836 = vpop.f32.mrb[0].mxu0
      %v1837 = vpop.f32.mrb[0].mxu0
      %v1838 = vadd.f32 0.0, %v1837
      %v1839 = vpop.f32.mrb[0].mxu0
      %1840 = vmatprep.mubr.bf16.mxu0 0
      %1841 = vmatmul.mubr.bf16.gmra.mrb[0].mxu0 %v1723
      %v1842 = vpop.f32.mrb[0].mxu0
      %v1843 = vadd.f32 0.0, %v1842
      %v1844 = vpop.f32.mrb[0].mxu0
      %v1845 = vpop.f32.mrb[0].mxu0
      %v1846 = vadd.f32 0.0, %v1845
      %v1847 = vpop.f32.mrb[0].mxu0
      %1848 = vmatprep.mubr.bf16.mxu0 0
      %1849 = vmatmul.mubr.bf16.gmra.mrb[0].mxu0 %v1726
      %v1850 = vpop.f32.mrb[0].mxu0
      %v1851 = vadd.f32 0.0, %v1850
      %v1852 = vpop.f32.mrb[0].mxu0
      %v1853 = vpop.f32.mrb[0].mxu0
      %v1854 = vadd.f32 0.0, %v1853
      %v1855 = vpop.f32.mrb[0].mxu0
      %1856 = vmatprep.mubr.bf16.mxu0 0
      %1857 = vmatmul.mubr.bf16.gmra.mrb[0].mxu0 %v1729
      %v1858 = vpop.f32.mrb[0].mxu0
      %v1859 = vadd.f32 0.0, %v1858
      %v1860 = vpop.f32.mrb[0].mxu0
      %v1861 = vpop.f32.mrb[0].mxu0
      %v1862 = vadd.f32 0.0, %v1861
      %v1863 = vpop.f32.mrb[0].mxu0
      %1864 = vmatprep.mubr.bf16.mxu0 0
      %1865 = vmatmul.mubr.bf16.gmra.mrb[0].mxu0 %v1732
      %v1866 = vpop.f32.mrb[0].mxu0
      %v1867 = vadd.f32 0.0, %v1866
      %v1868 = vpop.f32.mrb[0].mxu0
      %v1869 = vpop.f32.mrb[0].mxu0
      %v1870 = vadd.f32 0.0, %v1869
      %v1871 = vpop.f32.mrb[0].mxu0
      %1872 = vmatprep.mubr.bf16.mxu0 0
      %1873 = vmatmul.mubr.bf16.gmra.mrb[0].mxu0 %v1735
      %v1874 = vpop.f32.mrb[0].mxu0
      %v1875 = vadd.f32 0.0, %v1874
      %v1876 = vpop.f32.mrb[0].mxu0
      %v1877 = vpop.f32.mrb[0].mxu0
      %v1878 = vadd.f32 0.0, %v1877
      %v1879 = vpop.f32.mrb[0].mxu0
      %1880 = vmatprep.mubr.bf16.mxu0 0
      %1881 = vmatmul.mubr.bf16.gmra.mrb[0].mxu0 %v1738
      %v1882 = vpop.f32.mrb[0].mxu0
      %v1883 = vadd.f32 0.0, %v1882
      %v1884 = vpop.f32.mrb[0].mxu0
      %v1885 = vpop.f32.mrb[0].mxu0
      %v1886 = vadd.f32 0.0, %v1885
      %v1887 = vpop.f32.mrb[0].mxu0
      %1888 = vmatprep.mubr.bf16.mxu0 0
      %1889 = vmatmul.mubr.bf16.gmra.mrb[0].mxu0 %v1741
      %v1890 = vpop.f32.mrb[0].mxu0
      %v1891 = vadd.f32 0.0, %v1890
      %v1892 = vpop.f32.mrb[0].mxu0
      %v1893 = vpop.f32.mrb[0].mxu0
      %v1894 = vadd.f32 0.0, %v1893
      %v1895 = vpop.f32.mrb[0].mxu0
      %1896 = vmatprep.mubr.bf16.mxu0 0
      %1897 = vmatmul.mubr.bf16.gmra.mrb[0].mxu0 %v1744
      %v1898 = vpop.f32.mrb[0].mxu0
      %v1899 = vadd.f32 0.0, %v1898
      %v1900 = vpop.f32.mrb[0].mxu0
      %v1901 = vpop.f32.mrb[0].mxu0
      %v1902 = vadd.f32 0.0, %v1901
      %v1903 = vpop.f32.mrb[0].mxu0
      %1904 = vmatprep.mubr.bf16.mxu0 0
      %1905 = vmatmul.mubr.bf16.gmra.mrb[0].mxu0 %v1747
      %v1906 = vpop.f32.mrb[0].mxu0
      %v1907 = vadd.f32 0.0, %v1906
      %v1908 = vpop.f32.mrb[0].mxu0
      %v1909 = vpop.f32.mrb[0].mxu0
      %v1910 = vadd.f32 0.0, %v1909
      %v1911 = vpop.f32.mrb[0].mxu0
      %1912 = vdwg.mxu0
      %v1913 = vadd.f32 %v1619, %v1787
      %v1914 = vadd.f32 %v1620, %v1790
      %v1915 = vadd.f32 %v1621, %v1795
      %v1916 = vadd.f32 %v1622, %v1798
      %v1917 = vadd.f32 %v1623, %v1803
      %v1918 = vadd.f32 %v1624, %v1806
      %v1919 = vadd.f32 %v1625, %v1811
      %v1920 = vadd.f32 %v1626, %v1814
      %v1921 = vadd.f32 %v1627, %v1819
      %v1922 = vadd.f32 %v1628, %v1822
      %v1923 = vadd.f32 %v1629, %v1827
      %v1924 = vadd.f32 %v1630, %v1830
      %v1925 = vadd.f32 %v1631, %v1835
      %v1926 = vadd.f32 %v1632, %v1838
      %v1927 = vadd.f32 %v1633, %v1843
      %v1928 = vadd.f32 %v1634, %v1846
      %v1929 = vadd.f32 %v1635, %v1851
      %v1930 = vadd.f32 %v1636, %v1854
      %v1931 = vadd.f32 %v1637, %v1859
      %v1932 = vadd.f32 %v1638, %v1862
      %v1933 = vadd.f32 %v1639, %v1867
      %v1934 = vadd.f32 %v1640, %v1870
      %v1935 = vadd.f32 %v1641, %v1875
      %v1936 = vadd.f32 %v1642, %v1878
      %v1937 = vadd.f32 %v1643, %v1883
      %v1938 = vadd.f32 %v1644, %v1886
      %v1939 = vadd.f32 %v1645, %v1891
      %v1940 = vadd.f32 %v1646, %v1894
      %v1941 = vadd.f32 %v1647, %v1899
      %v1942 = vadd.f32 %v1648, %v1902
      %v1943 = vadd.f32 %v1649, %v1907
      %v1944 = vadd.f32 %v1650, %v1910
      %s1945 = scalar_lea.vmem %s230, 48
      %v1946 = vld [vmem:[%s1945] sm:$0xff]
      %v1947 = vld [vmem:[%s1945 + $0x8] sm:$0xff]
      %v1948 = vld [vmem:[%s1945 + $0x18] sm:$0xff]
      %v1949 = vld [vmem:[%s1945 + $0x20] sm:$0xff]
      %v1950 = vld [vmem:[%s1945 + $0x30] sm:$0xff]
      %v1951 = vld [vmem:[%s1945 + $0x38] sm:$0xff]
      %v1952 = vld [vmem:[%s1945 + $0x48] sm:$0xff]
      %v1953 = vld [vmem:[%s1945 + $0x50] sm:$0xff]
      %v1954 = vld [vmem:[%s1945 + $0x60] sm:$0xff]
      %v1955 = vld [vmem:[%s1945 + $0x68] sm:$0xff]
      %v1956 = vld [vmem:[%s1945 + $0x78] sm:$0xff]
      %v1957 = vld [vmem:[%s1945 + $0x80] sm:$0xff]
      %v1958 = vld [vmem:[%s1945 + $0x90] sm:$0xff]
      %v1959 = vld [vmem:[%s1945 + $0x98] sm:$0xff]
      %v1960 = vld [vmem:[%s1945 + $0xa8] sm:$0xff]
      %v1961 = vld [vmem:[%s1945 + $0xb0] sm:$0xff]
      %v1962 = vld [vmem:[%s1945 + $0xc0] sm:$0xff]
      %v1963 = vld [vmem:[%s1945 + $0xc8] sm:$0xff]
      %v1964 = vld [vmem:[%s1945 + $0xd8] sm:$0xff]
      %v1965 = vld [vmem:[%s1945 + $0xe0] sm:$0xff]
      %v1966 = vld [vmem:[%s1945 + $0xf0] sm:$0xff]
      %v1967 = vld [vmem:[%s1945 + $0xf8] sm:$0xff]
      %v1968 = vld [vmem:[%s1945 + $0x108] sm:$0xff]
      %v1969 = vld [vmem:[%s1945 + $0x110] sm:$0xff]
      %v1970 = vld [vmem:[%s1945 + $0x120] sm:$0xff]
      %v1971 = vld [vmem:[%s1945 + $0x128] sm:$0xff]
      %v1972 = vld [vmem:[%s1945 + $0x138] sm:$0xff]
      %v1973 = vld [vmem:[%s1945 + $0x140] sm:$0xff]
      %v1974 = vld [vmem:[%s1945 + $0x150] sm:$0xff]
      %v1975 = vld [vmem:[%s1945 + $0x158] sm:$0xff]
      %v1976 = vld [vmem:[%s1945 + $0x168] sm:$0xff]
      %v1977 = vld [vmem:[%s1945 + $0x170] sm:$0xff]
      %v1978 = vpack.c.bf16 %v1947, %v1946
      %v1979 = vpack.c.bf16 %v1949, %v1948
      %v1980 = vpack.c.bf16 %v1951, %v1950
      %v1981 = vpack.c.bf16 %v1953, %v1952
      %v1982 = vpack.c.bf16 %v1955, %v1954
      %v1983 = vpack.c.bf16 %v1957, %v1956
      %v1984 = vpack.c.bf16 %v1959, %v1958
      %v1985 = vpack.c.bf16 %v1961, %v1960
      %v1986 = vpack.c.bf16 %v1963, %v1962
      %v1987 = vpack.c.bf16 %v1965, %v1964
      %v1988 = vpack.c.bf16 %v1967, %v1966
      %v1989 = vpack.c.bf16 %v1969, %v1968
      %v1990 = vpack.c.bf16 %v1971, %v1970
      %v1991 = vpack.c.bf16 %v1973, %v1972
      %v1992 = vpack.c.bf16 %v1975, %v1974
      %v1993 = vpack.c.bf16 %v1977, %v1976
      %s1994 = scalar_lea.vmem %s1, 12
      %v1995 = vld [vmem:[%s1994] sm:$0x3]
      %v1997 = vsel %vm342, %v1978, 0
      %v2000 = vsel %vm342, %v1979, 0
      %v2003 = vsel %vm342, %v1980, 0
      %v2006 = vsel %vm342, %v1981, 0
      %v2009 = vsel %vm342, %v1982, 0
      %v2012 = vsel %vm342, %v1983, 0
      %v2015 = vsel %vm342, %v1984, 0
      %v2018 = vsel %vm342, %v1985, 0
      %v2021 = vsel %vm342, %v1986, 0
      %v2024 = vsel %vm342, %v1987, 0
      %v2027 = vsel %vm342, %v1988, 0
      %v2030 = vsel %vm342, %v1989, 0
      %v2033 = vsel %vm342, %v1990, 0
      %v2036 = vsel %vm342, %v1991, 0
      %v2039 = vsel %vm342, %v1992, 0
      %v2042 = vsel %vm342, %v1993, 0
      %v2045 = vsel %vm391, %v1995, 0
      %2047 = vmatprep.subr.bf16.mxu0 0
      %2048 = vmatpush1.bf16.msra.mxu0 %v2045
      %2049 = vmatprep.subr.bf16.mxu0 0
      %2050 = vmatpush1.bf16.msra.mxu0 0
      %2051 = vmatprep.subr.bf16.mxu0 0
      %2052 = vmatpush1.bf16.msra.mxu0 0
      %2053 = vmatprep.subr.bf16.mxu0 0
      %2054 = vmatpush1.bf16.msra.mxu0 0
      %2055 = vmatprep.subr.bf16.mxu0 0
      %2056 = vmatpush1.bf16.msra.mxu0 0
      %2057 = vmatprep.subr.bf16.mxu0 0
      %2058 = vmatpush1.bf16.msra.mxu0 0
      %2059 = vmatprep.subr.bf16.mxu0 0
      %2060 = vmatpush1.bf16.msra.mxu0 0
      %2061 = vmatprep.subr.bf16.mxu0 0
      %2062 = vmatpush1.bf16.msra.mxu0 0
      %2063 = vmatprep.subr.bf16.mxu0 0
      %2064 = vmatpush1.bf16.msra.mxu0 0
      %2065 = vmatprep.subr.bf16.mxu0 0
      %2066 = vmatpush1.bf16.msra.mxu0 0
      %2067 = vmatprep.subr.bf16.mxu0 0
      %2068 = vmatpush1.bf16.msra.mxu0 0
      %2069 = vmatprep.subr.bf16.mxu0 0
      %2070 = vmatpush1.bf16.msra.mxu0 0
      %2071 = vmatprep.subr.bf16.mxu0 0
      %2072 = vmatpush1.bf16.msra.mxu0 0
      %2073 = vmatprep.subr.bf16.mxu0 0
      %2074 = vmatpush1.bf16.msra.mxu0 0
      %2075 = vmatprep.subr.bf16.mxu0 0
      %2076 = vmatpush1.bf16.msra.mxu0 0
      %2077 = vmatprep.subr.bf16.mxu0 0
      %2078 = vmatpush1.bf16.msra.mxu0 0
      %2079 = vmatprep.mubr.bf16.mxu0 0
      %2080 = vmatmul.mubr.bf16.gmra.mrb[0].mxu0 %v1997
      %v2081 = vpop.f32.mrb[0].mxu0
      %v2082 = vadd.f32 0.0, %v2081
      %v2083 = vpop.f32.mrb[0].mxu0
      %v2084 = vpop.f32.mrb[0].mxu0
      %v2085 = vadd.f32 0.0, %v2084
      %v2086 = vpop.f32.mrb[0].mxu0
      %2087 = vmatprep.mubr.bf16.mxu0 0
      %2088 = vmatmul.mubr.bf16.gmra.mrb[0].mxu0 %v2000
      %v2089 = vpop.f32.mrb[0].mxu0
      %v2090 = vadd.f32 0.0, %v2089
      %v2091 = vpop.f32.mrb[0].mxu0
      %v2092 = vpop.f32.mrb[0].mxu0
      %v2093 = vadd.f32 0.0, %v2092
      %v2094 = vpop.f32.mrb[0].mxu0
      %2095 = vmatprep.mubr.bf16.mxu0 0
      %2096 = vmatmul.mubr.bf16.gmra.mrb[0].mxu0 %v2003
      %v2097 = vpop.f32.mrb[0].mxu0
      %v2098 = vadd.f32 0.0, %v2097
      %v2099 = vpop.f32.mrb[0].mxu0
      %v2100 = vpop.f32.mrb[0].mxu0
      %v2101 = vadd.f32 0.0, %v2100
      %v2102 = vpop.f32.mrb[0].mxu0
      %2103 = vmatprep.mubr.bf16.mxu0 0
      %2104 = vmatmul.mubr.bf16.gmra.mrb[0].mxu0 %v2006
      %v2105 = vpop.f32.mrb[0].mxu0
      %v2106 = vadd.f32 0.0, %v2105
      %v2107 = vpop.f32.mrb[0].mxu0
      %v2108 = vpop.f32.mrb[0].mxu0
      %v2109 = vadd.f32 0.0, %v2108
      %v2110 = vpop.f32.mrb[0].mxu0
      %2111 = vmatprep.mubr.bf16.mxu0 0
      %2112 = vmatmul.mubr.bf16.gmra.mrb[0].mxu0 %v2009
      %v2113 = vpop.f32.mrb[0].mxu0
      %v2114 = vadd.f32 0.0, %v2113
      %v2115 = vpop.f32.mrb[0].mxu0
      %v2116 = vpop.f32.mrb[0].mxu0
      %v2117 = vadd.f32 0.0, %v2116
      %v2118 = vpop.f32.mrb[0].mxu0
      %2119 = vmatprep.mubr.bf16.mxu0 0
      %2120 = vmatmul.mubr.bf16.gmra.mrb[0].mxu0 %v2012
      %v2121 = vpop.f32.mrb[0].mxu0
      %v2122 = vadd.f32 0.0, %v2121
      %v2123 = vpop.f32.mrb[0].mxu0
      %v2124 = vpop.f32.mrb[0].mxu0
      %v2125 = vadd.f32 0.0, %v2124
      %v2126 = vpop.f32.mrb[0].mxu0
      %2127 = vmatprep.mubr.bf16.mxu0 0
      %2128 = vmatmul.mubr.bf16.gmra.mrb[0].mxu0 %v2015
      %v2129 = vpop.f32.mrb[0].mxu0
      %v2130 = vadd.f32 0.0, %v2129
      %v2131 = vpop.f32.mrb[0].mxu0
      %v2132 = vpop.f32.mrb[0].mxu0
      %v2133 = vadd.f32 0.0, %v2132
      %v2134 = vpop.f32.mrb[0].mxu0
      %2135 = vmatprep.mubr.bf16.mxu0 0
      %2136 = vmatmul.mubr.bf16.gmra.mrb[0].mxu0 %v2018
      %v2137 = vpop.f32.mrb[0].mxu0
      %v2138 = vadd.f32 0.0, %v2137
      %v2139 = vpop.f32.mrb[0].mxu0
      %v2140 = vpop.f32.mrb[0].mxu0
      %v2141 = vadd.f32 0.0, %v2140
      %v2142 = vpop.f32.mrb[0].mxu0
      %2143 = vmatprep.mubr.bf16.mxu0 0
      %2144 = vmatmul.mubr.bf16.gmra.mrb[0].mxu0 %v2021
      %v2145 = vpop.f32.mrb[0].mxu0
      %v2146 = vadd.f32 0.0, %v2145
      %v2147 = vpop.f32.mrb[0].mxu0
      %v2148 = vpop.f32.mrb[0].mxu0
      %v2149 = vadd.f32 0.0, %v2148
      %v2150 = vpop.f32.mrb[0].mxu0
      %2151 = vmatprep.mubr.bf16.mxu0 0
      %2152 = vmatmul.mubr.bf16.gmra.mrb[0].mxu0 %v2024
      %v2153 = vpop.f32.mrb[0].mxu0
      %v2154 = vadd.f32 0.0, %v2153
      %v2155 = vpop.f32.mrb[0].mxu0
      %v2156 = vpop.f32.mrb[0].mxu0
      %v2157 = vadd.f32 0.0, %v2156
      %v2158 = vpop.f32.mrb[0].mxu0
      %2159 = vmatprep.mubr.bf16.mxu0 0
      %2160 = vmatmul.mubr.bf16.gmra.mrb[0].mxu0 %v2027
      %v2161 = vpop.f32.mrb[0].mxu0
      %v2162 = vadd.f32 0.0, %v2161
      %v2163 = vpop.f32.mrb[0].mxu0
      %v2164 = vpop.f32.mrb[0].mxu0
      %v2165 = vadd.f32 0.0, %v2164
      %v2166 = vpop.f32.mrb[0].mxu0
      %2167 = vmatprep.mubr.bf16.mxu0 0
      %2168 = vmatmul.mubr.bf16.gmra.mrb[0].mxu0 %v2030
      %v2169 = vpop.f32.mrb[0].mxu0
      %v2170 = vadd.f32 0.0, %v2169
      %v2171 = vpop.f32.mrb[0].mxu0
      %v2172 = vpop.f32.mrb[0].mxu0
      %v2173 = vadd.f32 0.0, %v2172
      %v2174 = vpop.f32.mrb[0].mxu0
      %2175 = vmatprep.mubr.bf16.mxu0 0
      %2176 = vmatmul.mubr.bf16.gmra.mrb[0].mxu0 %v2033
      %v2177 = vpop.f32.mrb[0].mxu0
      %v2178 = vadd.f32 0.0, %v2177
      %v2179 = vpop.f32.mrb[0].mxu0
      %v2180 = vpop.f32.mrb[0].mxu0
      %v2181 = vadd.f32 0.0, %v2180
      %v2182 = vpop.f32.mrb[0].mxu0
      %2183 = vmatprep.mubr.bf16.mxu0 0
      %2184 = vmatmul.mubr.bf16.gmra.mrb[0].mxu0 %v2036
      %v2185 = vpop.f32.mrb[0].mxu0
      %v2186 = vadd.f32 0.0, %v2185
      %v2187 = vpop.f32.mrb[0].mxu0
      %v2188 = vpop.f32.mrb[0].mxu0
      %v2189 = vadd.f32 0.0, %v2188
      %v2190 = vpop.f32.mrb[0].mxu0
      %2191 = vmatprep.mubr.bf16.mxu0 0
      %2192 = vmatmul.mubr.bf16.gmra.mrb[0].mxu0 %v2039
      %v2193 = vpop.f32.mrb[0].mxu0
      %v2194 = vadd.f32 0.0, %v2193
      %v2195 = vpop.f32.mrb[0].mxu0
      %v2196 = vpop.f32.mrb[0].mxu0
      %v2197 = vadd.f32 0.0, %v2196
      %v2198 = vpop.f32.mrb[0].mxu0
      %2199 = vmatprep.mubr.bf16.mxu0 0
      %2200 = vmatmul.mubr.bf16.gmra.mrb[0].mxu0 %v2042
      %v2201 = vpop.f32.mrb[0].mxu0
      %v2202 = vadd.f32 0.0, %v2201
      %v2203 = vpop.f32.mrb[0].mxu0
      %v2204 = vpop.f32.mrb[0].mxu0
      %v2205 = vadd.f32 0.0, %v2204
      %v2206 = vpop.f32.mrb[0].mxu0
      %2207 = vdwg.mxu0
      %v2208 = vadd.f32 %v1913, %v2082
      %v2209 = vadd.f32 %v1914, %v2085
      %v2210 = vadd.f32 %v1915, %v2090
      %v2211 = vadd.f32 %v1916, %v2093
      %v2212 = vadd.f32 %v1917, %v2098
      %v2213 = vadd.f32 %v1918, %v2101
      %v2214 = vadd.f32 %v1919, %v2106
      %v2215 = vadd.f32 %v1920, %v2109
      %v2216 = vadd.f32 %v1921, %v2114
      %v2217 = vadd.f32 %v1922, %v2117
      %v2218 = vadd.f32 %v1923, %v2122
      %v2219 = vadd.f32 %v1924, %v2125
      %v2220 = vadd.f32 %v1925, %v2130
      %v2221 = vadd.f32 %v1926, %v2133
      %v2222 = vadd.f32 %v1927, %v2138
      %v2223 = vadd.f32 %v1928, %v2141
      %v2224 = vadd.f32 %v1929, %v2146
      %v2225 = vadd.f32 %v1930, %v2149
      %v2226 = vadd.f32 %v1931, %v2154
      %v2227 = vadd.f32 %v1932, %v2157
      %v2228 = vadd.f32 %v1933, %v2162
      %v2229 = vadd.f32 %v1934, %v2165
      %v2230 = vadd.f32 %v1935, %v2170
      %v2231 = vadd.f32 %v1936, %v2173
      %v2232 = vadd.f32 %v1937, %v2178
      %v2233 = vadd.f32 %v1938, %v2181
      %v2234 = vadd.f32 %v1939, %v2186
      %v2235 = vadd.f32 %v1940, %v2189
      %v2236 = vadd.f32 %v1941, %v2194
      %v2237 = vadd.f32 %v1942, %v2197
      %v2238 = vadd.f32 %v1943, %v2202
      %v2239 = vadd.f32 %v1944, %v2205
      %v2240 = vld [vmem:[%s1945 + $0x1] sm:$0xff]
      %v2241 = vld [vmem:[%s1945 + $0x9] sm:$0xff]
      %v2242 = vld [vmem:[%s1945 + $0x19] sm:$0xff]
      %v2243 = vld [vmem:[%s1945 + $0x21] sm:$0xff]
      %v2244 = vld [vmem:[%s1945 + $0x31] sm:$0xff]
      %v2245 = vld [vmem:[%s1945 + $0x39] sm:$0xff]
      %v2246 = vld [vmem:[%s1945 + $0x49] sm:$0xff]
      %v2247 = vld [vmem:[%s1945 + $0x51] sm:$0xff]
      %v2248 = vld [vmem:[%s1945 + $0x61] sm:$0xff]
      %v2249 = vld [vmem:[%s1945 + $0x69] sm:$0xff]
      %v2250 = vld [vmem:[%s1945 + $0x79] sm:$0xff]
      %v2251 = vld [vmem:[%s1945 + $0x81] sm:$0xff]
      %v2252 = vld [vmem:[%s1945 + $0x91] sm:$0xff]
      %v2253 = vld [vmem:[%s1945 + $0x99] sm:$0xff]
      %v2254 = vld [vmem:[%s1945 + $0xa9] sm:$0xff]
      %v2255 = vld [vmem:[%s1945 + $0xb1] sm:$0xff]
      %v2256 = vld [vmem:[%s1945 + $0xc1] sm:$0xff]
      %v2257 = vld [vmem:[%s1945 + $0xc9] sm:$0xff]
      %v2258 = vld [vmem:[%s1945 + $0xd9] sm:$0xff]
      %v2259 = vld [vmem:[%s1945 + $0xe1] sm:$0xff]
      %v2260 = vld [vmem:[%s1945 + $0xf1] sm:$0xff]
      %v2261 = vld [vmem:[%s1945 + $0xf9] sm:$0xff]
      %v2262 = vld [vmem:[%s1945 + $0x109] sm:$0xff]
      %v2263 = vld [vmem:[%s1945 + $0x111] sm:$0xff]
      %v2264 = vld [vmem:[%s1945 + $0x121] sm:$0xff]
      %v2265 = vld [vmem:[%s1945 + $0x129] sm:$0xff]
      %v2266 = vld [vmem:[%s1945 + $0x139] sm:$0xff]
      %v2267 = vld [vmem:[%s1945 + $0x141] sm:$0xff]
      %v2268 = vld [vmem:[%s1945 + $0x151] sm:$0xff]
      %v2269 = vld [vmem:[%s1945 + $0x159] sm:$0xff]
      %v2270 = vld [vmem:[%s1945 + $0x169] sm:$0xff]
      %v2271 = vld [vmem:[%s1945 + $0x171] sm:$0xff]
      %v2272 = vpack.c.bf16 %v2241, %v2240
      %v2273 = vpack.c.bf16 %v2243, %v2242
      %v2274 = vpack.c.bf16 %v2245, %v2244
      %v2275 = vpack.c.bf16 %v2247, %v2246
      %v2276 = vpack.c.bf16 %v2249, %v2248
      %v2277 = vpack.c.bf16 %v2251, %v2250
      %v2278 = vpack.c.bf16 %v2253, %v2252
      %v2279 = vpack.c.bf16 %v2255, %v2254
      %v2280 = vpack.c.bf16 %v2257, %v2256
      %v2281 = vpack.c.bf16 %v2259, %v2258
      %v2282 = vpack.c.bf16 %v2261, %v2260
      %v2283 = vpack.c.bf16 %v2263, %v2262
      %v2284 = vpack.c.bf16 %v2265, %v2264
      %v2285 = vpack.c.bf16 %v2267, %v2266
      %v2286 = vpack.c.bf16 %v2269, %v2268
      %v2287 = vpack.c.bf16 %v2271, %v2270
      %s2288 = scalar_lea.vmem %s1, 14
      %v2289 = vld [vmem:[%s2288] sm:$0x3]
      %v2291 = vsel %vm342, %v2272, 0
      %v2294 = vsel %vm342, %v2273, 0
      %v2297 = vsel %vm342, %v2274, 0
      %v2300 = vsel %vm342, %v2275, 0
      %v2303 = vsel %vm342, %v2276, 0
      %v2306 = vsel %vm342, %v2277, 0
      %v2309 = vsel %vm342, %v2278, 0
      %v2312 = vsel %vm342, %v2279, 0
      %v2315 = vsel %vm342, %v2280, 0
      %v2318 = vsel %vm342, %v2281, 0
      %v2321 = vsel %vm342, %v2282, 0
      %v2324 = vsel %vm342, %v2283, 0
      %v2327 = vsel %vm342, %v2284, 0
      %v2330 = vsel %vm342, %v2285, 0
      %v2333 = vsel %vm342, %v2286, 0
      %v2336 = vsel %vm342, %v2287, 0
      %v2339 = vsel %vm391, %v2289, 0
      %2341 = vmatprep.subr.bf16.mxu0 0
      %2342 = vmatpush1.bf16.msra.mxu0 %v2339
      %2343 = vmatprep.subr.bf16.mxu0 0
      %2344 = vmatpush1.bf16.msra.mxu0 0
      %2345 = vmatprep.subr.bf16.mxu0 0
      %2346 = vmatpush1.bf16.msra.mxu0 0
      %2347 = vmatprep.subr.bf16.mxu0 0
      %2348 = vmatpush1.bf16.msra.mxu0 0
      %2349 = vmatprep.subr.bf16.mxu0 0
      %2350 = vmatpush1.bf16.msra.mxu0 0
      %2351 = vmatprep.subr.bf16.mxu0 0
      %2352 = vmatpush1.bf16.msra.mxu0 0
      %2353 = vmatprep.subr.bf16.mxu0 0
      %2354 = vmatpush1.bf16.msra.mxu0 0
      %2355 = vmatprep.subr.bf16.mxu0 0
      %2356 = vmatpush1.bf16.msra.mxu0 0
      %2357 = vmatprep.subr.bf16.mxu0 0
      %2358 = vmatpush1.bf16.msra.mxu0 0
      %2359 = vmatprep.subr.bf16.mxu0 0
      %2360 = vmatpush1.bf16.msra.mxu0 0
      %2361 = vmatprep.subr.bf16.mxu0 0
      %2362 = vmatpush1.bf16.msra.mxu0 0
      %2363 = vmatprep.subr.bf16.mxu0 0
      %2364 = vmatpush1.bf16.msra.mxu0 0
      %2365 = vmatprep.subr.bf16.mxu0 0
      %2366 = vmatpush1.bf16.msra.mxu0 0
      %2367 = vmatprep.subr.bf16.mxu0 0
      %2368 = vmatpush1.bf16.msra.mxu0 0
      %2369 = vmatprep.subr.bf16.mxu0 0
      %2370 = vmatpush1.bf16.msra.mxu0 0
      %2371 = vmatprep.subr.bf16.mxu0 0
      %2372 = vmatpush1.bf16.msra.mxu0 0
      %2373 = vmatprep.mubr.bf16.mxu0 0
      %2374 = vmatmul.mubr.bf16.gmra.mrb[0].mxu0 %v2291
      %v2375 = vpop.f32.mrb[0].mxu0
      %v2376 = vadd.f32 0.0, %v2375
      %v2377 = vpop.f32.mrb[0].mxu0
      %v2378 = vpop.f32.mrb[0].mxu0
      %v2379 = vadd.f32 0.0, %v2378
      %v2380 = vpop.f32.mrb[0].mxu0
      %2381 = vmatprep.mubr.bf16.mxu0 0
      %2382 = vmatmul.mubr.bf16.gmra.mrb[0].mxu0 %v2294
      %v2383 = vpop.f32.mrb[0].mxu0
      %v2384 = vadd.f32 0.0, %v2383
      %v2385 = vpop.f32.mrb[0].mxu0
      %v2386 = vpop.f32.mrb[0].mxu0
      %v2387 = vadd.f32 0.0, %v2386
      %v2388 = vpop.f32.mrb[0].mxu0
      %2389 = vmatprep.mubr.bf16.mxu0 0
      %2390 = vmatmul.mubr.bf16.gmra.mrb[0].mxu0 %v2297
      %v2391 = vpop.f32.mrb[0].mxu0
      %v2392 = vadd.f32 0.0, %v2391
      %v2393 = vpop.f32.mrb[0].mxu0
      %v2394 = vpop.f32.mrb[0].mxu0
      %v2395 = vadd.f32 0.0, %v2394
      %v2396 = vpop.f32.mrb[0].mxu0
      %2397 = vmatprep.mubr.bf16.mxu0 0
      %2398 = vmatmul.mubr.bf16.gmra.mrb[0].mxu0 %v2300
      %v2399 = vpop.f32.mrb[0].mxu0
      %v2400 = vadd.f32 0.0, %v2399
      %v2401 = vpop.f32.mrb[0].mxu0
      %v2402 = vpop.f32.mrb[0].mxu0
      %v2403 = vadd.f32 0.0, %v2402
      %v2404 = vpop.f32.mrb[0].mxu0
      %2405 = vmatprep.mubr.bf16.mxu0 0
      %2406 = vmatmul.mubr.bf16.gmra.mrb[0].mxu0 %v2303
      %v2407 = vpop.f32.mrb[0].mxu0
      %v2408 = vadd.f32 0.0, %v2407
      %v2409 = vpop.f32.mrb[0].mxu0
      %v2410 = vpop.f32.mrb[0].mxu0
      %v2411 = vadd.f32 0.0, %v2410
      %v2412 = vpop.f32.mrb[0].mxu0
      %2413 = vmatprep.mubr.bf16.mxu0 0
      %2414 = vmatmul.mubr.bf16.gmra.mrb[0].mxu0 %v2306
      %v2415 = vpop.f32.mrb[0].mxu0
      %v2416 = vadd.f32 0.0, %v2415
      %v2417 = vpop.f32.mrb[0].mxu0
      %v2418 = vpop.f32.mrb[0].mxu0
      %v2419 = vadd.f32 0.0, %v2418
      %v2420 = vpop.f32.mrb[0].mxu0
      %2421 = vmatprep.mubr.bf16.mxu0 0
      %2422 = vmatmul.mubr.bf16.gmra.mrb[0].mxu0 %v2309
      %v2423 = vpop.f32.mrb[0].mxu0
      %v2424 = vadd.f32 0.0, %v2423
      %v2425 = vpop.f32.mrb[0].mxu0
      %v2426 = vpop.f32.mrb[0].mxu0
      %v2427 = vadd.f32 0.0, %v2426
      %v2428 = vpop.f32.mrb[0].mxu0
      %2429 = vmatprep.mubr.bf16.mxu0 0
      %2430 = vmatmul.mubr.bf16.gmra.mrb[0].mxu0 %v2312
      %v2431 = vpop.f32.mrb[0].mxu0
      %v2432 = vadd.f32 0.0, %v2431
      %v2433 = vpop.f32.mrb[0].mxu0
      %v2434 = vpop.f32.mrb[0].mxu0
      %v2435 = vadd.f32 0.0, %v2434
      %v2436 = vpop.f32.mrb[0].mxu0
      %2437 = vmatprep.mubr.bf16.mxu0 0
      %2438 = vmatmul.mubr.bf16.gmra.mrb[0].mxu0 %v2315
      %v2439 = vpop.f32.mrb[0].mxu0
      %v2440 = vadd.f32 0.0, %v2439
      %v2441 = vpop.f32.mrb[0].mxu0
      %v2442 = vpop.f32.mrb[0].mxu0
      %v2443 = vadd.f32 0.0, %v2442
      %v2444 = vpop.f32.mrb[0].mxu0
      %2445 = vmatprep.mubr.bf16.mxu0 0
      %2446 = vmatmul.mubr.bf16.gmra.mrb[0].mxu0 %v2318
      %v2447 = vpop.f32.mrb[0].mxu0
      %v2448 = vadd.f32 0.0, %v2447
      %v2449 = vpop.f32.mrb[0].mxu0
      %v2450 = vpop.f32.mrb[0].mxu0
      %v2451 = vadd.f32 0.0, %v2450
      %v2452 = vpop.f32.mrb[0].mxu0
      %2453 = vmatprep.mubr.bf16.mxu0 0
      %2454 = vmatmul.mubr.bf16.gmra.mrb[0].mxu0 %v2321
      %v2455 = vpop.f32.mrb[0].mxu0
      %v2456 = vadd.f32 0.0, %v2455
      %v2457 = vpop.f32.mrb[0].mxu0
      %v2458 = vpop.f32.mrb[0].mxu0
      %v2459 = vadd.f32 0.0, %v2458
      %v2460 = vpop.f32.mrb[0].mxu0
      %2461 = vmatprep.mubr.bf16.mxu0 0
      %2462 = vmatmul.mubr.bf16.gmra.mrb[0].mxu0 %v2324
      %v2463 = vpop.f32.mrb[0].mxu0
      %v2464 = vadd.f32 0.0, %v2463
      %v2465 = vpop.f32.mrb[0].mxu0
      %v2466 = vpop.f32.mrb[0].mxu0
      %v2467 = vadd.f32 0.0, %v2466
      %v2468 = vpop.f32.mrb[0].mxu0
      %2469 = vmatprep.mubr.bf16.mxu0 0
      %2470 = vmatmul.mubr.bf16.gmra.mrb[0].mxu0 %v2327
      %v2471 = vpop.f32.mrb[0].mxu0
      %v2472 = vadd.f32 0.0, %v2471
      %v2473 = vpop.f32.mrb[0].mxu0
      %v2474 = vpop.f32.mrb[0].mxu0
      %v2475 = vadd.f32 0.0, %v2474
      %v2476 = vpop.f32.mrb[0].mxu0
      %2477 = vmatprep.mubr.bf16.mxu0 0
      %2478 = vmatmul.mubr.bf16.gmra.mrb[0].mxu0 %v2330
      %v2479 = vpop.f32.mrb[0].mxu0
      %v2480 = vadd.f32 0.0, %v2479
      %v2481 = vpop.f32.mrb[0].mxu0
      %v2482 = vpop.f32.mrb[0].mxu0
      %v2483 = vadd.f32 0.0, %v2482
      %v2484 = vpop.f32.mrb[0].mxu0
      %2485 = vmatprep.mubr.bf16.mxu0 0
      %2486 = vmatmul.mubr.bf16.gmra.mrb[0].mxu0 %v2333
      %v2487 = vpop.f32.mrb[0].mxu0
      %v2488 = vadd.f32 0.0, %v2487
      %v2489 = vpop.f32.mrb[0].mxu0
      %v2490 = vpop.f32.mrb[0].mxu0
      %v2491 = vadd.f32 0.0, %v2490
      %v2492 = vpop.f32.mrb[0].mxu0
      %2493 = vmatprep.mubr.bf16.mxu0 0
      %2494 = vmatmul.mubr.bf16.gmra.mrb[0].mxu0 %v2336
      %v2495 = vpop.f32.mrb[0].mxu0
      %v2496 = vadd.f32 0.0, %v2495
      %v2497 = vpop.f32.mrb[0].mxu0
      %v2498 = vpop.f32.mrb[0].mxu0
      %v2499 = vadd.f32 0.0, %v2498
      %v2500 = vpop.f32.mrb[0].mxu0
      %2501 = vdwg.mxu0
      %v2502 = vadd.f32 %v2208, %v2376
      %v2503 = vadd.f32 %v2209, %v2379
      %v2504 = vadd.f32 %v2210, %v2384
      %v2505 = vadd.f32 %v2211, %v2387
      %v2506 = vadd.f32 %v2212, %v2392
      %v2507 = vadd.f32 %v2213, %v2395
      %v2508 = vadd.f32 %v2214, %v2400
      %v2509 = vadd.f32 %v2215, %v2403
      %v2510 = vadd.f32 %v2216, %v2408
      %v2511 = vadd.f32 %v2217, %v2411
      %v2512 = vadd.f32 %v2218, %v2416
      %v2513 = vadd.f32 %v2219, %v2419
      %v2514 = vadd.f32 %v2220, %v2424
      %v2515 = vadd.f32 %v2221, %v2427
      %v2516 = vadd.f32 %v2222, %v2432
      %v2517 = vadd.f32 %v2223, %v2435
      %v2518 = vadd.f32 %v2224, %v2440
      %v2519 = vadd.f32 %v2225, %v2443
      %v2520 = vadd.f32 %v2226, %v2448
      %v2521 = vadd.f32 %v2227, %v2451
      %v2522 = vadd.f32 %v2228, %v2456
      %v2523 = vadd.f32 %v2229, %v2459
      %v2524 = vadd.f32 %v2230, %v2464
      %v2525 = vadd.f32 %v2231, %v2467
      %v2526 = vadd.f32 %v2232, %v2472
      %v2527 = vadd.f32 %v2233, %v2475
      %v2528 = vadd.f32 %v2234, %v2480
      %v2529 = vadd.f32 %v2235, %v2483
      %v2530 = vadd.f32 %v2236, %v2488
      %v2531 = vadd.f32 %v2237, %v2491
      %v2532 = vadd.f32 %v2238, %v2496
      %v2533 = vadd.f32 %v2239, %v2499
      %v2534 = vld [vmem:[%s1945 + $0x2] sm:$0xff]
      %v2535 = vld [vmem:[%s1945 + $0xa] sm:$0xff]
      %v2536 = vld [vmem:[%s1945 + $0x1a] sm:$0xff]
      %v2537 = vld [vmem:[%s1945 + $0x22] sm:$0xff]
      %v2538 = vld [vmem:[%s1945 + $0x32] sm:$0xff]
      %v2539 = vld [vmem:[%s1945 + $0x3a] sm:$0xff]
      %v2540 = vld [vmem:[%s1945 + $0x4a] sm:$0xff]
      %v2541 = vld [vmem:[%s1945 + $0x52] sm:$0xff]
      %v2542 = vld [vmem:[%s1945 + $0x62] sm:$0xff]
      %v2543 = vld [vmem:[%s1945 + $0x6a] sm:$0xff]
      %v2544 = vld [vmem:[%s1945 + $0x7a] sm:$0xff]
      %v2545 = vld [vmem:[%s1945 + $0x82] sm:$0xff]
      %v2546 = vld [vmem:[%s1945 + $0x92] sm:$0xff]
      %v2547 = vld [vmem:[%s1945 + $0x9a] sm:$0xff]
      %v2548 = vld [vmem:[%s1945 + $0xaa] sm:$0xff]
      %v2549 = vld [vmem:[%s1945 + $0xb2] sm:$0xff]
      %v2550 = vld [vmem:[%s1945 + $0xc2] sm:$0xff]
      %v2551 = vld [vmem:[%s1945 + $0xca] sm:$0xff]
      %v2552 = vld [vmem:[%s1945 + $0xda] sm:$0xff]
      %v2553 = vld [vmem:[%s1945 + $0xe2] sm:$0xff]
      %v2554 = vld [vmem:[%s1945 + $0xf2] sm:$0xff]
      %v2555 = vld [vmem:[%s1945 + $0xfa] sm:$0xff]
      %v2556 = vld [vmem:[%s1945 + $0x10a] sm:$0xff]
      %v2557 = vld [vmem:[%s1945 + $0x112] sm:$0xff]
      %v2558 = vld [vmem:[%s1945 + $0x122] sm:$0xff]
      %v2559 = vld [vmem:[%s1945 + $0x12a] sm:$0xff]
      %v2560 = vld [vmem:[%s1945 + $0x13a] sm:$0xff]
      %v2561 = vld [vmem:[%s1945 + $0x142] sm:$0xff]
      %v2562 = vld [vmem:[%s1945 + $0x152] sm:$0xff]
      %v2563 = vld [vmem:[%s1945 + $0x15a] sm:$0xff]
      %v2564 = vld [vmem:[%s1945 + $0x16a] sm:$0xff]
      %v2565 = vld [vmem:[%s1945 + $0x172] sm:$0xff]
      %v2566 = vpack.c.bf16 %v2535, %v2534
      %v2567 = vpack.c.bf16 %v2537, %v2536
      %v2568 = vpack.c.bf16 %v2539, %v2538
      %v2569 = vpack.c.bf16 %v2541, %v2540
      %v2570 = vpack.c.bf16 %v2543, %v2542
      %v2571 = vpack.c.bf16 %v2545, %v2544
      %v2572 = vpack.c.bf16 %v2547, %v2546
      %v2573 = vpack.c.bf16 %v2549, %v2548
      %v2574 = vpack.c.bf16 %v2551, %v2550
      %v2575 = vpack.c.bf16 %v2553, %v2552
      %v2576 = vpack.c.bf16 %v2555, %v2554
      %v2577 = vpack.c.bf16 %v2557, %v2556
      %v2578 = vpack.c.bf16 %v2559, %v2558
      %v2579 = vpack.c.bf16 %v2561, %v2560
      %v2580 = vpack.c.bf16 %v2563, %v2562
      %v2581 = vpack.c.bf16 %v2565, %v2564
      %s2582 = scalar_lea.vmem %s1, 16
      %v2583 = vld [vmem:[%s2582] sm:$0x3]
      %v2585 = vsel %vm342, %v2566, 0
      %v2588 = vsel %vm342, %v2567, 0
      %v2591 = vsel %vm342, %v2568, 0
      %v2594 = vsel %vm342, %v2569, 0
      %v2597 = vsel %vm342, %v2570, 0
      %v2600 = vsel %vm342, %v2571, 0
      %v2603 = vsel %vm342, %v2572, 0
      %v2606 = vsel %vm342, %v2573, 0
      %v2609 = vsel %vm342, %v2574, 0
      %v2612 = vsel %vm342, %v2575, 0
      %v2615 = vsel %vm342, %v2576, 0
      %v2618 = vsel %vm342, %v2577, 0
      %v2621 = vsel %vm342, %v2578, 0
      %v2624 = vsel %vm342, %v2579, 0
      %v2627 = vsel %vm342, %v2580, 0
      %v2630 = vsel %vm342, %v2581, 0
      %v2633 = vsel %vm391, %v2583, 0
      %2635 = vmatprep.subr.bf16.mxu0 0
      %2636 = vmatpush1.bf16.msra.mxu0 %v2633
      %2637 = vmatprep.subr.bf16.mxu0 0
      %2638 = vmatpush1.bf16.msra.mxu0 0
      %2639 = vmatprep.subr.bf16.mxu0 0
      %2640 = vmatpush1.bf16.msra.mxu0 0
      %2641 = vmatprep.subr.bf16.mxu0 0
      %2642 = vmatpush1.bf16.msra.mxu0 0
      %2643 = vmatprep.subr.bf16.mxu0 0
      %2644 = vmatpush1.bf16.msra.mxu0 0
      %2645 = vmatprep.subr.bf16.mxu0 0
      %2646 = vmatpush1.bf16.msra.mxu0 0
      %2647 = vmatprep.subr.bf16.mxu0 0
      %2648 = vmatpush1.bf16.msra.mxu0 0
      %2649 = vmatprep.subr.bf16.mxu0 0
      %2650 = vmatpush1.bf16.msra.mxu0 0
      %2651 = vmatprep.subr.bf16.mxu0 0
      %2652 = vmatpush1.bf16.msra.mxu0 0
      %2653 = vmatprep.subr.bf16.mxu0 0
      %2654 = vmatpush1.bf16.msra.mxu0 0
      %2655 = vmatprep.subr.bf16.mxu0 0
      %2656 = vmatpush1.bf16.msra.mxu0 0
      %2657 = vmatprep.subr.bf16.mxu0 0
      %2658 = vmatpush1.bf16.msra.mxu0 0
      %2659 = vmatprep.subr.bf16.mxu0 0
      %2660 = vmatpush1.bf16.msra.mxu0 0
      %2661 = vmatprep.subr.bf16.mxu0 0
      %2662 = vmatpush1.bf16.msra.mxu0 0
      %2663 = vmatprep.subr.bf16.mxu0 0
      %2664 = vmatpush1.bf16.msra.mxu0 0
      %2665 = vmatprep.subr.bf16.mxu0 0
      %2666 = vmatpush1.bf16.msra.mxu0 0
      %2667 = vmatprep.mubr.bf16.mxu0 0
      %2668 = vmatmul.mubr.bf16.gmra.mrb[0].mxu0 %v2585
      %v2669 = vpop.f32.mrb[0].mxu0
      %v2670 = vadd.f32 0.0, %v2669
      %v2671 = vpop.f32.mrb[0].mxu0
      %v2672 = vpop.f32.mrb[0].mxu0
      %v2673 = vadd.f32 0.0, %v2672
      %v2674 = vpop.f32.mrb[0].mxu0
      %2675 = vmatprep.mubr.bf16.mxu0 0
      %2676 = vmatmul.mubr.bf16.gmra.mrb[0].mxu0 %v2588
      %v2677 = vpop.f32.mrb[0].mxu0
      %v2678 = vadd.f32 0.0, %v2677
      %v2679 = vpop.f32.mrb[0].mxu0
      %v2680 = vpop.f32.mrb[0].mxu0
      %v2681 = vadd.f32 0.0, %v2680
      %v2682 = vpop.f32.mrb[0].mxu0
      %2683 = vmatprep.mubr.bf16.mxu0 0
      %2684 = vmatmul.mubr.bf16.gmra.mrb[0].mxu0 %v2591
      %v2685 = vpop.f32.mrb[0].mxu0
      %v2686 = vadd.f32 0.0, %v2685
      %v2687 = vpop.f32.mrb[0].mxu0
      %v2688 = vpop.f32.mrb[0].mxu0
      %v2689 = vadd.f32 0.0, %v2688
      %v2690 = vpop.f32.mrb[0].mxu0
      %2691 = vmatprep.mubr.bf16.mxu0 0
      %2692 = vmatmul.mubr.bf16.gmra.mrb[0].mxu0 %v2594
      %v2693 = vpop.f32.mrb[0].mxu0
      %v2694 = vadd.f32 0.0, %v2693
      %v2695 = vpop.f32.mrb[0].mxu0
      %v2696 = vpop.f32.mrb[0].mxu0
      %v2697 = vadd.f32 0.0, %v2696
      %v2698 = vpop.f32.mrb[0].mxu0
      %2699 = vmatprep.mubr.bf16.mxu0 0
      %2700 = vmatmul.mubr.bf16.gmra.mrb[0].mxu0 %v2597
      %v2701 = vpop.f32.mrb[0].mxu0
      %v2702 = vadd.f32 0.0, %v2701
      %v2703 = vpop.f32.mrb[0].mxu0
      %v2704 = vpop.f32.mrb[0].mxu0
      %v2705 = vadd.f32 0.0, %v2704
      %v2706 = vpop.f32.mrb[0].mxu0
      %2707 = vmatprep.mubr.bf16.mxu0 0
      %2708 = vmatmul.mubr.bf16.gmra.mrb[0].mxu0 %v2600
      %v2709 = vpop.f32.mrb[0].mxu0
      %v2710 = vadd.f32 0.0, %v2709
      %v2711 = vpop.f32.mrb[0].mxu0
      %v2712 = vpop.f32.mrb[0].mxu0
      %v2713 = vadd.f32 0.0, %v2712
      %v2714 = vpop.f32.mrb[0].mxu0
      %2715 = vmatprep.mubr.bf16.mxu0 0
      %2716 = vmatmul.mubr.bf16.gmra.mrb[0].mxu0 %v2603
      %v2717 = vpop.f32.mrb[0].mxu0
      %v2718 = vadd.f32 0.0, %v2717
      %v2719 = vpop.f32.mrb[0].mxu0
      %v2720 = vpop.f32.mrb[0].mxu0
      %v2721 = vadd.f32 0.0, %v2720
      %v2722 = vpop.f32.mrb[0].mxu0
      %2723 = vmatprep.mubr.bf16.mxu0 0
      %2724 = vmatmul.mubr.bf16.gmra.mrb[0].mxu0 %v2606
      %v2725 = vpop.f32.mrb[0].mxu0
      %v2726 = vadd.f32 0.0, %v2725
      %v2727 = vpop.f32.mrb[0].mxu0
      %v2728 = vpop.f32.mrb[0].mxu0
      %v2729 = vadd.f32 0.0, %v2728
      %v2730 = vpop.f32.mrb[0].mxu0
      %2731 = vmatprep.mubr.bf16.mxu0 0
      %2732 = vmatmul.mubr.bf16.gmra.mrb[0].mxu0 %v2609
      %v2733 = vpop.f32.mrb[0].mxu0
      %v2734 = vadd.f32 0.0, %v2733
      %v2735 = vpop.f32.mrb[0].mxu0
      %v2736 = vpop.f32.mrb[0].mxu0
      %v2737 = vadd.f32 0.0, %v2736
      %v2738 = vpop.f32.mrb[0].mxu0
      %2739 = vmatprep.mubr.bf16.mxu0 0
      %2740 = vmatmul.mubr.bf16.gmra.mrb[0].mxu0 %v2612
      %v2741 = vpop.f32.mrb[0].mxu0
      %v2742 = vadd.f32 0.0, %v2741
      %v2743 = vpop.f32.mrb[0].mxu0
      %v2744 = vpop.f32.mrb[0].mxu0
      %v2745 = vadd.f32 0.0, %v2744
      %v2746 = vpop.f32.mrb[0].mxu0
      %2747 = vmatprep.mubr.bf16.mxu0 0
      %2748 = vmatmul.mubr.bf16.gmra.mrb[0].mxu0 %v2615
      %v2749 = vpop.f32.mrb[0].mxu0
      %v2750 = vadd.f32 0.0, %v2749
      %v2751 = vpop.f32.mrb[0].mxu0
      %v2752 = vpop.f32.mrb[0].mxu0
      %v2753 = vadd.f32 0.0, %v2752
      %v2754 = vpop.f32.mrb[0].mxu0
      %2755 = vmatprep.mubr.bf16.mxu0 0
      %2756 = vmatmul.mubr.bf16.gmra.mrb[0].mxu0 %v2618
      %v2757 = vpop.f32.mrb[0].mxu0
      %v2758 = vadd.f32 0.0, %v2757
      %v2759 = vpop.f32.mrb[0].mxu0
      %v2760 = vpop.f32.mrb[0].mxu0
      %v2761 = vadd.f32 0.0, %v2760
      %v2762 = vpop.f32.mrb[0].mxu0
      %2763 = vmatprep.mubr.bf16.mxu0 0
      %2764 = vmatmul.mubr.bf16.gmra.mrb[0].mxu0 %v2621
      %v2765 = vpop.f32.mrb[0].mxu0
      %v2766 = vadd.f32 0.0, %v2765
      %v2767 = vpop.f32.mrb[0].mxu0
      %v2768 = vpop.f32.mrb[0].mxu0
      %v2769 = vadd.f32 0.0, %v2768
      %v2770 = vpop.f32.mrb[0].mxu0
      %2771 = vmatprep.mubr.bf16.mxu0 0
      %2772 = vmatmul.mubr.bf16.gmra.mrb[0].mxu0 %v2624
      %v2773 = vpop.f32.mrb[0].mxu0
      %v2774 = vadd.f32 0.0, %v2773
      %v2775 = vpop.f32.mrb[0].mxu0
      %v2776 = vpop.f32.mrb[0].mxu0
      %v2777 = vadd.f32 0.0, %v2776
      %v2778 = vpop.f32.mrb[0].mxu0
      %2779 = vmatprep.mubr.bf16.mxu0 0
      %2780 = vmatmul.mubr.bf16.gmra.mrb[0].mxu0 %v2627
      %v2781 = vpop.f32.mrb[0].mxu0
      %v2782 = vadd.f32 0.0, %v2781
      %v2783 = vpop.f32.mrb[0].mxu0
      %v2784 = vpop.f32.mrb[0].mxu0
      %v2785 = vadd.f32 0.0, %v2784
      %v2786 = vpop.f32.mrb[0].mxu0
      %2787 = vmatprep.mubr.bf16.mxu0 0
      %2788 = vmatmul.mubr.bf16.gmra.mrb[0].mxu0 %v2630
      %v2789 = vpop.f32.mrb[0].mxu0
      %v2790 = vadd.f32 0.0, %v2789
      %v2791 = vpop.f32.mrb[0].mxu0
      %v2792 = vpop.f32.mrb[0].mxu0
      %v2793 = vadd.f32 0.0, %v2792
      %v2794 = vpop.f32.mrb[0].mxu0
      %2795 = vdwg.mxu0
      %v2796 = vadd.f32 %v2502, %v2670
      %v2797 = vadd.f32 %v2503, %v2673
      %v2798 = vadd.f32 %v2504, %v2678
      %v2799 = vadd.f32 %v2505, %v2681
      %v2800 = vadd.f32 %v2506, %v2686
      %v2801 = vadd.f32 %v2507, %v2689
      %v2802 = vadd.f32 %v2508, %v2694
      %v2803 = vadd.f32 %v2509, %v2697
      %v2804 = vadd.f32 %v2510, %v2702
      %v2805 = vadd.f32 %v2511, %v2705
      %v2806 = vadd.f32 %v2512, %v2710
      %v2807 = vadd.f32 %v2513, %v2713
      %v2808 = vadd.f32 %v2514, %v2718
      %v2809 = vadd.f32 %v2515, %v2721
      %v2810 = vadd.f32 %v2516, %v2726
      %v2811 = vadd.f32 %v2517, %v2729
      %v2812 = vadd.f32 %v2518, %v2734
      %v2813 = vadd.f32 %v2519, %v2737
      %v2814 = vadd.f32 %v2520, %v2742
      %v2815 = vadd.f32 %v2521, %v2745
      %v2816 = vadd.f32 %v2522, %v2750
      %v2817 = vadd.f32 %v2523, %v2753
      %v2818 = vadd.f32 %v2524, %v2758
      %v2819 = vadd.f32 %v2525, %v2761
      %v2820 = vadd.f32 %v2526, %v2766
      %v2821 = vadd.f32 %v2527, %v2769
      %v2822 = vadd.f32 %v2528, %v2774
      %v2823 = vadd.f32 %v2529, %v2777
      %v2824 = vadd.f32 %v2530, %v2782
      %v2825 = vadd.f32 %v2531, %v2785
      %v2826 = vadd.f32 %v2532, %v2790
      %v2827 = vadd.f32 %v2533, %v2793
      %v2828 = vld [vmem:[%s2] sm:$0x1]
      %v2830 = vlaneseq
      %v2831 = vshrl.u32 %v2830, 7
      %v2832 = vsub.s32 0, %v2831
      %v2833 = vrot.slane %v2828, %v2832
      %v2835 = vadd.f32 %v2796, %v2833
      %v2836 = vadd.f32 %v2797, %v2833
      %v2837 = vadd.f32 %v2798, %v2833
      %v2838 = vadd.f32 %v2799, %v2833
      %v2839 = vadd.f32 %v2800, %v2833
      %v2840 = vadd.f32 %v2801, %v2833
      %v2841 = vadd.f32 %v2802, %v2833
      %v2842 = vadd.f32 %v2803, %v2833
      %v2843 = vadd.f32 %v2804, %v2833
      %v2844 = vadd.f32 %v2805, %v2833
      %v2845 = vadd.f32 %v2806, %v2833
      %v2846 = vadd.f32 %v2807, %v2833
      %v2847 = vadd.f32 %v2808, %v2833
      %v2848 = vadd.f32 %v2809, %v2833
      %v2849 = vadd.f32 %v2810, %v2833
      %v2850 = vadd.f32 %v2811, %v2833
      %v2851 = vadd.f32 %v2812, %v2833
      %v2852 = vadd.f32 %v2813, %v2833
      %v2853 = vadd.f32 %v2814, %v2833
      %v2854 = vadd.f32 %v2815, %v2833
      %v2855 = vadd.f32 %v2816, %v2833
      %v2856 = vadd.f32 %v2817, %v2833
      %v2857 = vadd.f32 %v2818, %v2833
      %v2858 = vadd.f32 %v2819, %v2833
      %v2859 = vadd.f32 %v2820, %v2833
      %v2860 = vadd.f32 %v2821, %v2833
      %v2861 = vadd.f32 %v2822, %v2833
      %v2862 = vadd.f32 %v2823, %v2833
      %v2863 = vadd.f32 %v2824, %v2833
      %v2864 = vadd.f32 %v2825, %v2833
      %v2865 = vadd.f32 %v2826, %v2833
      %v2866 = vadd.f32 %v2827, %v2833
      %v2867 = vadd.f32 %v2835, %v2836
      %v2868 = vadd.f32 %v2867, %v2837
      %v2869 = vadd.f32 %v2868, %v2838
      %v2870 = vadd.f32 %v2869, %v2839
      %v2871 = vadd.f32 %v2870, %v2840
      %v2872 = vadd.f32 %v2871, %v2841
      %v2873 = vadd.f32 %v2872, %v2842
      %v2874 = vadd.f32 %v2873, %v2843
      %v2875 = vadd.f32 %v2874, %v2844
      %v2876 = vadd.f32 %v2875, %v2845
      %v2877 = vadd.f32 %v2876, %v2846
      %v2878 = vadd.f32 %v2877, %v2847
      %v2879 = vadd.f32 %v2878, %v2848
      %v2880 = vadd.f32 %v2879, %v2849
      %v2881 = vadd.f32 %v2880, %v2850
      %v2882 = vadd.f32 %v2881, %v2851
      %v2883 = vadd.f32 %v2882, %v2852
      %v2884 = vadd.f32 %v2883, %v2853
      %v2885 = vadd.f32 %v2884, %v2854
      %v2886 = vadd.f32 %v2885, %v2855
      %v2887 = vadd.f32 %v2886, %v2856
      %v2888 = vadd.f32 %v2887, %v2857
      %v2889 = vadd.f32 %v2888, %v2858
      %v2890 = vadd.f32 %v2889, %v2859
      %v2891 = vadd.f32 %v2890, %v2860
      %v2892 = vadd.f32 %v2891, %v2861
      %v2893 = vadd.f32 %v2892, %v2862
      %v2894 = vadd.f32 %v2893, %v2863
      %v2895 = vadd.f32 %v2894, %v2864
      %v2896 = vadd.f32 %v2895, %v2865
      %v2897 = vadd.f32 %v2896, %v2866
      %v2898 = vrot.slane %v2897, 4
      %v2899 = vadd.f32 %v2897, %v2898
      %v2900 = vrot.slane %v2899, 2
      %v2901 = vadd.f32 %v2899, %v2900
      %v2902 = vrot.slane %v2901, 1
      %v2903 = vadd.f32 %v2901, %v2902
      %2904 = vst [vmem:[%s238] sm:$0x1] %v2903
      %v2905 = vmul.f32 %v2835, %v2835
      %v2906 = vmul.f32 %v2836, %v2836
      %v2907 = vmul.f32 %v2837, %v2837
      %v2908 = vmul.f32 %v2838, %v2838
      %v2909 = vmul.f32 %v2839, %v2839
      %v2910 = vmul.f32 %v2840, %v2840
      %v2911 = vmul.f32 %v2841, %v2841
      %v2912 = vmul.f32 %v2842, %v2842
      %v2913 = vmul.f32 %v2843, %v2843
      %v2914 = vmul.f32 %v2844, %v2844
      %v2915 = vmul.f32 %v2845, %v2845
      %v2916 = vmul.f32 %v2846, %v2846
      %v2917 = vmul.f32 %v2847, %v2847
      %v2918 = vmul.f32 %v2848, %v2848
      %v2919 = vmul.f32 %v2849, %v2849
      %v2920 = vmul.f32 %v2850, %v2850
      %v2921 = vmul.f32 %v2851, %v2851
      %v2922 = vmul.f32 %v2852, %v2852
      %v2923 = vmul.f32 %v2853, %v2853
      %v2924 = vmul.f32 %v2854, %v2854
      %v2925 = vmul.f32 %v2855, %v2855
      %v2926 = vmul.f32 %v2856, %v2856
      %v2927 = vmul.f32 %v2857, %v2857
      %v2928 = vmul.f32 %v2858, %v2858
      %v2929 = vmul.f32 %v2859, %v2859
      %v2930 = vmul.f32 %v2860, %v2860
      %v2931 = vmul.f32 %v2861, %v2861
      %v2932 = vmul.f32 %v2862, %v2862
      %v2933 = vmul.f32 %v2863, %v2863
      %v2934 = vmul.f32 %v2864, %v2864
      %v2935 = vmul.f32 %v2865, %v2865
      %v2936 = vmul.f32 %v2866, %v2866
      %v2937 = vadd.f32 %v2905, %v2906
      %v2938 = vadd.f32 %v2937, %v2907
      %v2939 = vadd.f32 %v2938, %v2908
      %v2940 = vadd.f32 %v2939, %v2909
      %v2941 = vadd.f32 %v2940, %v2910
      %v2942 = vadd.f32 %v2941, %v2911
      %v2943 = vadd.f32 %v2942, %v2912
      %v2944 = vadd.f32 %v2943, %v2913
      %v2945 = vadd.f32 %v2944, %v2914
      %v2946 = vadd.f32 %v2945, %v2915
      %v2947 = vadd.f32 %v2946, %v2916
      %v2948 = vadd.f32 %v2947, %v2917
      %v2949 = vadd.f32 %v2948, %v2918
      %v2950 = vadd.f32 %v2949, %v2919
      %v2951 = vadd.f32 %v2950, %v2920
      %v2952 = vadd.f32 %v2951, %v2921
      %v2953 = vadd.f32 %v2952, %v2922
      %v2954 = vadd.f32 %v2953, %v2923
      %v2955 = vadd.f32 %v2954, %v2924
      %v2956 = vadd.f32 %v2955, %v2925
      %v2957 = vadd.f32 %v2956, %v2926
      %v2958 = vadd.f32 %v2957, %v2927
      %v2959 = vadd.f32 %v2958, %v2928
      %v2960 = vadd.f32 %v2959, %v2929
      %v2961 = vadd.f32 %v2960, %v2930
      %v2962 = vadd.f32 %v2961, %v2931
      %v2963 = vadd.f32 %v2962, %v2932
      %v2964 = vadd.f32 %v2963, %v2933
      %v2965 = vadd.f32 %v2964, %v2934
      %v2966 = vadd.f32 %v2965, %v2935
      %v2967 = vadd.f32 %v2966, %v2936
      %v2968 = vrot.slane %v2967, 4
      %v2969 = vadd.f32 %v2967, %v2968
      %v2970 = vrot.slane %v2969, 2
      %v2971 = vadd.f32 %v2969, %v2970
      %v2972 = vrot.slane %v2971, 1
      %v2973 = vadd.f32 %v2971, %v2972
      %2974 = vst [vmem:[%s241] sm:$0x1] %v2973
      %2975 = vst [vmem:[%s235] sm:$0xff] 0.0
      %2976 = vst [vmem:[%s235 + $0x8] sm:$0xff] 0.0
      %2977 = vst [vmem:[%s235 + $0x10] sm:$0x3] 0.0
      %2978 = vst [vmem:[%s235 + $0x18] sm:$0xff] 0.0
      %2979 = vst [vmem:[%s235 + $0x20] sm:$0xff] 0.0
      %2980 = vst [vmem:[%s235 + $0x28] sm:$0x3] 0.0
      %2981 = vst [vmem:[%s235 + $0x30] sm:$0xff] 0.0
      %2982 = vst [vmem:[%s235 + $0x38] sm:$0xff] 0.0
      %2983 = vst [vmem:[%s235 + $0x40] sm:$0x3] 0.0
      %2984 = vst [vmem:[%s235 + $0x48] sm:$0xff] 0.0
      %2985 = vst [vmem:[%s235 + $0x50] sm:$0xff] 0.0
      %2986 = vst [vmem:[%s235 + $0x58] sm:$0x3] 0.0
      %2987 = vst [vmem:[%s235 + $0x60] sm:$0xff] 0.0
      %2988 = vst [vmem:[%s235 + $0x68] sm:$0xff] 0.0
      %2989 = vst [vmem:[%s235 + $0x70] sm:$0x3] 0.0
      %2990 = vst [vmem:[%s235 + $0x78] sm:$0xff] 0.0
      %2991 = vst [vmem:[%s235 + $0x80] sm:$0xff] 0.0
      %2992 = vst [vmem:[%s235 + $0x88] sm:$0x3] 0.0
      %2993 = vst [vmem:[%s235 + $0x90] sm:$0xff] 0.0
      %2994 = vst [vmem:[%s235 + $0x98] sm:$0xff] 0.0
      %2995 = vst [vmem:[%s235 + $0xa0] sm:$0x3] 0.0
      %2996 = vst [vmem:[%s235 + $0xa8] sm:$0xff] 0.0
      %2997 = vst [vmem:[%s235 + $0xb0] sm:$0xff] 0.0
      %2998 = vst [vmem:[%s235 + $0xb8] sm:$0x3] 0.0
      %2999 = vst [vmem:[%s235 + $0xc0] sm:$0xff] 0.0
      %3000 = vst [vmem:[%s235 + $0xc8] sm:$0xff] 0.0
      %3001 = vst [vmem:[%s235 + $0xd0] sm:$0x3] 0.0
      %3002 = vst [vmem:[%s235 + $0xd8] sm:$0xff] 0.0
      %3003 = vst [vmem:[%s235 + $0xe0] sm:$0xff] 0.0
      %3004 = vst [vmem:[%s235 + $0xe8] sm:$0x3] 0.0
      %3005 = vst [vmem:[%s235 + $0xf0] sm:$0xff] 0.0
      %3006 = vst [vmem:[%s235 + $0xf8] sm:$0xff] 0.0
      %3007 = vst [vmem:[%s235 + $0x100] sm:$0x3] 0.0
      %3008 = vst [vmem:[%s235 + $0x108] sm:$0xff] 0.0
      %3009 = vst [vmem:[%s235 + $0x110] sm:$0xff] 0.0
      %3010 = vst [vmem:[%s235 + $0x118] sm:$0x3] 0.0
      %3011 = vst [vmem:[%s235 + $0x120] sm:$0xff] 0.0
      %3012 = vst [vmem:[%s235 + $0x128] sm:$0xff] 0.0
      %3013 = vst [vmem:[%s235 + $0x130] sm:$0x3] 0.0
      %3014 = vst [vmem:[%s235 + $0x138] sm:$0xff] 0.0
      %3015 = vst [vmem:[%s235 + $0x140] sm:$0xff] 0.0
      %3016 = vst [vmem:[%s235 + $0x148] sm:$0x3] 0.0
      %3017 = vst [vmem:[%s235 + $0x150] sm:$0xff] 0.0
      %3018 = vst [vmem:[%s235 + $0x158] sm:$0xff] 0.0
      %3019 = vst [vmem:[%s235 + $0x160] sm:$0x3] 0.0
      %3020 = vst [vmem:[%s235 + $0x168] sm:$0xff] 0.0
      %3021 = vst [vmem:[%s235 + $0x170] sm:$0xff] 0.0
      %3022 = vst [vmem:[%s235 + $0x178] sm:$0x3] 0.0
      %3023 = vst [vmem:[%s235 + $0x180] sm:$0xff] 0.0
      %3024 = vst [vmem:[%s235 + $0x188] sm:$0xff] 0.0
      %3025 = vst [vmem:[%s235 + $0x190] sm:$0x3] 0.0
      %3026 = vst [vmem:[%s235 + $0x198] sm:$0xff] 0.0
      %3027 = vst [vmem:[%s235 + $0x1a0] sm:$0xff] 0.0
      %3028 = vst [vmem:[%s235 + $0x1a8] sm:$0x3] 0.0
      %3029 = vst [vmem:[%s235] sm:$0xff] %v2835
      %3030 = vst [vmem:[%s235 + $0x8] sm:$0xff] %v2836
      %3031 = vst [vmem:[%s235 + $0x18] sm:$0xff] %v2837
      %3032 = vst [vmem:[%s235 + $0x20] sm:$0xff] %v2838
      %3033 = vst [vmem:[%s235 + $0x30] sm:$0xff] %v2839
      %3034 = vst [vmem:[%s235 + $0x38] sm:$0xff] %v2840
      %3035 = vst [vmem:[%s235 + $0x48] sm:$0xff] %v2841
      %3036 = vst [vmem:[%s235 + $0x50] sm:$0xff] %v2842
      %3037 = vst [vmem:[%s235 + $0x60] sm:$0xff] %v2843
      %3038 = vst [vmem:[%s235 + $0x68] sm:$0xff] %v2844
      %3039 = vst [vmem:[%s235 + $0x78] sm:$0xff] %v2845
      %3040 = vst [vmem:[%s235 + $0x80] sm:$0xff] %v2846
      %3041 = vst [vmem:[%s235 + $0x90] sm:$0xff] %v2847
      %3042 = vst [vmem:[%s235 + $0x98] sm:$0xff] %v2848
      %3043 = vst [vmem:[%s235 + $0xa8] sm:$0xff] %v2849
      %3044 = vst [vmem:[%s235 + $0xb0] sm:$0xff] %v2850
      %3045 = vst [vmem:[%s235 + $0xc0] sm:$0xff] %v2851
      %3046 = vst [vmem:[%s235 + $0xc8] sm:$0xff] %v2852
      %3047 = vst [vmem:[%s235 + $0xd8] sm:$0xff] %v2853
      %3048 = vst [vmem:[%s235 + $0xe0] sm:$0xff] %v2854
      %3049 = vst [vmem:[%s235 + $0xf0] sm:$0xff] %v2855
      %3050 = vst [vmem:[%s235 + $0xf8] sm:$0xff] %v2856
      %3051 = vst [vmem:[%s235 + $0x108] sm:$0xff] %v2857
      %3052 = vst [vmem:[%s235 + $0x110] sm:$0xff] %v2858
      %3053 = vst [vmem:[%s235 + $0x120] sm:$0xff] %v2859
      %3054 = vst [vmem:[%s235 + $0x128] sm:$0xff] %v2860
      %3055 = vst [vmem:[%s235 + $0x138] sm:$0xff] %v2861
      %3056 = vst [vmem:[%s235 + $0x140] sm:$0xff] %v2862
      %3057 = vst [vmem:[%s235 + $0x150] sm:$0xff] %v2863
      %3058 = vst [vmem:[%s235 + $0x158] sm:$0xff] %v2864
      %3059 = vst [vmem:[%s235 + $0x168] sm:$0xff] %v2865
      %3060 = vst [vmem:[%s235 + $0x170] sm:$0xff] %v2866
      %p3061 = scmp.lt.s32.totalorder %s17, 1
      %s3062 = scalar_select %p3061, %s17, 1
      %s3063 = smul.addr %s3062, 54
      %s3064 = smul.addr %s3063, 8
      %s3065 = scalar_lea.vmem %s3, %s3064
      %p3066 = scmp.lt.s32.totalorder %s17, 1
      %s3067 = scalar_select %p3066, %s17, 1
      %s3068 = scalar_lea.vmem %s4, %s3067
      %p3069 = scmp.lt.s32.totalorder %s17, 1
      %s3070 = scalar_select %p3069, %s17, 1
      %s3071 = scalar_lea.vmem %s5, %s3070
      // Predicated region
      $region33: #{convblock_forward.2} parent=31 // pred_check
        %p3072 = pneg %p103
      $region34: #{convblock_forward.2} parent=31 // pred_check_branch
        %3074 = sbr.rel (%p3072) target = $region36
      $region35: #{convblock_forward.2} parent=31 // pred_region
        _
      $region36: #{convblock_forward.2} parent=31 // pred_fallthru
        _
      // Predicated region
      $region37: #{convblock_forward.2} parent=31 // pred_check
        %p3075 = pneg %p129
      $region38: #{convblock_forward.2} parent=31 // pred_check_branch
        %3077 = sbr.rel (%p3075) target = $region40
      $region39: #{convblock_forward.2} parent=31 // pred_region
        _
      $region40: #{convblock_forward.2} parent=31 // pred_fallthru
        _
      // Predicated region
      $region41: #{convblock_forward.2} parent=31 // pred_check
        %p3078 = pneg %p155
      $region42: #{convblock_forward.2} parent=31 // pred_check_branch
        %3080 = sbr.rel (%p3078) target = $region44
      $region43: #{convblock_forward.2} parent=31 // pred_region
        _
      $region44: #{convblock_forward.2} parent=31 // pred_fallthru
        _
    $region32: #{convblock_forward.2} parent=5 // pred_fallthru
      _
    %p3081 = scmp.le.s32.totalorder 2, %s12
    // Predicated region
    $region45: #{convblock_forward.2} parent=5 // pred_check
      %p3082 = pneg %p3081
    $region46: #{convblock_forward.2} parent=5 // pred_check_branch
      %3084 = sbr.rel (%p3082) target = $region48
    $region47: #{convblock_forward.2} parent=5 // pred_region
      %s3085 = ssub.s32 %s12, 2
      // Predicated region
      $region49: #{convblock_forward.2} parent=47 // pred_check
        %p3086 = pneg %p109
      $region50: #{convblock_forward.2} parent=47 // pred_check_branch
        %3088 = sbr.rel (%p3086) target = $region52
      $region51: #{convblock_forward.2} parent=47 // pred_region
        %p3089 = scmp.lt.s32.totalorder %s18, 1
        %s3090 = scalar_select %p3089, %s18, 1
        %s3091 = smul.addr %s3090, 54
        %s3092 = smul.addr %s3091, 8
        %s3093 = scalar_lea.vmem %s3, %s3092
      $region52: #{convblock_forward.2} parent=47 // pred_fallthru
        _
      // Predicated region
      $region53: #{convblock_forward.2} parent=47 // pred_check
        %p3094 = pneg %p135
      $region54: #{convblock_forward.2} parent=47 // pred_check_branch
        %3096 = sbr.rel (%p3094) target = $region56
      $region55: #{convblock_forward.2} parent=47 // pred_region
        %p3097 = scmp.lt.s32.totalorder %s18, 1
        %s3098 = scalar_select %p3097, %s18, 1
        %s3099 = scalar_lea.vmem %s4, %s3098
      $region56: #{convblock_forward.2} parent=47 // pred_fallthru
        _
      // Predicated region
      $region57: #{convblock_forward.2} parent=47 // pred_check
        %p3100 = pneg %p161
      $region58: #{convblock_forward.2} parent=47 // pred_check_branch
        %3102 = sbr.rel (%p3100) target = $region60
      $region59: #{convblock_forward.2} parent=47 // pred_region
        %p3103 = scmp.lt.s32.totalorder %s18, 1
        %s3104 = scalar_select %p3103, %s18, 1
        %s3105 = scalar_lea.vmem %s5, %s3104
      $region60: #{convblock_forward.2} parent=47 // pred_fallthru
        _
    $region48: #{convblock_forward.2} parent=5 // pred_fallthru
      _
  $region6: #{convblock_forward.2} parent=0 // loop_footer
    %s16 = sadd.s32 1, %s12
  $region7: #{convblock_forward.2} parent=0 // loop_footer_branch
    %11 = sbr.rel target = $region3
  $region8: #{convblock_forward.2} parent=0 // loop_exit
    _

</llo_original>
